<compile_context>
chip_gen: v6e
topology: v6e:2x2x1
jax: 0.10.0
libtpu: 0.0.40
codegen_flags: <defaults>
</compile_context>

<pallas_src>
import jax
import jax.numpy as jnp
import numpy as np
from jax.experimental import pallas as pl
from jax.experimental.pallas import tpu as pltpu


# ----------------------------------------------------------------------------
# Kernel: one grid step == one chunk of C characters
#         (C x [L fused GRU cells]) -> one deferred decoder matmul + tile store
# ----------------------------------------------------------------------------
def rnn_chunk_kernel(nvalid_ref,   # SMEM (1,) int32 scalar-prefetch: total valid tokens T
                     x_ref,        # (C, Hp)       embedding rows for this chunk (lane-padded)
                     w_ih_ref,     # (L, Hp, 3*Hp) fused per-gate input weights (lane-aligned gate blocks)
                     w_hh_ref,     # (L, Hp, 3*Hp) fused per-gate hidden weights
                     b_i_ref,      # (L, 1, 3*Hp)  [b_ir+b_hr | b_iz+b_hz | b_in]
                     b_hn_ref,     # (L, 1, Hp)    b_hn (stays inside r * (...))
                     wdec_ref,     # (Hp, O_pad)   decoder weight, transposed + padded
                     bdec_ref,     # (1, O_pad)
                     h0_ref,       # (L, 1, Hp)    initial hidden state (lane-padded)
                     out_ref,      # (C, O_pad)    logits tile for this chunk
                     hout_ref,     # (L, 1, Hp)    final hidden state (written at last chunk)
                     h_scratch):   # VMEM (L, 1, Hp) f32 — resident recurrent state across chunks
    c = pl.program_id(0)
    C = x_ref.shape[0]
    L, _, Hp = h_scratch.shape

    # Load the incoming hidden state into the resident scratch once.
    @pl.when(c == 0)
    def _():
        h_scratch[...] = h0_ref[...].astype(jnp.float32)

    # Number of valid steps remaining from the start of this chunk.
    n_valid = nvalid_ref[0] - c * C

    # Keep the per-layer hidden state in registers for the whole chunk.
    hs = [h_scratch[l] for l in range(L)]                 # each (1, Hp) f32

    tops = []
    for j in range(C):                                    # static unroll over the chunk
        valid = j < n_valid                               # traced scalar predicate
        x = x_ref[pl.ds(j, 1), :].astype(jnp.float32)     # (1, Hp)

        for l in range(L):                                # static unroll over layers
            h = hs[l]
            # One fused matmul per operand per layer: gates land in lane-aligned
            # 128-wide blocks [r | z | n] of a (1, 3*Hp) result.
            gi = jnp.dot(x, w_ih_ref[l], preferred_element_type=jnp.float32) + b_i_ref[l]
            gh = jnp.dot(h, w_hh_ref[l], preferred_element_type=jnp.float32)

            # Single sigmoid over the concatenated [r|z] slab.
            rz = jax.nn.sigmoid(gi[:, :2 * Hp] + gh[:, :2 * Hp])
            r = rz[:, :Hp]
            z = rz[:, Hp:2 * Hp]
            n = jnp.tanh(gi[:, 2 * Hp:] + r * (gh[:, 2 * Hp:] + b_hn_ref[l]))
            h_new = (1.0 - z) * n + z * h

            # Predicate the state update so padded trailing steps of the last
            # chunk leave the recurrence (and the final hidden) untouched.
            hs[l] = jnp.where(valid, h_new, h)
            x = hs[l]                                     # feed next layer

        tops.append(jnp.where(valid, x, 0.0))             # top-layer output (zero for padded steps)

    # Write the hidden state back once per chunk.
    for l in range(L):
        h_scratch[l] = hs[l]

    # Deferred decoder: one (C, Hp)@(Hp, O_pad) matmul + one full-tile store.
    top = jnp.concatenate(tops, axis=0)                   # (C, Hp)
    logits = jnp.dot(top, wdec_ref[...], preferred_element_type=jnp.float32) + bdec_ref[...]
    row_idx = jax.lax.broadcasted_iota(jnp.int32, logits.shape, 0)
    logits = jnp.where(row_idx < n_valid, logits, 0.0)    # padded rows -> deterministic zeros
    out_ref[...] = logits.astype(out_ref.dtype)

    # Emit the final hidden state once, at the last chunk.
    @pl.when(c == pl.num_programs(0) - 1)
    def _():
        hout_ref[...] = h_scratch[...].astype(hout_ref.dtype)


# ----------------------------------------------------------------------------
# Host-side wrappers
# ----------------------------------------------------------------------------
def rnn_forward_seq(tokens, hidden, packed, chunk=8):
    """Run a whole token sequence through the RNN in ONE pallas_call.

    Returns (logits (T, O), final_hidden (L, 1, H)).  Per-step semantics are
    identical to the PyTorch module's forward(input_t, hidden)."""
    H, Hp, O, Op = packed["H"], packed["Hp"], packed["O"], packed["Op"]
    L = hidden.shape[0]

    tokens = jnp.asarray(tokens, jnp.int32).reshape(-1)
    T = int(tokens.shape[0])
    C = chunk
    n_chunks = (T + C - 1) // C
    T_pad = n_chunks * C

    # Pre-gather the needed embedding rows (amortizes per-token gathers into a
    # single XLA gather + C-row DMA blocks per grid step) and pad to the chunk
    # boundary with zero rows.
    x_rows = jnp.take(packed["emb_pad"], tokens, axis=0)                   # (T, Hp)
    x_rows = jnp.zeros((T_pad, Hp), jnp.float32).at[:T].set(x_rows)

    # Lane-pad the hidden state; padded lanes stay exactly zero in the kernel.
    h0 = jnp.zeros((L, 1, Hp), jnp.float32).at[:, :, :H].set(hidden)

    nvalid = jnp.array([T], jnp.int32)

    def const_spec(shape):
        nd = len(shape)
        return pl.BlockSpec(shape, lambda c, nv, _nd=nd: (0,) * _nd)

    grid_spec = pltpu.PrefetchScalarGridSpec(
        num_scalar_prefetch=1,
        grid=(n_chunks,),
        in_specs=[
            pl.BlockSpec((C, Hp), lambda c, nv: (c, 0)),     # embedding rows, C per chunk
            const_spec(packed["w_ih_f"].shape),              # resident weights (constant index_maps)
            const_spec(packed["w_hh_f"].shape),
            const_spec(packed["b_i"].shape),
            const_spec(packed["b_hn"].shape),
            const_spec(packed["w_dec_t"].shape),
            const_spec(packed["b_dec"].shape),
            const_spec((L, 1, Hp)),                          # h0
        ],
        out_specs=[
            pl.BlockSpec((C, Op), lambda c, nv: (c, 0)),     # full (8, 128) logits tile per chunk
            const_spec((L, 1, Hp)),                          # final hidden, written at last chunk
        ],
        scratch_shapes=[pltpu.VMEM((L, 1, Hp), jnp.float32)],
    )

    logits_pad, h_fin = pl.pallas_call(
        rnn_chunk_kernel,
        out_shape=(
            jax.ShapeDtypeStruct((T_pad, Op), jnp.float32),
            jax.ShapeDtypeStruct((L, 1, Hp), jnp.float32),
        ),
        grid_spec=grid_spec,
        compiler_params=pltpu.CompilerParams(
            dimension_semantics=("arbitrary",),              # recurrent -> sequential grid
            vmem_limit_bytes=32 * 1024 * 1024),
    )(nvalid, x_rows, packed["w_ih_f"], packed["w_hh_f"],
      packed["b_i"], packed["b_hn"], packed["w_dec_t"], packed["b_dec"], h0)

    return logits_pad[:T, :O], h_fin[:, :, :H]


def rnn_forward(token, hidden, packed):
    """Single-step forward matching the PyTorch module API: (logits (1,O), hidden (L,1,H))."""
    token = jnp.asarray(token, jnp.int32).reshape(-1)[:1]
    return rnn_forward_seq(token, hidden, packed)


# ----------------------------------------------------------------------------
# Parameters: generated in PyTorch layout, then packed into the kernel layout.
# ----------------------------------------------------------------------------
def init_params(key, input_size, hidden_size, output_size, n_layers):
    V, H, O, L = input_size, hidden_size, output_size, n_layers
    ks = jax.random.split(key, 3 + 4 * L)
    s = 1.0 / np.sqrt(H)
    u = lambda k, shape: jax.random.uniform(k, shape, jnp.float32, -s, s)
    return {
        "emb":   jax.random.normal(ks[0], (V, H), jnp.float32),
        "w_ih":  [u(ks[1 + 4 * l + 0], (3 * H, H)) for l in range(L)],   # PyTorch (3H, H), gates r,z,n
        "w_hh":  [u(ks[1 + 4 * l + 1], (3 * H, H)) for l in range(L)],
        "b_ih":  [u(ks[1 + 4 * l + 2], (3 * H,)) for l in range(L)],
        "b_hh":  [u(ks[1 + 4 * l + 3], (3 * H,)) for l in range(L)],
        "w_dec": u(ks[1 + 4 * L], (O, H)),                                # PyTorch (O, H)
        "b_dec": u(ks[2 + 4 * L], (O,)),
    }


def pack_params(pt, lane=128):
    """PyTorch layout -> kernel layout.

    Gate weights are fused per layer into (Hp, 3*Hp) with each gate transposed
    into its own 128-lane-aligned block; r/z biases are pre-summed; decoder is
    transposed + lane-padded; embedding table is lane-padded for pre-gather."""
    V, H = pt["emb"].shape
    O = pt["w_dec"].shape[0]
    L = len(pt["w_ih"])
    Hp = ((H + lane - 1) // lane) * lane
    Op = ((O + lane - 1) // lane) * lane

    def fuse_w(w):   # (3H, H) -> (Hp, 3*Hp), gate g at columns [g*Hp, g*Hp+H)
        out = jnp.zeros((Hp, 3 * Hp), jnp.float32)
        for g in range(3):
            out = out.at[:H, g * Hp:g * Hp + H].set(w[g * H:(g + 1) * H, :].T)
        return out

    def fuse_b_i(b_ih, b_hh):   # -> (1, 3*Hp): [b_ir+b_hr | b_iz+b_hz | b_in]
        out = jnp.zeros((1, 3 * Hp), jnp.float32)
        out = out.at[0, 0:H].set(b_ih[0:H] + b_hh[0:H])
        out = out.at[0, Hp:Hp + H].set(b_ih[H:2 * H] + b_hh[H:2 * H])
        out = out.at[0, 2 * Hp:2 * Hp + H].set(b_ih[2 * H:3 * H])
        return out

    def fuse_b_hn(b_hh):        # -> (1, Hp): b_hn
        return jnp.zeros((1, Hp), jnp.float32).at[0, :H].set(b_hh[2 * H:3 * H])

    return {
        "emb_pad": jnp.zeros((V, Hp), jnp.float32).at[:, :H].set(pt["emb"]),
        "w_ih_f":  jnp.stack([fuse_w(w) for w in pt["w_ih"]], axis=0),    # (L, Hp, 3*Hp)
        "w_hh_f":  jnp.stack([fuse_w(w) for w in pt["w_hh"]], axis=0),
        "b_i":     jnp.stack([fuse_b_i(bi, bh)
                              for bi, bh in zip(pt["b_ih"], pt["b_hh"])], axis=0),   # (L, 1, 3*Hp)
        "b_hn":    jnp.stack([fuse_b_hn(bh) for bh in pt["b_hh"]], axis=0),          # (L, 1, Hp)
        "w_dec_t": jnp.zeros((Hp, Op), jnp.float32).at[:H, :O].set(pt["w_dec"].T),
        "b_dec":   jnp.zeros((1, Op), jnp.float32).at[0, :O].set(pt["b_dec"]),
        "H": H, "Hp": Hp, "O": O, "Op": Op,
    }


# ----------------------------------------------------------------------------
# Pure-JAX reference with exact PyTorch nn.GRU semantics (gate order r, z, n).
# ----------------------------------------------------------------------------
def reference_forward_seq(tokens, hidden, pt):
    H = pt["emb"].shape[1]
    L = hidden.shape[0]
    T = tokens.shape[0]
    h = hidden
    outs = []
    for t in range(T):
        x = pt["emb"][tokens[t]][None, :]
        new_h = []
        for l in range(L):
            hl = h[l]
            gi = x @ pt["w_ih"][l].T + pt["b_ih"][l]
            gh = hl @ pt["w_hh"][l].T + pt["b_hh"][l]
            r = jax.nn.sigmoid(gi[:, 0:H] + gh[:, 0:H])
            z = jax.nn.sigmoid(gi[:, H:2 * H] + gh[:, H:2 * H])
            n = jnp.tanh(gi[:, 2 * H:3 * H] + r * gh[:, 2 * H:3 * H])
            h_new = (1.0 - z) * n + z * hl
            new_h.append(h_new)
            x = h_new
        h = jnp.stack(new_h, axis=0)
        outs.append(x @ pt["w_dec"].T + pt["b_dec"][None, :])
    return jnp.concatenate(outs, axis=0), h


if __name__ == "__main__":
    input_size = 64      # vocab
    hidden_size = 32
    output_size = 64
    n_layers = 2
    seq_len = 8

    key = jax.random.PRNGKey(0)
    pt_params = init_params(key, input_size, hidden_size, output_size, n_layers)
    packed = pack_params(pt_params)

    tokens = jax.random.randint(jax.random.PRNGKey(1), (seq_len,), 0, input_size,
                                dtype=jnp.int32)
    hidden = jnp.zeros((n_layers, 1, hidden_size), jnp.float32)   # init_hidden()

    # Whole-sequence decode in a single pallas_call (T multiple of chunk).
    logits, h_final = rnn_forward_seq(tokens, hidden, packed)
    jax.block_until_ready((logits, h_final))
    ref_logits, ref_h = reference_forward_seq(tokens, hidden, pt_params)
    np.testing.assert_allclose(np.asarray(logits), np.asarray(ref_logits),
                               rtol=1e-4, atol=1e-4)
    np.testing.assert_allclose(np.asarray(h_final), np.asarray(ref_h),
                               rtol=1e-4, atol=1e-4)

    # Ragged sequence (T not a multiple of the chunk): exercises predication.
    tokens11 = jax.random.randint(jax.random.PRNGKey(2), (11,), 0, input_size,
                                  dtype=jnp.int32)
    logits11, h11 = rnn_forward_seq(tokens11, hidden, packed)
    jax.block_until_ready((logits11, h11))
    ref11, refh11 = reference_forward_seq(tokens11, hidden, pt_params)
    np.testing.assert_allclose(np.asarray(logits11), np.asarray(ref11), rtol=1e-4, atol=1e-4)
    np.testing.assert_allclose(np.asarray(h11), np.asarray(refh11), rtol=1e-4, atol=1e-4)

    # Single-step forward (exact PyTorch module API: forward(input, hidden)).
    out1, h1 = rnn_forward(tokens[:1], hidden, packed)
    jax.block_until_ready((out1, h1))
    ref1, refh1 = reference_forward_seq(tokens[:1], hidden, pt_params)
    np.testing.assert_allclose(np.asarray(out1), np.asarray(ref1), rtol=1e-4, atol=1e-4)
    np.testing.assert_allclose(np.asarray(h1), np.asarray(refh1), rtol=1e-4, atol=1e-4)

    print("KERNEL_OK")
</pallas_src>

<mosaic_0001>
module attributes {stable_mosaic.version = 11 : i64} {
  func.func @rnn_chunk_kernel(%arg0: i32, %arg1: memref<1xi32, #tpu.memory_space<smem>>, %arg2: memref<8x128xf32, #tpu.memory_space<vmem>>, %arg3: memref<2x128x384xf32, #tpu.memory_space<vmem>>, %arg4: memref<2x128x384xf32, #tpu.memory_space<vmem>>, %arg5: memref<2x1x384xf32, #tpu.memory_space<vmem>>, %arg6: memref<2x1x128xf32, #tpu.memory_space<vmem>>, %arg7: memref<128x128xf32, #tpu.memory_space<vmem>>, %arg8: memref<1x128xf32, #tpu.memory_space<vmem>>, %arg9: memref<2x1x128xf32, #tpu.memory_space<vmem>>, %arg10: memref<8x128xf32, #tpu.memory_space<vmem>>, %arg11: memref<2x1x128xf32, #tpu.memory_space<vmem>>, %arg12: memref<2x1x128xf32, #tpu.memory_space<vmem>>) attributes {dimension_semantics = [#tpu.dimension_semantics<arbitrary>], iteration_bounds = array<i64: 1>, scalar_prefetch = 1 : i64, scratch_operands = 1 : i64, tpu.core_type = #tpu.core_type<tc>, window_params = [{transform_indices = @transform_0, window_bounds = array<i64: 8, 128>}, {pipeline_mode = #tpu.pipeline_mode<synchronous>, transform_indices = @transform_1, window_bounds = array<i64: 2, 128, 384>}, {pipeline_mode = #tpu.pipeline_mode<synchronous>, transform_indices = @transform_2, window_bounds = array<i64: 2, 128, 384>}, {pipeline_mode = #tpu.pipeline_mode<synchronous>, transform_indices = @transform_3, window_bounds = array<i64: 2, 1, 384>}, {pipeline_mode = #tpu.pipeline_mode<synchronous>, transform_indices = @transform_4, window_bounds = array<i64: 2, 1, 128>}, {pipeline_mode = #tpu.pipeline_mode<synchronous>, transform_indices = @transform_5, window_bounds = array<i64: 128, 128>}, {pipeline_mode = #tpu.pipeline_mode<synchronous>, transform_indices = @transform_6, window_bounds = array<i64: 1, 128>}, {pipeline_mode = #tpu.pipeline_mode<synchronous>, transform_indices = @transform_7, window_bounds = array<i64: 2, 1, 128>}, {transform_indices = @transform_8, window_bounds = array<i64: 8, 128>}, {pipeline_mode = #tpu.pipeline_mode<synchronous>, transform_indices = @transform_9, window_bounds = array<i64: 2, 1, 128>}]} {
    %c0_i32 = arith.constant 0 : i32
    %0 = arith.cmpi eq, %arg0, %c0_i32 : i32
    %1 = arith.extui %0 : i1 to i32
    %c0_i32_0 = arith.constant 0 : i32
    %2 = arith.cmpi ne, %1, %c0_i32_0 : i32
    scf.if %2 {
      %c0_296 = arith.constant 0 : index
      %c0_297 = arith.constant 0 : index
      %c0_298 = arith.constant 0 : index
      %591 = vector.load %arg9[%c0_296, %c0_297, %c0_298] : memref<2x1x128xf32, #tpu.memory_space<vmem>>, vector<2x1x128xf32>
      %c0_299 = arith.constant 0 : index
      %c0_300 = arith.constant 0 : index
      %c0_301 = arith.constant 0 : index
      %592 = vector.load %arg12[%c0_299, %c0_300, %c0_301] : memref<2x1x128xf32, #tpu.memory_space<vmem>>, vector<2x1x128xf32>
      tpu.vector_store %arg12[%c0_299, %c0_300, %c0_301], %591 {strides = array<i32>} : memref<2x1x128xf32, #tpu.memory_space<vmem>>, vector<2x1x128xf32>,
    } else {
    }
    %c0 = arith.constant 0 : index
    %3 = memref.load %arg1[%c0] : memref<1xi32, #tpu.memory_space<smem>>
    %c8_i32 = arith.constant 8 : i32
    %4 = arith.muli %arg0, %c8_i32 : i32
    %5 = arith.subi %3, %4 : i32
    %c0_1 = arith.constant 0 : index
    %c0_2 = arith.constant 0 : index
    %c0_3 = arith.constant 0 : index
    %6 = vector.load %arg12[%c0_1, %c0_2, %c0_3] : memref<2x1x128xf32, #tpu.memory_space<vmem>>, vector<1x1x128xf32>
    %7 = vector.shape_cast %6 : vector<1x1x128xf32> to vector<1x128xf32>
    %c1 = arith.constant 1 : index
    %c0_4 = arith.constant 0 : index
    %c0_5 = arith.constant 0 : index
    %8 = vector.load %arg12[%c1, %c0_4, %c0_5] : memref<2x1x128xf32, #tpu.memory_space<vmem>>, vector<1x1x128xf32>
    %9 = vector.shape_cast %8 : vector<1x1x128xf32> to vector<1x128xf32>
    %c0_i32_6 = arith.constant 0 : i32
    %10 = arith.cmpi sgt, %5, %c0_i32_6 : i32
    %c0_7 = arith.constant 0 : index
    %c0_8 = arith.constant 0 : index
    %11 = vector.load %arg2[%c0_7, %c0_8] : memref<8x128xf32, #tpu.memory_space<vmem>>, vector<1x128xf32>
    %c0_9 = arith.constant 0 : index
    %c0_10 = arith.constant 0 : index
    %c0_11 = arith.constant 0 : index
    %12 = vector.load %arg3[%c0_9, %c0_10, %c0_11] : memref<2x128x384xf32, #tpu.memory_space<vmem>>, vector<1x128x384xf32>
    %13 = vector.shape_cast %12 : vector<1x128x384xf32> to vector<128x384xf32>
    %cst = arith.constant dense<0.000000e+00> : vector<1x384xf32>
    %14 = tpu.matmul %11, %13, %cst {dimension_numbers = #tpu.dot_dimension_numbers<[1], [0], [0], [1], [0, 0, 1, 1], [], []>} : vector<1x128xf32>, vector<128x384xf32>, vector<1x384xf32> -> vector<1x384xf32>
    %c0_12 = arith.constant 0 : index
    %c0_13 = arith.constant 0 : index
    %c0_14 = arith.constant 0 : index
    %15 = vector.load %arg5[%c0_12, %c0_13, %c0_14] : memref<2x1x384xf32, #tpu.memory_space<vmem>>, vector<1x1x384xf32>
    %16 = vector.shape_cast %15 : vector<1x1x384xf32> to vector<1x384xf32>
    %17 = arith.addf %14, %16 : vector<1x384xf32>
    %c0_15 = arith.constant 0 : index
    %c0_16 = arith.constant 0 : index
    %c0_17 = arith.constant 0 : index
    %18 = vector.load %arg4[%c0_15, %c0_16, %c0_17] : memref<2x128x384xf32, #tpu.memory_space<vmem>>, vector<1x128x384xf32>
    %19 = vector.shape_cast %18 : vector<1x128x384xf32> to vector<128x384xf32>
    %cst_18 = arith.constant dense<0.000000e+00> : vector<1x384xf32>
    %20 = tpu.matmul %7, %19, %cst_18 {dimension_numbers = #tpu.dot_dimension_numbers<[1], [0], [0], [1], [0, 0, 1, 1], [], []>} : vector<1x128xf32>, vector<128x384xf32>, vector<1x384xf32> -> vector<1x384xf32>
    %21 = vector.extract_strided_slice %17 {offsets = [0, 0], sizes = [1, 256], strides = [1, 1]} : vector<1x384xf32> to vector<1x256xf32>
    %22 = vector.extract_strided_slice %20 {offsets = [0, 0], sizes = [1, 256], strides = [1, 1]} : vector<1x384xf32> to vector<1x256xf32>
    %23 = arith.addf %21, %22 : vector<1x256xf32>
    %24 = arith.negf %23 : vector<1x256xf32>
    %25 = math.exp %24 : vector<1x256xf32>
    %cst_19 = arith.constant 1.000000e+00 : f32
    %26 = vector.broadcast %cst_19 : f32 to vector<1x256xf32>
    %27 = arith.addf %26, %25 : vector<1x256xf32>
    %28 = arith.divf %26, %27 : vector<1x256xf32>
    %29 = vector.extract_strided_slice %28 {offsets = [0, 0], sizes = [1, 128], strides = [1, 1]} : vector<1x256xf32> to vector<1x128xf32>
    %30 = vector.extract_strided_slice %28 {offsets = [0, 128], sizes = [1, 128], strides = [1, 1]} : vector<1x256xf32> to vector<1x128xf32>
    %31 = vector.extract_strided_slice %17 {offsets = [0, 256], sizes = [1, 128], strides = [1, 1]} : vector<1x384xf32> to vector<1x128xf32>
    %32 = vector.extract_strided_slice %20 {offsets = [0, 256], sizes = [1, 128], strides = [1, 1]} : vector<1x384xf32> to vector<1x128xf32>
    %c0_20 = arith.constant 0 : index
    %c0_21 = arith.constant 0 : index
    %c0_22 = arith.constant 0 : index
    %33 = vector.load %arg6[%c0_20, %c0_21, %c0_22] : memref<2x1x128xf32, #tpu.memory_space<vmem>>, vector<1x1x128xf32>
    %34 = vector.shape_cast %33 : vector<1x1x128xf32> to vector<1x128xf32>
    %35 = arith.addf %32, %34 : vector<1x128xf32>
    %36 = arith.mulf %29, %35 : vector<1x128xf32>
    %37 = arith.addf %31, %36 : vector<1x128xf32>
    %38 = math.tanh %37 : vector<1x128xf32>
    %cst_23 = arith.constant 1.000000e+00 : f32
    %39 = vector.broadcast %cst_23 : f32 to vector<1x128xf32>
    %40 = arith.subf %39, %30 : vector<1x128xf32>
    %41 = arith.mulf %40, %38 : vector<1x128xf32>
    %42 = arith.mulf %30, %7 : vector<1x128xf32>
    %43 = arith.addf %41, %42 : vector<1x128xf32>
    %44 = arith.select %10, %43, %7 : vector<1x128xf32>
    %c1_24 = arith.constant 1 : index
    %c0_25 = arith.constant 0 : index
    %c0_26 = arith.constant 0 : index
    %45 = vector.load %arg3[%c1_24, %c0_25, %c0_26] : memref<2x128x384xf32, #tpu.memory_space<vmem>>, vector<1x128x384xf32>
    %46 = vector.shape_cast %45 : vector<1x128x384xf32> to vector<128x384xf32>
    %cst_27 = arith.constant dense<0.000000e+00> : vector<1x384xf32>
    %47 = tpu.matmul %44, %46, %cst_27 {dimension_numbers = #tpu.dot_dimension_numbers<[1], [0], [0], [1], [0, 0, 1, 1], [], []>} : vector<1x128xf32>, vector<128x384xf32>, vector<1x384xf32> -> vector<1x384xf32>
    %c1_28 = arith.constant 1 : index
    %c0_29 = arith.constant 0 : index
    %c0_30 = arith.constant 0 : index
    %48 = vector.load %arg5[%c1_28, %c0_29, %c0_30] : memref<2x1x384xf32, #tpu.memory_space<vmem>>, vector<1x1x384xf32>
    %49 = vector.shape_cast %48 : vector<1x1x384xf32> to vector<1x384xf32>
    %50 = arith.addf %47, %49 : vector<1x384xf32>
    %c1_31 = arith.constant 1 : index
    %c0_32 = arith.constant 0 : index
    %c0_33 = arith.constant 0 : index
    %51 = vector.load %arg4[%c1_31, %c0_32, %c0_33] : memref<2x128x384xf32, #tpu.memory_space<vmem>>, vector<1x128x384xf32>
    %52 = vector.shape_cast %51 : vector<1x128x384xf32> to vector<128x384xf32>
    %cst_34 = arith.constant dense<0.000000e+00> : vector<1x384xf32>
    %53 = tpu.matmul %9, %52, %cst_34 {dimension_numbers = #tpu.dot_dimension_numbers<[1], [0], [0], [1], [0, 0, 1, 1], [], []>} : vector<1x128xf32>, vector<128x384xf32>, vector<1x384xf32> -> vector<1x384xf32>
    %54 = vector.extract_strided_slice %50 {offsets = [0, 0], sizes = [1, 256], strides = [1, 1]} : vector<1x384xf32> to vector<1x256xf32>
    %55 = vector.extract_strided_slice %53 {offsets = [0, 0], sizes = [1, 256], strides = [1, 1]} : vector<1x384xf32> to vector<1x256xf32>
    %56 = arith.addf %54, %55 : vector<1x256xf32>
    %57 = arith.negf %56 : vector<1x256xf32>
    %58 = math.exp %57 : vector<1x256xf32>
    %cst_35 = arith.constant 1.000000e+00 : f32
    %59 = vector.broadcast %cst_35 : f32 to vector<1x256xf32>
    %60 = arith.addf %59, %58 : vector<1x256xf32>
    %61 = arith.divf %59, %60 : vector<1x256xf32>
    %62 = vector.extract_strided_slice %61 {offsets = [0, 0], sizes = [1, 128], strides = [1, 1]} : vector<1x256xf32> to vector<1x128xf32>
    %63 = vector.extract_strided_slice %61 {offsets = [0, 128], sizes = [1, 128], strides = [1, 1]} : vector<1x256xf32> to vector<1x128xf32>
    %64 = vector.extract_strided_slice %50 {offsets = [0, 256], sizes = [1, 128], strides = [1, 1]} : vector<1x384xf32> to vector<1x128xf32>
    %65 = vector.extract_strided_slice %53 {offsets = [0, 256], sizes = [1, 128], strides = [1, 1]} : vector<1x384xf32> to vector<1x128xf32>
    %c1_36 = arith.constant 1 : index
    %c0_37 = arith.constant 0 : index
    %c0_38 = arith.constant 0 : index
    %66 = vector.load %arg6[%c1_36, %c0_37, %c0_38] : memref<2x1x128xf32, #tpu.memory_space<vmem>>, vector<1x1x128xf32>
    %67 = vector.shape_cast %66 : vector<1x1x128xf32> to vector<1x128xf32>
    %68 = arith.addf %65, %67 : vector<1x128xf32>
    %69 = arith.mulf %62, %68 : vector<1x128xf32>
    %70 = arith.addf %64, %69 : vector<1x128xf32>
    %71 = math.tanh %70 : vector<1x128xf32>
    %cst_39 = arith.constant 1.000000e+00 : f32
    %72 = vector.broadcast %cst_39 : f32 to vector<1x128xf32>
    %73 = arith.subf %72, %63 : vector<1x128xf32>
    %74 = arith.mulf %73, %71 : vector<1x128xf32>
    %75 = arith.mulf %63, %9 : vector<1x128xf32>
    %76 = arith.addf %74, %75 : vector<1x128xf32>
    %77 = arith.select %10, %76, %9 : vector<1x128xf32>
    %cst_40 = arith.constant 0.000000e+00 : f32
    %78 = vector.broadcast %cst_40 : f32 to vector<1x128xf32>
    %79 = arith.select %10, %77, %78 : vector<1x128xf32>
    %c1_i32 = arith.constant 1 : i32
    %80 = arith.cmpi sgt, %5, %c1_i32 : i32
    %c1_41 = arith.constant 1 : index
    %c0_42 = arith.constant 0 : index
    %81 = vector.load %arg2[%c1_41, %c0_42] : memref<8x128xf32, #tpu.memory_space<vmem>>, vector<1x128xf32>
    %c0_43 = arith.constant 0 : index
    %c0_44 = arith.constant 0 : index
    %c0_45 = arith.constant 0 : index
    %82 = vector.load %arg3[%c0_43, %c0_44, %c0_45] : memref<2x128x384xf32, #tpu.memory_space<vmem>>, vector<1x128x384xf32>
    %83 = vector.shape_cast %82 : vector<1x128x384xf32> to vector<128x384xf32>
    %cst_46 = arith.constant dense<0.000000e+00> : vector<1x384xf32>
    %84 = tpu.matmul %81, %83, %cst_46 {dimension_numbers = #tpu.dot_dimension_numbers<[1], [0], [0], [1], [0, 0, 1, 1], [], []>} : vector<1x128xf32>, vector<128x384xf32>, vector<1x384xf32> -> vector<1x384xf32>
    %c0_47 = arith.constant 0 : index
    %c0_48 = arith.constant 0 : index
    %c0_49 = arith.constant 0 : index
    %85 = vector.load %arg5[%c0_47, %c0_48, %c0_49] : memref<2x1x384xf32, #tpu.memory_space<vmem>>, vector<1x1x384xf32>
    %86 = vector.shape_cast %85 : vector<1x1x384xf32> to vector<1x384xf32>
    %87 = arith.addf %84, %86 : vector<1x384xf32>
    %c0_50 = arith.constant 0 : index
    %c0_51 = arith.constant 0 : index
    %c0_52 = arith.constant 0 : index
    %88 = vector.load %arg4[%c0_50, %c0_51, %c0_52] : memref<2x128x384xf32, #tpu.memory_space<vmem>>, vector<1x128x384xf32>
    %89 = vector.shape_cast %88 : vector<1x128x384xf32> to vector<128x384xf32>
    %cst_53 = arith.constant dense<0.000000e+00> : vector<1x384xf32>
    %90 = tpu.matmul %44, %89, %cst_53 {dimension_numbers = #tpu.dot_dimension_numbers<[1], [0], [0], [1], [0, 0, 1, 1], [], []>} : vector<1x128xf32>, vector<128x384xf32>, vector<1x384xf32> -> vector<1x384xf32>
    %91 = vector.extract_strided_slice %87 {offsets = [0, 0], sizes = [1, 256], strides = [1, 1]} : vector<1x384xf32> to vector<1x256xf32>
    %92 = vector.extract_strided_slice %90 {offsets = [0, 0], sizes = [1, 256], strides = [1, 1]} : vector<1x384xf32> to vector<1x256xf32>
    %93 = arith.addf %91, %92 : vector<1x256xf32>
    %94 = arith.negf %93 : vector<1x256xf32>
    %95 = math.exp %94 : vector<1x256xf32>
    %cst_54 = arith.constant 1.000000e+00 : f32
    %96 = vector.broadcast %cst_54 : f32 to vector<1x256xf32>
    %97 = arith.addf %96, %95 : vector<1x256xf32>
    %98 = arith.divf %96, %97 : vector<1x256xf32>
    %99 = vector.extract_strided_slice %98 {offsets = [0, 0], sizes = [1, 128], strides = [1, 1]} : vector<1x256xf32> to vector<1x128xf32>
    %100 = vector.extract_strided_slice %98 {offsets = [0, 128], sizes = [1, 128], strides = [1, 1]} : vector<1x256xf32> to vector<1x128xf32>
    %101 = vector.extract_strided_slice %87 {offsets = [0, 256], sizes = [1, 128], strides = [1, 1]} : vector<1x384xf32> to vector<1x128xf32>
    %102 = vector.extract_strided_slice %90 {offsets = [0, 256], sizes = [1, 128], strides = [1, 1]} : vector<1x384xf32> to vector<1x128xf32>
    %c0_55 = arith.constant 0 : index
    %c0_56 = arith.constant 0 : index
    %c0_57 = arith.constant 0 : index
    %103 = vector.load %arg6[%c0_55, %c0_56, %c0_57] : memref<2x1x128xf32, #tpu.memory_space<vmem>>, vector<1x1x128xf32>
    %104 = vector.shape_cast %103 : vector<1x1x128xf32> to vector<1x128xf32>
    %105 = arith.addf %102, %104 : vector<1x128xf32>
    %106 = arith.mulf %99, %105 : vector<1x128xf32>
    %107 = arith.addf %101, %106 : vector<1x128xf32>
    %108 = math.tanh %107 : vector<1x128xf32>
    %cst_58 = arith.constant 1.000000e+00 : f32
    %109 = vector.broadcast %cst_58 : f32 to vector<1x128xf32>
    %110 = arith.subf %109, %100 : vector<1x128xf32>
    %111 = arith.mulf %110, %108 : vector<1x128xf32>
    %112 = arith.mulf %100, %44 : vector<1x128xf32>
    %113 = arith.addf %111, %112 : vector<1x128xf32>
    %114 = arith.select %80, %113, %44 : vector<1x128xf32>
    %c1_59 = arith.constant 1 : index
    %c0_60 = arith.constant 0 : index
    %c0_61 = arith.constant 0 : index
    %115 = vector.load %arg3[%c1_59, %c0_60, %c0_61] : memref<2x128x384xf32, #tpu.memory_space<vmem>>, vector<1x128x384xf32>
    %116 = vector.shape_cast %115 : vector<1x128x384xf32> to vector<128x384xf32>
    %cst_62 = arith.constant dense<0.000000e+00> : vector<1x384xf32>
    %117 = tpu.matmul %114, %116, %cst_62 {dimension_numbers = #tpu.dot_dimension_numbers<[1], [0], [0], [1], [0, 0, 1, 1], [], []>} : vector<1x128xf32>, vector<128x384xf32>, vector<1x384xf32> -> vector<1x384xf32>
    %c1_63 = arith.constant 1 : index
    %c0_64 = arith.constant 0 : index
    %c0_65 = arith.constant 0 : index
    %118 = vector.load %arg5[%c1_63, %c0_64, %c0_65] : memref<2x1x384xf32, #tpu.memory_space<vmem>>, vector<1x1x384xf32>
    %119 = vector.shape_cast %118 : vector<1x1x384xf32> to vector<1x384xf32>
    %120 = arith.addf %117, %119 : vector<1x384xf32>
    %c1_66 = arith.constant 1 : index
    %c0_67 = arith.constant 0 : index
    %c0_68 = arith.constant 0 : index
    %121 = vector.load %arg4[%c1_66, %c0_67, %c0_68] : memref<2x128x384xf32, #tpu.memory_space<vmem>>, vector<1x128x384xf32>
    %122 = vector.shape_cast %121 : vector<1x128x384xf32> to vector<128x384xf32>
    %cst_69 = arith.constant dense<0.000000e+00> : vector<1x384xf32>
    %123 = tpu.matmul %77, %122, %cst_69 {dimension_numbers = #tpu.dot_dimension_numbers<[1], [0], [0], [1], [0, 0, 1, 1], [], []>} : vector<1x128xf32>, vector<128x384xf32>, vector<1x384xf32> -> vector<1x384xf32>
    %124 = vector.extract_strided_slice %120 {offsets = [0, 0], sizes = [1, 256], strides = [1, 1]} : vector<1x384xf32> to vector<1x256xf32>
    %125 = vector.extract_strided_slice %123 {offsets = [0, 0], sizes = [1, 256], strides = [1, 1]} : vector<1x384xf32> to vector<1x256xf32>
    %126 = arith.addf %124, %125 : vector<1x256xf32>
    %127 = arith.negf %126 : vector<1x256xf32>
    %128 = math.exp %127 : vector<1x256xf32>
    %cst_70 = arith.constant 1.000000e+00 : f32
    %129 = vector.broadcast %cst_70 : f32 to vector<1x256xf32>
    %130 = arith.addf %129, %128 : vector<1x256xf32>
    %131 = arith.divf %129, %130 : vector<1x256xf32>
    %132 = vector.extract_strided_slice %131 {offsets = [0, 0], sizes = [1, 128], strides = [1, 1]} : vector<1x256xf32> to vector<1x128xf32>
    %133 = vector.extract_strided_slice %131 {offsets = [0, 128], sizes = [1, 128], strides = [1, 1]} : vector<1x256xf32> to vector<1x128xf32>
    %134 = vector.extract_strided_slice %120 {offsets = [0, 256], sizes = [1, 128], strides = [1, 1]} : vector<1x384xf32> to vector<1x128xf32>
    %135 = vector.extract_strided_slice %123 {offsets = [0, 256], sizes = [1, 128], strides = [1, 1]} : vector<1x384xf32> to vector<1x128xf32>
    %c1_71 = arith.constant 1 : index
    %c0_72 = arith.constant 0 : index
    %c0_73 = arith.constant 0 : index
    %136 = vector.load %arg6[%c1_71, %c0_72, %c0_73] : memref<2x1x128xf32, #tpu.memory_space<vmem>>, vector<1x1x128xf32>
    %137 = vector.shape_cast %136 : vector<1x1x128xf32> to vector<1x128xf32>
    %138 = arith.addf %135, %137 : vector<1x128xf32>
    %139 = arith.mulf %132, %138 : vector<1x128xf32>
    %140 = arith.addf %134, %139 : vector<1x128xf32>
    %141 = math.tanh %140 : vector<1x128xf32>
    %cst_74 = arith.constant 1.000000e+00 : f32
    %142 = vector.broadcast %cst_74 : f32 to vector<1x128xf32>
    %143 = arith.subf %142, %133 : vector<1x128xf32>
    %144 = arith.mulf %143, %141 : vector<1x128xf32>
    %145 = arith.mulf %133, %77 : vector<1x128xf32>
    %146 = arith.addf %144, %145 : vector<1x128xf32>
    %147 = arith.select %80, %146, %77 : vector<1x128xf32>
    %cst_75 = arith.constant 0.000000e+00 : f32
    %148 = vector.broadcast %cst_75 : f32 to vector<1x128xf32>
    %149 = arith.select %80, %147, %148 : vector<1x128xf32>
    %c2_i32 = arith.constant 2 : i32
    %150 = arith.cmpi sgt, %5, %c2_i32 : i32
    %c2 = arith.constant 2 : index
    %c0_76 = arith.constant 0 : index
    %151 = vector.load %arg2[%c2, %c0_76] : memref<8x128xf32, #tpu.memory_space<vmem>>, vector<1x128xf32>
    %c0_77 = arith.constant 0 : index
    %c0_78 = arith.constant 0 : index
    %c0_79 = arith.constant 0 : index
    %152 = vector.load %arg3[%c0_77, %c0_78, %c0_79] : memref<2x128x384xf32, #tpu.memory_space<vmem>>, vector<1x128x384xf32>
    %153 = vector.shape_cast %152 : vector<1x128x384xf32> to vector<128x384xf32>
    %cst_80 = arith.constant dense<0.000000e+00> : vector<1x384xf32>
    %154 = tpu.matmul %151, %153, %cst_80 {dimension_numbers = #tpu.dot_dimension_numbers<[1], [0], [0], [1], [0, 0, 1, 1], [], []>} : vector<1x128xf32>, vector<128x384xf32>, vector<1x384xf32> -> vector<1x384xf32>
    %c0_81 = arith.constant 0 : index
    %c0_82 = arith.constant 0 : index
    %c0_83 = arith.constant 0 : index
    %155 = vector.load %arg5[%c0_81, %c0_82, %c0_83] : memref<2x1x384xf32, #tpu.memory_space<vmem>>, vector<1x1x384xf32>
    %156 = vector.shape_cast %155 : vector<1x1x384xf32> to vector<1x384xf32>
    %157 = arith.addf %154, %156 : vector<1x384xf32>
    %c0_84 = arith.constant 0 : index
    %c0_85 = arith.constant 0 : index
    %c0_86 = arith.constant 0 : index
    %158 = vector.load %arg4[%c0_84, %c0_85, %c0_86] : memref<2x128x384xf32, #tpu.memory_space<vmem>>, vector<1x128x384xf32>
    %159 = vector.shape_cast %158 : vector<1x128x384xf32> to vector<128x384xf32>
    %cst_87 = arith.constant dense<0.000000e+00> : vector<1x384xf32>
    %160 = tpu.matmul %114, %159, %cst_87 {dimension_numbers = #tpu.dot_dimension_numbers<[1], [0], [0], [1], [0, 0, 1, 1], [], []>} : vector<1x128xf32>, vector<128x384xf32>, vector<1x384xf32> -> vector<1x384xf32>
    %161 = vector.extract_strided_slice %157 {offsets = [0, 0], sizes = [1, 256], strides = [1, 1]} : vector<1x384xf32> to vector<1x256xf32>
    %162 = vector.extract_strided_slice %160 {offsets = [0, 0], sizes = [1, 256], strides = [1, 1]} : vector<1x384xf32> to vector<1x256xf32>
    %163 = arith.addf %161, %162 : vector<1x256xf32>
    %164 = arith.negf %163 : vector<1x256xf32>
    %165 = math.exp %164 : vector<1x256xf32>
    %cst_88 = arith.constant 1.000000e+00 : f32
    %166 = vector.broadcast %cst_88 : f32 to vector<1x256xf32>
    %167 = arith.addf %166, %165 : vector<1x256xf32>
    %168 = arith.divf %166, %167 : vector<1x256xf32>
    %169 = vector.extract_strided_slice %168 {offsets = [0, 0], sizes = [1, 128], strides = [1, 1]} : vector<1x256xf32> to vector<1x128xf32>
    %170 = vector.extract_strided_slice %168 {offsets = [0, 128], sizes = [1, 128], strides = [1, 1]} : vector<1x256xf32> to vector<1x128xf32>
    %171 = vector.extract_strided_slice %157 {offsets = [0, 256], sizes = [1, 128], strides = [1, 1]} : vector<1x384xf32> to vector<1x128xf32>
    %172 = vector.extract_strided_slice %160 {offsets = [0, 256], sizes = [1, 128], strides = [1, 1]} : vector<1x384xf32> to vector<1x128xf32>
    %c0_89 = arith.constant 0 : index
    %c0_90 = arith.constant 0 : index
    %c0_91 = arith.constant 0 : index
    %173 = vector.load %arg6[%c0_89, %c0_90, %c0_91] : memref<2x1x128xf32, #tpu.memory_space<vmem>>, vector<1x1x128xf32>
    %174 = vector.shape_cast %173 : vector<1x1x128xf32> to vector<1x128xf32>
    %175 = arith.addf %172, %174 : vector<1x128xf32>
    %176 = arith.mulf %169, %175 : vector<1x128xf32>
    %177 = arith.addf %171, %176 : vector<1x128xf32>
    %178 = math.tanh %177 : vector<1x128xf32>
    %cst_92 = arith.constant 1.000000e+00 : f32
    %179 = vector.broadcast %cst_92 : f32 to vector<1x128xf32>
    %180 = arith.subf %179, %170 : vector<1x128xf32>
    %181 = arith.mulf %180, %178 : vector<1x128xf32>
    %182 = arith.mulf %170, %114 : vector<1x128xf32>
    %183 = arith.addf %181, %182 : vector<1x128xf32>
    %184 = arith.select %150, %183, %114 : vector<1x128xf32>
    %c1_93 = arith.constant 1 : index
    %c0_94 = arith.constant 0 : index
    %c0_95 = arith.constant 0 : index
    %185 = vector.load %arg3[%c1_93, %c0_94, %c0_95] : memref<2x128x384xf32, #tpu.memory_space<vmem>>, vector<1x128x384xf32>
    %186 = vector.shape_cast %185 : vector<1x128x384xf32> to vector<128x384xf32>
    %cst_96 = arith.constant dense<0.000000e+00> : vector<1x384xf32>
    %187 = tpu.matmul %184, %186, %cst_96 {dimension_numbers = #tpu.dot_dimension_numbers<[1], [0], [0], [1], [0, 0, 1, 1], [], []>} : vector<1x128xf32>, vector<128x384xf32>, vector<1x384xf32> -> vector<1x384xf32>
    %c1_97 = arith.constant 1 : index
    %c0_98 = arith.constant 0 : index
    %c0_99 = arith.constant 0 : index
    %188 = vector.load %arg5[%c1_97, %c0_98, %c0_99] : memref<2x1x384xf32, #tpu.memory_space<vmem>>, vector<1x1x384xf32>
    %189 = vector.shape_cast %188 : vector<1x1x384xf32> to vector<1x384xf32>
    %190 = arith.addf %187, %189 : vector<1x384xf32>
    %c1_100 = arith.constant 1 : index
    %c0_101 = arith.constant 0 : index
    %c0_102 = arith.constant 0 : index
    %191 = vector.load %arg4[%c1_100, %c0_101, %c0_102] : memref<2x128x384xf32, #tpu.memory_space<vmem>>, vector<1x128x384xf32>
    %192 = vector.shape_cast %191 : vector<1x128x384xf32> to vector<128x384xf32>
    %cst_103 = arith.constant dense<0.000000e+00> : vector<1x384xf32>
    %193 = tpu.matmul %147, %192, %cst_103 {dimension_numbers = #tpu.dot_dimension_numbers<[1], [0], [0], [1], [0, 0, 1, 1], [], []>} : vector<1x128xf32>, vector<128x384xf32>, vector<1x384xf32> -> vector<1x384xf32>
    %194 = vector.extract_strided_slice %190 {offsets = [0, 0], sizes = [1, 256], strides = [1, 1]} : vector<1x384xf32> to vector<1x256xf32>
    %195 = vector.extract_strided_slice %193 {offsets = [0, 0], sizes = [1, 256], strides = [1, 1]} : vector<1x384xf32> to vector<1x256xf32>
    %196 = arith.addf %194, %195 : vector<1x256xf32>
    %197 = arith.negf %196 : vector<1x256xf32>
    %198 = math.exp %197 : vector<1x256xf32>
    %cst_104 = arith.constant 1.000000e+00 : f32
    %199 = vector.broadcast %cst_104 : f32 to vector<1x256xf32>
    %200 = arith.addf %199, %198 : vector<1x256xf32>
    %201 = arith.divf %199, %200 : vector<1x256xf32>
    %202 = vector.extract_strided_slice %201 {offsets = [0, 0], sizes = [1, 128], strides = [1, 1]} : vector<1x256xf32> to vector<1x128xf32>
    %203 = vector.extract_strided_slice %201 {offsets = [0, 128], sizes = [1, 128], strides = [1, 1]} : vector<1x256xf32> to vector<1x128xf32>
    %204 = vector.extract_strided_slice %190 {offsets = [0, 256], sizes = [1, 128], strides = [1, 1]} : vector<1x384xf32> to vector<1x128xf32>
    %205 = vector.extract_strided_slice %193 {offsets = [0, 256], sizes = [1, 128], strides = [1, 1]} : vector<1x384xf32> to vector<1x128xf32>
    %c1_105 = arith.constant 1 : index
    %c0_106 = arith.constant 0 : index
    %c0_107 = arith.constant 0 : index
    %206 = vector.load %arg6[%c1_105, %c0_106, %c0_107] : memref<2x1x128xf32, #tpu.memory_space<vmem>>, vector<1x1x128xf32>
    %207 = vector.shape_cast %206 : vector<1x1x128xf32> to vector<1x128xf32>
    %208 = arith.addf %205, %207 : vector<1x128xf32>
    %209 = arith.mulf %202, %208 : vector<1x128xf32>
    %210 = arith.addf %204, %209 : vector<1x128xf32>
    %211 = math.tanh %210 : vector<1x128xf32>
    %cst_108 = arith.constant 1.000000e+00 : f32
    %212 = vector.broadcast %cst_108 : f32 to vector<1x128xf32>
    %213 = arith.subf %212, %203 : vector<1x128xf32>
    %214 = arith.mulf %213, %211 : vector<1x128xf32>
    %215 = arith.mulf %203, %147 : vector<1x128xf32>
    %216 = arith.addf %214, %215 : vector<1x128xf32>
    %217 = arith.select %150, %216, %147 : vector<1x128xf32>
    %cst_109 = arith.constant 0.000000e+00 : f32
    %218 = vector.broadcast %cst_109 : f32 to vector<1x128xf32>
    %219 = arith.select %150, %217, %218 : vector<1x128xf32>
    %c3_i32 = arith.constant 3 : i32
    %220 = arith.cmpi sgt, %5, %c3_i32 : i32
    %c3 = arith.constant 3 : index
    %c0_110 = arith.constant 0 : index
    %221 = vector.load %arg2[%c3, %c0_110] : memref<8x128xf32, #tpu.memory_space<vmem>>, vector<1x128xf32>
    %c0_111 = arith.constant 0 : index
    %c0_112 = arith.constant 0 : index
    %c0_113 = arith.constant 0 : index
    %222 = vector.load %arg3[%c0_111, %c0_112, %c0_113] : memref<2x128x384xf32, #tpu.memory_space<vmem>>, vector<1x128x384xf32>
    %223 = vector.shape_cast %222 : vector<1x128x384xf32> to vector<128x384xf32>
    %cst_114 = arith.constant dense<0.000000e+00> : vector<1x384xf32>
    %224 = tpu.matmul %221, %223, %cst_114 {dimension_numbers = #tpu.dot_dimension_numbers<[1], [0], [0], [1], [0, 0, 1, 1], [], []>} : vector<1x128xf32>, vector<128x384xf32>, vector<1x384xf32> -> vector<1x384xf32>
    %c0_115 = arith.constant 0 : index
    %c0_116 = arith.constant 0 : index
    %c0_117 = arith.constant 0 : index
    %225 = vector.load %arg5[%c0_115, %c0_116, %c0_117] : memref<2x1x384xf32, #tpu.memory_space<vmem>>, vector<1x1x384xf32>
    %226 = vector.shape_cast %225 : vector<1x1x384xf32> to vector<1x384xf32>
    %227 = arith.addf %224, %226 : vector<1x384xf32>
    %c0_118 = arith.constant 0 : index
    %c0_119 = arith.constant 0 : index
    %c0_120 = arith.constant 0 : index
    %228 = vector.load %arg4[%c0_118, %c0_119, %c0_120] : memref<2x128x384xf32, #tpu.memory_space<vmem>>, vector<1x128x384xf32>
    %229 = vector.shape_cast %228 : vector<1x128x384xf32> to vector<128x384xf32>
    %cst_121 = arith.constant dense<0.000000e+00> : vector<1x384xf32>
    %230 = tpu.matmul %184, %229, %cst_121 {dimension_numbers = #tpu.dot_dimension_numbers<[1], [0], [0], [1], [0, 0, 1, 1], [], []>} : vector<1x128xf32>, vector<128x384xf32>, vector<1x384xf32> -> vector<1x384xf32>
    %231 = vector.extract_strided_slice %227 {offsets = [0, 0], sizes = [1, 256], strides = [1, 1]} : vector<1x384xf32> to vector<1x256xf32>
    %232 = vector.extract_strided_slice %230 {offsets = [0, 0], sizes = [1, 256], strides = [1, 1]} : vector<1x384xf32> to vector<1x256xf32>
    %233 = arith.addf %231, %232 : vector<1x256xf32>
    %234 = arith.negf %233 : vector<1x256xf32>
    %235 = math.exp %234 : vector<1x256xf32>
    %cst_122 = arith.constant 1.000000e+00 : f32
    %236 = vector.broadcast %cst_122 : f32 to vector<1x256xf32>
    %237 = arith.addf %236, %235 : vector<1x256xf32>
    %238 = arith.divf %236, %237 : vector<1x256xf32>
    %239 = vector.extract_strided_slice %238 {offsets = [0, 0], sizes = [1, 128], strides = [1, 1]} : vector<1x256xf32> to vector<1x128xf32>
    %240 = vector.extract_strided_slice %238 {offsets = [0, 128], sizes = [1, 128], strides = [1, 1]} : vector<1x256xf32> to vector<1x128xf32>
    %241 = vector.extract_strided_slice %227 {offsets = [0, 256], sizes = [1, 128], strides = [1, 1]} : vector<1x384xf32> to vector<1x128xf32>
    %242 = vector.extract_strided_slice %230 {offsets = [0, 256], sizes = [1, 128], strides = [1, 1]} : vector<1x384xf32> to vector<1x128xf32>
    %c0_123 = arith.constant 0 : index
    %c0_124 = arith.constant 0 : index
    %c0_125 = arith.constant 0 : index
    %243 = vector.load %arg6[%c0_123, %c0_124, %c0_125] : memref<2x1x128xf32, #tpu.memory_space<vmem>>, vector<1x1x128xf32>
    %244 = vector.shape_cast %243 : vector<1x1x128xf32> to vector<1x128xf32>
    %245 = arith.addf %242, %244 : vector<1x128xf32>
    %246 = arith.mulf %239, %245 : vector<1x128xf32>
    %247 = arith.addf %241, %246 : vector<1x128xf32>
    %248 = math.tanh %247 : vector<1x128xf32>
    %cst_126 = arith.constant 1.000000e+00 : f32
    %249 = vector.broadcast %cst_126 : f32 to vector<1x128xf32>
    %250 = arith.subf %249, %240 : vector<1x128xf32>
    %251 = arith.mulf %250, %248 : vector<1x128xf32>
    %252 = arith.mulf %240, %184 : vector<1x128xf32>
    %253 = arith.addf %251, %252 : vector<1x128xf32>
    %254 = arith.select %220, %253, %184 : vector<1x128xf32>
    %c1_127 = arith.constant 1 : index
    %c0_128 = arith.constant 0 : index
    %c0_129 = arith.constant 0 : index
    %255 = vector.load %arg3[%c1_127, %c0_128, %c0_129] : memref<2x128x384xf32, #tpu.memory_space<vmem>>, vector<1x128x384xf32>
    %256 = vector.shape_cast %255 : vector<1x128x384xf32> to vector<128x384xf32>
    %cst_130 = arith.constant dense<0.000000e+00> : vector<1x384xf32>
    %257 = tpu.matmul %254, %256, %cst_130 {dimension_numbers = #tpu.dot_dimension_numbers<[1], [0], [0], [1], [0, 0, 1, 1], [], []>} : vector<1x128xf32>, vector<128x384xf32>, vector<1x384xf32> -> vector<1x384xf32>
    %c1_131 = arith.constant 1 : index
    %c0_132 = arith.constant 0 : index
    %c0_133 = arith.constant 0 : index
    %258 = vector.load %arg5[%c1_131, %c0_132, %c0_133] : memref<2x1x384xf32, #tpu.memory_space<vmem>>, vector<1x1x384xf32>
    %259 = vector.shape_cast %258 : vector<1x1x384xf32> to vector<1x384xf32>
    %260 = arith.addf %257, %259 : vector<1x384xf32>
    %c1_134 = arith.constant 1 : index
    %c0_135 = arith.constant 0 : index
    %c0_136 = arith.constant 0 : index
    %261 = vector.load %arg4[%c1_134, %c0_135, %c0_136] : memref<2x128x384xf32, #tpu.memory_space<vmem>>, vector<1x128x384xf32>
    %262 = vector.shape_cast %261 : vector<1x128x384xf32> to vector<128x384xf32>
    %cst_137 = arith.constant dense<0.000000e+00> : vector<1x384xf32>
    %263 = tpu.matmul %217, %262, %cst_137 {dimension_numbers = #tpu.dot_dimension_numbers<[1], [0], [0], [1], [0, 0, 1, 1], [], []>} : vector<1x128xf32>, vector<128x384xf32>, vector<1x384xf32> -> vector<1x384xf32>
    %264 = vector.extract_strided_slice %260 {offsets = [0, 0], sizes = [1, 256], strides = [1, 1]} : vector<1x384xf32> to vector<1x256xf32>
    %265 = vector.extract_strided_slice %263 {offsets = [0, 0], sizes = [1, 256], strides = [1, 1]} : vector<1x384xf32> to vector<1x256xf32>
    %266 = arith.addf %264, %265 : vector<1x256xf32>
    %267 = arith.negf %266 : vector<1x256xf32>
    %268 = math.exp %267 : vector<1x256xf32>
    %cst_138 = arith.constant 1.000000e+00 : f32
    %269 = vector.broadcast %cst_138 : f32 to vector<1x256xf32>
    %270 = arith.addf %269, %268 : vector<1x256xf32>
    %271 = arith.divf %269, %270 : vector<1x256xf32>
    %272 = vector.extract_strided_slice %271 {offsets = [0, 0], sizes = [1, 128], strides = [1, 1]} : vector<1x256xf32> to vector<1x128xf32>
    %273 = vector.extract_strided_slice %271 {offsets = [0, 128], sizes = [1, 128], strides = [1, 1]} : vector<1x256xf32> to vector<1x128xf32>
    %274 = vector.extract_strided_slice %260 {offsets = [0, 256], sizes = [1, 128], strides = [1, 1]} : vector<1x384xf32> to vector<1x128xf32>
    %275 = vector.extract_strided_slice %263 {offsets = [0, 256], sizes = [1, 128], strides = [1, 1]} : vector<1x384xf32> to vector<1x128xf32>
    %c1_139 = arith.constant 1 : index
    %c0_140 = arith.constant 0 : index
    %c0_141 = arith.constant 0 : index
    %276 = vector.load %arg6[%c1_139, %c0_140, %c0_141] : memref<2x1x128xf32, #tpu.memory_space<vmem>>, vector<1x1x128xf32>
    %277 = vector.shape_cast %276 : vector<1x1x128xf32> to vector<1x128xf32>
    %278 = arith.addf %275, %277 : vector<1x128xf32>
    %279 = arith.mulf %272, %278 : vector<1x128xf32>
    %280 = arith.addf %274, %279 : vector<1x128xf32>
    %281 = math.tanh %280 : vector<1x128xf32>
    %cst_142 = arith.constant 1.000000e+00 : f32
    %282 = vector.broadcast %cst_142 : f32 to vector<1x128xf32>
    %283 = arith.subf %282, %273 : vector<1x128xf32>
    %284 = arith.mulf %283, %281 : vector<1x128xf32>
    %285 = arith.mulf %273, %217 : vector<1x128xf32>
    %286 = arith.addf %284, %285 : vector<1x128xf32>
    %287 = arith.select %220, %286, %217 : vector<1x128xf32>
    %cst_143 = arith.constant 0.000000e+00 : f32
    %288 = vector.broadcast %cst_143 : f32 to vector<1x128xf32>
    %289 = arith.select %220, %287, %288 : vector<1x128xf32>
    %c4_i32 = arith.constant 4 : i32
    %290 = arith.cmpi sgt, %5, %c4_i32 : i32
    %c4 = arith.constant 4 : index
    %c0_144 = arith.constant 0 : index
    %291 = vector.load %arg2[%c4, %c0_144] : memref<8x128xf32, #tpu.memory_space<vmem>>, vector<1x128xf32>
    %c0_145 = arith.constant 0 : index
    %c0_146 = arith.constant 0 : index
    %c0_147 = arith.constant 0 : index
    %292 = vector.load %arg3[%c0_145, %c0_146, %c0_147] : memref<2x128x384xf32, #tpu.memory_space<vmem>>, vector<1x128x384xf32>
    %293 = vector.shape_cast %292 : vector<1x128x384xf32> to vector<128x384xf32>
    %cst_148 = arith.constant dense<0.000000e+00> : vector<1x384xf32>
    %294 = tpu.matmul %291, %293, %cst_148 {dimension_numbers = #tpu.dot_dimension_numbers<[1], [0], [0], [1], [0, 0, 1, 1], [], []>} : vector<1x128xf32>, vector<128x384xf32>, vector<1x384xf32> -> vector<1x384xf32>
    %c0_149 = arith.constant 0 : index
    %c0_150 = arith.constant 0 : index
    %c0_151 = arith.constant 0 : index
    %295 = vector.load %arg5[%c0_149, %c0_150, %c0_151] : memref<2x1x384xf32, #tpu.memory_space<vmem>>, vector<1x1x384xf32>
    %296 = vector.shape_cast %295 : vector<1x1x384xf32> to vector<1x384xf32>
    %297 = arith.addf %294, %296 : vector<1x384xf32>
    %c0_152 = arith.constant 0 : index
    %c0_153 = arith.constant 0 : index
    %c0_154 = arith.constant 0 : index
    %298 = vector.load %arg4[%c0_152, %c0_153, %c0_154] : memref<2x128x384xf32, #tpu.memory_space<vmem>>, vector<1x128x384xf32>
    %299 = vector.shape_cast %298 : vector<1x128x384xf32> to vector<128x384xf32>
    %cst_155 = arith.constant dense<0.000000e+00> : vector<1x384xf32>
    %300 = tpu.matmul %254, %299, %cst_155 {dimension_numbers = #tpu.dot_dimension_numbers<[1], [0], [0], [1], [0, 0, 1, 1], [], []>} : vector<1x128xf32>, vector<128x384xf32>, vector<1x384xf32> -> vector<1x384xf32>
    %301 = vector.extract_strided_slice %297 {offsets = [0, 0], sizes = [1, 256], strides = [1, 1]} : vector<1x384xf32> to vector<1x256xf32>
    %302 = vector.extract_strided_slice %300 {offsets = [0, 0], sizes = [1, 256], strides = [1, 1]} : vector<1x384xf32> to vector<1x256xf32>
    %303 = arith.addf %301, %302 : vector<1x256xf32>
    %304 = arith.negf %303 : vector<1x256xf32>
    %305 = math.exp %304 : vector<1x256xf32>
    %cst_156 = arith.constant 1.000000e+00 : f32
    %306 = vector.broadcast %cst_156 : f32 to vector<1x256xf32>
    %307 = arith.addf %306, %305 : vector<1x256xf32>
    %308 = arith.divf %306, %307 : vector<1x256xf32>
    %309 = vector.extract_strided_slice %308 {offsets = [0, 0], sizes = [1, 128], strides = [1, 1]} : vector<1x256xf32> to vector<1x128xf32>
    %310 = vector.extract_strided_slice %308 {offsets = [0, 128], sizes = [1, 128], strides = [1, 1]} : vector<1x256xf32> to vector<1x128xf32>
    %311 = vector.extract_strided_slice %297 {offsets = [0, 256], sizes = [1, 128], strides = [1, 1]} : vector<1x384xf32> to vector<1x128xf32>
    %312 = vector.extract_strided_slice %300 {offsets = [0, 256], sizes = [1, 128], strides = [1, 1]} : vector<1x384xf32> to vector<1x128xf32>
    %c0_157 = arith.constant 0 : index
    %c0_158 = arith.constant 0 : index
    %c0_159 = arith.constant 0 : index
    %313 = vector.load %arg6[%c0_157, %c0_158, %c0_159] : memref<2x1x128xf32, #tpu.memory_space<vmem>>, vector<1x1x128xf32>
    %314 = vector.shape_cast %313 : vector<1x1x128xf32> to vector<1x128xf32>
    %315 = arith.addf %312, %314 : vector<1x128xf32>
    %316 = arith.mulf %309, %315 : vector<1x128xf32>
    %317 = arith.addf %311, %316 : vector<1x128xf32>
    %318 = math.tanh %317 : vector<1x128xf32>
    %cst_160 = arith.constant 1.000000e+00 : f32
    %319 = vector.broadcast %cst_160 : f32 to vector<1x128xf32>
    %320 = arith.subf %319, %310 : vector<1x128xf32>
    %321 = arith.mulf %320, %318 : vector<1x128xf32>
    %322 = arith.mulf %310, %254 : vector<1x128xf32>
    %323 = arith.addf %321, %322 : vector<1x128xf32>
    %324 = arith.select %290, %323, %254 : vector<1x128xf32>
    %c1_161 = arith.constant 1 : index
    %c0_162 = arith.constant 0 : index
    %c0_163 = arith.constant 0 : index
    %325 = vector.load %arg3[%c1_161, %c0_162, %c0_163] : memref<2x128x384xf32, #tpu.memory_space<vmem>>, vector<1x128x384xf32>
    %326 = vector.shape_cast %325 : vector<1x128x384xf32> to vector<128x384xf32>
    %cst_164 = arith.constant dense<0.000000e+00> : vector<1x384xf32>
    %327 = tpu.matmul %324, %326, %cst_164 {dimension_numbers = #tpu.dot_dimension_numbers<[1], [0], [0], [1], [0, 0, 1, 1], [], []>} : vector<1x128xf32>, vector<128x384xf32>, vector<1x384xf32> -> vector<1x384xf32>
    %c1_165 = arith.constant 1 : index
    %c0_166 = arith.constant 0 : index
    %c0_167 = arith.constant 0 : index
    %328 = vector.load %arg5[%c1_165, %c0_166, %c0_167] : memref<2x1x384xf32, #tpu.memory_space<vmem>>, vector<1x1x384xf32>
    %329 = vector.shape_cast %328 : vector<1x1x384xf32> to vector<1x384xf32>
    %330 = arith.addf %327, %329 : vector<1x384xf32>
    %c1_168 = arith.constant 1 : index
    %c0_169 = arith.constant 0 : index
    %c0_170 = arith.constant 0 : index
    %331 = vector.load %arg4[%c1_168, %c0_169, %c0_170] : memref<2x128x384xf32, #tpu.memory_space<vmem>>, vector<1x128x384xf32>
    %332 = vector.shape_cast %331 : vector<1x128x384xf32> to vector<128x384xf32>
    %cst_171 = arith.constant dense<0.000000e+00> : vector<1x384xf32>
    %333 = tpu.matmul %287, %332, %cst_171 {dimension_numbers = #tpu.dot_dimension_numbers<[1], [0], [0], [1], [0, 0, 1, 1], [], []>} : vector<1x128xf32>, vector<128x384xf32>, vector<1x384xf32> -> vector<1x384xf32>
    %334 = vector.extract_strided_slice %330 {offsets = [0, 0], sizes = [1, 256], strides = [1, 1]} : vector<1x384xf32> to vector<1x256xf32>
    %335 = vector.extract_strided_slice %333 {offsets = [0, 0], sizes = [1, 256], strides = [1, 1]} : vector<1x384xf32> to vector<1x256xf32>
    %336 = arith.addf %334, %335 : vector<1x256xf32>
    %337 = arith.negf %336 : vector<1x256xf32>
    %338 = math.exp %337 : vector<1x256xf32>
    %cst_172 = arith.constant 1.000000e+00 : f32
    %339 = vector.broadcast %cst_172 : f32 to vector<1x256xf32>
    %340 = arith.addf %339, %338 : vector<1x256xf32>
    %341 = arith.divf %339, %340 : vector<1x256xf32>
    %342 = vector.extract_strided_slice %341 {offsets = [0, 0], sizes = [1, 128], strides = [1, 1]} : vector<1x256xf32> to vector<1x128xf32>
    %343 = vector.extract_strided_slice %341 {offsets = [0, 128], sizes = [1, 128], strides = [1, 1]} : vector<1x256xf32> to vector<1x128xf32>
    %344 = vector.extract_strided_slice %330 {offsets = [0, 256], sizes = [1, 128], strides = [1, 1]} : vector<1x384xf32> to vector<1x128xf32>
    %345 = vector.extract_strided_slice %333 {offsets = [0, 256], sizes = [1, 128], strides = [1, 1]} : vector<1x384xf32> to vector<1x128xf32>
    %c1_173 = arith.constant 1 : index
    %c0_174 = arith.constant 0 : index
    %c0_175 = arith.constant 0 : index
    %346 = vector.load %arg6[%c1_173, %c0_174, %c0_175] : memref<2x1x128xf32, #tpu.memory_space<vmem>>, vector<1x1x128xf32>
    %347 = vector.shape_cast %346 : vector<1x1x128xf32> to vector<1x128xf32>
    %348 = arith.addf %345, %347 : vector<1x128xf32>
    %349 = arith.mulf %342, %348 : vector<1x128xf32>
    %350 = arith.addf %344, %349 : vector<1x128xf32>
    %351 = math.tanh %350 : vector<1x128xf32>
    %cst_176 = arith.constant 1.000000e+00 : f32
    %352 = vector.broadcast %cst_176 : f32 to vector<1x128xf32>
    %353 = arith.subf %352, %343 : vector<1x128xf32>
    %354 = arith.mulf %353, %351 : vector<1x128xf32>
    %355 = arith.mulf %343, %287 : vector<1x128xf32>
    %356 = arith.addf %354, %355 : vector<1x128xf32>
    %357 = arith.select %290, %356, %287 : vector<1x128xf32>
    %cst_177 = arith.constant 0.000000e+00 : f32
    %358 = vector.broadcast %cst_177 : f32 to vector<1x128xf32>
    %359 = arith.select %290, %357, %358 : vector<1x128xf32>
    %c5_i32 = arith.constant 5 : i32
    %360 = arith.cmpi sgt, %5, %c5_i32 : i32
    %c5 = arith.constant 5 : index
    %c0_178 = arith.constant 0 : index
    %361 = vector.load %arg2[%c5, %c0_178] : memref<8x128xf32, #tpu.memory_space<vmem>>, vector<1x128xf32>
    %c0_179 = arith.constant 0 : index
    %c0_180 = arith.constant 0 : index
    %c0_181 = arith.constant 0 : index
    %362 = vector.load %arg3[%c0_179, %c0_180, %c0_181] : memref<2x128x384xf32, #tpu.memory_space<vmem>>, vector<1x128x384xf32>
    %363 = vector.shape_cast %362 : vector<1x128x384xf32> to vector<128x384xf32>
    %cst_182 = arith.constant dense<0.000000e+00> : vector<1x384xf32>
    %364 = tpu.matmul %361, %363, %cst_182 {dimension_numbers = #tpu.dot_dimension_numbers<[1], [0], [0], [1], [0, 0, 1, 1], [], []>} : vector<1x128xf32>, vector<128x384xf32>, vector<1x384xf32> -> vector<1x384xf32>
    %c0_183 = arith.constant 0 : index
    %c0_184 = arith.constant 0 : index
    %c0_185 = arith.constant 0 : index
    %365 = vector.load %arg5[%c0_183, %c0_184, %c0_185] : memref<2x1x384xf32, #tpu.memory_space<vmem>>, vector<1x1x384xf32>
    %366 = vector.shape_cast %365 : vector<1x1x384xf32> to vector<1x384xf32>
    %367 = arith.addf %364, %366 : vector<1x384xf32>
    %c0_186 = arith.constant 0 : index
    %c0_187 = arith.constant 0 : index
    %c0_188 = arith.constant 0 : index
    %368 = vector.load %arg4[%c0_186, %c0_187, %c0_188] : memref<2x128x384xf32, #tpu.memory_space<vmem>>, vector<1x128x384xf32>
    %369 = vector.shape_cast %368 : vector<1x128x384xf32> to vector<128x384xf32>
    %cst_189 = arith.constant dense<0.000000e+00> : vector<1x384xf32>
    %370 = tpu.matmul %324, %369, %cst_189 {dimension_numbers = #tpu.dot_dimension_numbers<[1], [0], [0], [1], [0, 0, 1, 1], [], []>} : vector<1x128xf32>, vector<128x384xf32>, vector<1x384xf32> -> vector<1x384xf32>
    %371 = vector.extract_strided_slice %367 {offsets = [0, 0], sizes = [1, 256], strides = [1, 1]} : vector<1x384xf32> to vector<1x256xf32>
    %372 = vector.extract_strided_slice %370 {offsets = [0, 0], sizes = [1, 256], strides = [1, 1]} : vector<1x384xf32> to vector<1x256xf32>
    %373 = arith.addf %371, %372 : vector<1x256xf32>
    %374 = arith.negf %373 : vector<1x256xf32>
    %375 = math.exp %374 : vector<1x256xf32>
    %cst_190 = arith.constant 1.000000e+00 : f32
    %376 = vector.broadcast %cst_190 : f32 to vector<1x256xf32>
    %377 = arith.addf %376, %375 : vector<1x256xf32>
    %378 = arith.divf %376, %377 : vector<1x256xf32>
    %379 = vector.extract_strided_slice %378 {offsets = [0, 0], sizes = [1, 128], strides = [1, 1]} : vector<1x256xf32> to vector<1x128xf32>
    %380 = vector.extract_strided_slice %378 {offsets = [0, 128], sizes = [1, 128], strides = [1, 1]} : vector<1x256xf32> to vector<1x128xf32>
    %381 = vector.extract_strided_slice %367 {offsets = [0, 256], sizes = [1, 128], strides = [1, 1]} : vector<1x384xf32> to vector<1x128xf32>
    %382 = vector.extract_strided_slice %370 {offsets = [0, 256], sizes = [1, 128], strides = [1, 1]} : vector<1x384xf32> to vector<1x128xf32>
    %c0_191 = arith.constant 0 : index
    %c0_192 = arith.constant 0 : index
    %c0_193 = arith.constant 0 : index
    %383 = vector.load %arg6[%c0_191, %c0_192, %c0_193] : memref<2x1x128xf32, #tpu.memory_space<vmem>>, vector<1x1x128xf32>
    %384 = vector.shape_cast %383 : vector<1x1x128xf32> to vector<1x128xf32>
    %385 = arith.addf %382, %384 : vector<1x128xf32>
    %386 = arith.mulf %379, %385 : vector<1x128xf32>
    %387 = arith.addf %381, %386 : vector<1x128xf32>
    %388 = math.tanh %387 : vector<1x128xf32>
    %cst_194 = arith.constant 1.000000e+00 : f32
    %389 = vector.broadcast %cst_194 : f32 to vector<1x128xf32>
    %390 = arith.subf %389, %380 : vector<1x128xf32>
    %391 = arith.mulf %390, %388 : vector<1x128xf32>
    %392 = arith.mulf %380, %324 : vector<1x128xf32>
    %393 = arith.addf %391, %392 : vector<1x128xf32>
    %394 = arith.select %360, %393, %324 : vector<1x128xf32>
    %c1_195 = arith.constant 1 : index
    %c0_196 = arith.constant 0 : index
    %c0_197 = arith.constant 0 : index
    %395 = vector.load %arg3[%c1_195, %c0_196, %c0_197] : memref<2x128x384xf32, #tpu.memory_space<vmem>>, vector<1x128x384xf32>
    %396 = vector.shape_cast %395 : vector<1x128x384xf32> to vector<128x384xf32>
    %cst_198 = arith.constant dense<0.000000e+00> : vector<1x384xf32>
    %397 = tpu.matmul %394, %396, %cst_198 {dimension_numbers = #tpu.dot_dimension_numbers<[1], [0], [0], [1], [0, 0, 1, 1], [], []>} : vector<1x128xf32>, vector<128x384xf32>, vector<1x384xf32> -> vector<1x384xf32>
    %c1_199 = arith.constant 1 : index
    %c0_200 = arith.constant 0 : index
    %c0_201 = arith.constant 0 : index
    %398 = vector.load %arg5[%c1_199, %c0_200, %c0_201] : memref<2x1x384xf32, #tpu.memory_space<vmem>>, vector<1x1x384xf32>
    %399 = vector.shape_cast %398 : vector<1x1x384xf32> to vector<1x384xf32>
    %400 = arith.addf %397, %399 : vector<1x384xf32>
    %c1_202 = arith.constant 1 : index
    %c0_203 = arith.constant 0 : index
    %c0_204 = arith.constant 0 : index
    %401 = vector.load %arg4[%c1_202, %c0_203, %c0_204] : memref<2x128x384xf32, #tpu.memory_space<vmem>>, vector<1x128x384xf32>
    %402 = vector.shape_cast %401 : vector<1x128x384xf32> to vector<128x384xf32>
    %cst_205 = arith.constant dense<0.000000e+00> : vector<1x384xf32>
    %403 = tpu.matmul %357, %402, %cst_205 {dimension_numbers = #tpu.dot_dimension_numbers<[1], [0], [0], [1], [0, 0, 1, 1], [], []>} : vector<1x128xf32>, vector<128x384xf32>, vector<1x384xf32> -> vector<1x384xf32>
    %404 = vector.extract_strided_slice %400 {offsets = [0, 0], sizes = [1, 256], strides = [1, 1]} : vector<1x384xf32> to vector<1x256xf32>
    %405 = vector.extract_strided_slice %403 {offsets = [0, 0], sizes = [1, 256], strides = [1, 1]} : vector<1x384xf32> to vector<1x256xf32>
    %406 = arith.addf %404, %405 : vector<1x256xf32>
    %407 = arith.negf %406 : vector<1x256xf32>
    %408 = math.exp %407 : vector<1x256xf32>
    %cst_206 = arith.constant 1.000000e+00 : f32
    %409 = vector.broadcast %cst_206 : f32 to vector<1x256xf32>
    %410 = arith.addf %409, %408 : vector<1x256xf32>
    %411 = arith.divf %409, %410 : vector<1x256xf32>
    %412 = vector.extract_strided_slice %411 {offsets = [0, 0], sizes = [1, 128], strides = [1, 1]} : vector<1x256xf32> to vector<1x128xf32>
    %413 = vector.extract_strided_slice %411 {offsets = [0, 128], sizes = [1, 128], strides = [1, 1]} : vector<1x256xf32> to vector<1x128xf32>
    %414 = vector.extract_strided_slice %400 {offsets = [0, 256], sizes = [1, 128], strides = [1, 1]} : vector<1x384xf32> to vector<1x128xf32>
    %415 = vector.extract_strided_slice %403 {offsets = [0, 256], sizes = [1, 128], strides = [1, 1]} : vector<1x384xf32> to vector<1x128xf32>
    %c1_207 = arith.constant 1 : index
    %c0_208 = arith.constant 0 : index
    %c0_209 = arith.constant 0 : index
    %416 = vector.load %arg6[%c1_207, %c0_208, %c0_209] : memref<2x1x128xf32, #tpu.memory_space<vmem>>, vector<1x1x128xf32>
    %417 = vector.shape_cast %416 : vector<1x1x128xf32> to vector<1x128xf32>
    %418 = arith.addf %415, %417 : vector<1x128xf32>
    %419 = arith.mulf %412, %418 : vector<1x128xf32>
    %420 = arith.addf %414, %419 : vector<1x128xf32>
    %421 = math.tanh %420 : vector<1x128xf32>
    %cst_210 = arith.constant 1.000000e+00 : f32
    %422 = vector.broadcast %cst_210 : f32 to vector<1x128xf32>
    %423 = arith.subf %422, %413 : vector<1x128xf32>
    %424 = arith.mulf %423, %421 : vector<1x128xf32>
    %425 = arith.mulf %413, %357 : vector<1x128xf32>
    %426 = arith.addf %424, %425 : vector<1x128xf32>
    %427 = arith.select %360, %426, %357 : vector<1x128xf32>
    %cst_211 = arith.constant 0.000000e+00 : f32
    %428 = vector.broadcast %cst_211 : f32 to vector<1x128xf32>
    %429 = arith.select %360, %427, %428 : vector<1x128xf32>
    %c6_i32 = arith.constant 6 : i32
    %430 = arith.cmpi sgt, %5, %c6_i32 : i32
    %c6 = arith.constant 6 : index
    %c0_212 = arith.constant 0 : index
    %431 = vector.load %arg2[%c6, %c0_212] : memref<8x128xf32, #tpu.memory_space<vmem>>, vector<1x128xf32>
    %c0_213 = arith.constant 0 : index
    %c0_214 = arith.constant 0 : index
    %c0_215 = arith.constant 0 : index
    %432 = vector.load %arg3[%c0_213, %c0_214, %c0_215] : memref<2x128x384xf32, #tpu.memory_space<vmem>>, vector<1x128x384xf32>
    %433 = vector.shape_cast %432 : vector<1x128x384xf32> to vector<128x384xf32>
    %cst_216 = arith.constant dense<0.000000e+00> : vector<1x384xf32>
    %434 = tpu.matmul %431, %433, %cst_216 {dimension_numbers = #tpu.dot_dimension_numbers<[1], [0], [0], [1], [0, 0, 1, 1], [], []>} : vector<1x128xf32>, vector<128x384xf32>, vector<1x384xf32> -> vector<1x384xf32>
    %c0_217 = arith.constant 0 : index
    %c0_218 = arith.constant 0 : index
    %c0_219 = arith.constant 0 : index
    %435 = vector.load %arg5[%c0_217, %c0_218, %c0_219] : memref<2x1x384xf32, #tpu.memory_space<vmem>>, vector<1x1x384xf32>
    %436 = vector.shape_cast %435 : vector<1x1x384xf32> to vector<1x384xf32>
    %437 = arith.addf %434, %436 : vector<1x384xf32>
    %c0_220 = arith.constant 0 : index
    %c0_221 = arith.constant 0 : index
    %c0_222 = arith.constant 0 : index
    %438 = vector.load %arg4[%c0_220, %c0_221, %c0_222] : memref<2x128x384xf32, #tpu.memory_space<vmem>>, vector<1x128x384xf32>
    %439 = vector.shape_cast %438 : vector<1x128x384xf32> to vector<128x384xf32>
    %cst_223 = arith.constant dense<0.000000e+00> : vector<1x384xf32>
    %440 = tpu.matmul %394, %439, %cst_223 {dimension_numbers = #tpu.dot_dimension_numbers<[1], [0], [0], [1], [0, 0, 1, 1], [], []>} : vector<1x128xf32>, vector<128x384xf32>, vector<1x384xf32> -> vector<1x384xf32>
    %441 = vector.extract_strided_slice %437 {offsets = [0, 0], sizes = [1, 256], strides = [1, 1]} : vector<1x384xf32> to vector<1x256xf32>
    %442 = vector.extract_strided_slice %440 {offsets = [0, 0], sizes = [1, 256], strides = [1, 1]} : vector<1x384xf32> to vector<1x256xf32>
    %443 = arith.addf %441, %442 : vector<1x256xf32>
    %444 = arith.negf %443 : vector<1x256xf32>
    %445 = math.exp %444 : vector<1x256xf32>
    %cst_224 = arith.constant 1.000000e+00 : f32
    %446 = vector.broadcast %cst_224 : f32 to vector<1x256xf32>
    %447 = arith.addf %446, %445 : vector<1x256xf32>
    %448 = arith.divf %446, %447 : vector<1x256xf32>
    %449 = vector.extract_strided_slice %448 {offsets = [0, 0], sizes = [1, 128], strides = [1, 1]} : vector<1x256xf32> to vector<1x128xf32>
    %450 = vector.extract_strided_slice %448 {offsets = [0, 128], sizes = [1, 128], strides = [1, 1]} : vector<1x256xf32> to vector<1x128xf32>
    %451 = vector.extract_strided_slice %437 {offsets = [0, 256], sizes = [1, 128], strides = [1, 1]} : vector<1x384xf32> to vector<1x128xf32>
    %452 = vector.extract_strided_slice %440 {offsets = [0, 256], sizes = [1, 128], strides = [1, 1]} : vector<1x384xf32> to vector<1x128xf32>
    %c0_225 = arith.constant 0 : index
    %c0_226 = arith.constant 0 : index
    %c0_227 = arith.constant 0 : index
    %453 = vector.load %arg6[%c0_225, %c0_226, %c0_227] : memref<2x1x128xf32, #tpu.memory_space<vmem>>, vector<1x1x128xf32>
    %454 = vector.shape_cast %453 : vector<1x1x128xf32> to vector<1x128xf32>
    %455 = arith.addf %452, %454 : vector<1x128xf32>
    %456 = arith.mulf %449, %455 : vector<1x128xf32>
    %457 = arith.addf %451, %456 : vector<1x128xf32>
    %458 = math.tanh %457 : vector<1x128xf32>
    %cst_228 = arith.constant 1.000000e+00 : f32
    %459 = vector.broadcast %cst_228 : f32 to vector<1x128xf32>
    %460 = arith.subf %459, %450 : vector<1x128xf32>
    %461 = arith.mulf %460, %458 : vector<1x128xf32>
    %462 = arith.mulf %450, %394 : vector<1x128xf32>
    %463 = arith.addf %461, %462 : vector<1x128xf32>
    %464 = arith.select %430, %463, %394 : vector<1x128xf32>
    %c1_229 = arith.constant 1 : index
    %c0_230 = arith.constant 0 : index
    %c0_231 = arith.constant 0 : index
    %465 = vector.load %arg3[%c1_229, %c0_230, %c0_231] : memref<2x128x384xf32, #tpu.memory_space<vmem>>, vector<1x128x384xf32>
    %466 = vector.shape_cast %465 : vector<1x128x384xf32> to vector<128x384xf32>
    %cst_232 = arith.constant dense<0.000000e+00> : vector<1x384xf32>
    %467 = tpu.matmul %464, %466, %cst_232 {dimension_numbers = #tpu.dot_dimension_numbers<[1], [0], [0], [1], [0, 0, 1, 1], [], []>} : vector<1x128xf32>, vector<128x384xf32>, vector<1x384xf32> -> vector<1x384xf32>
    %c1_233 = arith.constant 1 : index
    %c0_234 = arith.constant 0 : index
    %c0_235 = arith.constant 0 : index
    %468 = vector.load %arg5[%c1_233, %c0_234, %c0_235] : memref<2x1x384xf32, #tpu.memory_space<vmem>>, vector<1x1x384xf32>
    %469 = vector.shape_cast %468 : vector<1x1x384xf32> to vector<1x384xf32>
    %470 = arith.addf %467, %469 : vector<1x384xf32>
    %c1_236 = arith.constant 1 : index
    %c0_237 = arith.constant 0 : index
    %c0_238 = arith.constant 0 : index
    %471 = vector.load %arg4[%c1_236, %c0_237, %c0_238] : memref<2x128x384xf32, #tpu.memory_space<vmem>>, vector<1x128x384xf32>
    %472 = vector.shape_cast %471 : vector<1x128x384xf32> to vector<128x384xf32>
    %cst_239 = arith.constant dense<0.000000e+00> : vector<1x384xf32>
    %473 = tpu.matmul %427, %472, %cst_239 {dimension_numbers = #tpu.dot_dimension_numbers<[1], [0], [0], [1], [0, 0, 1, 1], [], []>} : vector<1x128xf32>, vector<128x384xf32>, vector<1x384xf32> -> vector<1x384xf32>
    %474 = vector.extract_strided_slice %470 {offsets = [0, 0], sizes = [1, 256], strides = [1, 1]} : vector<1x384xf32> to vector<1x256xf32>
    %475 = vector.extract_strided_slice %473 {offsets = [0, 0], sizes = [1, 256], strides = [1, 1]} : vector<1x384xf32> to vector<1x256xf32>
    %476 = arith.addf %474, %475 : vector<1x256xf32>
    %477 = arith.negf %476 : vector<1x256xf32>
    %478 = math.exp %477 : vector<1x256xf32>
    %cst_240 = arith.constant 1.000000e+00 : f32
    %479 = vector.broadcast %cst_240 : f32 to vector<1x256xf32>
    %480 = arith.addf %479, %478 : vector<1x256xf32>
    %481 = arith.divf %479, %480 : vector<1x256xf32>
    %482 = vector.extract_strided_slice %481 {offsets = [0, 0], sizes = [1, 128], strides = [1, 1]} : vector<1x256xf32> to vector<1x128xf32>
    %483 = vector.extract_strided_slice %481 {offsets = [0, 128], sizes = [1, 128], strides = [1, 1]} : vector<1x256xf32> to vector<1x128xf32>
    %484 = vector.extract_strided_slice %470 {offsets = [0, 256], sizes = [1, 128], strides = [1, 1]} : vector<1x384xf32> to vector<1x128xf32>
    %485 = vector.extract_strided_slice %473 {offsets = [0, 256], sizes = [1, 128], strides = [1, 1]} : vector<1x384xf32> to vector<1x128xf32>
    %c1_241 = arith.constant 1 : index
    %c0_242 = arith.constant 0 : index
    %c0_243 = arith.constant 0 : index
    %486 = vector.load %arg6[%c1_241, %c0_242, %c0_243] : memref<2x1x128xf32, #tpu.memory_space<vmem>>, vector<1x1x128xf32>
    %487 = vector.shape_cast %486 : vector<1x1x128xf32> to vector<1x128xf32>
    %488 = arith.addf %485, %487 : vector<1x128xf32>
    %489 = arith.mulf %482, %488 : vector<1x128xf32>
    %490 = arith.addf %484, %489 : vector<1x128xf32>
    %491 = math.tanh %490 : vector<1x128xf32>
    %cst_244 = arith.constant 1.000000e+00 : f32
    %492 = vector.broadcast %cst_244 : f32 to vector<1x128xf32>
    %493 = arith.subf %492, %483 : vector<1x128xf32>
    %494 = arith.mulf %493, %491 : vector<1x128xf32>
    %495 = arith.mulf %483, %427 : vector<1x128xf32>
    %496 = arith.addf %494, %495 : vector<1x128xf32>
    %497 = arith.select %430, %496, %427 : vector<1x128xf32>
    %cst_245 = arith.constant 0.000000e+00 : f32
    %498 = vector.broadcast %cst_245 : f32 to vector<1x128xf32>
    %499 = arith.select %430, %497, %498 : vector<1x128xf32>
    %c7_i32 = arith.constant 7 : i32
    %500 = arith.cmpi sgt, %5, %c7_i32 : i32
    %c7 = arith.constant 7 : index
    %c0_246 = arith.constant 0 : index
    %501 = vector.load %arg2[%c7, %c0_246] : memref<8x128xf32, #tpu.memory_space<vmem>>, vector<1x128xf32>
    %c0_247 = arith.constant 0 : index
    %c0_248 = arith.constant 0 : index
    %c0_249 = arith.constant 0 : index
    %502 = vector.load %arg3[%c0_247, %c0_248, %c0_249] : memref<2x128x384xf32, #tpu.memory_space<vmem>>, vector<1x128x384xf32>
    %503 = vector.shape_cast %502 : vector<1x128x384xf32> to vector<128x384xf32>
    %cst_250 = arith.constant dense<0.000000e+00> : vector<1x384xf32>
    %504 = tpu.matmul %501, %503, %cst_250 {dimension_numbers = #tpu.dot_dimension_numbers<[1], [0], [0], [1], [0, 0, 1, 1], [], []>} : vector<1x128xf32>, vector<128x384xf32>, vector<1x384xf32> -> vector<1x384xf32>
    %c0_251 = arith.constant 0 : index
    %c0_252 = arith.constant 0 : index
    %c0_253 = arith.constant 0 : index
    %505 = vector.load %arg5[%c0_251, %c0_252, %c0_253] : memref<2x1x384xf32, #tpu.memory_space<vmem>>, vector<1x1x384xf32>
    %506 = vector.shape_cast %505 : vector<1x1x384xf32> to vector<1x384xf32>
    %507 = arith.addf %504, %506 : vector<1x384xf32>
    %c0_254 = arith.constant 0 : index
    %c0_255 = arith.constant 0 : index
    %c0_256 = arith.constant 0 : index
    %508 = vector.load %arg4[%c0_254, %c0_255, %c0_256] : memref<2x128x384xf32, #tpu.memory_space<vmem>>, vector<1x128x384xf32>
    %509 = vector.shape_cast %508 : vector<1x128x384xf32> to vector<128x384xf32>
    %cst_257 = arith.constant dense<0.000000e+00> : vector<1x384xf32>
    %510 = tpu.matmul %464, %509, %cst_257 {dimension_numbers = #tpu.dot_dimension_numbers<[1], [0], [0], [1], [0, 0, 1, 1], [], []>} : vector<1x128xf32>, vector<128x384xf32>, vector<1x384xf32> -> vector<1x384xf32>
    %511 = vector.extract_strided_slice %507 {offsets = [0, 0], sizes = [1, 256], strides = [1, 1]} : vector<1x384xf32> to vector<1x256xf32>
    %512 = vector.extract_strided_slice %510 {offsets = [0, 0], sizes = [1, 256], strides = [1, 1]} : vector<1x384xf32> to vector<1x256xf32>
    %513 = arith.addf %511, %512 : vector<1x256xf32>
    %514 = arith.negf %513 : vector<1x256xf32>
    %515 = math.exp %514 : vector<1x256xf32>
    %cst_258 = arith.constant 1.000000e+00 : f32
    %516 = vector.broadcast %cst_258 : f32 to vector<1x256xf32>
    %517 = arith.addf %516, %515 : vector<1x256xf32>
    %518 = arith.divf %516, %517 : vector<1x256xf32>
    %519 = vector.extract_strided_slice %518 {offsets = [0, 0], sizes = [1, 128], strides = [1, 1]} : vector<1x256xf32> to vector<1x128xf32>
    %520 = vector.extract_strided_slice %518 {offsets = [0, 128], sizes = [1, 128], strides = [1, 1]} : vector<1x256xf32> to vector<1x128xf32>
    %521 = vector.extract_strided_slice %507 {offsets = [0, 256], sizes = [1, 128], strides = [1, 1]} : vector<1x384xf32> to vector<1x128xf32>
    %522 = vector.extract_strided_slice %510 {offsets = [0, 256], sizes = [1, 128], strides = [1, 1]} : vector<1x384xf32> to vector<1x128xf32>
    %c0_259 = arith.constant 0 : index
    %c0_260 = arith.constant 0 : index
    %c0_261 = arith.constant 0 : index
    %523 = vector.load %arg6[%c0_259, %c0_260, %c0_261] : memref<2x1x128xf32, #tpu.memory_space<vmem>>, vector<1x1x128xf32>
    %524 = vector.shape_cast %523 : vector<1x1x128xf32> to vector<1x128xf32>
    %525 = arith.addf %522, %524 : vector<1x128xf32>
    %526 = arith.mulf %519, %525 : vector<1x128xf32>
    %527 = arith.addf %521, %526 : vector<1x128xf32>
    %528 = math.tanh %527 : vector<1x128xf32>
    %cst_262 = arith.constant 1.000000e+00 : f32
    %529 = vector.broadcast %cst_262 : f32 to vector<1x128xf32>
    %530 = arith.subf %529, %520 : vector<1x128xf32>
    %531 = arith.mulf %530, %528 : vector<1x128xf32>
    %532 = arith.mulf %520, %464 : vector<1x128xf32>
    %533 = arith.addf %531, %532 : vector<1x128xf32>
    %534 = arith.select %500, %533, %464 : vector<1x128xf32>
    %c1_263 = arith.constant 1 : index
    %c0_264 = arith.constant 0 : index
    %c0_265 = arith.constant 0 : index
    %535 = vector.load %arg3[%c1_263, %c0_264, %c0_265] : memref<2x128x384xf32, #tpu.memory_space<vmem>>, vector<1x128x384xf32>
    %536 = vector.shape_cast %535 : vector<1x128x384xf32> to vector<128x384xf32>
    %cst_266 = arith.constant dense<0.000000e+00> : vector<1x384xf32>
    %537 = tpu.matmul %534, %536, %cst_266 {dimension_numbers = #tpu.dot_dimension_numbers<[1], [0], [0], [1], [0, 0, 1, 1], [], []>} : vector<1x128xf32>, vector<128x384xf32>, vector<1x384xf32> -> vector<1x384xf32>
    %c1_267 = arith.constant 1 : index
    %c0_268 = arith.constant 0 : index
    %c0_269 = arith.constant 0 : index
    %538 = vector.load %arg5[%c1_267, %c0_268, %c0_269] : memref<2x1x384xf32, #tpu.memory_space<vmem>>, vector<1x1x384xf32>
    %539 = vector.shape_cast %538 : vector<1x1x384xf32> to vector<1x384xf32>
    %540 = arith.addf %537, %539 : vector<1x384xf32>
    %c1_270 = arith.constant 1 : index
    %c0_271 = arith.constant 0 : index
    %c0_272 = arith.constant 0 : index
    %541 = vector.load %arg4[%c1_270, %c0_271, %c0_272] : memref<2x128x384xf32, #tpu.memory_space<vmem>>, vector<1x128x384xf32>
    %542 = vector.shape_cast %541 : vector<1x128x384xf32> to vector<128x384xf32>
    %cst_273 = arith.constant dense<0.000000e+00> : vector<1x384xf32>
    %543 = tpu.matmul %497, %542, %cst_273 {dimension_numbers = #tpu.dot_dimension_numbers<[1], [0], [0], [1], [0, 0, 1, 1], [], []>} : vector<1x128xf32>, vector<128x384xf32>, vector<1x384xf32> -> vector<1x384xf32>
    %544 = vector.extract_strided_slice %540 {offsets = [0, 0], sizes = [1, 256], strides = [1, 1]} : vector<1x384xf32> to vector<1x256xf32>
    %545 = vector.extract_strided_slice %543 {offsets = [0, 0], sizes = [1, 256], strides = [1, 1]} : vector<1x384xf32> to vector<1x256xf32>
    %546 = arith.addf %544, %545 : vector<1x256xf32>
    %547 = arith.negf %546 : vector<1x256xf32>
    %548 = math.exp %547 : vector<1x256xf32>
    %cst_274 = arith.constant 1.000000e+00 : f32
    %549 = vector.broadcast %cst_274 : f32 to vector<1x256xf32>
    %550 = arith.addf %549, %548 : vector<1x256xf32>
    %551 = arith.divf %549, %550 : vector<1x256xf32>
    %552 = vector.extract_strided_slice %551 {offsets = [0, 0], sizes = [1, 128], strides = [1, 1]} : vector<1x256xf32> to vector<1x128xf32>
    %553 = vector.extract_strided_slice %551 {offsets = [0, 128], sizes = [1, 128], strides = [1, 1]} : vector<1x256xf32> to vector<1x128xf32>
    %554 = vector.extract_strided_slice %540 {offsets = [0, 256], sizes = [1, 128], strides = [1, 1]} : vector<1x384xf32> to vector<1x128xf32>
    %555 = vector.extract_strided_slice %543 {offsets = [0, 256], sizes = [1, 128], strides = [1, 1]} : vector<1x384xf32> to vector<1x128xf32>
    %c1_275 = arith.constant 1 : index
    %c0_276 = arith.constant 0 : index
    %c0_277 = arith.constant 0 : index
    %556 = vector.load %arg6[%c1_275, %c0_276, %c0_277] : memref<2x1x128xf32, #tpu.memory_space<vmem>>, vector<1x1x128xf32>
    %557 = vector.shape_cast %556 : vector<1x1x128xf32> to vector<1x128xf32>
    %558 = arith.addf %555, %557 : vector<1x128xf32>
    %559 = arith.mulf %552, %558 : vector<1x128xf32>
    %560 = arith.addf %554, %559 : vector<1x128xf32>
    %561 = math.tanh %560 : vector<1x128xf32>
    %cst_278 = arith.constant 1.000000e+00 : f32
    %562 = vector.broadcast %cst_278 : f32 to vector<1x128xf32>
    %563 = arith.subf %562, %553 : vector<1x128xf32>
    %564 = arith.mulf %563, %561 : vector<1x128xf32>
    %565 = arith.mulf %553, %497 : vector<1x128xf32>
    %566 = arith.addf %564, %565 : vector<1x128xf32>
    %567 = arith.select %500, %566, %497 : vector<1x128xf32>
    %cst_279 = arith.constant 0.000000e+00 : f32
    %568 = vector.broadcast %cst_279 : f32 to vector<1x128xf32>
    %569 = arith.select %500, %567, %568 : vector<1x128xf32>
    %c0_280 = arith.constant 0 : index
    %c0_281 = arith.constant 0 : index
    %c0_282 = arith.constant 0 : index
    %570 = vector.load %arg12[%c0_280, %c0_281, %c0_282] : memref<2x1x128xf32, #tpu.memory_space<vmem>>, vector<1x1x128xf32>
    %571 = vector.shape_cast %570 : vector<1x1x128xf32> to vector<1x128xf32>
    %572 = vector.shape_cast %534 : vector<1x128xf32> to vector<1x1x128xf32>
    tpu.vector_store %arg12[%c0_280, %c0_281, %c0_282], %572 {strides = array<i32>} : memref<2x1x128xf32, #tpu.memory_space<vmem>>, vector<1x1x128xf32>,
    %c1_283 = arith.constant 1 : index
    %c0_284 = arith.constant 0 : index
    %c0_285 = arith.constant 0 : index
    %573 = vector.load %arg12[%c1_283, %c0_284, %c0_285] : memref<2x1x128xf32, #tpu.memory_space<vmem>>, vector<1x1x128xf32>
    %574 = vector.shape_cast %573 : vector<1x1x128xf32> to vector<1x128xf32>
    %575 = vector.shape_cast %567 : vector<1x128xf32> to vector<1x1x128xf32>
    tpu.vector_store %arg12[%c1_283, %c0_284, %c0_285], %575 {strides = array<i32>} : memref<2x1x128xf32, #tpu.memory_space<vmem>>, vector<1x1x128xf32>,
    %576 = tpu.concatenate %79, %149, %219, %289, %359, %429, %499, %569 in 0 : vector<1x128xf32>, vector<1x128xf32>, vector<1x128xf32>, vector<1x128xf32>, vector<1x128xf32>, vector<1x128xf32>, vector<1x128xf32>, vector<1x128xf32> -> vector<8x128xf32>
    %c0_286 = arith.constant 0 : index
    %c0_287 = arith.constant 0 : index
    %577 = vector.load %arg7[%c0_286, %c0_287] : memref<128x128xf32, #tpu.memory_space<vmem>>, vector<128x128xf32>
    %cst_288 = arith.constant dense<0.000000e+00> : vector<8x128xf32>
    %578 = tpu.matmul %576, %577, %cst_288 {dimension_numbers = #tpu.dot_dimension_numbers<[1], [0], [0], [1], [0, 0, 1, 1], [], []>} : vector<8x128xf32>, vector<128x128xf32>, vector<8x128xf32> -> vector<8x128xf32>
    %c0_289 = arith.constant 0 : index
    %c0_290 = arith.constant 0 : index
    %579 = vector.load %arg8[%c0_289, %c0_290] : memref<1x128xf32, #tpu.memory_space<vmem>>, vector<1x128xf32>
    %580 = vector.broadcast %579 : vector<1x128xf32> to vector<8x128xf32>
    %581 = arith.addf %578, %580 : vector<8x128xf32>
    %582 = tpu.iota {dimensions = array<i32: 0>} : vector<8x128xi32>
    %583 = vector.broadcast %5 : i32 to vector<8x128xi32>
    %584 = arith.cmpi slt, %582, %583 : vector<8x128xi32>
    %cst_291 = arith.constant 0.000000e+00 : f32
    %585 = vector.broadcast %cst_291 : f32 to vector<8x128xf32>
    %586 = arith.select %584, %581, %585 : vector<8x128xi1>, vector<8x128xf32>
    %c0_292 = arith.constant 0 : index
    %c0_293 = arith.constant 0 : index
    %587 = vector.load %arg10[%c0_292, %c0_293] : memref<8x128xf32, #tpu.memory_space<vmem>>, vector<8x128xf32>
    tpu.vector_store %arg10[%c0_292, %c0_293], %586 {strides = array<i32>} : memref<8x128xf32, #tpu.memory_space<vmem>>, vector<8x128xf32>,
    %c0_i32_294 = arith.constant 0 : i32
    %588 = arith.cmpi eq, %arg0, %c0_i32_294 : i32
    %589 = arith.extui %588 : i1 to i32
    %c0_i32_295 = arith.constant 0 : i32
    %590 = arith.cmpi ne, %589, %c0_i32_295 : i32
    scf.if %590 {
      %c0_296 = arith.constant 0 : index
      %c0_297 = arith.constant 0 : index
      %c0_298 = arith.constant 0 : index
      %591 = vector.load %arg12[%c0_296, %c0_297, %c0_298] : memref<2x1x128xf32, #tpu.memory_space<vmem>>, vector<2x1x128xf32>
      %c0_299 = arith.constant 0 : index
      %c0_300 = arith.constant 0 : index
      %c0_301 = arith.constant 0 : index
      %592 = vector.load %arg11[%c0_299, %c0_300, %c0_301] : memref<2x1x128xf32, #tpu.memory_space<vmem>>, vector<2x1x128xf32>
      tpu.vector_store %arg11[%c0_299, %c0_300, %c0_301], %591 {strides = array<i32>} : memref<2x1x128xf32, #tpu.memory_space<vmem>>, vector<2x1x128xf32>,
    } else {
    }
    return
  }
  func.func @transform_0(%arg0: i32, %arg1: memref<1xi32, #tpu.memory_space<smem>>) -> (i32, i32) {
    %c0_i32 = arith.constant 0 : i32
    %c0_i32_0 = arith.constant 0 : i32
    return %arg0, %c0_i32 : i32, i32
  }
  func.func @transform_1(%arg0: i32, %arg1: memref<1xi32, #tpu.memory_space<smem>>) -> (i32, i32, i32) {
    %c0_i32 = arith.constant 0 : i32
    %c0_i32_0 = arith.constant 0 : i32
    %c0_i32_1 = arith.constant 0 : i32
    %c0_i32_2 = arith.constant 0 : i32
    return %c0_i32, %c0_i32_0, %c0_i32_1 : i32, i32, i32
  }
  func.func @transform_2(%arg0: i32, %arg1: memref<1xi32, #tpu.memory_space<smem>>) -> (i32, i32, i32) {
    %c0_i32 = arith.constant 0 : i32
    %c0_i32_0 = arith.constant 0 : i32
    %c0_i32_1 = arith.constant 0 : i32
    %c0_i32_2 = arith.constant 0 : i32
    return %c0_i32, %c0_i32_0, %c0_i32_1 : i32, i32, i32
  }
  func.func @transform_3(%arg0: i32, %arg1: memref<1xi32, #tpu.memory_space<smem>>) -> (i32, i32, i32) {
    %c0_i32 = arith.constant 0 : i32
    %c0_i32_0 = arith.constant 0 : i32
    %c0_i32_1 = arith.constant 0 : i32
    %c0_i32_2 = arith.constant 0 : i32
    return %c0_i32, %c0_i32_0, %c0_i32_1 : i32, i32, i32
  }
  func.func @transform_4(%arg0: i32, %arg1: memref<1xi32, #tpu.memory_space<smem>>) -> (i32, i32, i32) {
    %c0_i32 = arith.constant 0 : i32
    %c0_i32_0 = arith.constant 0 : i32
    %c0_i32_1 = arith.constant 0 : i32
    %c0_i32_2 = arith.constant 0 : i32
    return %c0_i32, %c0_i32_0, %c0_i32_1 : i32, i32, i32
  }
  func.func @transform_5(%arg0: i32, %arg1: memref<1xi32, #tpu.memory_space<smem>>) -> (i32, i32) {
    %c0_i32 = arith.constant 0 : i32
    %c0_i32_0 = arith.constant 0 : i32
    %c0_i32_1 = arith.constant 0 : i32
    return %c0_i32, %c0_i32_0 : i32, i32
  }
  func.func @transform_6(%arg0: i32, %arg1: memref<1xi32, #tpu.memory_space<smem>>) -> (i32, i32) {
    %c0_i32 = arith.constant 0 : i32
    %c0_i32_0 = arith.constant 0 : i32
    %c0_i32_1 = arith.constant 0 : i32
    return %c0_i32, %c0_i32_0 : i32, i32
  }
  func.func @transform_7(%arg0: i32, %arg1: memref<1xi32, #tpu.memory_space<smem>>) -> (i32, i32, i32) {
    %c0_i32 = arith.constant 0 : i32
    %c0_i32_0 = arith.constant 0 : i32
    %c0_i32_1 = arith.constant 0 : i32
    %c0_i32_2 = arith.constant 0 : i32
    return %c0_i32, %c0_i32_0, %c0_i32_1 : i32, i32, i32
  }
  func.func @transform_8(%arg0: i32, %arg1: memref<1xi32, #tpu.memory_space<smem>>) -> (i32, i32) {
    %c0_i32 = arith.constant 0 : i32
    %c0_i32_0 = arith.constant 0 : i32
    return %arg0, %c0_i32 : i32, i32
  }
  func.func @transform_9(%arg0: i32, %arg1: memref<1xi32, #tpu.memory_space<smem>>) -> (i32, i32, i32) {
    %c0_i32 = arith.constant 0 : i32
    %c0_i32_0 = arith.constant 0 : i32
    %c0_i32_1 = arith.constant 0 : i32
    %c0_i32_2 = arith.constant 0 : i32
    return %c0_i32, %c0_i32_0, %c0_i32_1 : i32, i32, i32
  }
}

</mosaic_0001>

<llo_original>
// kernel: tpu_custom_call.1
$region0: #{tpu_custom_call.1}
  #allocation0 [shape = 'u32[]', space=smem, size = 0x4, offset = 0x4, fixed_abs, tag = 'smem constant byte address 0x4 - core index']
  #allocation1 [shape = 'u32[144,128]{1,0:T(1,128)}', space=vmem, size = 0x12000, scoped, tag = 'internal scratch']
  #allocation2 [shape = 'f32[2,1,128]{2,1,0:T(1,128)}', space=vmem, size = 0x400, scoped, tag = 'scratch operand']
  #allocation3 [shape = 's32[1]{0}', space=sflag, size = 0x4, scoped, tag = 'scoped memory for tpu_custom_call.1']
  #allocation4 [shape = 's32[1]{0:T(128)S(6)}', space=smem, size = 0x200, scoped, tag = 'prefetched SMEM operand 0']
  %s0 = inlined_call_operand.<no memory space> [shape: s32[1], index: 0, kind: input, shape index: {}]
  %s1 = inlined_call_operand.hbm [shape: f32[8,128], index: 1, kind: input, shape index: {}]
  %s2 = inlined_call_operand.hbm [shape: f32[2,128,384], index: 2, kind: input, shape index: {}]
  %s3 = inlined_call_operand.hbm [shape: f32[2,128,384], index: 3, kind: input, shape index: {}]
  %s4 = inlined_call_operand.vmem [shape: f32[2,1,384], index: 4, kind: input, shape index: {}]
  %s5 = inlined_call_operand.vmem [shape: f32[2,1,128], index: 5, kind: input, shape index: {}]
  %s6 = inlined_call_operand.hbm [shape: f32[128,128], index: 6, kind: input, shape index: {}]
  %s7 = inlined_call_operand.vmem [shape: f32[1,128], index: 7, kind: input, shape index: {}]
  %s8 = inlined_call_operand.vmem [shape: f32[2,1,128], index: 8, kind: input, shape index: {}]
  %s9 = inlined_call_operand.hbm [shape: f32[8,128], index: 9, kind: output, shape index: {0}]
  %s10 = inlined_call_operand.hbm [shape: f32[2,1,128], index: 10, kind: output, shape index: {1}]
  %11 = xla_tuple %s9, %s10
  %s12 = sld [smem:[#allocation0]]
  $region74: #{tpu_custom_call.1} parent=0
    _
  %s14 = ssub.s32 1, %s12
  %s15 = scalar_select 0, %s14, %s12
  %16 = sst [smem:[#allocation4]] %s0
  $region1: #{tpu_custom_call.1} parent=0
    #allocation5 [shape = 'u8[4096]{0}', space=vmem, size = 0x1000, scoped, tag = 'input window, operand 1, single buffered']
    #allocation6 [shape = 's32[1]{0}', space=sflag, size = 0x4, scoped, tag = 'scoped memory for tpu_custom_call.1']
    #allocation7 [shape = 's32[1]{0}', space=sflag, size = 0x4, scoped, tag = 'scoped memory for tpu_custom_call.1']
    #allocation8 [shape = 'u8[393216]{0}', space=vmem, size = 0x60000, scoped, tag = 'input window, operand 2, single buffered']
    #allocation9 [shape = 's32[1]{0}', space=sflag, size = 0x4, scoped, tag = 'scoped memory for tpu_custom_call.1']
    #allocation10 [shape = 'u8[393216]{0}', space=vmem, size = 0x60000, scoped, tag = 'input window, operand 3, single buffered']
    #allocation11 [shape = 'u8[65536]{0}', space=vmem, size = 0x10000, scoped, tag = 'input window, operand 6, single buffered']
    #allocation12 [shape = 's32[1]{0}', space=sflag, size = 0x4, scoped, tag = 'scoped memory for tpu_custom_call.1']
    #allocation13 [shape = 'u8[4096]{0}', space=vmem, size = 0x1000, scoped, tag = 'output window, operand 0, single buffered']
    #allocation14 [shape = 'u8[1024]{0}', space=vmem, size = 0x400, scoped, tag = 'output window, operand 1, single buffered']
    #allocation15 [shape = 's32[1]{0}', space=sflag, size = 0x4, scoped, tag = 'scoped memory for tpu_custom_call.1']
    %17 = vsyncpa [#allocation6], 0
    %18 = vsyncpa [#allocation9], 0
    %19 = vsyncpa [#allocation12], 0
    %20 = vsyncpa [#allocation7], 0
    %21 = vsyncpa [#allocation15], 0
    // Predicated region
    $region2: #{tpu_custom_call.1} parent=1 // pred_check
      _
    $region3: #{tpu_custom_call.1} parent=1 // pred_check_branch
      %23 = sbr.rel (0) target = $region5
    $region4: #{tpu_custom_call.1} parent=1 // pred_region
      %s25 = ssub.s32 128, 128
      %26 = vsyncadd [#allocation6], %s25
      %s28 = sshll.u32 [#allocation5], 4
      %s29 = int_to_ptr.vmem [resolvable:$true] %s28
      %31 = dma.hbm_to_vmem [thread:$0]  %s1, 128, %s29, [#allocation6]
    $region5: #{tpu_custom_call.1} parent=1 // pred_fallthru
      _
    // Predicated region
    $region6: #{tpu_custom_call.1} parent=1 // pred_check
      _
    $region7: #{tpu_custom_call.1} parent=1 // pred_check_branch
      %33 = sbr.rel (0) target = $region9
    $region8: #{tpu_custom_call.1} parent=1 // pred_region
      %s35 = ssub.s32 12288, 12288
      %36 = vsyncadd [#allocation9], %s35
      %s37 = sshll.u32 [#allocation8], 4
      %s38 = int_to_ptr.vmem [resolvable:$true] %s37
      %43 = dma.hbm_to_vmem [thread:$0]  %s2, 12288, %s38, [#allocation9], 384, 384, 24
    $region9: #{tpu_custom_call.1} parent=1 // pred_fallthru
      _
    // Predicated region
    $region10: #{tpu_custom_call.1} parent=1 // pred_check
      _
    $region11: #{tpu_custom_call.1} parent=1 // pred_check_branch
      %45 = sbr.rel (0) target = $region13
    $region12: #{tpu_custom_call.1} parent=1 // pred_region
      %s47 = ssub.s32 12288, 12288
      %48 = vsyncadd [#allocation9], %s47
      %s49 = sshll.u32 [#allocation10], 4
      %s50 = int_to_ptr.vmem [resolvable:$true] %s49
      %55 = dma.hbm_to_vmem [thread:$0]  %s3, 12288, %s50, [#allocation9], 384, 384, 24
    $region13: #{tpu_custom_call.1} parent=1 // pred_fallthru
      _
    // Predicated region
    $region14: #{tpu_custom_call.1} parent=1 // pred_check
      _
    $region15: #{tpu_custom_call.1} parent=1 // pred_check_branch
      %57 = sbr.rel (0) target = $region17
    $region16: #{tpu_custom_call.1} parent=1 // pred_region
      _
    $region17: #{tpu_custom_call.1} parent=1 // pred_fallthru
      _
    // Predicated region
    $region18: #{tpu_custom_call.1} parent=1 // pred_check
      _
    $region19: #{tpu_custom_call.1} parent=1 // pred_check_branch
      %59 = sbr.rel (0) target = $region21
    $region20: #{tpu_custom_call.1} parent=1 // pred_region
      _
    $region21: #{tpu_custom_call.1} parent=1 // pred_fallthru
      _
    // Predicated region
    $region22: #{tpu_custom_call.1} parent=1 // pred_check
      _
    $region23: #{tpu_custom_call.1} parent=1 // pred_check_branch
      %61 = sbr.rel (0) target = $region25
    $region24: #{tpu_custom_call.1} parent=1 // pred_region
      %s63 = ssub.s32 2048, 2048
      %64 = vsyncadd [#allocation12], %s63
      %s65 = sshll.u32 [#allocation11], 4
      %s66 = int_to_ptr.vmem [resolvable:$true] %s65
      %71 = dma.hbm_to_vmem [thread:$0]  %s6, 2048, %s66, [#allocation12], 128, 128, 8
    $region25: #{tpu_custom_call.1} parent=1 // pred_fallthru
      _
    // Predicated region
    $region26: #{tpu_custom_call.1} parent=1 // pred_check
      _
    $region27: #{tpu_custom_call.1} parent=1 // pred_check_branch
      %73 = sbr.rel (0) target = $region29
    $region28: #{tpu_custom_call.1} parent=1 // pred_region
      _
    $region29: #{tpu_custom_call.1} parent=1 // pred_fallthru
      _
    // Predicated region
    $region30: #{tpu_custom_call.1} parent=1 // pred_check
      _
    $region31: #{tpu_custom_call.1} parent=1 // pred_check_branch
      %75 = sbr.rel (0) target = $region33
    $region32: #{tpu_custom_call.1} parent=1 // pred_region
      _
    $region33: #{tpu_custom_call.1} parent=1 // pred_fallthru
      _
    // Predicated region
    $region34: #{tpu_custom_call.1} parent=1 // pred_check
      _
    $region35: #{tpu_custom_call.1} parent=1 // pred_check_branch
      %77 = sbr.rel (0) target = $region37
    $region36: #{tpu_custom_call.1} parent=1 // pred_region
      %78 = dma.done [#allocation6], 128
    $region37: #{tpu_custom_call.1} parent=1 // pred_fallthru
      _
    // Predicated region
    $region38: #{tpu_custom_call.1} parent=1 // pred_check
      _
    $region39: #{tpu_custom_call.1} parent=1 // pred_check_branch
      %80 = sbr.rel (0) target = $region41
    $region40: #{tpu_custom_call.1} parent=1 // pred_region
      %81 = dma.done [#allocation9], 12288
    $region41: #{tpu_custom_call.1} parent=1 // pred_fallthru
      _
    // Predicated region
    $region42: #{tpu_custom_call.1} parent=1 // pred_check
      _
    $region43: #{tpu_custom_call.1} parent=1 // pred_check_branch
      %83 = sbr.rel (0) target = $region45
    $region44: #{tpu_custom_call.1} parent=1 // pred_region
      %84 = dma.done [#allocation9], 12288
    $region45: #{tpu_custom_call.1} parent=1 // pred_fallthru
      _
    // Predicated region
    $region46: #{tpu_custom_call.1} parent=1 // pred_check
      _
    $region47: #{tpu_custom_call.1} parent=1 // pred_check_branch
      %86 = sbr.rel (0) target = $region49
    $region48: #{tpu_custom_call.1} parent=1 // pred_region
      %87 = dma.done [#allocation12], 2048
    $region49: #{tpu_custom_call.1} parent=1 // pred_fallthru
      _
    %p88 = scmp.eq.s32.totalorder 0, 0
    // Predicated region
    $region50: #{tpu_custom_call.1} parent=1 // pred_check
      %p89 = pneg %p88
    $region51: #{tpu_custom_call.1} parent=1 // pred_check_branch
      %91 = sbr.rel (%p89) target = $region53
    $region52: #{tpu_custom_call.1} parent=1 // pred_region
      %v92 = vld [vmem:[%s8] sm:$0x1]
      %v93 = vld [vmem:[%s8 + $0x1] sm:$0x1]
      %94 = vst [vmem:[#allocation2] sm:$0x1] %v92
      %95 = vst [vmem:[#allocation2 + $0x1] sm:$0x1] %v93
    $region53: #{tpu_custom_call.1} parent=1 // pred_fallthru
      _
    %s96 = sld [smem:[#allocation4]]
    %s97 = smul.u32 0, 8
    %s98 = ssub.s32 %s96, %s97
    %v99 = vld [vmem:[#allocation2] sm:$0x1]
    %s100 = scalar_lea.vmem [#allocation2], 1
    %v101 = vld [vmem:[%s100] sm:$0x1]
    %p102 = scmp.gt.s32.totalorder %s98, 0
    %v103 = vld [vmem:[#allocation5] sm:$0x1]
    %v104 = vld [vmem:[#allocation8] sm:$0xff]
    %v105 = vld [vmem:[#allocation8 + $0x8] sm:$0xff]
    %v106 = vld [vmem:[#allocation8 + $0x10] sm:$0xff]
    %v107 = vld [vmem:[#allocation8 + $0x18] sm:$0xff]
    %v108 = vld [vmem:[#allocation8 + $0x20] sm:$0xff]
    %v109 = vld [vmem:[#allocation8 + $0x28] sm:$0xff]
    %v110 = vld [vmem:[#allocation8 + $0x30] sm:$0xff]
    %v111 = vld [vmem:[#allocation8 + $0x38] sm:$0xff]
    %v112 = vld [vmem:[#allocation8 + $0x40] sm:$0xff]
    %v113 = vld [vmem:[#allocation8 + $0x48] sm:$0xff]
    %v114 = vld [vmem:[#allocation8 + $0x50] sm:$0xff]
    %v115 = vld [vmem:[#allocation8 + $0x58] sm:$0xff]
    %v116 = vld [vmem:[#allocation8 + $0x60] sm:$0xff]
    %v117 = vld [vmem:[#allocation8 + $0x68] sm:$0xff]
    %v118 = vld [vmem:[#allocation8 + $0x70] sm:$0xff]
    %v119 = vld [vmem:[#allocation8 + $0x78] sm:$0xff]
    %v120 = vld [vmem:[#allocation8 + $0x80] sm:$0xff]
    %v121 = vld [vmem:[#allocation8 + $0x88] sm:$0xff]
    %v122 = vld [vmem:[#allocation8 + $0x90] sm:$0xff]
    %v123 = vld [vmem:[#allocation8 + $0x98] sm:$0xff]
    %v124 = vld [vmem:[#allocation8 + $0xa0] sm:$0xff]
    %v125 = vld [vmem:[#allocation8 + $0xa8] sm:$0xff]
    %v126 = vld [vmem:[#allocation8 + $0xb0] sm:$0xff]
    %v127 = vld [vmem:[#allocation8 + $0xb8] sm:$0xff]
    %v128 = vld [vmem:[#allocation8 + $0xc0] sm:$0xff]
    %v129 = vld [vmem:[#allocation8 + $0xc8] sm:$0xff]
    %v130 = vld [vmem:[#allocation8 + $0xd0] sm:$0xff]
    %v131 = vld [vmem:[#allocation8 + $0xd8] sm:$0xff]
    %v132 = vld [vmem:[#allocation8 + $0xe0] sm:$0xff]
    %v133 = vld [vmem:[#allocation8 + $0xe8] sm:$0xff]
    %v134 = vld [vmem:[#allocation8 + $0xf0] sm:$0xff]
    %v135 = vld [vmem:[#allocation8 + $0xf8] sm:$0xff]
    %v136 = vld [vmem:[#allocation8 + $0x100] sm:$0xff]
    %v137 = vld [vmem:[#allocation8 + $0x108] sm:$0xff]
    %v138 = vld [vmem:[#allocation8 + $0x110] sm:$0xff]
    %v139 = vld [vmem:[#allocation8 + $0x118] sm:$0xff]
    %v140 = vld [vmem:[#allocation8 + $0x120] sm:$0xff]
    %v141 = vld [vmem:[#allocation8 + $0x128] sm:$0xff]
    %v142 = vld [vmem:[#allocation8 + $0x130] sm:$0xff]
    %v143 = vld [vmem:[#allocation8 + $0x138] sm:$0xff]
    %v144 = vld [vmem:[#allocation8 + $0x140] sm:$0xff]
    %v145 = vld [vmem:[#allocation8 + $0x148] sm:$0xff]
    %v146 = vld [vmem:[#allocation8 + $0x150] sm:$0xff]
    %v147 = vld [vmem:[#allocation8 + $0x158] sm:$0xff]
    %v148 = vld [vmem:[#allocation8 + $0x160] sm:$0xff]
    %v149 = vld [vmem:[#allocation8 + $0x168] sm:$0xff]
    %v150 = vld [vmem:[#allocation8 + $0x170] sm:$0xff]
    %v151 = vld [vmem:[#allocation8 + $0x178] sm:$0xff]
    %v152 = vld [vmem:[%s4] sm:$0x7]
    %v154 = vlaneseq
    %v155 = vshrl.u32 %v154, 7
    %v156 = vsub.s32 0, %v155
    %v157 = vrot.slane %v152, %v156
    %v158 = vlaneseq
    %v159 = vshrl.u32 %v158, 7
    %v160 = vsub.s32 1, %v159
    %v161 = vrot.slane %v152, %v160
    %v162 = vlaneseq
    %v163 = vshrl.u32 %v162, 7
    %v164 = vsub.s32 2, %v163
    %v165 = vrot.slane %v152, %v164
    %169 = vmatprep.subr.mxu0 %v150
    %170 = vmatpush1.msra.mxu0 %v149
    %171 = vmatprep.subr.mxu0 %v147
    %172 = vmatpush1.msra.mxu0 %v146
    %173 = vmatprep.subr.mxu0 %v144
    %174 = vmatpush1.msra.mxu0 %v143
    %175 = vmatprep.subr.mxu0 %v141
    %176 = vmatpush1.msra.mxu0 %v140
    %177 = vmatprep.subr.mxu0 %v138
    %178 = vmatpush1.msra.mxu0 %v137
    %179 = vmatprep.subr.mxu0 %v135
    %180 = vmatpush1.msra.mxu0 %v134
    %181 = vmatprep.subr.mxu0 %v132
    %182 = vmatpush1.msra.mxu0 %v131
    %183 = vmatprep.subr.mxu0 %v129
    %184 = vmatpush1.msra.mxu0 %v128
    %185 = vmatprep.subr.mxu0 %v126
    %186 = vmatpush1.msra.mxu0 %v125
    %187 = vmatprep.subr.mxu0 %v123
    %188 = vmatpush1.msra.mxu0 %v122
    %189 = vmatprep.subr.mxu0 %v120
    %190 = vmatpush1.msra.mxu0 %v119
    %191 = vmatprep.subr.mxu0 %v117
    %192 = vmatpush1.msra.mxu0 %v116
    %193 = vmatprep.subr.mxu0 %v114
    %194 = vmatpush1.msra.mxu0 %v113
    %195 = vmatprep.subr.mxu0 %v111
    %196 = vmatpush1.msra.mxu0 %v110
    %197 = vmatprep.subr.mxu0 %v108
    %198 = vmatpush1.msra.mxu0 %v107
    %199 = vmatprep.subr.mxu0 %v105
    %200 = vmatpush1.msra.mxu0 %v104
    %201 = vmatprep.subr.mxu0 0.0
    %202 = vmatpush2.msra.mxu0 0.0
    %203 = vmatprep.subr.mxu0 0.0
    %204 = vmatpush2.msra.mxu0 0.0
    %205 = vmatprep.subr.mxu0 0.0
    %206 = vmatpush2.msra.mxu0 0.0
    %207 = vmatprep.subr.mxu0 0.0
    %208 = vmatpush2.msra.mxu0 0.0
    %209 = vmatprep.subr.mxu0 0.0
    %210 = vmatpush2.msra.mxu0 0.0
    %211 = vmatprep.subr.mxu0 0.0
    %212 = vmatpush2.msra.mxu0 0.0
    %213 = vmatprep.subr.mxu0 0.0
    %214 = vmatpush2.msra.mxu0 0.0
    %215 = vmatprep.subr.mxu0 0.0
    %216 = vmatpush2.msra.mxu0 0.0
    %217 = vmatprep.subr.mxu0 0.0
    %218 = vmatpush2.msra.mxu0 0.0
    %219 = vmatprep.subr.mxu0 0.0
    %220 = vmatpush2.msra.mxu0 0.0
    %221 = vmatprep.subr.mxu0 0.0
    %222 = vmatpush2.msra.mxu0 0.0
    %223 = vmatprep.subr.mxu0 0.0
    %224 = vmatpush2.msra.mxu0 0.0
    %225 = vmatprep.subr.mxu0 0.0
    %226 = vmatpush2.msra.mxu0 0.0
    %227 = vmatprep.subr.mxu0 0.0
    %228 = vmatpush2.msra.mxu0 0.0
    %229 = vmatprep.subr.mxu0 0.0
    %230 = vmatpush2.msra.mxu0 0.0
    %231 = vmatprep.subr.mxu0 0.0
    %232 = vmatpush2.msra.mxu0 0.0
    %233 = vmatprep.mubr.f32.mxu0 0.0
    %234 = vmatmul.mubr.f32.gmra.mxu0 %v103
    %v235 = vpop.f32.mrf.mxu0
    %v236 = vadd.f32 %v157, %v235
    %v237 = vpop.f32.mrf.mxu0
    %v238 = vadd.f32 %v161, %v237
    %239 = vdwg.mxu0
    %240 = vmatprep.subr.mxu0 0.0
    %241 = vmatpush1.msra.mxu0 %v151
    %242 = vmatprep.subr.mxu0 0.0
    %243 = vmatpush1.msra.mxu0 %v148
    %244 = vmatprep.subr.mxu0 0.0
    %245 = vmatpush1.msra.mxu0 %v145
    %246 = vmatprep.subr.mxu0 0.0
    %247 = vmatpush1.msra.mxu0 %v142
    %248 = vmatprep.subr.mxu0 0.0
    %249 = vmatpush1.msra.mxu0 %v139
    %250 = vmatprep.subr.mxu0 0.0
    %251 = vmatpush1.msra.mxu0 %v136
    %252 = vmatprep.subr.mxu0 0.0
    %253 = vmatpush1.msra.mxu0 %v133
    %254 = vmatprep.subr.mxu0 0.0
    %255 = vmatpush1.msra.mxu0 %v130
    %256 = vmatprep.subr.mxu0 0.0
    %257 = vmatpush1.msra.mxu0 %v127
    %258 = vmatprep.subr.mxu0 0.0
    %259 = vmatpush1.msra.mxu0 %v124
    %260 = vmatprep.subr.mxu0 0.0
    %261 = vmatpush1.msra.mxu0 %v121
    %262 = vmatprep.subr.mxu0 0.0
    %263 = vmatpush1.msra.mxu0 %v118
    %264 = vmatprep.subr.mxu0 0.0
    %265 = vmatpush1.msra.mxu0 %v115
    %266 = vmatprep.subr.mxu0 0.0
    %267 = vmatpush1.msra.mxu0 %v112
    %268 = vmatprep.subr.mxu0 0.0
    %269 = vmatpush1.msra.mxu0 %v109
    %270 = vmatprep.subr.mxu0 0.0
    %271 = vmatpush1.msra.mxu0 %v106
    %272 = vmatprep.subr.mxu0 0.0
    %273 = vmatpush2.msra.mxu0 0.0
    %274 = vmatprep.subr.mxu0 0.0
    %275 = vmatpush2.msra.mxu0 0.0
    %276 = vmatprep.subr.mxu0 0.0
    %277 = vmatpush2.msra.mxu0 0.0
    %278 = vmatprep.subr.mxu0 0.0
    %279 = vmatpush2.msra.mxu0 0.0
    %280 = vmatprep.subr.mxu0 0.0
    %281 = vmatpush2.msra.mxu0 0.0
    %282 = vmatprep.subr.mxu0 0.0
    %283 = vmatpush2.msra.mxu0 0.0
    %284 = vmatprep.subr.mxu0 0.0
    %285 = vmatpush2.msra.mxu0 0.0
    %286 = vmatprep.subr.mxu0 0.0
    %287 = vmatpush2.msra.mxu0 0.0
    %288 = vmatprep.subr.mxu0 0.0
    %289 = vmatpush2.msra.mxu0 0.0
    %290 = vmatprep.subr.mxu0 0.0
    %291 = vmatpush2.msra.mxu0 0.0
    %292 = vmatprep.subr.mxu0 0.0
    %293 = vmatpush2.msra.mxu0 0.0
    %294 = vmatprep.subr.mxu0 0.0
    %295 = vmatpush2.msra.mxu0 0.0
    %296 = vmatprep.subr.mxu0 0.0
    %297 = vmatpush2.msra.mxu0 0.0
    %298 = vmatprep.subr.mxu0 0.0
    %299 = vmatpush2.msra.mxu0 0.0
    %300 = vmatprep.subr.mxu0 0.0
    %301 = vmatpush2.msra.mxu0 0.0
    %302 = vmatprep.subr.mxu0 0.0
    %303 = vmatpush2.msra.mxu0 0.0
    %304 = vmatprep.mubr.f32.mxu0 0.0
    %305 = vmatmul.mubr.f32.gmra.mxu0 %v103
    %v306 = vpop.f32.mrf.mxu0
    %v307 = vadd.f32 %v165, %v306
    %v308 = vpop.f32.mrf.mxu0
    %309 = vdwg.mxu0
    %v310 = vld [vmem:[#allocation10] sm:$0xff]
    %v311 = vld [vmem:[#allocation10 + $0x8] sm:$0xff]
    %v312 = vld [vmem:[#allocation10 + $0x10] sm:$0xff]
    %v313 = vld [vmem:[#allocation10 + $0x18] sm:$0xff]
    %v314 = vld [vmem:[#allocation10 + $0x20] sm:$0xff]
    %v315 = vld [vmem:[#allocation10 + $0x28] sm:$0xff]
    %v316 = vld [vmem:[#allocation10 + $0x30] sm:$0xff]
    %v317 = vld [vmem:[#allocation10 + $0x38] sm:$0xff]
    %v318 = vld [vmem:[#allocation10 + $0x40] sm:$0xff]
    %v319 = vld [vmem:[#allocation10 + $0x48] sm:$0xff]
    %v320 = vld [vmem:[#allocation10 + $0x50] sm:$0xff]
    %v321 = vld [vmem:[#allocation10 + $0x58] sm:$0xff]
    %v322 = vld [vmem:[#allocation10 + $0x60] sm:$0xff]
    %v323 = vld [vmem:[#allocation10 + $0x68] sm:$0xff]
    %v324 = vld [vmem:[#allocation10 + $0x70] sm:$0xff]
    %v325 = vld [vmem:[#allocation10 + $0x78] sm:$0xff]
    %v326 = vld [vmem:[#allocation10 + $0x80] sm:$0xff]
    %v327 = vld [vmem:[#allocation10 + $0x88] sm:$0xff]
    %v328 = vld [vmem:[#allocation10 + $0x90] sm:$0xff]
    %v329 = vld [vmem:[#allocation10 + $0x98] sm:$0xff]
    %v330 = vld [vmem:[#allocation10 + $0xa0] sm:$0xff]
    %v331 = vld [vmem:[#allocation10 + $0xa8] sm:$0xff]
    %v332 = vld [vmem:[#allocation10 + $0xb0] sm:$0xff]
    %v333 = vld [vmem:[#allocation10 + $0xb8] sm:$0xff]
    %v334 = vld [vmem:[#allocation10 + $0xc0] sm:$0xff]
    %v335 = vld [vmem:[#allocation10 + $0xc8] sm:$0xff]
    %v336 = vld [vmem:[#allocation10 + $0xd0] sm:$0xff]
    %v337 = vld [vmem:[#allocation10 + $0xd8] sm:$0xff]
    %v338 = vld [vmem:[#allocation10 + $0xe0] sm:$0xff]
    %v339 = vld [vmem:[#allocation10 + $0xe8] sm:$0xff]
    %v340 = vld [vmem:[#allocation10 + $0xf0] sm:$0xff]
    %v341 = vld [vmem:[#allocation10 + $0xf8] sm:$0xff]
    %v342 = vld [vmem:[#allocation10 + $0x100] sm:$0xff]
    %v343 = vld [vmem:[#allocation10 + $0x108] sm:$0xff]
    %v344 = vld [vmem:[#allocation10 + $0x110] sm:$0xff]
    %v345 = vld [vmem:[#allocation10 + $0x118] sm:$0xff]
    %v346 = vld [vmem:[#allocation10 + $0x120] sm:$0xff]
    %v347 = vld [vmem:[#allocation10 + $0x128] sm:$0xff]
    %v348 = vld [vmem:[#allocation10 + $0x130] sm:$0xff]
    %v349 = vld [vmem:[#allocation10 + $0x138] sm:$0xff]
    %v350 = vld [vmem:[#allocation10 + $0x140] sm:$0xff]
    %v351 = vld [vmem:[#allocation10 + $0x148] sm:$0xff]
    %v352 = vld [vmem:[#allocation10 + $0x150] sm:$0xff]
    %v353 = vld [vmem:[#allocation10 + $0x158] sm:$0xff]
    %v354 = vld [vmem:[#allocation10 + $0x160] sm:$0xff]
    %v355 = vld [vmem:[#allocation10 + $0x168] sm:$0xff]
    %v356 = vld [vmem:[#allocation10 + $0x170] sm:$0xff]
    %v357 = vld [vmem:[#allocation10 + $0x178] sm:$0xff]
    %358 = vmatprep.subr.mxu0 %v356
    %359 = vmatpush1.msra.mxu0 %v355
    %360 = vmatprep.subr.mxu0 %v353
    %361 = vmatpush1.msra.mxu0 %v352
    %362 = vmatprep.subr.mxu0 %v350
    %363 = vmatpush1.msra.mxu0 %v349
    %364 = vmatprep.subr.mxu0 %v347
    %365 = vmatpush1.msra.mxu0 %v346
    %366 = vmatprep.subr.mxu0 %v344
    %367 = vmatpush1.msra.mxu0 %v343
    %368 = vmatprep.subr.mxu0 %v341
    %369 = vmatpush1.msra.mxu0 %v340
    %370 = vmatprep.subr.mxu0 %v338
    %371 = vmatpush1.msra.mxu0 %v337
    %372 = vmatprep.subr.mxu0 %v335
    %373 = vmatpush1.msra.mxu0 %v334
    %374 = vmatprep.subr.mxu0 %v332
    %375 = vmatpush1.msra.mxu0 %v331
    %376 = vmatprep.subr.mxu0 %v329
    %377 = vmatpush1.msra.mxu0 %v328
    %378 = vmatprep.subr.mxu0 %v326
    %379 = vmatpush1.msra.mxu0 %v325
    %380 = vmatprep.subr.mxu0 %v323
    %381 = vmatpush1.msra.mxu0 %v322
    %382 = vmatprep.subr.mxu0 %v320
    %383 = vmatpush1.msra.mxu0 %v319
    %384 = vmatprep.subr.mxu0 %v317
    %385 = vmatpush1.msra.mxu0 %v316
    %386 = vmatprep.subr.mxu0 %v314
    %387 = vmatpush1.msra.mxu0 %v313
    %388 = vmatprep.subr.mxu0 %v311
    %389 = vmatpush1.msra.mxu0 %v310
    %390 = vmatprep.subr.mxu0 0.0
    %391 = vmatpush2.msra.mxu0 0.0
    %392 = vmatprep.subr.mxu0 0.0
    %393 = vmatpush2.msra.mxu0 0.0
    %394 = vmatprep.subr.mxu0 0.0
    %395 = vmatpush2.msra.mxu0 0.0
    %396 = vmatprep.subr.mxu0 0.0
    %397 = vmatpush2.msra.mxu0 0.0
    %398 = vmatprep.subr.mxu0 0.0
    %399 = vmatpush2.msra.mxu0 0.0
    %400 = vmatprep.subr.mxu0 0.0
    %401 = vmatpush2.msra.mxu0 0.0
    %402 = vmatprep.subr.mxu0 0.0
    %403 = vmatpush2.msra.mxu0 0.0
    %404 = vmatprep.subr.mxu0 0.0
    %405 = vmatpush2.msra.mxu0 0.0
    %406 = vmatprep.subr.mxu0 0.0
    %407 = vmatpush2.msra.mxu0 0.0
    %408 = vmatprep.subr.mxu0 0.0
    %409 = vmatpush2.msra.mxu0 0.0
    %410 = vmatprep.subr.mxu0 0.0
    %411 = vmatpush2.msra.mxu0 0.0
    %412 = vmatprep.subr.mxu0 0.0
    %413 = vmatpush2.msra.mxu0 0.0
    %414 = vmatprep.subr.mxu0 0.0
    %415 = vmatpush2.msra.mxu0 0.0
    %416 = vmatprep.subr.mxu0 0.0
    %417 = vmatpush2.msra.mxu0 0.0
    %418 = vmatprep.subr.mxu0 0.0
    %419 = vmatpush2.msra.mxu0 0.0
    %420 = vmatprep.subr.mxu0 0.0
    %421 = vmatpush2.msra.mxu0 0.0
    %422 = vmatprep.mubr.f32.mxu0 0.0
    %423 = vmatmul.mubr.f32.gmra.mxu0 %v99
    %v424 = vpop.f32.mrf.mxu0
    %v425 = vadd.f32 0.0, %v424
    %v426 = vpop.f32.mrf.mxu0
    %v427 = vadd.f32 0.0, %v426
    %428 = vdwg.mxu0
    %429 = vmatprep.subr.mxu0 0.0
    %430 = vmatpush1.msra.mxu0 %v357
    %431 = vmatprep.subr.mxu0 0.0
    %432 = vmatpush1.msra.mxu0 %v354
    %433 = vmatprep.subr.mxu0 0.0
    %434 = vmatpush1.msra.mxu0 %v351
    %435 = vmatprep.subr.mxu0 0.0
    %436 = vmatpush1.msra.mxu0 %v348
    %437 = vmatprep.subr.mxu0 0.0
    %438 = vmatpush1.msra.mxu0 %v345
    %439 = vmatprep.subr.mxu0 0.0
    %440 = vmatpush1.msra.mxu0 %v342
    %441 = vmatprep.subr.mxu0 0.0
    %442 = vmatpush1.msra.mxu0 %v339
    %443 = vmatprep.subr.mxu0 0.0
    %444 = vmatpush1.msra.mxu0 %v336
    %445 = vmatprep.subr.mxu0 0.0
    %446 = vmatpush1.msra.mxu0 %v333
    %447 = vmatprep.subr.mxu0 0.0
    %448 = vmatpush1.msra.mxu0 %v330
    %449 = vmatprep.subr.mxu0 0.0
    %450 = vmatpush1.msra.mxu0 %v327
    %451 = vmatprep.subr.mxu0 0.0
    %452 = vmatpush1.msra.mxu0 %v324
    %453 = vmatprep.subr.mxu0 0.0
    %454 = vmatpush1.msra.mxu0 %v321
    %455 = vmatprep.subr.mxu0 0.0
    %456 = vmatpush1.msra.mxu0 %v318
    %457 = vmatprep.subr.mxu0 0.0
    %458 = vmatpush1.msra.mxu0 %v315
    %459 = vmatprep.subr.mxu0 0.0
    %460 = vmatpush1.msra.mxu0 %v312
    %461 = vmatprep.subr.mxu0 0.0
    %462 = vmatpush2.msra.mxu0 0.0
    %463 = vmatprep.subr.mxu0 0.0
    %464 = vmatpush2.msra.mxu0 0.0
    %465 = vmatprep.subr.mxu0 0.0
    %466 = vmatpush2.msra.mxu0 0.0
    %467 = vmatprep.subr.mxu0 0.0
    %468 = vmatpush2.msra.mxu0 0.0
    %469 = vmatprep.subr.mxu0 0.0
    %470 = vmatpush2.msra.mxu0 0.0
    %471 = vmatprep.subr.mxu0 0.0
    %472 = vmatpush2.msra.mxu0 0.0
    %473 = vmatprep.subr.mxu0 0.0
    %474 = vmatpush2.msra.mxu0 0.0
    %475 = vmatprep.subr.mxu0 0.0
    %476 = vmatpush2.msra.mxu0 0.0
    %477 = vmatprep.subr.mxu0 0.0
    %478 = vmatpush2.msra.mxu0 0.0
    %479 = vmatprep.subr.mxu0 0.0
    %480 = vmatpush2.msra.mxu0 0.0
    %481 = vmatprep.subr.mxu0 0.0
    %482 = vmatpush2.msra.mxu0 0.0
    %483 = vmatprep.subr.mxu0 0.0
    %484 = vmatpush2.msra.mxu0 0.0
    %485 = vmatprep.subr.mxu0 0.0
    %486 = vmatpush2.msra.mxu0 0.0
    %487 = vmatprep.subr.mxu0 0.0
    %488 = vmatpush2.msra.mxu0 0.0
    %489 = vmatprep.subr.mxu0 0.0
    %490 = vmatpush2.msra.mxu0 0.0
    %491 = vmatprep.subr.mxu0 0.0
    %492 = vmatpush2.msra.mxu0 0.0
    %493 = vmatprep.mubr.f32.mxu0 0.0
    %494 = vmatmul.mubr.f32.gmra.mxu0 %v99
    %v495 = vpop.f32.mrf.mxu0
    %v496 = vadd.f32 0.0, %v495
    %v497 = vpop.f32.mrf.mxu0
    %498 = vdwg.mxu0
    %v499 = vadd.f32 %v236, %v425
    %v500 = vadd.f32 %v238, %v427
    %v501 = vxor.u32 %v499, 2147483648
    %v502 = vxor.u32 %v500, 2147483648
    %v503 = vmul.f32 %v501, 1.442695
    %v504 = vpow.pop %v503
    %v505 = vmul.f32 %v502, 1.442695
    %v506 = vpow.pop %v505
    %v507 = vadd.f32 %v504, 1.0
    %v508 = vadd.f32 %v506, 1.0
    %v509 = vrcp.pop %v507
    %v510 = vmul.f32 1.0, %v509
    %v511 = vrcp.pop %v508
    %v512 = vmul.f32 1.0, %v511
    %v513 = vld [vmem:[%s5] sm:$0x1]
    %v514 = vadd.f32 %v496, %v513
    %v515 = vmul.f32 %v510, %v514
    %v516 = vadd.f32 %v307, %v515
    %v517 = vtanh.pop %v516
    %v518 = vsub.f32 1.0, %v512
    %v519 = vmul.f32 %v518, %v517
    %v520 = vmul.f32 %v512, %v99
    %v521 = vadd.f32 %v519, %v520
    %s522 = scalar_select %p102, 1, 0
    %v523 = vstv %s522
    %vm524 = vcmp.eq.s32.totalorder %v523, 1
    %v525 = vsel %vm524, %v521, %v99
    %s526 = scalar_lea.vmem [#allocation8], 384
    %v527 = vld [vmem:[%s526] sm:$0xff]
    %v528 = vld [vmem:[%s526 + $0x8] sm:$0xff]
    %v529 = vld [vmem:[%s526 + $0x10] sm:$0xff]
    %v530 = vld [vmem:[%s526 + $0x18] sm:$0xff]
    %v531 = vld [vmem:[%s526 + $0x20] sm:$0xff]
    %v532 = vld [vmem:[%s526 + $0x28] sm:$0xff]
    %v533 = vld [vmem:[%s526 + $0x30] sm:$0xff]
    %v534 = vld [vmem:[%s526 + $0x38] sm:$0xff]
    %v535 = vld [vmem:[%s526 + $0x40] sm:$0xff]
    %v536 = vld [vmem:[%s526 + $0x48] sm:$0xff]
    %v537 = vld [vmem:[%s526 + $0x50] sm:$0xff]
    %v538 = vld [vmem:[%s526 + $0x58] sm:$0xff]
    %v539 = vld [vmem:[%s526 + $0x60] sm:$0xff]
    %v540 = vld [vmem:[%s526 + $0x68] sm:$0xff]
    %v541 = vld [vmem:[%s526 + $0x70] sm:$0xff]
    %v542 = vld [vmem:[%s526 + $0x78] sm:$0xff]
    %v543 = vld [vmem:[%s526 + $0x80] sm:$0xff]
    %v544 = vld [vmem:[%s526 + $0x88] sm:$0xff]
    %v545 = vld [vmem:[%s526 + $0x90] sm:$0xff]
    %v546 = vld [vmem:[%s526 + $0x98] sm:$0xff]
    %v547 = vld [vmem:[%s526 + $0xa0] sm:$0xff]
    %v548 = vld [vmem:[%s526 + $0xa8] sm:$0xff]
    %v549 = vld [vmem:[%s526 + $0xb0] sm:$0xff]
    %v550 = vld [vmem:[%s526 + $0xb8] sm:$0xff]
    %v551 = vld [vmem:[%s526 + $0xc0] sm:$0xff]
    %v552 = vld [vmem:[%s526 + $0xc8] sm:$0xff]
    %v553 = vld [vmem:[%s526 + $0xd0] sm:$0xff]
    %v554 = vld [vmem:[%s526 + $0xd8] sm:$0xff]
    %v555 = vld [vmem:[%s526 + $0xe0] sm:$0xff]
    %v556 = vld [vmem:[%s526 + $0xe8] sm:$0xff]
    %v557 = vld [vmem:[%s526 + $0xf0] sm:$0xff]
    %v558 = vld [vmem:[%s526 + $0xf8] sm:$0xff]
    %v559 = vld [vmem:[%s526 + $0x100] sm:$0xff]
    %v560 = vld [vmem:[%s526 + $0x108] sm:$0xff]
    %v561 = vld [vmem:[%s526 + $0x110] sm:$0xff]
    %v562 = vld [vmem:[%s526 + $0x118] sm:$0xff]
    %v563 = vld [vmem:[%s526 + $0x120] sm:$0xff]
    %v564 = vld [vmem:[%s526 + $0x128] sm:$0xff]
    %v565 = vld [vmem:[%s526 + $0x130] sm:$0xff]
    %v566 = vld [vmem:[%s526 + $0x138] sm:$0xff]
    %v567 = vld [vmem:[%s526 + $0x140] sm:$0xff]
    %v568 = vld [vmem:[%s526 + $0x148] sm:$0xff]
    %v569 = vld [vmem:[%s526 + $0x150] sm:$0xff]
    %v570 = vld [vmem:[%s526 + $0x158] sm:$0xff]
    %v571 = vld [vmem:[%s526 + $0x160] sm:$0xff]
    %v572 = vld [vmem:[%s526 + $0x168] sm:$0xff]
    %v573 = vld [vmem:[%s526 + $0x170] sm:$0xff]
    %v574 = vld [vmem:[%s526 + $0x178] sm:$0xff]
    %s575 = scalar_lea.vmem %s4, 3
    %v576 = vld [vmem:[%s575] sm:$0x7]
    %v578 = vlaneseq
    %v579 = vshrl.u32 %v578, 7
    %v580 = vsub.s32 0, %v579
    %v581 = vrot.slane %v576, %v580
    %v582 = vlaneseq
    %v583 = vshrl.u32 %v582, 7
    %v584 = vsub.s32 1, %v583
    %v585 = vrot.slane %v576, %v584
    %v586 = vlaneseq
    %v587 = vshrl.u32 %v586, 7
    %v588 = vsub.s32 2, %v587
    %v589 = vrot.slane %v576, %v588
    %593 = vmatprep.subr.mxu0 %v573
    %594 = vmatpush1.msra.mxu0 %v572
    %595 = vmatprep.subr.mxu0 %v570
    %596 = vmatpush1.msra.mxu0 %v569
    %597 = vmatprep.subr.mxu0 %v567
    %598 = vmatpush1.msra.mxu0 %v566
    %599 = vmatprep.subr.mxu0 %v564
    %600 = vmatpush1.msra.mxu0 %v563
    %601 = vmatprep.subr.mxu0 %v561
    %602 = vmatpush1.msra.mxu0 %v560
    %603 = vmatprep.subr.mxu0 %v558
    %604 = vmatpush1.msra.mxu0 %v557
    %605 = vmatprep.subr.mxu0 %v555
    %606 = vmatpush1.msra.mxu0 %v554
    %607 = vmatprep.subr.mxu0 %v552
    %608 = vmatpush1.msra.mxu0 %v551
    %609 = vmatprep.subr.mxu0 %v549
    %610 = vmatpush1.msra.mxu0 %v548
    %611 = vmatprep.subr.mxu0 %v546
    %612 = vmatpush1.msra.mxu0 %v545
    %613 = vmatprep.subr.mxu0 %v543
    %614 = vmatpush1.msra.mxu0 %v542
    %615 = vmatprep.subr.mxu0 %v540
    %616 = vmatpush1.msra.mxu0 %v539
    %617 = vmatprep.subr.mxu0 %v537
    %618 = vmatpush1.msra.mxu0 %v536
    %619 = vmatprep.subr.mxu0 %v534
    %620 = vmatpush1.msra.mxu0 %v533
    %621 = vmatprep.subr.mxu0 %v531
    %622 = vmatpush1.msra.mxu0 %v530
    %623 = vmatprep.subr.mxu0 %v528
    %624 = vmatpush1.msra.mxu0 %v527
    %625 = vmatprep.subr.mxu0 0.0
    %626 = vmatpush2.msra.mxu0 0.0
    %627 = vmatprep.subr.mxu0 0.0
    %628 = vmatpush2.msra.mxu0 0.0
    %629 = vmatprep.subr.mxu0 0.0
    %630 = vmatpush2.msra.mxu0 0.0
    %631 = vmatprep.subr.mxu0 0.0
    %632 = vmatpush2.msra.mxu0 0.0
    %633 = vmatprep.subr.mxu0 0.0
    %634 = vmatpush2.msra.mxu0 0.0
    %635 = vmatprep.subr.mxu0 0.0
    %636 = vmatpush2.msra.mxu0 0.0
    %637 = vmatprep.subr.mxu0 0.0
    %638 = vmatpush2.msra.mxu0 0.0
    %639 = vmatprep.subr.mxu0 0.0
    %640 = vmatpush2.msra.mxu0 0.0
    %641 = vmatprep.subr.mxu0 0.0
    %642 = vmatpush2.msra.mxu0 0.0
    %643 = vmatprep.subr.mxu0 0.0
    %644 = vmatpush2.msra.mxu0 0.0
    %645 = vmatprep.subr.mxu0 0.0
    %646 = vmatpush2.msra.mxu0 0.0
    %647 = vmatprep.subr.mxu0 0.0
    %648 = vmatpush2.msra.mxu0 0.0
    %649 = vmatprep.subr.mxu0 0.0
    %650 = vmatpush2.msra.mxu0 0.0
    %651 = vmatprep.subr.mxu0 0.0
    %652 = vmatpush2.msra.mxu0 0.0
    %653 = vmatprep.subr.mxu0 0.0
    %654 = vmatpush2.msra.mxu0 0.0
    %655 = vmatprep.subr.mxu0 0.0
    %656 = vmatpush2.msra.mxu0 0.0
    %657 = vmatprep.mubr.f32.mxu0 0.0
    %658 = vmatmul.mubr.f32.gmra.mxu0 %v525
    %v659 = vpop.f32.mrf.mxu0
    %v660 = vadd.f32 %v581, %v659
    %v661 = vpop.f32.mrf.mxu0
    %v662 = vadd.f32 %v585, %v661
    %663 = vdwg.mxu0
    %664 = vmatprep.subr.mxu0 0.0
    %665 = vmatpush1.msra.mxu0 %v574
    %666 = vmatprep.subr.mxu0 0.0
    %667 = vmatpush1.msra.mxu0 %v571
    %668 = vmatprep.subr.mxu0 0.0
    %669 = vmatpush1.msra.mxu0 %v568
    %670 = vmatprep.subr.mxu0 0.0
    %671 = vmatpush1.msra.mxu0 %v565
    %672 = vmatprep.subr.mxu0 0.0
    %673 = vmatpush1.msra.mxu0 %v562
    %674 = vmatprep.subr.mxu0 0.0
    %675 = vmatpush1.msra.mxu0 %v559
    %676 = vmatprep.subr.mxu0 0.0
    %677 = vmatpush1.msra.mxu0 %v556
    %678 = vmatprep.subr.mxu0 0.0
    %679 = vmatpush1.msra.mxu0 %v553
    %680 = vmatprep.subr.mxu0 0.0
    %681 = vmatpush1.msra.mxu0 %v550
    %682 = vmatprep.subr.mxu0 0.0
    %683 = vmatpush1.msra.mxu0 %v547
    %684 = vmatprep.subr.mxu0 0.0
    %685 = vmatpush1.msra.mxu0 %v544
    %686 = vmatprep.subr.mxu0 0.0
    %687 = vmatpush1.msra.mxu0 %v541
    %688 = vmatprep.subr.mxu0 0.0
    %689 = vmatpush1.msra.mxu0 %v538
    %690 = vmatprep.subr.mxu0 0.0
    %691 = vmatpush1.msra.mxu0 %v535
    %692 = vmatprep.subr.mxu0 0.0
    %693 = vmatpush1.msra.mxu0 %v532
    %694 = vmatprep.subr.mxu0 0.0
    %695 = vmatpush1.msra.mxu0 %v529
    %696 = vmatprep.subr.mxu0 0.0
    %697 = vmatpush2.msra.mxu0 0.0
    %698 = vmatprep.subr.mxu0 0.0
    %699 = vmatpush2.msra.mxu0 0.0
    %700 = vmatprep.subr.mxu0 0.0
    %701 = vmatpush2.msra.mxu0 0.0
    %702 = vmatprep.subr.mxu0 0.0
    %703 = vmatpush2.msra.mxu0 0.0
    %704 = vmatprep.subr.mxu0 0.0
    %705 = vmatpush2.msra.mxu0 0.0
    %706 = vmatprep.subr.mxu0 0.0
    %707 = vmatpush2.msra.mxu0 0.0
    %708 = vmatprep.subr.mxu0 0.0
    %709 = vmatpush2.msra.mxu0 0.0
    %710 = vmatprep.subr.mxu0 0.0
    %711 = vmatpush2.msra.mxu0 0.0
    %712 = vmatprep.subr.mxu0 0.0
    %713 = vmatpush2.msra.mxu0 0.0
    %714 = vmatprep.subr.mxu0 0.0
    %715 = vmatpush2.msra.mxu0 0.0
    %716 = vmatprep.subr.mxu0 0.0
    %717 = vmatpush2.msra.mxu0 0.0
    %718 = vmatprep.subr.mxu0 0.0
    %719 = vmatpush2.msra.mxu0 0.0
    %720 = vmatprep.subr.mxu0 0.0
    %721 = vmatpush2.msra.mxu0 0.0
    %722 = vmatprep.subr.mxu0 0.0
    %723 = vmatpush2.msra.mxu0 0.0
    %724 = vmatprep.subr.mxu0 0.0
    %725 = vmatpush2.msra.mxu0 0.0
    %726 = vmatprep.subr.mxu0 0.0
    %727 = vmatpush2.msra.mxu0 0.0
    %728 = vmatprep.mubr.f32.mxu0 0.0
    %729 = vmatmul.mubr.f32.gmra.mxu0 %v525
    %v730 = vpop.f32.mrf.mxu0
    %v731 = vadd.f32 %v589, %v730
    %v732 = vpop.f32.mrf.mxu0
    %733 = vdwg.mxu0
    %s734 = scalar_lea.vmem [#allocation10], 384
    %v735 = vld [vmem:[%s734] sm:$0xff]
    %v736 = vld [vmem:[%s734 + $0x8] sm:$0xff]
    %v737 = vld [vmem:[%s734 + $0x10] sm:$0xff]
    %v738 = vld [vmem:[%s734 + $0x18] sm:$0xff]
    %v739 = vld [vmem:[%s734 + $0x20] sm:$0xff]
    %v740 = vld [vmem:[%s734 + $0x28] sm:$0xff]
    %v741 = vld [vmem:[%s734 + $0x30] sm:$0xff]
    %v742 = vld [vmem:[%s734 + $0x38] sm:$0xff]
    %v743 = vld [vmem:[%s734 + $0x40] sm:$0xff]
    %v744 = vld [vmem:[%s734 + $0x48] sm:$0xff]
    %v745 = vld [vmem:[%s734 + $0x50] sm:$0xff]
    %v746 = vld [vmem:[%s734 + $0x58] sm:$0xff]
    %v747 = vld [vmem:[%s734 + $0x60] sm:$0xff]
    %v748 = vld [vmem:[%s734 + $0x68] sm:$0xff]
    %v749 = vld [vmem:[%s734 + $0x70] sm:$0xff]
    %v750 = vld [vmem:[%s734 + $0x78] sm:$0xff]
    %v751 = vld [vmem:[%s734 + $0x80] sm:$0xff]
    %v752 = vld [vmem:[%s734 + $0x88] sm:$0xff]
    %v753 = vld [vmem:[%s734 + $0x90] sm:$0xff]
    %v754 = vld [vmem:[%s734 + $0x98] sm:$0xff]
    %v755 = vld [vmem:[%s734 + $0xa0] sm:$0xff]
    %v756 = vld [vmem:[%s734 + $0xa8] sm:$0xff]
    %v757 = vld [vmem:[%s734 + $0xb0] sm:$0xff]
    %v758 = vld [vmem:[%s734 + $0xb8] sm:$0xff]
    %v759 = vld [vmem:[%s734 + $0xc0] sm:$0xff]
    %v760 = vld [vmem:[%s734 + $0xc8] sm:$0xff]
    %v761 = vld [vmem:[%s734 + $0xd0] sm:$0xff]
    %v762 = vld [vmem:[%s734 + $0xd8] sm:$0xff]
    %v763 = vld [vmem:[%s734 + $0xe0] sm:$0xff]
    %v764 = vld [vmem:[%s734 + $0xe8] sm:$0xff]
    %v765 = vld [vmem:[%s734 + $0xf0] sm:$0xff]
    %v766 = vld [vmem:[%s734 + $0xf8] sm:$0xff]
    %v767 = vld [vmem:[%s734 + $0x100] sm:$0xff]
    %v768 = vld [vmem:[%s734 + $0x108] sm:$0xff]
    %v769 = vld [vmem:[%s734 + $0x110] sm:$0xff]
    %v770 = vld [vmem:[%s734 + $0x118] sm:$0xff]
    %v771 = vld [vmem:[%s734 + $0x120] sm:$0xff]
    %v772 = vld [vmem:[%s734 + $0x128] sm:$0xff]
    %v773 = vld [vmem:[%s734 + $0x130] sm:$0xff]
    %v774 = vld [vmem:[%s734 + $0x138] sm:$0xff]
    %v775 = vld [vmem:[%s734 + $0x140] sm:$0xff]
    %v776 = vld [vmem:[%s734 + $0x148] sm:$0xff]
    %v777 = vld [vmem:[%s734 + $0x150] sm:$0xff]
    %v778 = vld [vmem:[%s734 + $0x158] sm:$0xff]
    %v779 = vld [vmem:[%s734 + $0x160] sm:$0xff]
    %v780 = vld [vmem:[%s734 + $0x168] sm:$0xff]
    %v781 = vld [vmem:[%s734 + $0x170] sm:$0xff]
    %v782 = vld [vmem:[%s734 + $0x178] sm:$0xff]
    %783 = vmatprep.subr.mxu0 %v781
    %784 = vmatpush1.msra.mxu0 %v780
    %785 = vmatprep.subr.mxu0 %v778
    %786 = vmatpush1.msra.mxu0 %v777
    %787 = vmatprep.subr.mxu0 %v775
    %788 = vmatpush1.msra.mxu0 %v774
    %789 = vmatprep.subr.mxu0 %v772
    %790 = vmatpush1.msra.mxu0 %v771
    %791 = vmatprep.subr.mxu0 %v769
    %792 = vmatpush1.msra.mxu0 %v768
    %793 = vmatprep.subr.mxu0 %v766
    %794 = vmatpush1.msra.mxu0 %v765
    %795 = vmatprep.subr.mxu0 %v763
    %796 = vmatpush1.msra.mxu0 %v762
    %797 = vmatprep.subr.mxu0 %v760
    %798 = vmatpush1.msra.mxu0 %v759
    %799 = vmatprep.subr.mxu0 %v757
    %800 = vmatpush1.msra.mxu0 %v756
    %801 = vmatprep.subr.mxu0 %v754
    %802 = vmatpush1.msra.mxu0 %v753
    %803 = vmatprep.subr.mxu0 %v751
    %804 = vmatpush1.msra.mxu0 %v750
    %805 = vmatprep.subr.mxu0 %v748
    %806 = vmatpush1.msra.mxu0 %v747
    %807 = vmatprep.subr.mxu0 %v745
    %808 = vmatpush1.msra.mxu0 %v744
    %809 = vmatprep.subr.mxu0 %v742
    %810 = vmatpush1.msra.mxu0 %v741
    %811 = vmatprep.subr.mxu0 %v739
    %812 = vmatpush1.msra.mxu0 %v738
    %813 = vmatprep.subr.mxu0 %v736
    %814 = vmatpush1.msra.mxu0 %v735
    %815 = vmatprep.subr.mxu0 0.0
    %816 = vmatpush2.msra.mxu0 0.0
    %817 = vmatprep.subr.mxu0 0.0
    %818 = vmatpush2.msra.mxu0 0.0
    %819 = vmatprep.subr.mxu0 0.0
    %820 = vmatpush2.msra.mxu0 0.0
    %821 = vmatprep.subr.mxu0 0.0
    %822 = vmatpush2.msra.mxu0 0.0
    %823 = vmatprep.subr.mxu0 0.0
    %824 = vmatpush2.msra.mxu0 0.0
    %825 = vmatprep.subr.mxu0 0.0
    %826 = vmatpush2.msra.mxu0 0.0
    %827 = vmatprep.subr.mxu0 0.0
    %828 = vmatpush2.msra.mxu0 0.0
    %829 = vmatprep.subr.mxu0 0.0
    %830 = vmatpush2.msra.mxu0 0.0
    %831 = vmatprep.subr.mxu0 0.0
    %832 = vmatpush2.msra.mxu0 0.0
    %833 = vmatprep.subr.mxu0 0.0
    %834 = vmatpush2.msra.mxu0 0.0
    %835 = vmatprep.subr.mxu0 0.0
    %836 = vmatpush2.msra.mxu0 0.0
    %837 = vmatprep.subr.mxu0 0.0
    %838 = vmatpush2.msra.mxu0 0.0
    %839 = vmatprep.subr.mxu0 0.0
    %840 = vmatpush2.msra.mxu0 0.0
    %841 = vmatprep.subr.mxu0 0.0
    %842 = vmatpush2.msra.mxu0 0.0
    %843 = vmatprep.subr.mxu0 0.0
    %844 = vmatpush2.msra.mxu0 0.0
    %845 = vmatprep.subr.mxu0 0.0
    %846 = vmatpush2.msra.mxu0 0.0
    %847 = vmatprep.mubr.f32.mxu0 0.0
    %848 = vmatmul.mubr.f32.gmra.mxu0 %v101
    %v849 = vpop.f32.mrf.mxu0
    %v850 = vadd.f32 0.0, %v849
    %v851 = vpop.f32.mrf.mxu0
    %v852 = vadd.f32 0.0, %v851
    %853 = vdwg.mxu0
    %854 = vmatprep.subr.mxu0 0.0
    %855 = vmatpush1.msra.mxu0 %v782
    %856 = vmatprep.subr.mxu0 0.0
    %857 = vmatpush1.msra.mxu0 %v779
    %858 = vmatprep.subr.mxu0 0.0
    %859 = vmatpush1.msra.mxu0 %v776
    %860 = vmatprep.subr.mxu0 0.0
    %861 = vmatpush1.msra.mxu0 %v773
    %862 = vmatprep.subr.mxu0 0.0
    %863 = vmatpush1.msra.mxu0 %v770
    %864 = vmatprep.subr.mxu0 0.0
    %865 = vmatpush1.msra.mxu0 %v767
    %866 = vmatprep.subr.mxu0 0.0
    %867 = vmatpush1.msra.mxu0 %v764
    %868 = vmatprep.subr.mxu0 0.0
    %869 = vmatpush1.msra.mxu0 %v761
    %870 = vmatprep.subr.mxu0 0.0
    %871 = vmatpush1.msra.mxu0 %v758
    %872 = vmatprep.subr.mxu0 0.0
    %873 = vmatpush1.msra.mxu0 %v755
    %874 = vmatprep.subr.mxu0 0.0
    %875 = vmatpush1.msra.mxu0 %v752
    %876 = vmatprep.subr.mxu0 0.0
    %877 = vmatpush1.msra.mxu0 %v749
    %878 = vmatprep.subr.mxu0 0.0
    %879 = vmatpush1.msra.mxu0 %v746
    %880 = vmatprep.subr.mxu0 0.0
    %881 = vmatpush1.msra.mxu0 %v743
    %882 = vmatprep.subr.mxu0 0.0
    %883 = vmatpush1.msra.mxu0 %v740
    %884 = vmatprep.subr.mxu0 0.0
    %885 = vmatpush1.msra.mxu0 %v737
    %886 = vmatprep.subr.mxu0 0.0
    %887 = vmatpush2.msra.mxu0 0.0
    %888 = vmatprep.subr.mxu0 0.0
    %889 = vmatpush2.msra.mxu0 0.0
    %890 = vmatprep.subr.mxu0 0.0
    %891 = vmatpush2.msra.mxu0 0.0
    %892 = vmatprep.subr.mxu0 0.0
    %893 = vmatpush2.msra.mxu0 0.0
    %894 = vmatprep.subr.mxu0 0.0
    %895 = vmatpush2.msra.mxu0 0.0
    %896 = vmatprep.subr.mxu0 0.0
    %897 = vmatpush2.msra.mxu0 0.0
    %898 = vmatprep.subr.mxu0 0.0
    %899 = vmatpush2.msra.mxu0 0.0
    %900 = vmatprep.subr.mxu0 0.0
    %901 = vmatpush2.msra.mxu0 0.0
    %902 = vmatprep.subr.mxu0 0.0
    %903 = vmatpush2.msra.mxu0 0.0
    %904 = vmatprep.subr.mxu0 0.0
    %905 = vmatpush2.msra.mxu0 0.0
    %906 = vmatprep.subr.mxu0 0.0
    %907 = vmatpush2.msra.mxu0 0.0
    %908 = vmatprep.subr.mxu0 0.0
    %909 = vmatpush2.msra.mxu0 0.0
    %910 = vmatprep.subr.mxu0 0.0
    %911 = vmatpush2.msra.mxu0 0.0
    %912 = vmatprep.subr.mxu0 0.0
    %913 = vmatpush2.msra.mxu0 0.0
    %914 = vmatprep.subr.mxu0 0.0
    %915 = vmatpush2.msra.mxu0 0.0
    %916 = vmatprep.subr.mxu0 0.0
    %917 = vmatpush2.msra.mxu0 0.0
    %918 = vmatprep.mubr.f32.mxu0 0.0
    %919 = vmatmul.mubr.f32.gmra.mxu0 %v101
    %v920 = vpop.f32.mrf.mxu0
    %v921 = vadd.f32 0.0, %v920
    %v922 = vpop.f32.mrf.mxu0
    %923 = vdwg.mxu0
    %v924 = vadd.f32 %v660, %v850
    %v925 = vadd.f32 %v662, %v852
    %v926 = vxor.u32 %v924, 2147483648
    %v927 = vxor.u32 %v925, 2147483648
    %v928 = vmul.f32 %v926, 1.442695
    %v929 = vpow.pop %v928
    %v930 = vmul.f32 %v927, 1.442695
    %v931 = vpow.pop %v930
    %v932 = vadd.f32 %v929, 1.0
    %v933 = vadd.f32 %v931, 1.0
    %v934 = vrcp.pop %v932
    %v935 = vmul.f32 1.0, %v934
    %v936 = vrcp.pop %v933
    %v937 = vmul.f32 1.0, %v936
    %s938 = scalar_lea.vmem %s5, 1
    %v939 = vld [vmem:[%s938] sm:$0x1]
    %v940 = vadd.f32 %v921, %v939
    %v941 = vmul.f32 %v935, %v940
    %v942 = vadd.f32 %v731, %v941
    %v943 = vtanh.pop %v942
    %v944 = vsub.f32 1.0, %v937
    %v945 = vmul.f32 %v944, %v943
    %v946 = vmul.f32 %v937, %v101
    %v947 = vadd.f32 %v945, %v946
    %v948 = vsel %vm524, %v947, %v101
    %v949 = vsel %vm524, %v947, 0.0
    %p950 = scmp.gt.s32.totalorder %s98, 1
    %v951 = vld [vmem:[#allocation5 + $0x1] sm:$0x1]
    %952 = vmatprep.subr.mxu0 %v150
    %953 = vmatpush1.msra.mxu0 %v149
    %954 = vmatprep.subr.mxu0 %v147
    %955 = vmatpush1.msra.mxu0 %v146
    %956 = vmatprep.subr.mxu0 %v144
    %957 = vmatpush1.msra.mxu0 %v143
    %958 = vmatprep.subr.mxu0 %v141
    %959 = vmatpush1.msra.mxu0 %v140
    %960 = vmatprep.subr.mxu0 %v138
    %961 = vmatpush1.msra.mxu0 %v137
    %962 = vmatprep.subr.mxu0 %v135
    %963 = vmatpush1.msra.mxu0 %v134
    %964 = vmatprep.subr.mxu0 %v132
    %965 = vmatpush1.msra.mxu0 %v131
    %966 = vmatprep.subr.mxu0 %v129
    %967 = vmatpush1.msra.mxu0 %v128
    %968 = vmatprep.subr.mxu0 %v126
    %969 = vmatpush1.msra.mxu0 %v125
    %970 = vmatprep.subr.mxu0 %v123
    %971 = vmatpush1.msra.mxu0 %v122
    %972 = vmatprep.subr.mxu0 %v120
    %973 = vmatpush1.msra.mxu0 %v119
    %974 = vmatprep.subr.mxu0 %v117
    %975 = vmatpush1.msra.mxu0 %v116
    %976 = vmatprep.subr.mxu0 %v114
    %977 = vmatpush1.msra.mxu0 %v113
    %978 = vmatprep.subr.mxu0 %v111
    %979 = vmatpush1.msra.mxu0 %v110
    %980 = vmatprep.subr.mxu0 %v108
    %981 = vmatpush1.msra.mxu0 %v107
    %982 = vmatprep.subr.mxu0 %v105
    %983 = vmatpush1.msra.mxu0 %v104
    %984 = vmatprep.subr.mxu0 0.0
    %985 = vmatpush2.msra.mxu0 0.0
    %986 = vmatprep.subr.mxu0 0.0
    %987 = vmatpush2.msra.mxu0 0.0
    %988 = vmatprep.subr.mxu0 0.0
    %989 = vmatpush2.msra.mxu0 0.0
    %990 = vmatprep.subr.mxu0 0.0
    %991 = vmatpush2.msra.mxu0 0.0
    %992 = vmatprep.subr.mxu0 0.0
    %993 = vmatpush2.msra.mxu0 0.0
    %994 = vmatprep.subr.mxu0 0.0
    %995 = vmatpush2.msra.mxu0 0.0
    %996 = vmatprep.subr.mxu0 0.0
    %997 = vmatpush2.msra.mxu0 0.0
    %998 = vmatprep.subr.mxu0 0.0
    %999 = vmatpush2.msra.mxu0 0.0
    %1000 = vmatprep.subr.mxu0 0.0
    %1001 = vmatpush2.msra.mxu0 0.0
    %1002 = vmatprep.subr.mxu0 0.0
    %1003 = vmatpush2.msra.mxu0 0.0
    %1004 = vmatprep.subr.mxu0 0.0
    %1005 = vmatpush2.msra.mxu0 0.0
    %1006 = vmatprep.subr.mxu0 0.0
    %1007 = vmatpush2.msra.mxu0 0.0
    %1008 = vmatprep.subr.mxu0 0.0
    %1009 = vmatpush2.msra.mxu0 0.0
    %1010 = vmatprep.subr.mxu0 0.0
    %1011 = vmatpush2.msra.mxu0 0.0
    %1012 = vmatprep.subr.mxu0 0.0
    %1013 = vmatpush2.msra.mxu0 0.0
    %1014 = vmatprep.subr.mxu0 0.0
    %1015 = vmatpush2.msra.mxu0 0.0
    %1016 = vmatprep.mubr.f32.mxu0 0.0
    %1017 = vmatmul.mubr.f32.gmra.mxu0 %v951
    %v1018 = vpop.f32.mrf.mxu0
    %v1019 = vadd.f32 %v157, %v1018
    %v1020 = vpop.f32.mrf.mxu0
    %v1021 = vadd.f32 %v161, %v1020
    %1022 = vdwg.mxu0
    %1023 = vmatprep.subr.mxu0 0.0
    %1024 = vmatpush1.msra.mxu0 %v151
    %1025 = vmatprep.subr.mxu0 0.0
    %1026 = vmatpush1.msra.mxu0 %v148
    %1027 = vmatprep.subr.mxu0 0.0
    %1028 = vmatpush1.msra.mxu0 %v145
    %1029 = vmatprep.subr.mxu0 0.0
    %1030 = vmatpush1.msra.mxu0 %v142
    %1031 = vmatprep.subr.mxu0 0.0
    %1032 = vmatpush1.msra.mxu0 %v139
    %1033 = vmatprep.subr.mxu0 0.0
    %1034 = vmatpush1.msra.mxu0 %v136
    %1035 = vmatprep.subr.mxu0 0.0
    %1036 = vmatpush1.msra.mxu0 %v133
    %1037 = vmatprep.subr.mxu0 0.0
    %1038 = vmatpush1.msra.mxu0 %v130
    %1039 = vmatprep.subr.mxu0 0.0
    %1040 = vmatpush1.msra.mxu0 %v127
    %1041 = vmatprep.subr.mxu0 0.0
    %1042 = vmatpush1.msra.mxu0 %v124
    %1043 = vmatprep.subr.mxu0 0.0
    %1044 = vmatpush1.msra.mxu0 %v121
    %1045 = vmatprep.subr.mxu0 0.0
    %1046 = vmatpush1.msra.mxu0 %v118
    %1047 = vmatprep.subr.mxu0 0.0
    %1048 = vmatpush1.msra.mxu0 %v115
    %1049 = vmatprep.subr.mxu0 0.0
    %1050 = vmatpush1.msra.mxu0 %v112
    %1051 = vmatprep.subr.mxu0 0.0
    %1052 = vmatpush1.msra.mxu0 %v109
    %1053 = vmatprep.subr.mxu0 0.0
    %1054 = vmatpush1.msra.mxu0 %v106
    %1055 = vmatprep.subr.mxu0 0.0
    %1056 = vmatpush2.msra.mxu0 0.0
    %1057 = vmatprep.subr.mxu0 0.0
    %1058 = vmatpush2.msra.mxu0 0.0
    %1059 = vmatprep.subr.mxu0 0.0
    %1060 = vmatpush2.msra.mxu0 0.0
    %1061 = vmatprep.subr.mxu0 0.0
    %1062 = vmatpush2.msra.mxu0 0.0
    %1063 = vmatprep.subr.mxu0 0.0
    %1064 = vmatpush2.msra.mxu0 0.0
    %1065 = vmatprep.subr.mxu0 0.0
    %1066 = vmatpush2.msra.mxu0 0.0
    %1067 = vmatprep.subr.mxu0 0.0
    %1068 = vmatpush2.msra.mxu0 0.0
    %1069 = vmatprep.subr.mxu0 0.0
    %1070 = vmatpush2.msra.mxu0 0.0
    %1071 = vmatprep.subr.mxu0 0.0
    %1072 = vmatpush2.msra.mxu0 0.0
    %1073 = vmatprep.subr.mxu0 0.0
    %1074 = vmatpush2.msra.mxu0 0.0
    %1075 = vmatprep.subr.mxu0 0.0
    %1076 = vmatpush2.msra.mxu0 0.0
    %1077 = vmatprep.subr.mxu0 0.0
    %1078 = vmatpush2.msra.mxu0 0.0
    %1079 = vmatprep.subr.mxu0 0.0
    %1080 = vmatpush2.msra.mxu0 0.0
    %1081 = vmatprep.subr.mxu0 0.0
    %1082 = vmatpush2.msra.mxu0 0.0
    %1083 = vmatprep.subr.mxu0 0.0
    %1084 = vmatpush2.msra.mxu0 0.0
    %1085 = vmatprep.subr.mxu0 0.0
    %1086 = vmatpush2.msra.mxu0 0.0
    %1087 = vmatprep.mubr.f32.mxu0 0.0
    %1088 = vmatmul.mubr.f32.gmra.mxu0 %v951
    %v1089 = vpop.f32.mrf.mxu0
    %v1090 = vadd.f32 %v165, %v1089
    %v1091 = vpop.f32.mrf.mxu0
    %1092 = vdwg.mxu0
    %1093 = vmatprep.subr.mxu0 %v356
    %1094 = vmatpush1.msra.mxu0 %v355
    %1095 = vmatprep.subr.mxu0 %v353
    %1096 = vmatpush1.msra.mxu0 %v352
    %1097 = vmatprep.subr.mxu0 %v350
    %1098 = vmatpush1.msra.mxu0 %v349
    %1099 = vmatprep.subr.mxu0 %v347
    %1100 = vmatpush1.msra.mxu0 %v346
    %1101 = vmatprep.subr.mxu0 %v344
    %1102 = vmatpush1.msra.mxu0 %v343
    %1103 = vmatprep.subr.mxu0 %v341
    %1104 = vmatpush1.msra.mxu0 %v340
    %1105 = vmatprep.subr.mxu0 %v338
    %1106 = vmatpush1.msra.mxu0 %v337
    %1107 = vmatprep.subr.mxu0 %v335
    %1108 = vmatpush1.msra.mxu0 %v334
    %1109 = vmatprep.subr.mxu0 %v332
    %1110 = vmatpush1.msra.mxu0 %v331
    %1111 = vmatprep.subr.mxu0 %v329
    %1112 = vmatpush1.msra.mxu0 %v328
    %1113 = vmatprep.subr.mxu0 %v326
    %1114 = vmatpush1.msra.mxu0 %v325
    %1115 = vmatprep.subr.mxu0 %v323
    %1116 = vmatpush1.msra.mxu0 %v322
    %1117 = vmatprep.subr.mxu0 %v320
    %1118 = vmatpush1.msra.mxu0 %v319
    %1119 = vmatprep.subr.mxu0 %v317
    %1120 = vmatpush1.msra.mxu0 %v316
    %1121 = vmatprep.subr.mxu0 %v314
    %1122 = vmatpush1.msra.mxu0 %v313
    %1123 = vmatprep.subr.mxu0 %v311
    %1124 = vmatpush1.msra.mxu0 %v310
    %1125 = vmatprep.subr.mxu0 0.0
    %1126 = vmatpush2.msra.mxu0 0.0
    %1127 = vmatprep.subr.mxu0 0.0
    %1128 = vmatpush2.msra.mxu0 0.0
    %1129 = vmatprep.subr.mxu0 0.0
    %1130 = vmatpush2.msra.mxu0 0.0
    %1131 = vmatprep.subr.mxu0 0.0
    %1132 = vmatpush2.msra.mxu0 0.0
    %1133 = vmatprep.subr.mxu0 0.0
    %1134 = vmatpush2.msra.mxu0 0.0
    %1135 = vmatprep.subr.mxu0 0.0
    %1136 = vmatpush2.msra.mxu0 0.0
    %1137 = vmatprep.subr.mxu0 0.0
    %1138 = vmatpush2.msra.mxu0 0.0
    %1139 = vmatprep.subr.mxu0 0.0
    %1140 = vmatpush2.msra.mxu0 0.0
    %1141 = vmatprep.subr.mxu0 0.0
    %1142 = vmatpush2.msra.mxu0 0.0
    %1143 = vmatprep.subr.mxu0 0.0
    %1144 = vmatpush2.msra.mxu0 0.0
    %1145 = vmatprep.subr.mxu0 0.0
    %1146 = vmatpush2.msra.mxu0 0.0
    %1147 = vmatprep.subr.mxu0 0.0
    %1148 = vmatpush2.msra.mxu0 0.0
    %1149 = vmatprep.subr.mxu0 0.0
    %1150 = vmatpush2.msra.mxu0 0.0
    %1151 = vmatprep.subr.mxu0 0.0
    %1152 = vmatpush2.msra.mxu0 0.0
    %1153 = vmatprep.subr.mxu0 0.0
    %1154 = vmatpush2.msra.mxu0 0.0
    %1155 = vmatprep.subr.mxu0 0.0
    %1156 = vmatpush2.msra.mxu0 0.0
    %1157 = vmatprep.mubr.f32.mxu0 0.0
    %1158 = vmatmul.mubr.f32.gmra.mxu0 %v525
    %v1159 = vpop.f32.mrf.mxu0
    %v1160 = vadd.f32 0.0, %v1159
    %v1161 = vpop.f32.mrf.mxu0
    %v1162 = vadd.f32 0.0, %v1161
    %1163 = vdwg.mxu0
    %1164 = vmatprep.subr.mxu0 0.0
    %1165 = vmatpush1.msra.mxu0 %v357
    %1166 = vmatprep.subr.mxu0 0.0
    %1167 = vmatpush1.msra.mxu0 %v354
    %1168 = vmatprep.subr.mxu0 0.0
    %1169 = vmatpush1.msra.mxu0 %v351
    %1170 = vmatprep.subr.mxu0 0.0
    %1171 = vmatpush1.msra.mxu0 %v348
    %1172 = vmatprep.subr.mxu0 0.0
    %1173 = vmatpush1.msra.mxu0 %v345
    %1174 = vmatprep.subr.mxu0 0.0
    %1175 = vmatpush1.msra.mxu0 %v342
    %1176 = vmatprep.subr.mxu0 0.0
    %1177 = vmatpush1.msra.mxu0 %v339
    %1178 = vmatprep.subr.mxu0 0.0
    %1179 = vmatpush1.msra.mxu0 %v336
    %1180 = vmatprep.subr.mxu0 0.0
    %1181 = vmatpush1.msra.mxu0 %v333
    %1182 = vmatprep.subr.mxu0 0.0
    %1183 = vmatpush1.msra.mxu0 %v330
    %1184 = vmatprep.subr.mxu0 0.0
    %1185 = vmatpush1.msra.mxu0 %v327
    %1186 = vmatprep.subr.mxu0 0.0
    %1187 = vmatpush1.msra.mxu0 %v324
    %1188 = vmatprep.subr.mxu0 0.0
    %1189 = vmatpush1.msra.mxu0 %v321
    %1190 = vmatprep.subr.mxu0 0.0
    %1191 = vmatpush1.msra.mxu0 %v318
    %1192 = vmatprep.subr.mxu0 0.0
    %1193 = vmatpush1.msra.mxu0 %v315
    %1194 = vmatprep.subr.mxu0 0.0
    %1195 = vmatpush1.msra.mxu0 %v312
    %1196 = vmatprep.subr.mxu0 0.0
    %1197 = vmatpush2.msra.mxu0 0.0
    %1198 = vmatprep.subr.mxu0 0.0
    %1199 = vmatpush2.msra.mxu0 0.0
    %1200 = vmatprep.subr.mxu0 0.0
    %1201 = vmatpush2.msra.mxu0 0.0
    %1202 = vmatprep.subr.mxu0 0.0
    %1203 = vmatpush2.msra.mxu0 0.0
    %1204 = vmatprep.subr.mxu0 0.0
    %1205 = vmatpush2.msra.mxu0 0.0
    %1206 = vmatprep.subr.mxu0 0.0
    %1207 = vmatpush2.msra.mxu0 0.0
    %1208 = vmatprep.subr.mxu0 0.0
    %1209 = vmatpush2.msra.mxu0 0.0
    %1210 = vmatprep.subr.mxu0 0.0
    %1211 = vmatpush2.msra.mxu0 0.0
    %1212 = vmatprep.subr.mxu0 0.0
    %1213 = vmatpush2.msra.mxu0 0.0
    %1214 = vmatprep.subr.mxu0 0.0
    %1215 = vmatpush2.msra.mxu0 0.0
    %1216 = vmatprep.subr.mxu0 0.0
    %1217 = vmatpush2.msra.mxu0 0.0
    %1218 = vmatprep.subr.mxu0 0.0
    %1219 = vmatpush2.msra.mxu0 0.0
    %1220 = vmatprep.subr.mxu0 0.0
    %1221 = vmatpush2.msra.mxu0 0.0
    %1222 = vmatprep.subr.mxu0 0.0
    %1223 = vmatpush2.msra.mxu0 0.0
    %1224 = vmatprep.subr.mxu0 0.0
    %1225 = vmatpush2.msra.mxu0 0.0
    %1226 = vmatprep.subr.mxu0 0.0
    %1227 = vmatpush2.msra.mxu0 0.0
    %1228 = vmatprep.mubr.f32.mxu0 0.0
    %1229 = vmatmul.mubr.f32.gmra.mxu0 %v525
    %v1230 = vpop.f32.mrf.mxu0
    %v1231 = vadd.f32 0.0, %v1230
    %v1232 = vpop.f32.mrf.mxu0
    %1233 = vdwg.mxu0
    %v1234 = vadd.f32 %v1019, %v1160
    %v1235 = vadd.f32 %v1021, %v1162
    %v1236 = vxor.u32 %v1234, 2147483648
    %v1237 = vxor.u32 %v1235, 2147483648
    %v1238 = vmul.f32 %v1236, 1.442695
    %v1239 = vpow.pop %v1238
    %v1240 = vmul.f32 %v1237, 1.442695
    %v1241 = vpow.pop %v1240
    %v1242 = vadd.f32 %v1239, 1.0
    %v1243 = vadd.f32 %v1241, 1.0
    %v1244 = vrcp.pop %v1242
    %v1245 = vmul.f32 1.0, %v1244
    %v1246 = vrcp.pop %v1243
    %v1247 = vmul.f32 1.0, %v1246
    %v1248 = vadd.f32 %v1231, %v513
    %v1249 = vmul.f32 %v1245, %v1248
    %v1250 = vadd.f32 %v1090, %v1249
    %v1251 = vtanh.pop %v1250
    %v1252 = vsub.f32 1.0, %v1247
    %v1253 = vmul.f32 %v1252, %v1251
    %v1254 = vmul.f32 %v1247, %v525
    %v1255 = vadd.f32 %v1253, %v1254
    %s1256 = scalar_select %p950, 1, 0
    %v1257 = vstv %s1256
    %vm1258 = vcmp.eq.s32.totalorder %v1257, 1
    %v1259 = vsel %vm1258, %v1255, %v525
    %1260 = vmatprep.subr.mxu0 %v573
    %1261 = vmatpush1.msra.mxu0 %v572
    %1262 = vmatprep.subr.mxu0 %v570
    %1263 = vmatpush1.msra.mxu0 %v569
    %1264 = vmatprep.subr.mxu0 %v567
    %1265 = vmatpush1.msra.mxu0 %v566
    %1266 = vmatprep.subr.mxu0 %v564
    %1267 = vmatpush1.msra.mxu0 %v563
    %1268 = vmatprep.subr.mxu0 %v561
    %1269 = vmatpush1.msra.mxu0 %v560
    %1270 = vmatprep.subr.mxu0 %v558
    %1271 = vmatpush1.msra.mxu0 %v557
    %1272 = vmatprep.subr.mxu0 %v555
    %1273 = vmatpush1.msra.mxu0 %v554
    %1274 = vmatprep.subr.mxu0 %v552
    %1275 = vmatpush1.msra.mxu0 %v551
    %1276 = vmatprep.subr.mxu0 %v549
    %1277 = vmatpush1.msra.mxu0 %v548
    %1278 = vmatprep.subr.mxu0 %v546
    %1279 = vmatpush1.msra.mxu0 %v545
    %1280 = vmatprep.subr.mxu0 %v543
    %1281 = vmatpush1.msra.mxu0 %v542
    %1282 = vmatprep.subr.mxu0 %v540
    %1283 = vmatpush1.msra.mxu0 %v539
    %1284 = vmatprep.subr.mxu0 %v537
    %1285 = vmatpush1.msra.mxu0 %v536
    %1286 = vmatprep.subr.mxu0 %v534
    %1287 = vmatpush1.msra.mxu0 %v533
    %1288 = vmatprep.subr.mxu0 %v531
    %1289 = vmatpush1.msra.mxu0 %v530
    %1290 = vmatprep.subr.mxu0 %v528
    %1291 = vmatpush1.msra.mxu0 %v527
    %1292 = vmatprep.subr.mxu0 0.0
    %1293 = vmatpush2.msra.mxu0 0.0
    %1294 = vmatprep.subr.mxu0 0.0
    %1295 = vmatpush2.msra.mxu0 0.0
    %1296 = vmatprep.subr.mxu0 0.0
    %1297 = vmatpush2.msra.mxu0 0.0
    %1298 = vmatprep.subr.mxu0 0.0
    %1299 = vmatpush2.msra.mxu0 0.0
    %1300 = vmatprep.subr.mxu0 0.0
    %1301 = vmatpush2.msra.mxu0 0.0
    %1302 = vmatprep.subr.mxu0 0.0
    %1303 = vmatpush2.msra.mxu0 0.0
    %1304 = vmatprep.subr.mxu0 0.0
    %1305 = vmatpush2.msra.mxu0 0.0
    %1306 = vmatprep.subr.mxu0 0.0
    %1307 = vmatpush2.msra.mxu0 0.0
    %1308 = vmatprep.subr.mxu0 0.0
    %1309 = vmatpush2.msra.mxu0 0.0
    %1310 = vmatprep.subr.mxu0 0.0
    %1311 = vmatpush2.msra.mxu0 0.0
    %1312 = vmatprep.subr.mxu0 0.0
    %1313 = vmatpush2.msra.mxu0 0.0
    %1314 = vmatprep.subr.mxu0 0.0
    %1315 = vmatpush2.msra.mxu0 0.0
    %1316 = vmatprep.subr.mxu0 0.0
    %1317 = vmatpush2.msra.mxu0 0.0
    %1318 = vmatprep.subr.mxu0 0.0
    %1319 = vmatpush2.msra.mxu0 0.0
    %1320 = vmatprep.subr.mxu0 0.0
    %1321 = vmatpush2.msra.mxu0 0.0
    %1322 = vmatprep.subr.mxu0 0.0
    %1323 = vmatpush2.msra.mxu0 0.0
    %1324 = vmatprep.mubr.f32.mxu0 0.0
    %1325 = vmatmul.mubr.f32.gmra.mxu0 %v1259
    %v1326 = vpop.f32.mrf.mxu0
    %v1327 = vadd.f32 %v581, %v1326
    %v1328 = vpop.f32.mrf.mxu0
    %v1329 = vadd.f32 %v585, %v1328
    %1330 = vdwg.mxu0
    %1331 = vmatprep.subr.mxu0 0.0
    %1332 = vmatpush1.msra.mxu0 %v574
    %1333 = vmatprep.subr.mxu0 0.0
    %1334 = vmatpush1.msra.mxu0 %v571
    %1335 = vmatprep.subr.mxu0 0.0
    %1336 = vmatpush1.msra.mxu0 %v568
    %1337 = vmatprep.subr.mxu0 0.0
    %1338 = vmatpush1.msra.mxu0 %v565
    %1339 = vmatprep.subr.mxu0 0.0
    %1340 = vmatpush1.msra.mxu0 %v562
    %1341 = vmatprep.subr.mxu0 0.0
    %1342 = vmatpush1.msra.mxu0 %v559
    %1343 = vmatprep.subr.mxu0 0.0
    %1344 = vmatpush1.msra.mxu0 %v556
    %1345 = vmatprep.subr.mxu0 0.0
    %1346 = vmatpush1.msra.mxu0 %v553
    %1347 = vmatprep.subr.mxu0 0.0
    %1348 = vmatpush1.msra.mxu0 %v550
    %1349 = vmatprep.subr.mxu0 0.0
    %1350 = vmatpush1.msra.mxu0 %v547
    %1351 = vmatprep.subr.mxu0 0.0
    %1352 = vmatpush1.msra.mxu0 %v544
    %1353 = vmatprep.subr.mxu0 0.0
    %1354 = vmatpush1.msra.mxu0 %v541
    %1355 = vmatprep.subr.mxu0 0.0
    %1356 = vmatpush1.msra.mxu0 %v538
    %1357 = vmatprep.subr.mxu0 0.0
    %1358 = vmatpush1.msra.mxu0 %v535
    %1359 = vmatprep.subr.mxu0 0.0
    %1360 = vmatpush1.msra.mxu0 %v532
    %1361 = vmatprep.subr.mxu0 0.0
    %1362 = vmatpush1.msra.mxu0 %v529
    %1363 = vmatprep.subr.mxu0 0.0
    %1364 = vmatpush2.msra.mxu0 0.0
    %1365 = vmatprep.subr.mxu0 0.0
    %1366 = vmatpush2.msra.mxu0 0.0
    %1367 = vmatprep.subr.mxu0 0.0
    %1368 = vmatpush2.msra.mxu0 0.0
    %1369 = vmatprep.subr.mxu0 0.0
    %1370 = vmatpush2.msra.mxu0 0.0
    %1371 = vmatprep.subr.mxu0 0.0
    %1372 = vmatpush2.msra.mxu0 0.0
    %1373 = vmatprep.subr.mxu0 0.0
    %1374 = vmatpush2.msra.mxu0 0.0
    %1375 = vmatprep.subr.mxu0 0.0
    %1376 = vmatpush2.msra.mxu0 0.0
    %1377 = vmatprep.subr.mxu0 0.0
    %1378 = vmatpush2.msra.mxu0 0.0
    %1379 = vmatprep.subr.mxu0 0.0
    %1380 = vmatpush2.msra.mxu0 0.0
    %1381 = vmatprep.subr.mxu0 0.0
    %1382 = vmatpush2.msra.mxu0 0.0
    %1383 = vmatprep.subr.mxu0 0.0
    %1384 = vmatpush2.msra.mxu0 0.0
    %1385 = vmatprep.subr.mxu0 0.0
    %1386 = vmatpush2.msra.mxu0 0.0
    %1387 = vmatprep.subr.mxu0 0.0
    %1388 = vmatpush2.msra.mxu0 0.0
    %1389 = vmatprep.subr.mxu0 0.0
    %1390 = vmatpush2.msra.mxu0 0.0
    %1391 = vmatprep.subr.mxu0 0.0
    %1392 = vmatpush2.msra.mxu0 0.0
    %1393 = vmatprep.subr.mxu0 0.0
    %1394 = vmatpush2.msra.mxu0 0.0
    %1395 = vmatprep.mubr.f32.mxu0 0.0
    %1396 = vmatmul.mubr.f32.gmra.mxu0 %v1259
    %v1397 = vpop.f32.mrf.mxu0
    %v1398 = vadd.f32 %v589, %v1397
    %v1399 = vpop.f32.mrf.mxu0
    %1400 = vdwg.mxu0
    %1401 = vmatprep.subr.mxu0 %v781
    %1402 = vmatpush1.msra.mxu0 %v780
    %1403 = vmatprep.subr.mxu0 %v778
    %1404 = vmatpush1.msra.mxu0 %v777
    %1405 = vmatprep.subr.mxu0 %v775
    %1406 = vmatpush1.msra.mxu0 %v774
    %1407 = vmatprep.subr.mxu0 %v772
    %1408 = vmatpush1.msra.mxu0 %v771
    %1409 = vmatprep.subr.mxu0 %v769
    %1410 = vmatpush1.msra.mxu0 %v768
    %1411 = vmatprep.subr.mxu0 %v766
    %1412 = vmatpush1.msra.mxu0 %v765
    %1413 = vmatprep.subr.mxu0 %v763
    %1414 = vmatpush1.msra.mxu0 %v762
    %1415 = vmatprep.subr.mxu0 %v760
    %1416 = vmatpush1.msra.mxu0 %v759
    %1417 = vmatprep.subr.mxu0 %v757
    %1418 = vmatpush1.msra.mxu0 %v756
    %1419 = vmatprep.subr.mxu0 %v754
    %1420 = vmatpush1.msra.mxu0 %v753
    %1421 = vmatprep.subr.mxu0 %v751
    %1422 = vmatpush1.msra.mxu0 %v750
    %1423 = vmatprep.subr.mxu0 %v748
    %1424 = vmatpush1.msra.mxu0 %v747
    %1425 = vmatprep.subr.mxu0 %v745
    %1426 = vmatpush1.msra.mxu0 %v744
    %1427 = vmatprep.subr.mxu0 %v742
    %1428 = vmatpush1.msra.mxu0 %v741
    %1429 = vmatprep.subr.mxu0 %v739
    %1430 = vmatpush1.msra.mxu0 %v738
    %1431 = vmatprep.subr.mxu0 %v736
    %1432 = vmatpush1.msra.mxu0 %v735
    %1433 = vmatprep.subr.mxu0 0.0
    %1434 = vmatpush2.msra.mxu0 0.0
    %1435 = vmatprep.subr.mxu0 0.0
    %1436 = vmatpush2.msra.mxu0 0.0
    %1437 = vmatprep.subr.mxu0 0.0
    %1438 = vmatpush2.msra.mxu0 0.0
    %1439 = vmatprep.subr.mxu0 0.0
    %1440 = vmatpush2.msra.mxu0 0.0
    %1441 = vmatprep.subr.mxu0 0.0
    %1442 = vmatpush2.msra.mxu0 0.0
    %1443 = vmatprep.subr.mxu0 0.0
    %1444 = vmatpush2.msra.mxu0 0.0
    %1445 = vmatprep.subr.mxu0 0.0
    %1446 = vmatpush2.msra.mxu0 0.0
    %1447 = vmatprep.subr.mxu0 0.0
    %1448 = vmatpush2.msra.mxu0 0.0
    %1449 = vmatprep.subr.mxu0 0.0
    %1450 = vmatpush2.msra.mxu0 0.0
    %1451 = vmatprep.subr.mxu0 0.0
    %1452 = vmatpush2.msra.mxu0 0.0
    %1453 = vmatprep.subr.mxu0 0.0
    %1454 = vmatpush2.msra.mxu0 0.0
    %1455 = vmatprep.subr.mxu0 0.0
    %1456 = vmatpush2.msra.mxu0 0.0
    %1457 = vmatprep.subr.mxu0 0.0
    %1458 = vmatpush2.msra.mxu0 0.0
    %1459 = vmatprep.subr.mxu0 0.0
    %1460 = vmatpush2.msra.mxu0 0.0
    %1461 = vmatprep.subr.mxu0 0.0
    %1462 = vmatpush2.msra.mxu0 0.0
    %1463 = vmatprep.subr.mxu0 0.0
    %1464 = vmatpush2.msra.mxu0 0.0
    %1465 = vmatprep.mubr.f32.mxu0 0.0
    %1466 = vmatmul.mubr.f32.gmra.mxu0 %v948
    %v1467 = vpop.f32.mrf.mxu0
    %v1468 = vadd.f32 0.0, %v1467
    %v1469 = vpop.f32.mrf.mxu0
    %v1470 = vadd.f32 0.0, %v1469
    %1471 = vdwg.mxu0
    %1472 = vmatprep.subr.mxu0 0.0
    %1473 = vmatpush1.msra.mxu0 %v782
    %1474 = vmatprep.subr.mxu0 0.0
    %1475 = vmatpush1.msra.mxu0 %v779
    %1476 = vmatprep.subr.mxu0 0.0
    %1477 = vmatpush1.msra.mxu0 %v776
    %1478 = vmatprep.subr.mxu0 0.0
    %1479 = vmatpush1.msra.mxu0 %v773
    %1480 = vmatprep.subr.mxu0 0.0
    %1481 = vmatpush1.msra.mxu0 %v770
    %1482 = vmatprep.subr.mxu0 0.0
    %1483 = vmatpush1.msra.mxu0 %v767
    %1484 = vmatprep.subr.mxu0 0.0
    %1485 = vmatpush1.msra.mxu0 %v764
    %1486 = vmatprep.subr.mxu0 0.0
    %1487 = vmatpush1.msra.mxu0 %v761
    %1488 = vmatprep.subr.mxu0 0.0
    %1489 = vmatpush1.msra.mxu0 %v758
    %1490 = vmatprep.subr.mxu0 0.0
    %1491 = vmatpush1.msra.mxu0 %v755
    %1492 = vmatprep.subr.mxu0 0.0
    %1493 = vmatpush1.msra.mxu0 %v752
    %1494 = vmatprep.subr.mxu0 0.0
    %1495 = vmatpush1.msra.mxu0 %v749
    %1496 = vmatprep.subr.mxu0 0.0
    %1497 = vmatpush1.msra.mxu0 %v746
    %1498 = vmatprep.subr.mxu0 0.0
    %1499 = vmatpush1.msra.mxu0 %v743
    %1500 = vmatprep.subr.mxu0 0.0
    %1501 = vmatpush1.msra.mxu0 %v740
    %1502 = vmatprep.subr.mxu0 0.0
    %1503 = vmatpush1.msra.mxu0 %v737
    %1504 = vmatprep.subr.mxu0 0.0
    %1505 = vmatpush2.msra.mxu0 0.0
    %1506 = vmatprep.subr.mxu0 0.0
    %1507 = vmatpush2.msra.mxu0 0.0
    %1508 = vmatprep.subr.mxu0 0.0
    %1509 = vmatpush2.msra.mxu0 0.0
    %1510 = vmatprep.subr.mxu0 0.0
    %1511 = vmatpush2.msra.mxu0 0.0
    %1512 = vmatprep.subr.mxu0 0.0
    %1513 = vmatpush2.msra.mxu0 0.0
    %1514 = vmatprep.subr.mxu0 0.0
    %1515 = vmatpush2.msra.mxu0 0.0
    %1516 = vmatprep.subr.mxu0 0.0
    %1517 = vmatpush2.msra.mxu0 0.0
    %1518 = vmatprep.subr.mxu0 0.0
    %1519 = vmatpush2.msra.mxu0 0.0
    %1520 = vmatprep.subr.mxu0 0.0
    %1521 = vmatpush2.msra.mxu0 0.0
    %1522 = vmatprep.subr.mxu0 0.0
    %1523 = vmatpush2.msra.mxu0 0.0
    %1524 = vmatprep.subr.mxu0 0.0
    %1525 = vmatpush2.msra.mxu0 0.0
    %1526 = vmatprep.subr.mxu0 0.0
    %1527 = vmatpush2.msra.mxu0 0.0
    %1528 = vmatprep.subr.mxu0 0.0
    %1529 = vmatpush2.msra.mxu0 0.0
    %1530 = vmatprep.subr.mxu0 0.0
    %1531 = vmatpush2.msra.mxu0 0.0
    %1532 = vmatprep.subr.mxu0 0.0
    %1533 = vmatpush2.msra.mxu0 0.0
    %1534 = vmatprep.subr.mxu0 0.0
    %1535 = vmatpush2.msra.mxu0 0.0
    %1536 = vmatprep.mubr.f32.mxu0 0.0
    %1537 = vmatmul.mubr.f32.gmra.mxu0 %v948
    %v1538 = vpop.f32.mrf.mxu0
    %v1539 = vadd.f32 0.0, %v1538
    %v1540 = vpop.f32.mrf.mxu0
    %1541 = vdwg.mxu0
    %v1542 = vadd.f32 %v1327, %v1468
    %v1543 = vadd.f32 %v1329, %v1470
    %v1544 = vxor.u32 %v1542, 2147483648
    %v1545 = vxor.u32 %v1543, 2147483648
    %v1546 = vmul.f32 %v1544, 1.442695
    %v1547 = vpow.pop %v1546
    %v1548 = vmul.f32 %v1545, 1.442695
    %v1549 = vpow.pop %v1548
    %v1550 = vadd.f32 %v1547, 1.0
    %v1551 = vadd.f32 %v1549, 1.0
    %v1552 = vrcp.pop %v1550
    %v1553 = vmul.f32 1.0, %v1552
    %v1554 = vrcp.pop %v1551
    %v1555 = vmul.f32 1.0, %v1554
    %v1556 = vadd.f32 %v1539, %v939
    %v1557 = vmul.f32 %v1553, %v1556
    %v1558 = vadd.f32 %v1398, %v1557
    %v1559 = vtanh.pop %v1558
    %v1560 = vsub.f32 1.0, %v1555
    %v1561 = vmul.f32 %v1560, %v1559
    %v1562 = vmul.f32 %v1555, %v948
    %v1563 = vadd.f32 %v1561, %v1562
    %v1564 = vsel %vm1258, %v1563, %v948
    %v1565 = vsel %vm1258, %v1563, 0.0
    %p1566 = scmp.gt.s32.totalorder %s98, 2
    %v1567 = vld [vmem:[#allocation5 + $0x2] sm:$0x1]
    %1568 = vmatprep.subr.mxu0 %v150
    %1569 = vmatpush1.msra.mxu0 %v149
    %1570 = vmatprep.subr.mxu0 %v147
    %1571 = vmatpush1.msra.mxu0 %v146
    %1572 = vmatprep.subr.mxu0 %v144
    %1573 = vmatpush1.msra.mxu0 %v143
    %1574 = vmatprep.subr.mxu0 %v141
    %1575 = vmatpush1.msra.mxu0 %v140
    %1576 = vmatprep.subr.mxu0 %v138
    %1577 = vmatpush1.msra.mxu0 %v137
    %1578 = vmatprep.subr.mxu0 %v135
    %1579 = vmatpush1.msra.mxu0 %v134
    %1580 = vmatprep.subr.mxu0 %v132
    %1581 = vmatpush1.msra.mxu0 %v131
    %1582 = vmatprep.subr.mxu0 %v129
    %1583 = vmatpush1.msra.mxu0 %v128
    %1584 = vmatprep.subr.mxu0 %v126
    %1585 = vmatpush1.msra.mxu0 %v125
    %1586 = vmatprep.subr.mxu0 %v123
    %1587 = vmatpush1.msra.mxu0 %v122
    %1588 = vmatprep.subr.mxu0 %v120
    %1589 = vmatpush1.msra.mxu0 %v119
    %1590 = vmatprep.subr.mxu0 %v117
    %1591 = vmatpush1.msra.mxu0 %v116
    %1592 = vmatprep.subr.mxu0 %v114
    %1593 = vmatpush1.msra.mxu0 %v113
    %1594 = vmatprep.subr.mxu0 %v111
    %1595 = vmatpush1.msra.mxu0 %v110
    %1596 = vmatprep.subr.mxu0 %v108
    %1597 = vmatpush1.msra.mxu0 %v107
    %1598 = vmatprep.subr.mxu0 %v105
    %1599 = vmatpush1.msra.mxu0 %v104
    %1600 = vmatprep.subr.mxu0 0.0
    %1601 = vmatpush2.msra.mxu0 0.0
    %1602 = vmatprep.subr.mxu0 0.0
    %1603 = vmatpush2.msra.mxu0 0.0
    %1604 = vmatprep.subr.mxu0 0.0
    %1605 = vmatpush2.msra.mxu0 0.0
    %1606 = vmatprep.subr.mxu0 0.0
    %1607 = vmatpush2.msra.mxu0 0.0
    %1608 = vmatprep.subr.mxu0 0.0
    %1609 = vmatpush2.msra.mxu0 0.0
    %1610 = vmatprep.subr.mxu0 0.0
    %1611 = vmatpush2.msra.mxu0 0.0
    %1612 = vmatprep.subr.mxu0 0.0
    %1613 = vmatpush2.msra.mxu0 0.0
    %1614 = vmatprep.subr.mxu0 0.0
    %1615 = vmatpush2.msra.mxu0 0.0
    %1616 = vmatprep.subr.mxu0 0.0
    %1617 = vmatpush2.msra.mxu0 0.0
    %1618 = vmatprep.subr.mxu0 0.0
    %1619 = vmatpush2.msra.mxu0 0.0
    %1620 = vmatprep.subr.mxu0 0.0
    %1621 = vmatpush2.msra.mxu0 0.0
    %1622 = vmatprep.subr.mxu0 0.0
    %1623 = vmatpush2.msra.mxu0 0.0
    %1624 = vmatprep.subr.mxu0 0.0
    %1625 = vmatpush2.msra.mxu0 0.0
    %1626 = vmatprep.subr.mxu0 0.0
    %1627 = vmatpush2.msra.mxu0 0.0
    %1628 = vmatprep.subr.mxu0 0.0
    %1629 = vmatpush2.msra.mxu0 0.0
    %1630 = vmatprep.subr.mxu0 0.0
    %1631 = vmatpush2.msra.mxu0 0.0
    %1632 = vmatprep.mubr.f32.mxu0 0.0
    %1633 = vmatmul.mubr.f32.gmra.mxu0 %v1567
    %v1634 = vpop.f32.mrf.mxu0
    %v1635 = vadd.f32 %v157, %v1634
    %v1636 = vpop.f32.mrf.mxu0
    %v1637 = vadd.f32 %v161, %v1636
    %1638 = vdwg.mxu0
    %1639 = vmatprep.subr.mxu0 0.0
    %1640 = vmatpush1.msra.mxu0 %v151
    %1641 = vmatprep.subr.mxu0 0.0
    %1642 = vmatpush1.msra.mxu0 %v148
    %1643 = vmatprep.subr.mxu0 0.0
    %1644 = vmatpush1.msra.mxu0 %v145
    %1645 = vmatprep.subr.mxu0 0.0
    %1646 = vmatpush1.msra.mxu0 %v142
    %1647 = vmatprep.subr.mxu0 0.0
    %1648 = vmatpush1.msra.mxu0 %v139
    %1649 = vmatprep.subr.mxu0 0.0
    %1650 = vmatpush1.msra.mxu0 %v136
    %1651 = vmatprep.subr.mxu0 0.0
    %1652 = vmatpush1.msra.mxu0 %v133
    %1653 = vmatprep.subr.mxu0 0.0
    %1654 = vmatpush1.msra.mxu0 %v130
    %1655 = vmatprep.subr.mxu0 0.0
    %1656 = vmatpush1.msra.mxu0 %v127
    %1657 = vmatprep.subr.mxu0 0.0
    %1658 = vmatpush1.msra.mxu0 %v124
    %1659 = vmatprep.subr.mxu0 0.0
    %1660 = vmatpush1.msra.mxu0 %v121
    %1661 = vmatprep.subr.mxu0 0.0
    %1662 = vmatpush1.msra.mxu0 %v118
    %1663 = vmatprep.subr.mxu0 0.0
    %1664 = vmatpush1.msra.mxu0 %v115
    %1665 = vmatprep.subr.mxu0 0.0
    %1666 = vmatpush1.msra.mxu0 %v112
    %1667 = vmatprep.subr.mxu0 0.0
    %1668 = vmatpush1.msra.mxu0 %v109
    %1669 = vmatprep.subr.mxu0 0.0
    %1670 = vmatpush1.msra.mxu0 %v106
    %1671 = vmatprep.subr.mxu0 0.0
    %1672 = vmatpush2.msra.mxu0 0.0
    %1673 = vmatprep.subr.mxu0 0.0
    %1674 = vmatpush2.msra.mxu0 0.0
    %1675 = vmatprep.subr.mxu0 0.0
    %1676 = vmatpush2.msra.mxu0 0.0
    %1677 = vmatprep.subr.mxu0 0.0
    %1678 = vmatpush2.msra.mxu0 0.0
    %1679 = vmatprep.subr.mxu0 0.0
    %1680 = vmatpush2.msra.mxu0 0.0
    %1681 = vmatprep.subr.mxu0 0.0
    %1682 = vmatpush2.msra.mxu0 0.0
    %1683 = vmatprep.subr.mxu0 0.0
    %1684 = vmatpush2.msra.mxu0 0.0
    %1685 = vmatprep.subr.mxu0 0.0
    %1686 = vmatpush2.msra.mxu0 0.0
    %1687 = vmatprep.subr.mxu0 0.0
    %1688 = vmatpush2.msra.mxu0 0.0
    %1689 = vmatprep.subr.mxu0 0.0
    %1690 = vmatpush2.msra.mxu0 0.0
    %1691 = vmatprep.subr.mxu0 0.0
    %1692 = vmatpush2.msra.mxu0 0.0
    %1693 = vmatprep.subr.mxu0 0.0
    %1694 = vmatpush2.msra.mxu0 0.0
    %1695 = vmatprep.subr.mxu0 0.0
    %1696 = vmatpush2.msra.mxu0 0.0
    %1697 = vmatprep.subr.mxu0 0.0
    %1698 = vmatpush2.msra.mxu0 0.0
    %1699 = vmatprep.subr.mxu0 0.0
    %1700 = vmatpush2.msra.mxu0 0.0
    %1701 = vmatprep.subr.mxu0 0.0
    %1702 = vmatpush2.msra.mxu0 0.0
    %1703 = vmatprep.mubr.f32.mxu0 0.0
    %1704 = vmatmul.mubr.f32.gmra.mxu0 %v1567
    %v1705 = vpop.f32.mrf.mxu0
    %v1706 = vadd.f32 %v165, %v1705
    %v1707 = vpop.f32.mrf.mxu0
    %1708 = vdwg.mxu0
    %1709 = vmatprep.subr.mxu0 %v356
    %1710 = vmatpush1.msra.mxu0 %v355
    %1711 = vmatprep.subr.mxu0 %v353
    %1712 = vmatpush1.msra.mxu0 %v352
    %1713 = vmatprep.subr.mxu0 %v350
    %1714 = vmatpush1.msra.mxu0 %v349
    %1715 = vmatprep.subr.mxu0 %v347
    %1716 = vmatpush1.msra.mxu0 %v346
    %1717 = vmatprep.subr.mxu0 %v344
    %1718 = vmatpush1.msra.mxu0 %v343
    %1719 = vmatprep.subr.mxu0 %v341
    %1720 = vmatpush1.msra.mxu0 %v340
    %1721 = vmatprep.subr.mxu0 %v338
    %1722 = vmatpush1.msra.mxu0 %v337
    %1723 = vmatprep.subr.mxu0 %v335
    %1724 = vmatpush1.msra.mxu0 %v334
    %1725 = vmatprep.subr.mxu0 %v332
    %1726 = vmatpush1.msra.mxu0 %v331
    %1727 = vmatprep.subr.mxu0 %v329
    %1728 = vmatpush1.msra.mxu0 %v328
    %1729 = vmatprep.subr.mxu0 %v326
    %1730 = vmatpush1.msra.mxu0 %v325
    %1731 = vmatprep.subr.mxu0 %v323
    %1732 = vmatpush1.msra.mxu0 %v322
    %1733 = vmatprep.subr.mxu0 %v320
    %1734 = vmatpush1.msra.mxu0 %v319
    %1735 = vmatprep.subr.mxu0 %v317
    %1736 = vmatpush1.msra.mxu0 %v316
    %1737 = vmatprep.subr.mxu0 %v314
    %1738 = vmatpush1.msra.mxu0 %v313
    %1739 = vmatprep.subr.mxu0 %v311
    %1740 = vmatpush1.msra.mxu0 %v310
    %1741 = vmatprep.subr.mxu0 0.0
    %1742 = vmatpush2.msra.mxu0 0.0
    %1743 = vmatprep.subr.mxu0 0.0
    %1744 = vmatpush2.msra.mxu0 0.0
    %1745 = vmatprep.subr.mxu0 0.0
    %1746 = vmatpush2.msra.mxu0 0.0
    %1747 = vmatprep.subr.mxu0 0.0
    %1748 = vmatpush2.msra.mxu0 0.0
    %1749 = vmatprep.subr.mxu0 0.0
    %1750 = vmatpush2.msra.mxu0 0.0
    %1751 = vmatprep.subr.mxu0 0.0
    %1752 = vmatpush2.msra.mxu0 0.0
    %1753 = vmatprep.subr.mxu0 0.0
    %1754 = vmatpush2.msra.mxu0 0.0
    %1755 = vmatprep.subr.mxu0 0.0
    %1756 = vmatpush2.msra.mxu0 0.0
    %1757 = vmatprep.subr.mxu0 0.0
    %1758 = vmatpush2.msra.mxu0 0.0
    %1759 = vmatprep.subr.mxu0 0.0
    %1760 = vmatpush2.msra.mxu0 0.0
    %1761 = vmatprep.subr.mxu0 0.0
    %1762 = vmatpush2.msra.mxu0 0.0
    %1763 = vmatprep.subr.mxu0 0.0
    %1764 = vmatpush2.msra.mxu0 0.0
    %1765 = vmatprep.subr.mxu0 0.0
    %1766 = vmatpush2.msra.mxu0 0.0
    %1767 = vmatprep.subr.mxu0 0.0
    %1768 = vmatpush2.msra.mxu0 0.0
    %1769 = vmatprep.subr.mxu0 0.0
    %1770 = vmatpush2.msra.mxu0 0.0
    %1771 = vmatprep.subr.mxu0 0.0
    %1772 = vmatpush2.msra.mxu0 0.0
    %1773 = vmatprep.mubr.f32.mxu0 0.0
    %1774 = vmatmul.mubr.f32.gmra.mxu0 %v1259
    %v1775 = vpop.f32.mrf.mxu0
    %v1776 = vadd.f32 0.0, %v1775
    %v1777 = vpop.f32.mrf.mxu0
    %v1778 = vadd.f32 0.0, %v1777
    %1779 = vdwg.mxu0
    %1780 = vmatprep.subr.mxu0 0.0
    %1781 = vmatpush1.msra.mxu0 %v357
    %1782 = vmatprep.subr.mxu0 0.0
    %1783 = vmatpush1.msra.mxu0 %v354
    %1784 = vmatprep.subr.mxu0 0.0
    %1785 = vmatpush1.msra.mxu0 %v351
    %1786 = vmatprep.subr.mxu0 0.0
    %1787 = vmatpush1.msra.mxu0 %v348
    %1788 = vmatprep.subr.mxu0 0.0
    %1789 = vmatpush1.msra.mxu0 %v345
    %1790 = vmatprep.subr.mxu0 0.0
    %1791 = vmatpush1.msra.mxu0 %v342
    %1792 = vmatprep.subr.mxu0 0.0
    %1793 = vmatpush1.msra.mxu0 %v339
    %1794 = vmatprep.subr.mxu0 0.0
    %1795 = vmatpush1.msra.mxu0 %v336
    %1796 = vmatprep.subr.mxu0 0.0
    %1797 = vmatpush1.msra.mxu0 %v333
    %1798 = vmatprep.subr.mxu0 0.0
    %1799 = vmatpush1.msra.mxu0 %v330
    %1800 = vmatprep.subr.mxu0 0.0
    %1801 = vmatpush1.msra.mxu0 %v327
    %1802 = vmatprep.subr.mxu0 0.0
    %1803 = vmatpush1.msra.mxu0 %v324
    %1804 = vmatprep.subr.mxu0 0.0
    %1805 = vmatpush1.msra.mxu0 %v321
    %1806 = vmatprep.subr.mxu0 0.0
    %1807 = vmatpush1.msra.mxu0 %v318
    %1808 = vmatprep.subr.mxu0 0.0
    %1809 = vmatpush1.msra.mxu0 %v315
    %1810 = vmatprep.subr.mxu0 0.0
    %1811 = vmatpush1.msra.mxu0 %v312
    %1812 = vmatprep.subr.mxu0 0.0
    %1813 = vmatpush2.msra.mxu0 0.0
    %1814 = vmatprep.subr.mxu0 0.0
    %1815 = vmatpush2.msra.mxu0 0.0
    %1816 = vmatprep.subr.mxu0 0.0
    %1817 = vmatpush2.msra.mxu0 0.0
    %1818 = vmatprep.subr.mxu0 0.0
    %1819 = vmatpush2.msra.mxu0 0.0
    %1820 = vmatprep.subr.mxu0 0.0
    %1821 = vmatpush2.msra.mxu0 0.0
    %1822 = vmatprep.subr.mxu0 0.0
    %1823 = vmatpush2.msra.mxu0 0.0
    %1824 = vmatprep.subr.mxu0 0.0
    %1825 = vmatpush2.msra.mxu0 0.0
    %1826 = vmatprep.subr.mxu0 0.0
    %1827 = vmatpush2.msra.mxu0 0.0
    %1828 = vmatprep.subr.mxu0 0.0
    %1829 = vmatpush2.msra.mxu0 0.0
    %1830 = vmatprep.subr.mxu0 0.0
    %1831 = vmatpush2.msra.mxu0 0.0
    %1832 = vmatprep.subr.mxu0 0.0
    %1833 = vmatpush2.msra.mxu0 0.0
    %1834 = vmatprep.subr.mxu0 0.0
    %1835 = vmatpush2.msra.mxu0 0.0
    %1836 = vmatprep.subr.mxu0 0.0
    %1837 = vmatpush2.msra.mxu0 0.0
    %1838 = vmatprep.subr.mxu0 0.0
    %1839 = vmatpush2.msra.mxu0 0.0
    %1840 = vmatprep.subr.mxu0 0.0
    %1841 = vmatpush2.msra.mxu0 0.0
    %1842 = vmatprep.subr.mxu0 0.0
    %1843 = vmatpush2.msra.mxu0 0.0
    %1844 = vmatprep.mubr.f32.mxu0 0.0
    %1845 = vmatmul.mubr.f32.gmra.mxu0 %v1259
    %v1846 = vpop.f32.mrf.mxu0
    %v1847 = vadd.f32 0.0, %v1846
    %v1848 = vpop.f32.mrf.mxu0
    %1849 = vdwg.mxu0
    %v1850 = vadd.f32 %v1635, %v1776
    %v1851 = vadd.f32 %v1637, %v1778
    %v1852 = vxor.u32 %v1850, 2147483648
    %v1853 = vxor.u32 %v1851, 2147483648
    %v1854 = vmul.f32 %v1852, 1.442695
    %v1855 = vpow.pop %v1854
    %v1856 = vmul.f32 %v1853, 1.442695
    %v1857 = vpow.pop %v1856
    %v1858 = vadd.f32 %v1855, 1.0
    %v1859 = vadd.f32 %v1857, 1.0
    %v1860 = vrcp.pop %v1858
    %v1861 = vmul.f32 1.0, %v1860
    %v1862 = vrcp.pop %v1859
    %v1863 = vmul.f32 1.0, %v1862
    %v1864 = vadd.f32 %v1847, %v513
    %v1865 = vmul.f32 %v1861, %v1864
    %v1866 = vadd.f32 %v1706, %v1865
    %v1867 = vtanh.pop %v1866
    %v1868 = vsub.f32 1.0, %v1863
    %v1869 = vmul.f32 %v1868, %v1867
    %v1870 = vmul.f32 %v1863, %v1259
    %v1871 = vadd.f32 %v1869, %v1870
    %s1872 = scalar_select %p1566, 1, 0
    %v1873 = vstv %s1872
    %vm1874 = vcmp.eq.s32.totalorder %v1873, 1
    %v1875 = vsel %vm1874, %v1871, %v1259
    %1876 = vmatprep.subr.mxu0 %v573
    %1877 = vmatpush1.msra.mxu0 %v572
    %1878 = vmatprep.subr.mxu0 %v570
    %1879 = vmatpush1.msra.mxu0 %v569
    %1880 = vmatprep.subr.mxu0 %v567
    %1881 = vmatpush1.msra.mxu0 %v566
    %1882 = vmatprep.subr.mxu0 %v564
    %1883 = vmatpush1.msra.mxu0 %v563
    %1884 = vmatprep.subr.mxu0 %v561
    %1885 = vmatpush1.msra.mxu0 %v560
    %1886 = vmatprep.subr.mxu0 %v558
    %1887 = vmatpush1.msra.mxu0 %v557
    %1888 = vmatprep.subr.mxu0 %v555
    %1889 = vmatpush1.msra.mxu0 %v554
    %1890 = vmatprep.subr.mxu0 %v552
    %1891 = vmatpush1.msra.mxu0 %v551
    %1892 = vmatprep.subr.mxu0 %v549
    %1893 = vmatpush1.msra.mxu0 %v548
    %1894 = vmatprep.subr.mxu0 %v546
    %1895 = vmatpush1.msra.mxu0 %v545
    %1896 = vmatprep.subr.mxu0 %v543
    %1897 = vmatpush1.msra.mxu0 %v542
    %1898 = vmatprep.subr.mxu0 %v540
    %1899 = vmatpush1.msra.mxu0 %v539
    %1900 = vmatprep.subr.mxu0 %v537
    %1901 = vmatpush1.msra.mxu0 %v536
    %1902 = vmatprep.subr.mxu0 %v534
    %1903 = vmatpush1.msra.mxu0 %v533
    %1904 = vmatprep.subr.mxu0 %v531
    %1905 = vmatpush1.msra.mxu0 %v530
    %1906 = vmatprep.subr.mxu0 %v528
    %1907 = vmatpush1.msra.mxu0 %v527
    %1908 = vmatprep.subr.mxu0 0.0
    %1909 = vmatpush2.msra.mxu0 0.0
    %1910 = vmatprep.subr.mxu0 0.0
    %1911 = vmatpush2.msra.mxu0 0.0
    %1912 = vmatprep.subr.mxu0 0.0
    %1913 = vmatpush2.msra.mxu0 0.0
    %1914 = vmatprep.subr.mxu0 0.0
    %1915 = vmatpush2.msra.mxu0 0.0
    %1916 = vmatprep.subr.mxu0 0.0
    %1917 = vmatpush2.msra.mxu0 0.0
    %1918 = vmatprep.subr.mxu0 0.0
    %1919 = vmatpush2.msra.mxu0 0.0
    %1920 = vmatprep.subr.mxu0 0.0
    %1921 = vmatpush2.msra.mxu0 0.0
    %1922 = vmatprep.subr.mxu0 0.0
    %1923 = vmatpush2.msra.mxu0 0.0
    %1924 = vmatprep.subr.mxu0 0.0
    %1925 = vmatpush2.msra.mxu0 0.0
    %1926 = vmatprep.subr.mxu0 0.0
    %1927 = vmatpush2.msra.mxu0 0.0
    %1928 = vmatprep.subr.mxu0 0.0
    %1929 = vmatpush2.msra.mxu0 0.0
    %1930 = vmatprep.subr.mxu0 0.0
    %1931 = vmatpush2.msra.mxu0 0.0
    %1932 = vmatprep.subr.mxu0 0.0
    %1933 = vmatpush2.msra.mxu0 0.0
    %1934 = vmatprep.subr.mxu0 0.0
    %1935 = vmatpush2.msra.mxu0 0.0
    %1936 = vmatprep.subr.mxu0 0.0
    %1937 = vmatpush2.msra.mxu0 0.0
    %1938 = vmatprep.subr.mxu0 0.0
    %1939 = vmatpush2.msra.mxu0 0.0
    %1940 = vmatprep.mubr.f32.mxu0 0.0
    %1941 = vmatmul.mubr.f32.gmra.mxu0 %v1875
    %v1942 = vpop.f32.mrf.mxu0
    %v1943 = vadd.f32 %v581, %v1942
    %v1944 = vpop.f32.mrf.mxu0
    %v1945 = vadd.f32 %v585, %v1944
    %1946 = vdwg.mxu0
    %1947 = vmatprep.subr.mxu0 0.0
    %1948 = vmatpush1.msra.mxu0 %v574
    %1949 = vmatprep.subr.mxu0 0.0
    %1950 = vmatpush1.msra.mxu0 %v571
    %1951 = vmatprep.subr.mxu0 0.0
    %1952 = vmatpush1.msra.mxu0 %v568
    %1953 = vmatprep.subr.mxu0 0.0
    %1954 = vmatpush1.msra.mxu0 %v565
    %1955 = vmatprep.subr.mxu0 0.0
    %1956 = vmatpush1.msra.mxu0 %v562
    %1957 = vmatprep.subr.mxu0 0.0
    %1958 = vmatpush1.msra.mxu0 %v559
    %1959 = vmatprep.subr.mxu0 0.0
    %1960 = vmatpush1.msra.mxu0 %v556
    %1961 = vmatprep.subr.mxu0 0.0
    %1962 = vmatpush1.msra.mxu0 %v553
    %1963 = vmatprep.subr.mxu0 0.0
    %1964 = vmatpush1.msra.mxu0 %v550
    %1965 = vmatprep.subr.mxu0 0.0
    %1966 = vmatpush1.msra.mxu0 %v547
    %1967 = vmatprep.subr.mxu0 0.0
    %1968 = vmatpush1.msra.mxu0 %v544
    %1969 = vmatprep.subr.mxu0 0.0
    %1970 = vmatpush1.msra.mxu0 %v541
    %1971 = vmatprep.subr.mxu0 0.0
    %1972 = vmatpush1.msra.mxu0 %v538
    %1973 = vmatprep.subr.mxu0 0.0
    %1974 = vmatpush1.msra.mxu0 %v535
    %1975 = vmatprep.subr.mxu0 0.0
    %1976 = vmatpush1.msra.mxu0 %v532
    %1977 = vmatprep.subr.mxu0 0.0
    %1978 = vmatpush1.msra.mxu0 %v529
    %1979 = vmatprep.subr.mxu0 0.0
    %1980 = vmatpush2.msra.mxu0 0.0
    %1981 = vmatprep.subr.mxu0 0.0
    %1982 = vmatpush2.msra.mxu0 0.0
    %1983 = vmatprep.subr.mxu0 0.0
    %1984 = vmatpush2.msra.mxu0 0.0
    %1985 = vmatprep.subr.mxu0 0.0
    %1986 = vmatpush2.msra.mxu0 0.0
    %1987 = vmatprep.subr.mxu0 0.0
    %1988 = vmatpush2.msra.mxu0 0.0
    %1989 = vmatprep.subr.mxu0 0.0
    %1990 = vmatpush2.msra.mxu0 0.0
    %1991 = vmatprep.subr.mxu0 0.0
    %1992 = vmatpush2.msra.mxu0 0.0
    %1993 = vmatprep.subr.mxu0 0.0
    %1994 = vmatpush2.msra.mxu0 0.0
    %1995 = vmatprep.subr.mxu0 0.0
    %1996 = vmatpush2.msra.mxu0 0.0
    %1997 = vmatprep.subr.mxu0 0.0
    %1998 = vmatpush2.msra.mxu0 0.0
    %1999 = vmatprep.subr.mxu0 0.0
    %2000 = vmatpush2.msra.mxu0 0.0
    %2001 = vmatprep.subr.mxu0 0.0
    %2002 = vmatpush2.msra.mxu0 0.0
    %2003 = vmatprep.subr.mxu0 0.0
    %2004 = vmatpush2.msra.mxu0 0.0
    %2005 = vmatprep.subr.mxu0 0.0
    %2006 = vmatpush2.msra.mxu0 0.0
    %2007 = vmatprep.subr.mxu0 0.0
    %2008 = vmatpush2.msra.mxu0 0.0
    %2009 = vmatprep.subr.mxu0 0.0
    %2010 = vmatpush2.msra.mxu0 0.0
    %2011 = vmatprep.mubr.f32.mxu0 0.0
    %2012 = vmatmul.mubr.f32.gmra.mxu0 %v1875
    %v2013 = vpop.f32.mrf.mxu0
    %v2014 = vadd.f32 %v589, %v2013
    %v2015 = vpop.f32.mrf.mxu0
    %2016 = vdwg.mxu0
    %2017 = vmatprep.subr.mxu0 %v781
    %2018 = vmatpush1.msra.mxu0 %v780
    %2019 = vmatprep.subr.mxu0 %v778
    %2020 = vmatpush1.msra.mxu0 %v777
    %2021 = vmatprep.subr.mxu0 %v775
    %2022 = vmatpush1.msra.mxu0 %v774
    %2023 = vmatprep.subr.mxu0 %v772
    %2024 = vmatpush1.msra.mxu0 %v771
    %2025 = vmatprep.subr.mxu0 %v769
    %2026 = vmatpush1.msra.mxu0 %v768
    %2027 = vmatprep.subr.mxu0 %v766
    %2028 = vmatpush1.msra.mxu0 %v765
    %2029 = vmatprep.subr.mxu0 %v763
    %2030 = vmatpush1.msra.mxu0 %v762
    %2031 = vmatprep.subr.mxu0 %v760
    %2032 = vmatpush1.msra.mxu0 %v759
    %2033 = vmatprep.subr.mxu0 %v757
    %2034 = vmatpush1.msra.mxu0 %v756
    %2035 = vmatprep.subr.mxu0 %v754
    %2036 = vmatpush1.msra.mxu0 %v753
    %2037 = vmatprep.subr.mxu0 %v751
    %2038 = vmatpush1.msra.mxu0 %v750
    %2039 = vmatprep.subr.mxu0 %v748
    %2040 = vmatpush1.msra.mxu0 %v747
    %2041 = vmatprep.subr.mxu0 %v745
    %2042 = vmatpush1.msra.mxu0 %v744
    %2043 = vmatprep.subr.mxu0 %v742
    %2044 = vmatpush1.msra.mxu0 %v741
    %2045 = vmatprep.subr.mxu0 %v739
    %2046 = vmatpush1.msra.mxu0 %v738
    %2047 = vmatprep.subr.mxu0 %v736
    %2048 = vmatpush1.msra.mxu0 %v735
    %2049 = vmatprep.subr.mxu0 0.0
    %2050 = vmatpush2.msra.mxu0 0.0
    %2051 = vmatprep.subr.mxu0 0.0
    %2052 = vmatpush2.msra.mxu0 0.0
    %2053 = vmatprep.subr.mxu0 0.0
    %2054 = vmatpush2.msra.mxu0 0.0
    %2055 = vmatprep.subr.mxu0 0.0
    %2056 = vmatpush2.msra.mxu0 0.0
    %2057 = vmatprep.subr.mxu0 0.0
    %2058 = vmatpush2.msra.mxu0 0.0
    %2059 = vmatprep.subr.mxu0 0.0
    %2060 = vmatpush2.msra.mxu0 0.0
    %2061 = vmatprep.subr.mxu0 0.0
    %2062 = vmatpush2.msra.mxu0 0.0
    %2063 = vmatprep.subr.mxu0 0.0
    %2064 = vmatpush2.msra.mxu0 0.0
    %2065 = vmatprep.subr.mxu0 0.0
    %2066 = vmatpush2.msra.mxu0 0.0
    %2067 = vmatprep.subr.mxu0 0.0
    %2068 = vmatpush2.msra.mxu0 0.0
    %2069 = vmatprep.subr.mxu0 0.0
    %2070 = vmatpush2.msra.mxu0 0.0
    %2071 = vmatprep.subr.mxu0 0.0
    %2072 = vmatpush2.msra.mxu0 0.0
    %2073 = vmatprep.subr.mxu0 0.0
    %2074 = vmatpush2.msra.mxu0 0.0
    %2075 = vmatprep.subr.mxu0 0.0
    %2076 = vmatpush2.msra.mxu0 0.0
    %2077 = vmatprep.subr.mxu0 0.0
    %2078 = vmatpush2.msra.mxu0 0.0
    %2079 = vmatprep.subr.mxu0 0.0
    %2080 = vmatpush2.msra.mxu0 0.0
    %2081 = vmatprep.mubr.f32.mxu0 0.0
    %2082 = vmatmul.mubr.f32.gmra.mxu0 %v1564
    %v2083 = vpop.f32.mrf.mxu0
    %v2084 = vadd.f32 0.0, %v2083
    %v2085 = vpop.f32.mrf.mxu0
    %v2086 = vadd.f32 0.0, %v2085
    %2087 = vdwg.mxu0
    %2088 = vmatprep.subr.mxu0 0.0
    %2089 = vmatpush1.msra.mxu0 %v782
    %2090 = vmatprep.subr.mxu0 0.0
    %2091 = vmatpush1.msra.mxu0 %v779
    %2092 = vmatprep.subr.mxu0 0.0
    %2093 = vmatpush1.msra.mxu0 %v776
    %2094 = vmatprep.subr.mxu0 0.0
    %2095 = vmatpush1.msra.mxu0 %v773
    %2096 = vmatprep.subr.mxu0 0.0
    %2097 = vmatpush1.msra.mxu0 %v770
    %2098 = vmatprep.subr.mxu0 0.0
    %2099 = vmatpush1.msra.mxu0 %v767
    %2100 = vmatprep.subr.mxu0 0.0
    %2101 = vmatpush1.msra.mxu0 %v764
    %2102 = vmatprep.subr.mxu0 0.0
    %2103 = vmatpush1.msra.mxu0 %v761
    %2104 = vmatprep.subr.mxu0 0.0
    %2105 = vmatpush1.msra.mxu0 %v758
    %2106 = vmatprep.subr.mxu0 0.0
    %2107 = vmatpush1.msra.mxu0 %v755
    %2108 = vmatprep.subr.mxu0 0.0
    %2109 = vmatpush1.msra.mxu0 %v752
    %2110 = vmatprep.subr.mxu0 0.0
    %2111 = vmatpush1.msra.mxu0 %v749
    %2112 = vmatprep.subr.mxu0 0.0
    %2113 = vmatpush1.msra.mxu0 %v746
    %2114 = vmatprep.subr.mxu0 0.0
    %2115 = vmatpush1.msra.mxu0 %v743
    %2116 = vmatprep.subr.mxu0 0.0
    %2117 = vmatpush1.msra.mxu0 %v740
    %2118 = vmatprep.subr.mxu0 0.0
    %2119 = vmatpush1.msra.mxu0 %v737
    %2120 = vmatprep.subr.mxu0 0.0
    %2121 = vmatpush2.msra.mxu0 0.0
    %2122 = vmatprep.subr.mxu0 0.0
    %2123 = vmatpush2.msra.mxu0 0.0
    %2124 = vmatprep.subr.mxu0 0.0
    %2125 = vmatpush2.msra.mxu0 0.0
    %2126 = vmatprep.subr.mxu0 0.0
    %2127 = vmatpush2.msra.mxu0 0.0
    %2128 = vmatprep.subr.mxu0 0.0
    %2129 = vmatpush2.msra.mxu0 0.0
    %2130 = vmatprep.subr.mxu0 0.0
    %2131 = vmatpush2.msra.mxu0 0.0
    %2132 = vmatprep.subr.mxu0 0.0
    %2133 = vmatpush2.msra.mxu0 0.0
    %2134 = vmatprep.subr.mxu0 0.0
    %2135 = vmatpush2.msra.mxu0 0.0
    %2136 = vmatprep.subr.mxu0 0.0
    %2137 = vmatpush2.msra.mxu0 0.0
    %2138 = vmatprep.subr.mxu0 0.0
    %2139 = vmatpush2.msra.mxu0 0.0
    %2140 = vmatprep.subr.mxu0 0.0
    %2141 = vmatpush2.msra.mxu0 0.0
    %2142 = vmatprep.subr.mxu0 0.0
    %2143 = vmatpush2.msra.mxu0 0.0
    %2144 = vmatprep.subr.mxu0 0.0
    %2145 = vmatpush2.msra.mxu0 0.0
    %2146 = vmatprep.subr.mxu0 0.0
    %2147 = vmatpush2.msra.mxu0 0.0
    %2148 = vmatprep.subr.mxu0 0.0
    %2149 = vmatpush2.msra.mxu0 0.0
    %2150 = vmatprep.subr.mxu0 0.0
    %2151 = vmatpush2.msra.mxu0 0.0
    %2152 = vmatprep.mubr.f32.mxu0 0.0
    %2153 = vmatmul.mubr.f32.gmra.mxu0 %v1564
    %v2154 = vpop.f32.mrf.mxu0
    %v2155 = vadd.f32 0.0, %v2154
    %v2156 = vpop.f32.mrf.mxu0
    %2157 = vdwg.mxu0
    %v2158 = vadd.f32 %v1943, %v2084
    %v2159 = vadd.f32 %v1945, %v2086
    %v2160 = vxor.u32 %v2158, 2147483648
    %v2161 = vxor.u32 %v2159, 2147483648
    %v2162 = vmul.f32 %v2160, 1.442695
    %v2163 = vpow.pop %v2162
    %v2164 = vmul.f32 %v2161, 1.442695
    %v2165 = vpow.pop %v2164
    %v2166 = vadd.f32 %v2163, 1.0
    %v2167 = vadd.f32 %v2165, 1.0
    %v2168 = vrcp.pop %v2166
    %v2169 = vmul.f32 1.0, %v2168
    %v2170 = vrcp.pop %v2167
    %v2171 = vmul.f32 1.0, %v2170
    %v2172 = vadd.f32 %v2155, %v939
    %v2173 = vmul.f32 %v2169, %v2172
    %v2174 = vadd.f32 %v2014, %v2173
    %v2175 = vtanh.pop %v2174
    %v2176 = vsub.f32 1.0, %v2171
    %v2177 = vmul.f32 %v2176, %v2175
    %v2178 = vmul.f32 %v2171, %v1564
    %v2179 = vadd.f32 %v2177, %v2178
    %v2180 = vsel %vm1874, %v2179, %v1564
    %v2181 = vsel %vm1874, %v2179, 0.0
    %p2182 = scmp.gt.s32.totalorder %s98, 3
    %v2183 = vld [vmem:[#allocation5 + $0x3] sm:$0x1]
    %2184 = vmatprep.subr.mxu0 %v150
    %2185 = vmatpush1.msra.mxu0 %v149
    %2186 = vmatprep.subr.mxu0 %v147
    %2187 = vmatpush1.msra.mxu0 %v146
    %2188 = vmatprep.subr.mxu0 %v144
    %2189 = vmatpush1.msra.mxu0 %v143
    %2190 = vmatprep.subr.mxu0 %v141
    %2191 = vmatpush1.msra.mxu0 %v140
    %2192 = vmatprep.subr.mxu0 %v138
    %2193 = vmatpush1.msra.mxu0 %v137
    %2194 = vmatprep.subr.mxu0 %v135
    %2195 = vmatpush1.msra.mxu0 %v134
    %2196 = vmatprep.subr.mxu0 %v132
    %2197 = vmatpush1.msra.mxu0 %v131
    %2198 = vmatprep.subr.mxu0 %v129
    %2199 = vmatpush1.msra.mxu0 %v128
    %2200 = vmatprep.subr.mxu0 %v126
    %2201 = vmatpush1.msra.mxu0 %v125
    %2202 = vmatprep.subr.mxu0 %v123
    %2203 = vmatpush1.msra.mxu0 %v122
    %2204 = vmatprep.subr.mxu0 %v120
    %2205 = vmatpush1.msra.mxu0 %v119
    %2206 = vmatprep.subr.mxu0 %v117
    %2207 = vmatpush1.msra.mxu0 %v116
    %2208 = vmatprep.subr.mxu0 %v114
    %2209 = vmatpush1.msra.mxu0 %v113
    %2210 = vmatprep.subr.mxu0 %v111
    %2211 = vmatpush1.msra.mxu0 %v110
    %2212 = vmatprep.subr.mxu0 %v108
    %2213 = vmatpush1.msra.mxu0 %v107
    %2214 = vmatprep.subr.mxu0 %v105
    %2215 = vmatpush1.msra.mxu0 %v104
    %2216 = vmatprep.subr.mxu0 0.0
    %2217 = vmatpush2.msra.mxu0 0.0
    %2218 = vmatprep.subr.mxu0 0.0
    %2219 = vmatpush2.msra.mxu0 0.0
    %2220 = vmatprep.subr.mxu0 0.0
    %2221 = vmatpush2.msra.mxu0 0.0
    %2222 = vmatprep.subr.mxu0 0.0
    %2223 = vmatpush2.msra.mxu0 0.0
    %2224 = vmatprep.subr.mxu0 0.0
    %2225 = vmatpush2.msra.mxu0 0.0
    %2226 = vmatprep.subr.mxu0 0.0
    %2227 = vmatpush2.msra.mxu0 0.0
    %2228 = vmatprep.subr.mxu0 0.0
    %2229 = vmatpush2.msra.mxu0 0.0
    %2230 = vmatprep.subr.mxu0 0.0
    %2231 = vmatpush2.msra.mxu0 0.0
    %2232 = vmatprep.subr.mxu0 0.0
    %2233 = vmatpush2.msra.mxu0 0.0
    %2234 = vmatprep.subr.mxu0 0.0
    %2235 = vmatpush2.msra.mxu0 0.0
    %2236 = vmatprep.subr.mxu0 0.0
    %2237 = vmatpush2.msra.mxu0 0.0
    %2238 = vmatprep.subr.mxu0 0.0
    %2239 = vmatpush2.msra.mxu0 0.0
    %2240 = vmatprep.subr.mxu0 0.0
    %2241 = vmatpush2.msra.mxu0 0.0
    %2242 = vmatprep.subr.mxu0 0.0
    %2243 = vmatpush2.msra.mxu0 0.0
    %2244 = vmatprep.subr.mxu0 0.0
    %2245 = vmatpush2.msra.mxu0 0.0
    %2246 = vmatprep.subr.mxu0 0.0
    %2247 = vmatpush2.msra.mxu0 0.0
    %2248 = vmatprep.mubr.f32.mxu0 0.0
    %2249 = vmatmul.mubr.f32.gmra.mxu0 %v2183
    %v2250 = vpop.f32.mrf.mxu0
    %v2251 = vadd.f32 %v157, %v2250
    %v2252 = vpop.f32.mrf.mxu0
    %v2253 = vadd.f32 %v161, %v2252
    %2254 = vdwg.mxu0
    %2255 = vmatprep.subr.mxu0 0.0
    %2256 = vmatpush1.msra.mxu0 %v151
    %2257 = vmatprep.subr.mxu0 0.0
    %2258 = vmatpush1.msra.mxu0 %v148
    %2259 = vmatprep.subr.mxu0 0.0
    %2260 = vmatpush1.msra.mxu0 %v145
    %2261 = vmatprep.subr.mxu0 0.0
    %2262 = vmatpush1.msra.mxu0 %v142
    %2263 = vmatprep.subr.mxu0 0.0
    %2264 = vmatpush1.msra.mxu0 %v139
    %2265 = vmatprep.subr.mxu0 0.0
    %2266 = vmatpush1.msra.mxu0 %v136
    %2267 = vmatprep.subr.mxu0 0.0
    %2268 = vmatpush1.msra.mxu0 %v133
    %2269 = vmatprep.subr.mxu0 0.0
    %2270 = vmatpush1.msra.mxu0 %v130
    %2271 = vmatprep.subr.mxu0 0.0
    %2272 = vmatpush1.msra.mxu0 %v127
    %2273 = vmatprep.subr.mxu0 0.0
    %2274 = vmatpush1.msra.mxu0 %v124
    %2275 = vmatprep.subr.mxu0 0.0
    %2276 = vmatpush1.msra.mxu0 %v121
    %2277 = vmatprep.subr.mxu0 0.0
    %2278 = vmatpush1.msra.mxu0 %v118
    %2279 = vmatprep.subr.mxu0 0.0
    %2280 = vmatpush1.msra.mxu0 %v115
    %2281 = vmatprep.subr.mxu0 0.0
    %2282 = vmatpush1.msra.mxu0 %v112
    %2283 = vmatprep.subr.mxu0 0.0
    %2284 = vmatpush1.msra.mxu0 %v109
    %2285 = vmatprep.subr.mxu0 0.0
    %2286 = vmatpush1.msra.mxu0 %v106
    %2287 = vmatprep.subr.mxu0 0.0
    %2288 = vmatpush2.msra.mxu0 0.0
    %2289 = vmatprep.subr.mxu0 0.0
    %2290 = vmatpush2.msra.mxu0 0.0
    %2291 = vmatprep.subr.mxu0 0.0
    %2292 = vmatpush2.msra.mxu0 0.0
    %2293 = vmatprep.subr.mxu0 0.0
    %2294 = vmatpush2.msra.mxu0 0.0
    %2295 = vmatprep.subr.mxu0 0.0
    %2296 = vmatpush2.msra.mxu0 0.0
    %2297 = vmatprep.subr.mxu0 0.0
    %2298 = vmatpush2.msra.mxu0 0.0
    %2299 = vmatprep.subr.mxu0 0.0
    %2300 = vmatpush2.msra.mxu0 0.0
    %2301 = vmatprep.subr.mxu0 0.0
    %2302 = vmatpush2.msra.mxu0 0.0
    %2303 = vmatprep.subr.mxu0 0.0
    %2304 = vmatpush2.msra.mxu0 0.0
    %2305 = vmatprep.subr.mxu0 0.0
    %2306 = vmatpush2.msra.mxu0 0.0
    %2307 = vmatprep.subr.mxu0 0.0
    %2308 = vmatpush2.msra.mxu0 0.0
    %2309 = vmatprep.subr.mxu0 0.0
    %2310 = vmatpush2.msra.mxu0 0.0
    %2311 = vmatprep.subr.mxu0 0.0
    %2312 = vmatpush2.msra.mxu0 0.0
    %2313 = vmatprep.subr.mxu0 0.0
    %2314 = vmatpush2.msra.mxu0 0.0
    %2315 = vmatprep.subr.mxu0 0.0
    %2316 = vmatpush2.msra.mxu0 0.0
    %2317 = vmatprep.subr.mxu0 0.0
    %2318 = vmatpush2.msra.mxu0 0.0
    %2319 = vmatprep.mubr.f32.mxu0 0.0
    %2320 = vmatmul.mubr.f32.gmra.mxu0 %v2183
    %v2321 = vpop.f32.mrf.mxu0
    %v2322 = vadd.f32 %v165, %v2321
    %v2323 = vpop.f32.mrf.mxu0
    %2324 = vdwg.mxu0
    %2325 = vmatprep.subr.mxu0 %v356
    %2326 = vmatpush1.msra.mxu0 %v355
    %2327 = vmatprep.subr.mxu0 %v353
    %2328 = vmatpush1.msra.mxu0 %v352
    %2329 = vmatprep.subr.mxu0 %v350
    %2330 = vmatpush1.msra.mxu0 %v349
    %2331 = vmatprep.subr.mxu0 %v347
    %2332 = vmatpush1.msra.mxu0 %v346
    %2333 = vmatprep.subr.mxu0 %v344
    %2334 = vmatpush1.msra.mxu0 %v343
    %2335 = vmatprep.subr.mxu0 %v341
    %2336 = vmatpush1.msra.mxu0 %v340
    %2337 = vmatprep.subr.mxu0 %v338
    %2338 = vmatpush1.msra.mxu0 %v337
    %2339 = vmatprep.subr.mxu0 %v335
    %2340 = vmatpush1.msra.mxu0 %v334
    %2341 = vmatprep.subr.mxu0 %v332
    %2342 = vmatpush1.msra.mxu0 %v331
    %2343 = vmatprep.subr.mxu0 %v329
    %2344 = vmatpush1.msra.mxu0 %v328
    %2345 = vmatprep.subr.mxu0 %v326
    %2346 = vmatpush1.msra.mxu0 %v325
    %2347 = vmatprep.subr.mxu0 %v323
    %2348 = vmatpush1.msra.mxu0 %v322
    %2349 = vmatprep.subr.mxu0 %v320
    %2350 = vmatpush1.msra.mxu0 %v319
    %2351 = vmatprep.subr.mxu0 %v317
    %2352 = vmatpush1.msra.mxu0 %v316
    %2353 = vmatprep.subr.mxu0 %v314
    %2354 = vmatpush1.msra.mxu0 %v313
    %2355 = vmatprep.subr.mxu0 %v311
    %2356 = vmatpush1.msra.mxu0 %v310
    %2357 = vmatprep.subr.mxu0 0.0
    %2358 = vmatpush2.msra.mxu0 0.0
    %2359 = vmatprep.subr.mxu0 0.0
    %2360 = vmatpush2.msra.mxu0 0.0
    %2361 = vmatprep.subr.mxu0 0.0
    %2362 = vmatpush2.msra.mxu0 0.0
    %2363 = vmatprep.subr.mxu0 0.0
    %2364 = vmatpush2.msra.mxu0 0.0
    %2365 = vmatprep.subr.mxu0 0.0
    %2366 = vmatpush2.msra.mxu0 0.0
    %2367 = vmatprep.subr.mxu0 0.0
    %2368 = vmatpush2.msra.mxu0 0.0
    %2369 = vmatprep.subr.mxu0 0.0
    %2370 = vmatpush2.msra.mxu0 0.0
    %2371 = vmatprep.subr.mxu0 0.0
    %2372 = vmatpush2.msra.mxu0 0.0
    %2373 = vmatprep.subr.mxu0 0.0
    %2374 = vmatpush2.msra.mxu0 0.0
    %2375 = vmatprep.subr.mxu0 0.0
    %2376 = vmatpush2.msra.mxu0 0.0
    %2377 = vmatprep.subr.mxu0 0.0
    %2378 = vmatpush2.msra.mxu0 0.0
    %2379 = vmatprep.subr.mxu0 0.0
    %2380 = vmatpush2.msra.mxu0 0.0
    %2381 = vmatprep.subr.mxu0 0.0
    %2382 = vmatpush2.msra.mxu0 0.0
    %2383 = vmatprep.subr.mxu0 0.0
    %2384 = vmatpush2.msra.mxu0 0.0
    %2385 = vmatprep.subr.mxu0 0.0
    %2386 = vmatpush2.msra.mxu0 0.0
    %2387 = vmatprep.subr.mxu0 0.0
    %2388 = vmatpush2.msra.mxu0 0.0
    %2389 = vmatprep.mubr.f32.mxu0 0.0
    %2390 = vmatmul.mubr.f32.gmra.mxu0 %v1875
    %v2391 = vpop.f32.mrf.mxu0
    %v2392 = vadd.f32 0.0, %v2391
    %v2393 = vpop.f32.mrf.mxu0
    %v2394 = vadd.f32 0.0, %v2393
    %2395 = vdwg.mxu0
    %2396 = vmatprep.subr.mxu0 0.0
    %2397 = vmatpush1.msra.mxu0 %v357
    %2398 = vmatprep.subr.mxu0 0.0
    %2399 = vmatpush1.msra.mxu0 %v354
    %2400 = vmatprep.subr.mxu0 0.0
    %2401 = vmatpush1.msra.mxu0 %v351
    %2402 = vmatprep.subr.mxu0 0.0
    %2403 = vmatpush1.msra.mxu0 %v348
    %2404 = vmatprep.subr.mxu0 0.0
    %2405 = vmatpush1.msra.mxu0 %v345
    %2406 = vmatprep.subr.mxu0 0.0
    %2407 = vmatpush1.msra.mxu0 %v342
    %2408 = vmatprep.subr.mxu0 0.0
    %2409 = vmatpush1.msra.mxu0 %v339
    %2410 = vmatprep.subr.mxu0 0.0
    %2411 = vmatpush1.msra.mxu0 %v336
    %2412 = vmatprep.subr.mxu0 0.0
    %2413 = vmatpush1.msra.mxu0 %v333
    %2414 = vmatprep.subr.mxu0 0.0
    %2415 = vmatpush1.msra.mxu0 %v330
    %2416 = vmatprep.subr.mxu0 0.0
    %2417 = vmatpush1.msra.mxu0 %v327
    %2418 = vmatprep.subr.mxu0 0.0
    %2419 = vmatpush1.msra.mxu0 %v324
    %2420 = vmatprep.subr.mxu0 0.0
    %2421 = vmatpush1.msra.mxu0 %v321
    %2422 = vmatprep.subr.mxu0 0.0
    %2423 = vmatpush1.msra.mxu0 %v318
    %2424 = vmatprep.subr.mxu0 0.0
    %2425 = vmatpush1.msra.mxu0 %v315
    %2426 = vmatprep.subr.mxu0 0.0
    %2427 = vmatpush1.msra.mxu0 %v312
    %2428 = vmatprep.subr.mxu0 0.0
    %2429 = vmatpush2.msra.mxu0 0.0
    %2430 = vmatprep.subr.mxu0 0.0
    %2431 = vmatpush2.msra.mxu0 0.0
    %2432 = vmatprep.subr.mxu0 0.0
    %2433 = vmatpush2.msra.mxu0 0.0
    %2434 = vmatprep.subr.mxu0 0.0
    %2435 = vmatpush2.msra.mxu0 0.0
    %2436 = vmatprep.subr.mxu0 0.0
    %2437 = vmatpush2.msra.mxu0 0.0
    %2438 = vmatprep.subr.mxu0 0.0
    %2439 = vmatpush2.msra.mxu0 0.0
    %2440 = vmatprep.subr.mxu0 0.0
    %2441 = vmatpush2.msra.mxu0 0.0
    %2442 = vmatprep.subr.mxu0 0.0
    %2443 = vmatpush2.msra.mxu0 0.0
    %2444 = vmatprep.subr.mxu0 0.0
    %2445 = vmatpush2.msra.mxu0 0.0
    %2446 = vmatprep.subr.mxu0 0.0
    %2447 = vmatpush2.msra.mxu0 0.0
    %2448 = vmatprep.subr.mxu0 0.0
    %2449 = vmatpush2.msra.mxu0 0.0
    %2450 = vmatprep.subr.mxu0 0.0
    %2451 = vmatpush2.msra.mxu0 0.0
    %2452 = vmatprep.subr.mxu0 0.0
    %2453 = vmatpush2.msra.mxu0 0.0
    %2454 = vmatprep.subr.mxu0 0.0
    %2455 = vmatpush2.msra.mxu0 0.0
    %2456 = vmatprep.subr.mxu0 0.0
    %2457 = vmatpush2.msra.mxu0 0.0
    %2458 = vmatprep.subr.mxu0 0.0
    %2459 = vmatpush2.msra.mxu0 0.0
    %2460 = vmatprep.mubr.f32.mxu0 0.0
    %2461 = vmatmul.mubr.f32.gmra.mxu0 %v1875
    %v2462 = vpop.f32.mrf.mxu0
    %v2463 = vadd.f32 0.0, %v2462
    %v2464 = vpop.f32.mrf.mxu0
    %2465 = vdwg.mxu0
    %v2466 = vadd.f32 %v2251, %v2392
    %v2467 = vadd.f32 %v2253, %v2394
    %v2468 = vxor.u32 %v2466, 2147483648
    %v2469 = vxor.u32 %v2467, 2147483648
    %v2470 = vmul.f32 %v2468, 1.442695
    %v2471 = vpow.pop %v2470
    %v2472 = vmul.f32 %v2469, 1.442695
    %v2473 = vpow.pop %v2472
    %v2474 = vadd.f32 %v2471, 1.0
    %v2475 = vadd.f32 %v2473, 1.0
    %v2476 = vrcp.pop %v2474
    %v2477 = vmul.f32 1.0, %v2476
    %v2478 = vrcp.pop %v2475
    %v2479 = vmul.f32 1.0, %v2478
    %v2480 = vadd.f32 %v2463, %v513
    %v2481 = vmul.f32 %v2477, %v2480
    %v2482 = vadd.f32 %v2322, %v2481
    %v2483 = vtanh.pop %v2482
    %v2484 = vsub.f32 1.0, %v2479
    %v2485 = vmul.f32 %v2484, %v2483
    %v2486 = vmul.f32 %v2479, %v1875
    %v2487 = vadd.f32 %v2485, %v2486
    %s2488 = scalar_select %p2182, 1, 0
    %v2489 = vstv %s2488
    %vm2490 = vcmp.eq.s32.totalorder %v2489, 1
    %v2491 = vsel %vm2490, %v2487, %v1875
    %2492 = vmatprep.subr.mxu0 %v573
    %2493 = vmatpush1.msra.mxu0 %v572
    %2494 = vmatprep.subr.mxu0 %v570
    %2495 = vmatpush1.msra.mxu0 %v569
    %2496 = vmatprep.subr.mxu0 %v567
    %2497 = vmatpush1.msra.mxu0 %v566
    %2498 = vmatprep.subr.mxu0 %v564
    %2499 = vmatpush1.msra.mxu0 %v563
    %2500 = vmatprep.subr.mxu0 %v561
    %2501 = vmatpush1.msra.mxu0 %v560
    %2502 = vmatprep.subr.mxu0 %v558
    %2503 = vmatpush1.msra.mxu0 %v557
    %2504 = vmatprep.subr.mxu0 %v555
    %2505 = vmatpush1.msra.mxu0 %v554
    %2506 = vmatprep.subr.mxu0 %v552
    %2507 = vmatpush1.msra.mxu0 %v551
    %2508 = vmatprep.subr.mxu0 %v549
    %2509 = vmatpush1.msra.mxu0 %v548
    %2510 = vmatprep.subr.mxu0 %v546
    %2511 = vmatpush1.msra.mxu0 %v545
    %2512 = vmatprep.subr.mxu0 %v543
    %2513 = vmatpush1.msra.mxu0 %v542
    %2514 = vmatprep.subr.mxu0 %v540
    %2515 = vmatpush1.msra.mxu0 %v539
    %2516 = vmatprep.subr.mxu0 %v537
    %2517 = vmatpush1.msra.mxu0 %v536
    %2518 = vmatprep.subr.mxu0 %v534
    %2519 = vmatpush1.msra.mxu0 %v533
    %2520 = vmatprep.subr.mxu0 %v531
    %2521 = vmatpush1.msra.mxu0 %v530
    %2522 = vmatprep.subr.mxu0 %v528
    %2523 = vmatpush1.msra.mxu0 %v527
    %2524 = vmatprep.subr.mxu0 0.0
    %2525 = vmatpush2.msra.mxu0 0.0
    %2526 = vmatprep.subr.mxu0 0.0
    %2527 = vmatpush2.msra.mxu0 0.0
    %2528 = vmatprep.subr.mxu0 0.0
    %2529 = vmatpush2.msra.mxu0 0.0
    %2530 = vmatprep.subr.mxu0 0.0
    %2531 = vmatpush2.msra.mxu0 0.0
    %2532 = vmatprep.subr.mxu0 0.0
    %2533 = vmatpush2.msra.mxu0 0.0
    %2534 = vmatprep.subr.mxu0 0.0
    %2535 = vmatpush2.msra.mxu0 0.0
    %2536 = vmatprep.subr.mxu0 0.0
    %2537 = vmatpush2.msra.mxu0 0.0
    %2538 = vmatprep.subr.mxu0 0.0
    %2539 = vmatpush2.msra.mxu0 0.0
    %2540 = vmatprep.subr.mxu0 0.0
    %2541 = vmatpush2.msra.mxu0 0.0
    %2542 = vmatprep.subr.mxu0 0.0
    %2543 = vmatpush2.msra.mxu0 0.0
    %2544 = vmatprep.subr.mxu0 0.0
    %2545 = vmatpush2.msra.mxu0 0.0
    %2546 = vmatprep.subr.mxu0 0.0
    %2547 = vmatpush2.msra.mxu0 0.0
    %2548 = vmatprep.subr.mxu0 0.0
    %2549 = vmatpush2.msra.mxu0 0.0
    %2550 = vmatprep.subr.mxu0 0.0
    %2551 = vmatpush2.msra.mxu0 0.0
    %2552 = vmatprep.subr.mxu0 0.0
    %2553 = vmatpush2.msra.mxu0 0.0
    %2554 = vmatprep.subr.mxu0 0.0
    %2555 = vmatpush2.msra.mxu0 0.0
    %2556 = vmatprep.mubr.f32.mxu0 0.0
    %2557 = vmatmul.mubr.f32.gmra.mxu0 %v2491
    %v2558 = vpop.f32.mrf.mxu0
    %v2559 = vadd.f32 %v581, %v2558
    %v2560 = vpop.f32.mrf.mxu0
    %v2561 = vadd.f32 %v585, %v2560
    %2562 = vdwg.mxu0
    %2563 = vmatprep.subr.mxu0 0.0
    %2564 = vmatpush1.msra.mxu0 %v574
    %2565 = vmatprep.subr.mxu0 0.0
    %2566 = vmatpush1.msra.mxu0 %v571
    %2567 = vmatprep.subr.mxu0 0.0
    %2568 = vmatpush1.msra.mxu0 %v568
    %2569 = vmatprep.subr.mxu0 0.0
    %2570 = vmatpush1.msra.mxu0 %v565
    %2571 = vmatprep.subr.mxu0 0.0
    %2572 = vmatpush1.msra.mxu0 %v562
    %2573 = vmatprep.subr.mxu0 0.0
    %2574 = vmatpush1.msra.mxu0 %v559
    %2575 = vmatprep.subr.mxu0 0.0
    %2576 = vmatpush1.msra.mxu0 %v556
    %2577 = vmatprep.subr.mxu0 0.0
    %2578 = vmatpush1.msra.mxu0 %v553
    %2579 = vmatprep.subr.mxu0 0.0
    %2580 = vmatpush1.msra.mxu0 %v550
    %2581 = vmatprep.subr.mxu0 0.0
    %2582 = vmatpush1.msra.mxu0 %v547
    %2583 = vmatprep.subr.mxu0 0.0
    %2584 = vmatpush1.msra.mxu0 %v544
    %2585 = vmatprep.subr.mxu0 0.0
    %2586 = vmatpush1.msra.mxu0 %v541
    %2587 = vmatprep.subr.mxu0 0.0
    %2588 = vmatpush1.msra.mxu0 %v538
    %2589 = vmatprep.subr.mxu0 0.0
    %2590 = vmatpush1.msra.mxu0 %v535
    %2591 = vmatprep.subr.mxu0 0.0
    %2592 = vmatpush1.msra.mxu0 %v532
    %2593 = vmatprep.subr.mxu0 0.0
    %2594 = vmatpush1.msra.mxu0 %v529
    %2595 = vmatprep.subr.mxu0 0.0
    %2596 = vmatpush2.msra.mxu0 0.0
    %2597 = vmatprep.subr.mxu0 0.0
    %2598 = vmatpush2.msra.mxu0 0.0
    %2599 = vmatprep.subr.mxu0 0.0
    %2600 = vmatpush2.msra.mxu0 0.0
    %2601 = vmatprep.subr.mxu0 0.0
    %2602 = vmatpush2.msra.mxu0 0.0
    %2603 = vmatprep.subr.mxu0 0.0
    %2604 = vmatpush2.msra.mxu0 0.0
    %2605 = vmatprep.subr.mxu0 0.0
    %2606 = vmatpush2.msra.mxu0 0.0
    %2607 = vmatprep.subr.mxu0 0.0
    %2608 = vmatpush2.msra.mxu0 0.0
    %2609 = vmatprep.subr.mxu0 0.0
    %2610 = vmatpush2.msra.mxu0 0.0
    %2611 = vmatprep.subr.mxu0 0.0
    %2612 = vmatpush2.msra.mxu0 0.0
    %2613 = vmatprep.subr.mxu0 0.0
    %2614 = vmatpush2.msra.mxu0 0.0
    %2615 = vmatprep.subr.mxu0 0.0
    %2616 = vmatpush2.msra.mxu0 0.0
    %2617 = vmatprep.subr.mxu0 0.0
    %2618 = vmatpush2.msra.mxu0 0.0
    %2619 = vmatprep.subr.mxu0 0.0
    %2620 = vmatpush2.msra.mxu0 0.0
    %2621 = vmatprep.subr.mxu0 0.0
    %2622 = vmatpush2.msra.mxu0 0.0
    %2623 = vmatprep.subr.mxu0 0.0
    %2624 = vmatpush2.msra.mxu0 0.0
    %2625 = vmatprep.subr.mxu0 0.0
    %2626 = vmatpush2.msra.mxu0 0.0
    %2627 = vmatprep.mubr.f32.mxu0 0.0
    %2628 = vmatmul.mubr.f32.gmra.mxu0 %v2491
    %v2629 = vpop.f32.mrf.mxu0
    %v2630 = vadd.f32 %v589, %v2629
    %v2631 = vpop.f32.mrf.mxu0
    %2632 = vdwg.mxu0
    %2633 = vmatprep.subr.mxu0 %v781
    %2634 = vmatpush1.msra.mxu0 %v780
    %2635 = vmatprep.subr.mxu0 %v778
    %2636 = vmatpush1.msra.mxu0 %v777
    %2637 = vmatprep.subr.mxu0 %v775
    %2638 = vmatpush1.msra.mxu0 %v774
    %2639 = vmatprep.subr.mxu0 %v772
    %2640 = vmatpush1.msra.mxu0 %v771
    %2641 = vmatprep.subr.mxu0 %v769
    %2642 = vmatpush1.msra.mxu0 %v768
    %2643 = vmatprep.subr.mxu0 %v766
    %2644 = vmatpush1.msra.mxu0 %v765
    %2645 = vmatprep.subr.mxu0 %v763
    %2646 = vmatpush1.msra.mxu0 %v762
    %2647 = vmatprep.subr.mxu0 %v760
    %2648 = vmatpush1.msra.mxu0 %v759
    %2649 = vmatprep.subr.mxu0 %v757
    %2650 = vmatpush1.msra.mxu0 %v756
    %2651 = vmatprep.subr.mxu0 %v754
    %2652 = vmatpush1.msra.mxu0 %v753
    %2653 = vmatprep.subr.mxu0 %v751
    %2654 = vmatpush1.msra.mxu0 %v750
    %2655 = vmatprep.subr.mxu0 %v748
    %2656 = vmatpush1.msra.mxu0 %v747
    %2657 = vmatprep.subr.mxu0 %v745
    %2658 = vmatpush1.msra.mxu0 %v744
    %2659 = vmatprep.subr.mxu0 %v742
    %2660 = vmatpush1.msra.mxu0 %v741
    %2661 = vmatprep.subr.mxu0 %v739
    %2662 = vmatpush1.msra.mxu0 %v738
    %2663 = vmatprep.subr.mxu0 %v736
    %2664 = vmatpush1.msra.mxu0 %v735
    %2665 = vmatprep.subr.mxu0 0.0
    %2666 = vmatpush2.msra.mxu0 0.0
    %2667 = vmatprep.subr.mxu0 0.0
    %2668 = vmatpush2.msra.mxu0 0.0
    %2669 = vmatprep.subr.mxu0 0.0
    %2670 = vmatpush2.msra.mxu0 0.0
    %2671 = vmatprep.subr.mxu0 0.0
    %2672 = vmatpush2.msra.mxu0 0.0
    %2673 = vmatprep.subr.mxu0 0.0
    %2674 = vmatpush2.msra.mxu0 0.0
    %2675 = vmatprep.subr.mxu0 0.0
    %2676 = vmatpush2.msra.mxu0 0.0
    %2677 = vmatprep.subr.mxu0 0.0
    %2678 = vmatpush2.msra.mxu0 0.0
    %2679 = vmatprep.subr.mxu0 0.0
    %2680 = vmatpush2.msra.mxu0 0.0
    %2681 = vmatprep.subr.mxu0 0.0
    %2682 = vmatpush2.msra.mxu0 0.0
    %2683 = vmatprep.subr.mxu0 0.0
    %2684 = vmatpush2.msra.mxu0 0.0
    %2685 = vmatprep.subr.mxu0 0.0
    %2686 = vmatpush2.msra.mxu0 0.0
    %2687 = vmatprep.subr.mxu0 0.0
    %2688 = vmatpush2.msra.mxu0 0.0
    %2689 = vmatprep.subr.mxu0 0.0
    %2690 = vmatpush2.msra.mxu0 0.0
    %2691 = vmatprep.subr.mxu0 0.0
    %2692 = vmatpush2.msra.mxu0 0.0
    %2693 = vmatprep.subr.mxu0 0.0
    %2694 = vmatpush2.msra.mxu0 0.0
    %2695 = vmatprep.subr.mxu0 0.0
    %2696 = vmatpush2.msra.mxu0 0.0
    %2697 = vmatprep.mubr.f32.mxu0 0.0
    %2698 = vmatmul.mubr.f32.gmra.mxu0 %v2180
    %v2699 = vpop.f32.mrf.mxu0
    %v2700 = vadd.f32 0.0, %v2699
    %v2701 = vpop.f32.mrf.mxu0
    %v2702 = vadd.f32 0.0, %v2701
    %2703 = vdwg.mxu0
    %2704 = vmatprep.subr.mxu0 0.0
    %2705 = vmatpush1.msra.mxu0 %v782
    %2706 = vmatprep.subr.mxu0 0.0
    %2707 = vmatpush1.msra.mxu0 %v779
    %2708 = vmatprep.subr.mxu0 0.0
    %2709 = vmatpush1.msra.mxu0 %v776
    %2710 = vmatprep.subr.mxu0 0.0
    %2711 = vmatpush1.msra.mxu0 %v773
    %2712 = vmatprep.subr.mxu0 0.0
    %2713 = vmatpush1.msra.mxu0 %v770
    %2714 = vmatprep.subr.mxu0 0.0
    %2715 = vmatpush1.msra.mxu0 %v767
    %2716 = vmatprep.subr.mxu0 0.0
    %2717 = vmatpush1.msra.mxu0 %v764
    %2718 = vmatprep.subr.mxu0 0.0
    %2719 = vmatpush1.msra.mxu0 %v761
    %2720 = vmatprep.subr.mxu0 0.0
    %2721 = vmatpush1.msra.mxu0 %v758
    %2722 = vmatprep.subr.mxu0 0.0
    %2723 = vmatpush1.msra.mxu0 %v755
    %2724 = vmatprep.subr.mxu0 0.0
    %2725 = vmatpush1.msra.mxu0 %v752
    %2726 = vmatprep.subr.mxu0 0.0
    %2727 = vmatpush1.msra.mxu0 %v749
    %2728 = vmatprep.subr.mxu0 0.0
    %2729 = vmatpush1.msra.mxu0 %v746
    %2730 = vmatprep.subr.mxu0 0.0
    %2731 = vmatpush1.msra.mxu0 %v743
    %2732 = vmatprep.subr.mxu0 0.0
    %2733 = vmatpush1.msra.mxu0 %v740
    %2734 = vmatprep.subr.mxu0 0.0
    %2735 = vmatpush1.msra.mxu0 %v737
    %2736 = vmatprep.subr.mxu0 0.0
    %2737 = vmatpush2.msra.mxu0 0.0
    %2738 = vmatprep.subr.mxu0 0.0
    %2739 = vmatpush2.msra.mxu0 0.0
    %2740 = vmatprep.subr.mxu0 0.0
    %2741 = vmatpush2.msra.mxu0 0.0
    %2742 = vmatprep.subr.mxu0 0.0
    %2743 = vmatpush2.msra.mxu0 0.0
    %2744 = vmatprep.subr.mxu0 0.0
    %2745 = vmatpush2.msra.mxu0 0.0
    %2746 = vmatprep.subr.mxu0 0.0
    %2747 = vmatpush2.msra.mxu0 0.0
    %2748 = vmatprep.subr.mxu0 0.0
    %2749 = vmatpush2.msra.mxu0 0.0
    %2750 = vmatprep.subr.mxu0 0.0
    %2751 = vmatpush2.msra.mxu0 0.0
    %2752 = vmatprep.subr.mxu0 0.0
    %2753 = vmatpush2.msra.mxu0 0.0
    %2754 = vmatprep.subr.mxu0 0.0
    %2755 = vmatpush2.msra.mxu0 0.0
    %2756 = vmatprep.subr.mxu0 0.0
    %2757 = vmatpush2.msra.mxu0 0.0
    %2758 = vmatprep.subr.mxu0 0.0
    %2759 = vmatpush2.msra.mxu0 0.0
    %2760 = vmatprep.subr.mxu0 0.0
    %2761 = vmatpush2.msra.mxu0 0.0
    %2762 = vmatprep.subr.mxu0 0.0
    %2763 = vmatpush2.msra.mxu0 0.0
    %2764 = vmatprep.subr.mxu0 0.0
    %2765 = vmatpush2.msra.mxu0 0.0
    %2766 = vmatprep.subr.mxu0 0.0
    %2767 = vmatpush2.msra.mxu0 0.0
    %2768 = vmatprep.mubr.f32.mxu0 0.0
    %2769 = vmatmul.mubr.f32.gmra.mxu0 %v2180
    %v2770 = vpop.f32.mrf.mxu0
    %v2771 = vadd.f32 0.0, %v2770
    %v2772 = vpop.f32.mrf.mxu0
    %2773 = vdwg.mxu0
    %v2774 = vadd.f32 %v2559, %v2700
    %v2775 = vadd.f32 %v2561, %v2702
    %v2776 = vxor.u32 %v2774, 2147483648
    %v2777 = vxor.u32 %v2775, 2147483648
    %v2778 = vmul.f32 %v2776, 1.442695
    %v2779 = vpow.pop %v2778
    %v2780 = vmul.f32 %v2777, 1.442695
    %v2781 = vpow.pop %v2780
    %v2782 = vadd.f32 %v2779, 1.0
    %v2783 = vadd.f32 %v2781, 1.0
    %v2784 = vrcp.pop %v2782
    %v2785 = vmul.f32 1.0, %v2784
    %v2786 = vrcp.pop %v2783
    %v2787 = vmul.f32 1.0, %v2786
    %v2788 = vadd.f32 %v2771, %v939
    %v2789 = vmul.f32 %v2785, %v2788
    %v2790 = vadd.f32 %v2630, %v2789
    %v2791 = vtanh.pop %v2790
    %v2792 = vsub.f32 1.0, %v2787
    %v2793 = vmul.f32 %v2792, %v2791
    %v2794 = vmul.f32 %v2787, %v2180
    %v2795 = vadd.f32 %v2793, %v2794
    %v2796 = vsel %vm2490, %v2795, %v2180
    %v2797 = vsel %vm2490, %v2795, 0.0
    %p2798 = scmp.gt.s32.totalorder %s98, 4
    %v2799 = vld [vmem:[#allocation5 + $0x4] sm:$0x1]
    %2800 = vmatprep.subr.mxu0 %v150
    %2801 = vmatpush1.msra.mxu0 %v149
    %2802 = vmatprep.subr.mxu0 %v147
    %2803 = vmatpush1.msra.mxu0 %v146
    %2804 = vmatprep.subr.mxu0 %v144
    %2805 = vmatpush1.msra.mxu0 %v143
    %2806 = vmatprep.subr.mxu0 %v141
    %2807 = vmatpush1.msra.mxu0 %v140
    %2808 = vmatprep.subr.mxu0 %v138
    %2809 = vmatpush1.msra.mxu0 %v137
    %2810 = vmatprep.subr.mxu0 %v135
    %2811 = vmatpush1.msra.mxu0 %v134
    %2812 = vmatprep.subr.mxu0 %v132
    %2813 = vmatpush1.msra.mxu0 %v131
    %2814 = vmatprep.subr.mxu0 %v129
    %2815 = vmatpush1.msra.mxu0 %v128
    %2816 = vmatprep.subr.mxu0 %v126
    %2817 = vmatpush1.msra.mxu0 %v125
    %2818 = vmatprep.subr.mxu0 %v123
    %2819 = vmatpush1.msra.mxu0 %v122
    %2820 = vmatprep.subr.mxu0 %v120
    %2821 = vmatpush1.msra.mxu0 %v119
    %2822 = vmatprep.subr.mxu0 %v117
    %2823 = vmatpush1.msra.mxu0 %v116
    %2824 = vmatprep.subr.mxu0 %v114
    %2825 = vmatpush1.msra.mxu0 %v113
    %2826 = vmatprep.subr.mxu0 %v111
    %2827 = vmatpush1.msra.mxu0 %v110
    %2828 = vmatprep.subr.mxu0 %v108
    %2829 = vmatpush1.msra.mxu0 %v107
    %2830 = vmatprep.subr.mxu0 %v105
    %2831 = vmatpush1.msra.mxu0 %v104
    %2832 = vmatprep.subr.mxu0 0.0
    %2833 = vmatpush2.msra.mxu0 0.0
    %2834 = vmatprep.subr.mxu0 0.0
    %2835 = vmatpush2.msra.mxu0 0.0
    %2836 = vmatprep.subr.mxu0 0.0
    %2837 = vmatpush2.msra.mxu0 0.0
    %2838 = vmatprep.subr.mxu0 0.0
    %2839 = vmatpush2.msra.mxu0 0.0
    %2840 = vmatprep.subr.mxu0 0.0
    %2841 = vmatpush2.msra.mxu0 0.0
    %2842 = vmatprep.subr.mxu0 0.0
    %2843 = vmatpush2.msra.mxu0 0.0
    %2844 = vmatprep.subr.mxu0 0.0
    %2845 = vmatpush2.msra.mxu0 0.0
    %2846 = vmatprep.subr.mxu0 0.0
    %2847 = vmatpush2.msra.mxu0 0.0
    %2848 = vmatprep.subr.mxu0 0.0
    %2849 = vmatpush2.msra.mxu0 0.0
    %2850 = vmatprep.subr.mxu0 0.0
    %2851 = vmatpush2.msra.mxu0 0.0
    %2852 = vmatprep.subr.mxu0 0.0
    %2853 = vmatpush2.msra.mxu0 0.0
    %2854 = vmatprep.subr.mxu0 0.0
    %2855 = vmatpush2.msra.mxu0 0.0
    %2856 = vmatprep.subr.mxu0 0.0
    %2857 = vmatpush2.msra.mxu0 0.0
    %2858 = vmatprep.subr.mxu0 0.0
    %2859 = vmatpush2.msra.mxu0 0.0
    %2860 = vmatprep.subr.mxu0 0.0
    %2861 = vmatpush2.msra.mxu0 0.0
    %2862 = vmatprep.subr.mxu0 0.0
    %2863 = vmatpush2.msra.mxu0 0.0
    %2864 = vmatprep.mubr.f32.mxu0 0.0
    %2865 = vmatmul.mubr.f32.gmra.mxu0 %v2799
    %v2866 = vpop.f32.mrf.mxu0
    %v2867 = vadd.f32 %v157, %v2866
    %v2868 = vpop.f32.mrf.mxu0
    %v2869 = vadd.f32 %v161, %v2868
    %2870 = vdwg.mxu0
    %2871 = vmatprep.subr.mxu0 0.0
    %2872 = vmatpush1.msra.mxu0 %v151
    %2873 = vmatprep.subr.mxu0 0.0
    %2874 = vmatpush1.msra.mxu0 %v148
    %2875 = vmatprep.subr.mxu0 0.0
    %2876 = vmatpush1.msra.mxu0 %v145
    %2877 = vmatprep.subr.mxu0 0.0
    %2878 = vmatpush1.msra.mxu0 %v142
    %2879 = vmatprep.subr.mxu0 0.0
    %2880 = vmatpush1.msra.mxu0 %v139
    %2881 = vmatprep.subr.mxu0 0.0
    %2882 = vmatpush1.msra.mxu0 %v136
    %2883 = vmatprep.subr.mxu0 0.0
    %2884 = vmatpush1.msra.mxu0 %v133
    %2885 = vmatprep.subr.mxu0 0.0
    %2886 = vmatpush1.msra.mxu0 %v130
    %2887 = vmatprep.subr.mxu0 0.0
    %2888 = vmatpush1.msra.mxu0 %v127
    %2889 = vmatprep.subr.mxu0 0.0
    %2890 = vmatpush1.msra.mxu0 %v124
    %2891 = vmatprep.subr.mxu0 0.0
    %2892 = vmatpush1.msra.mxu0 %v121
    %2893 = vmatprep.subr.mxu0 0.0
    %2894 = vmatpush1.msra.mxu0 %v118
    %2895 = vmatprep.subr.mxu0 0.0
    %2896 = vmatpush1.msra.mxu0 %v115
    %2897 = vmatprep.subr.mxu0 0.0
    %2898 = vmatpush1.msra.mxu0 %v112
    %2899 = vmatprep.subr.mxu0 0.0
    %2900 = vmatpush1.msra.mxu0 %v109
    %2901 = vmatprep.subr.mxu0 0.0
    %2902 = vmatpush1.msra.mxu0 %v106
    %2903 = vmatprep.subr.mxu0 0.0
    %2904 = vmatpush2.msra.mxu0 0.0
    %2905 = vmatprep.subr.mxu0 0.0
    %2906 = vmatpush2.msra.mxu0 0.0
    %2907 = vmatprep.subr.mxu0 0.0
    %2908 = vmatpush2.msra.mxu0 0.0
    %2909 = vmatprep.subr.mxu0 0.0
    %2910 = vmatpush2.msra.mxu0 0.0
    %2911 = vmatprep.subr.mxu0 0.0
    %2912 = vmatpush2.msra.mxu0 0.0
    %2913 = vmatprep.subr.mxu0 0.0
    %2914 = vmatpush2.msra.mxu0 0.0
    %2915 = vmatprep.subr.mxu0 0.0
    %2916 = vmatpush2.msra.mxu0 0.0
    %2917 = vmatprep.subr.mxu0 0.0
    %2918 = vmatpush2.msra.mxu0 0.0
    %2919 = vmatprep.subr.mxu0 0.0
    %2920 = vmatpush2.msra.mxu0 0.0
    %2921 = vmatprep.subr.mxu0 0.0
    %2922 = vmatpush2.msra.mxu0 0.0
    %2923 = vmatprep.subr.mxu0 0.0
    %2924 = vmatpush2.msra.mxu0 0.0
    %2925 = vmatprep.subr.mxu0 0.0
    %2926 = vmatpush2.msra.mxu0 0.0
    %2927 = vmatprep.subr.mxu0 0.0
    %2928 = vmatpush2.msra.mxu0 0.0
    %2929 = vmatprep.subr.mxu0 0.0
    %2930 = vmatpush2.msra.mxu0 0.0
    %2931 = vmatprep.subr.mxu0 0.0
    %2932 = vmatpush2.msra.mxu0 0.0
    %2933 = vmatprep.subr.mxu0 0.0
    %2934 = vmatpush2.msra.mxu0 0.0
    %2935 = vmatprep.mubr.f32.mxu0 0.0
    %2936 = vmatmul.mubr.f32.gmra.mxu0 %v2799
    %v2937 = vpop.f32.mrf.mxu0
    %v2938 = vadd.f32 %v165, %v2937
    %v2939 = vpop.f32.mrf.mxu0
    %2940 = vdwg.mxu0
    %2941 = vmatprep.subr.mxu0 %v356
    %2942 = vmatpush1.msra.mxu0 %v355
    %2943 = vmatprep.subr.mxu0 %v353
    %2944 = vmatpush1.msra.mxu0 %v352
    %2945 = vmatprep.subr.mxu0 %v350
    %2946 = vmatpush1.msra.mxu0 %v349
    %2947 = vmatprep.subr.mxu0 %v347
    %2948 = vmatpush1.msra.mxu0 %v346
    %2949 = vmatprep.subr.mxu0 %v344
    %2950 = vmatpush1.msra.mxu0 %v343
    %2951 = vmatprep.subr.mxu0 %v341
    %2952 = vmatpush1.msra.mxu0 %v340
    %2953 = vmatprep.subr.mxu0 %v338
    %2954 = vmatpush1.msra.mxu0 %v337
    %2955 = vmatprep.subr.mxu0 %v335
    %2956 = vmatpush1.msra.mxu0 %v334
    %2957 = vmatprep.subr.mxu0 %v332
    %2958 = vmatpush1.msra.mxu0 %v331
    %2959 = vmatprep.subr.mxu0 %v329
    %2960 = vmatpush1.msra.mxu0 %v328
    %2961 = vmatprep.subr.mxu0 %v326
    %2962 = vmatpush1.msra.mxu0 %v325
    %2963 = vmatprep.subr.mxu0 %v323
    %2964 = vmatpush1.msra.mxu0 %v322
    %2965 = vmatprep.subr.mxu0 %v320
    %2966 = vmatpush1.msra.mxu0 %v319
    %2967 = vmatprep.subr.mxu0 %v317
    %2968 = vmatpush1.msra.mxu0 %v316
    %2969 = vmatprep.subr.mxu0 %v314
    %2970 = vmatpush1.msra.mxu0 %v313
    %2971 = vmatprep.subr.mxu0 %v311
    %2972 = vmatpush1.msra.mxu0 %v310
    %2973 = vmatprep.subr.mxu0 0.0
    %2974 = vmatpush2.msra.mxu0 0.0
    %2975 = vmatprep.subr.mxu0 0.0
    %2976 = vmatpush2.msra.mxu0 0.0
    %2977 = vmatprep.subr.mxu0 0.0
    %2978 = vmatpush2.msra.mxu0 0.0
    %2979 = vmatprep.subr.mxu0 0.0
    %2980 = vmatpush2.msra.mxu0 0.0
    %2981 = vmatprep.subr.mxu0 0.0
    %2982 = vmatpush2.msra.mxu0 0.0
    %2983 = vmatprep.subr.mxu0 0.0
    %2984 = vmatpush2.msra.mxu0 0.0
    %2985 = vmatprep.subr.mxu0 0.0
    %2986 = vmatpush2.msra.mxu0 0.0
    %2987 = vmatprep.subr.mxu0 0.0
    %2988 = vmatpush2.msra.mxu0 0.0
    %2989 = vmatprep.subr.mxu0 0.0
    %2990 = vmatpush2.msra.mxu0 0.0
    %2991 = vmatprep.subr.mxu0 0.0
    %2992 = vmatpush2.msra.mxu0 0.0
    %2993 = vmatprep.subr.mxu0 0.0
    %2994 = vmatpush2.msra.mxu0 0.0
    %2995 = vmatprep.subr.mxu0 0.0
    %2996 = vmatpush2.msra.mxu0 0.0
    %2997 = vmatprep.subr.mxu0 0.0
    %2998 = vmatpush2.msra.mxu0 0.0
    %2999 = vmatprep.subr.mxu0 0.0
    %3000 = vmatpush2.msra.mxu0 0.0
    %3001 = vmatprep.subr.mxu0 0.0
    %3002 = vmatpush2.msra.mxu0 0.0
    %3003 = vmatprep.subr.mxu0 0.0
    %3004 = vmatpush2.msra.mxu0 0.0
    %3005 = vmatprep.mubr.f32.mxu0 0.0
    %3006 = vmatmul.mubr.f32.gmra.mxu0 %v2491
    %v3007 = vpop.f32.mrf.mxu0
    %v3008 = vadd.f32 0.0, %v3007
    %v3009 = vpop.f32.mrf.mxu0
    %v3010 = vadd.f32 0.0, %v3009
    %3011 = vdwg.mxu0
    %3012 = vmatprep.subr.mxu0 0.0
    %3013 = vmatpush1.msra.mxu0 %v357
    %3014 = vmatprep.subr.mxu0 0.0
    %3015 = vmatpush1.msra.mxu0 %v354
    %3016 = vmatprep.subr.mxu0 0.0
    %3017 = vmatpush1.msra.mxu0 %v351
    %3018 = vmatprep.subr.mxu0 0.0
    %3019 = vmatpush1.msra.mxu0 %v348
    %3020 = vmatprep.subr.mxu0 0.0
    %3021 = vmatpush1.msra.mxu0 %v345
    %3022 = vmatprep.subr.mxu0 0.0
    %3023 = vmatpush1.msra.mxu0 %v342
    %3024 = vmatprep.subr.mxu0 0.0
    %3025 = vmatpush1.msra.mxu0 %v339
    %3026 = vmatprep.subr.mxu0 0.0
    %3027 = vmatpush1.msra.mxu0 %v336
    %3028 = vmatprep.subr.mxu0 0.0
    %3029 = vmatpush1.msra.mxu0 %v333
    %3030 = vmatprep.subr.mxu0 0.0
    %3031 = vmatpush1.msra.mxu0 %v330
    %3032 = vmatprep.subr.mxu0 0.0
    %3033 = vmatpush1.msra.mxu0 %v327
    %3034 = vmatprep.subr.mxu0 0.0
    %3035 = vmatpush1.msra.mxu0 %v324
    %3036 = vmatprep.subr.mxu0 0.0
    %3037 = vmatpush1.msra.mxu0 %v321
    %3038 = vmatprep.subr.mxu0 0.0
    %3039 = vmatpush1.msra.mxu0 %v318
    %3040 = vmatprep.subr.mxu0 0.0
    %3041 = vmatpush1.msra.mxu0 %v315
    %3042 = vmatprep.subr.mxu0 0.0
    %3043 = vmatpush1.msra.mxu0 %v312
    %3044 = vmatprep.subr.mxu0 0.0
    %3045 = vmatpush2.msra.mxu0 0.0
    %3046 = vmatprep.subr.mxu0 0.0
    %3047 = vmatpush2.msra.mxu0 0.0
    %3048 = vmatprep.subr.mxu0 0.0
    %3049 = vmatpush2.msra.mxu0 0.0
    %3050 = vmatprep.subr.mxu0 0.0
    %3051 = vmatpush2.msra.mxu0 0.0
    %3052 = vmatprep.subr.mxu0 0.0
    %3053 = vmatpush2.msra.mxu0 0.0
    %3054 = vmatprep.subr.mxu0 0.0
    %3055 = vmatpush2.msra.mxu0 0.0
    %3056 = vmatprep.subr.mxu0 0.0
    %3057 = vmatpush2.msra.mxu0 0.0
    %3058 = vmatprep.subr.mxu0 0.0
    %3059 = vmatpush2.msra.mxu0 0.0
    %3060 = vmatprep.subr.mxu0 0.0
    %3061 = vmatpush2.msra.mxu0 0.0
    %3062 = vmatprep.subr.mxu0 0.0
    %3063 = vmatpush2.msra.mxu0 0.0
    %3064 = vmatprep.subr.mxu0 0.0
    %3065 = vmatpush2.msra.mxu0 0.0
    %3066 = vmatprep.subr.mxu0 0.0
    %3067 = vmatpush2.msra.mxu0 0.0
    %3068 = vmatprep.subr.mxu0 0.0
    %3069 = vmatpush2.msra.mxu0 0.0
    %3070 = vmatprep.subr.mxu0 0.0
    %3071 = vmatpush2.msra.mxu0 0.0
    %3072 = vmatprep.subr.mxu0 0.0
    %3073 = vmatpush2.msra.mxu0 0.0
    %3074 = vmatprep.subr.mxu0 0.0
    %3075 = vmatpush2.msra.mxu0 0.0
    %3076 = vmatprep.mubr.f32.mxu0 0.0
    %3077 = vmatmul.mubr.f32.gmra.mxu0 %v2491
    %v3078 = vpop.f32.mrf.mxu0
    %v3079 = vadd.f32 0.0, %v3078
    %v3080 = vpop.f32.mrf.mxu0
    %3081 = vdwg.mxu0
    %v3082 = vadd.f32 %v2867, %v3008
    %v3083 = vadd.f32 %v2869, %v3010
    %v3084 = vxor.u32 %v3082, 2147483648
    %v3085 = vxor.u32 %v3083, 2147483648
    %v3086 = vmul.f32 %v3084, 1.442695
    %v3087 = vpow.pop %v3086
    %v3088 = vmul.f32 %v3085, 1.442695
    %v3089 = vpow.pop %v3088
    %v3090 = vadd.f32 %v3087, 1.0
    %v3091 = vadd.f32 %v3089, 1.0
    %v3092 = vrcp.pop %v3090
    %v3093 = vmul.f32 1.0, %v3092
    %v3094 = vrcp.pop %v3091
    %v3095 = vmul.f32 1.0, %v3094
    %v3096 = vadd.f32 %v3079, %v513
    %v3097 = vmul.f32 %v3093, %v3096
    %v3098 = vadd.f32 %v2938, %v3097
    %v3099 = vtanh.pop %v3098
    %v3100 = vsub.f32 1.0, %v3095
    %v3101 = vmul.f32 %v3100, %v3099
    %v3102 = vmul.f32 %v3095, %v2491
    %v3103 = vadd.f32 %v3101, %v3102
    %s3104 = scalar_select %p2798, 1, 0
    %v3105 = vstv %s3104
    %vm3106 = vcmp.eq.s32.totalorder %v3105, 1
    %v3107 = vsel %vm3106, %v3103, %v2491
    %3108 = vmatprep.subr.mxu0 %v573
    %3109 = vmatpush1.msra.mxu0 %v572
    %3110 = vmatprep.subr.mxu0 %v570
    %3111 = vmatpush1.msra.mxu0 %v569
    %3112 = vmatprep.subr.mxu0 %v567
    %3113 = vmatpush1.msra.mxu0 %v566
    %3114 = vmatprep.subr.mxu0 %v564
    %3115 = vmatpush1.msra.mxu0 %v563
    %3116 = vmatprep.subr.mxu0 %v561
    %3117 = vmatpush1.msra.mxu0 %v560
    %3118 = vmatprep.subr.mxu0 %v558
    %3119 = vmatpush1.msra.mxu0 %v557
    %3120 = vmatprep.subr.mxu0 %v555
    %3121 = vmatpush1.msra.mxu0 %v554
    %3122 = vmatprep.subr.mxu0 %v552
    %3123 = vmatpush1.msra.mxu0 %v551
    %3124 = vmatprep.subr.mxu0 %v549
    %3125 = vmatpush1.msra.mxu0 %v548
    %3126 = vmatprep.subr.mxu0 %v546
    %3127 = vmatpush1.msra.mxu0 %v545
    %3128 = vmatprep.subr.mxu0 %v543
    %3129 = vmatpush1.msra.mxu0 %v542
    %3130 = vmatprep.subr.mxu0 %v540
    %3131 = vmatpush1.msra.mxu0 %v539
    %3132 = vmatprep.subr.mxu0 %v537
    %3133 = vmatpush1.msra.mxu0 %v536
    %3134 = vmatprep.subr.mxu0 %v534
    %3135 = vmatpush1.msra.mxu0 %v533
    %3136 = vmatprep.subr.mxu0 %v531
    %3137 = vmatpush1.msra.mxu0 %v530
    %3138 = vmatprep.subr.mxu0 %v528
    %3139 = vmatpush1.msra.mxu0 %v527
    %3140 = vmatprep.subr.mxu0 0.0
    %3141 = vmatpush2.msra.mxu0 0.0
    %3142 = vmatprep.subr.mxu0 0.0
    %3143 = vmatpush2.msra.mxu0 0.0
    %3144 = vmatprep.subr.mxu0 0.0
    %3145 = vmatpush2.msra.mxu0 0.0
    %3146 = vmatprep.subr.mxu0 0.0
    %3147 = vmatpush2.msra.mxu0 0.0
    %3148 = vmatprep.subr.mxu0 0.0
    %3149 = vmatpush2.msra.mxu0 0.0
    %3150 = vmatprep.subr.mxu0 0.0
    %3151 = vmatpush2.msra.mxu0 0.0
    %3152 = vmatprep.subr.mxu0 0.0
    %3153 = vmatpush2.msra.mxu0 0.0
    %3154 = vmatprep.subr.mxu0 0.0
    %3155 = vmatpush2.msra.mxu0 0.0
    %3156 = vmatprep.subr.mxu0 0.0
    %3157 = vmatpush2.msra.mxu0 0.0
    %3158 = vmatprep.subr.mxu0 0.0
    %3159 = vmatpush2.msra.mxu0 0.0
    %3160 = vmatprep.subr.mxu0 0.0
    %3161 = vmatpush2.msra.mxu0 0.0
    %3162 = vmatprep.subr.mxu0 0.0
    %3163 = vmatpush2.msra.mxu0 0.0
    %3164 = vmatprep.subr.mxu0 0.0
    %3165 = vmatpush2.msra.mxu0 0.0
    %3166 = vmatprep.subr.mxu0 0.0
    %3167 = vmatpush2.msra.mxu0 0.0
    %3168 = vmatprep.subr.mxu0 0.0
    %3169 = vmatpush2.msra.mxu0 0.0
    %3170 = vmatprep.subr.mxu0 0.0
    %3171 = vmatpush2.msra.mxu0 0.0
    %3172 = vmatprep.mubr.f32.mxu0 0.0
    %3173 = vmatmul.mubr.f32.gmra.mxu0 %v3107
    %v3174 = vpop.f32.mrf.mxu0
    %v3175 = vadd.f32 %v581, %v3174
    %v3176 = vpop.f32.mrf.mxu0
    %v3177 = vadd.f32 %v585, %v3176
    %3178 = vdwg.mxu0
    %3179 = vmatprep.subr.mxu0 0.0
    %3180 = vmatpush1.msra.mxu0 %v574
    %3181 = vmatprep.subr.mxu0 0.0
    %3182 = vmatpush1.msra.mxu0 %v571
    %3183 = vmatprep.subr.mxu0 0.0
    %3184 = vmatpush1.msra.mxu0 %v568
    %3185 = vmatprep.subr.mxu0 0.0
    %3186 = vmatpush1.msra.mxu0 %v565
    %3187 = vmatprep.subr.mxu0 0.0
    %3188 = vmatpush1.msra.mxu0 %v562
    %3189 = vmatprep.subr.mxu0 0.0
    %3190 = vmatpush1.msra.mxu0 %v559
    %3191 = vmatprep.subr.mxu0 0.0
    %3192 = vmatpush1.msra.mxu0 %v556
    %3193 = vmatprep.subr.mxu0 0.0
    %3194 = vmatpush1.msra.mxu0 %v553
    %3195 = vmatprep.subr.mxu0 0.0
    %3196 = vmatpush1.msra.mxu0 %v550
    %3197 = vmatprep.subr.mxu0 0.0
    %3198 = vmatpush1.msra.mxu0 %v547
    %3199 = vmatprep.subr.mxu0 0.0
    %3200 = vmatpush1.msra.mxu0 %v544
    %3201 = vmatprep.subr.mxu0 0.0
    %3202 = vmatpush1.msra.mxu0 %v541
    %3203 = vmatprep.subr.mxu0 0.0
    %3204 = vmatpush1.msra.mxu0 %v538
    %3205 = vmatprep.subr.mxu0 0.0
    %3206 = vmatpush1.msra.mxu0 %v535
    %3207 = vmatprep.subr.mxu0 0.0
    %3208 = vmatpush1.msra.mxu0 %v532
    %3209 = vmatprep.subr.mxu0 0.0
    %3210 = vmatpush1.msra.mxu0 %v529
    %3211 = vmatprep.subr.mxu0 0.0
    %3212 = vmatpush2.msra.mxu0 0.0
    %3213 = vmatprep.subr.mxu0 0.0
    %3214 = vmatpush2.msra.mxu0 0.0
    %3215 = vmatprep.subr.mxu0 0.0
    %3216 = vmatpush2.msra.mxu0 0.0
    %3217 = vmatprep.subr.mxu0 0.0
    %3218 = vmatpush2.msra.mxu0 0.0
    %3219 = vmatprep.subr.mxu0 0.0
    %3220 = vmatpush2.msra.mxu0 0.0
    %3221 = vmatprep.subr.mxu0 0.0
    %3222 = vmatpush2.msra.mxu0 0.0
    %3223 = vmatprep.subr.mxu0 0.0
    %3224 = vmatpush2.msra.mxu0 0.0
    %3225 = vmatprep.subr.mxu0 0.0
    %3226 = vmatpush2.msra.mxu0 0.0
    %3227 = vmatprep.subr.mxu0 0.0
    %3228 = vmatpush2.msra.mxu0 0.0
    %3229 = vmatprep.subr.mxu0 0.0
    %3230 = vmatpush2.msra.mxu0 0.0
    %3231 = vmatprep.subr.mxu0 0.0
    %3232 = vmatpush2.msra.mxu0 0.0
    %3233 = vmatprep.subr.mxu0 0.0
    %3234 = vmatpush2.msra.mxu0 0.0
    %3235 = vmatprep.subr.mxu0 0.0
    %3236 = vmatpush2.msra.mxu0 0.0
    %3237 = vmatprep.subr.mxu0 0.0
    %3238 = vmatpush2.msra.mxu0 0.0
    %3239 = vmatprep.subr.mxu0 0.0
    %3240 = vmatpush2.msra.mxu0 0.0
    %3241 = vmatprep.subr.mxu0 0.0
    %3242 = vmatpush2.msra.mxu0 0.0
    %3243 = vmatprep.mubr.f32.mxu0 0.0
    %3244 = vmatmul.mubr.f32.gmra.mxu0 %v3107
    %v3245 = vpop.f32.mrf.mxu0
    %v3246 = vadd.f32 %v589, %v3245
    %v3247 = vpop.f32.mrf.mxu0
    %3248 = vdwg.mxu0
    %3249 = vmatprep.subr.mxu0 %v781
    %3250 = vmatpush1.msra.mxu0 %v780
    %3251 = vmatprep.subr.mxu0 %v778
    %3252 = vmatpush1.msra.mxu0 %v777
    %3253 = vmatprep.subr.mxu0 %v775
    %3254 = vmatpush1.msra.mxu0 %v774
    %3255 = vmatprep.subr.mxu0 %v772
    %3256 = vmatpush1.msra.mxu0 %v771
    %3257 = vmatprep.subr.mxu0 %v769
    %3258 = vmatpush1.msra.mxu0 %v768
    %3259 = vmatprep.subr.mxu0 %v766
    %3260 = vmatpush1.msra.mxu0 %v765
    %3261 = vmatprep.subr.mxu0 %v763
    %3262 = vmatpush1.msra.mxu0 %v762
    %3263 = vmatprep.subr.mxu0 %v760
    %3264 = vmatpush1.msra.mxu0 %v759
    %3265 = vmatprep.subr.mxu0 %v757
    %3266 = vmatpush1.msra.mxu0 %v756
    %3267 = vmatprep.subr.mxu0 %v754
    %3268 = vmatpush1.msra.mxu0 %v753
    %3269 = vmatprep.subr.mxu0 %v751
    %3270 = vmatpush1.msra.mxu0 %v750
    %3271 = vmatprep.subr.mxu0 %v748
    %3272 = vmatpush1.msra.mxu0 %v747
    %3273 = vmatprep.subr.mxu0 %v745
    %3274 = vmatpush1.msra.mxu0 %v744
    %3275 = vmatprep.subr.mxu0 %v742
    %3276 = vmatpush1.msra.mxu0 %v741
    %3277 = vmatprep.subr.mxu0 %v739
    %3278 = vmatpush1.msra.mxu0 %v738
    %3279 = vmatprep.subr.mxu0 %v736
    %3280 = vmatpush1.msra.mxu0 %v735
    %3281 = vmatprep.subr.mxu0 0.0
    %3282 = vmatpush2.msra.mxu0 0.0
    %3283 = vmatprep.subr.mxu0 0.0
    %3284 = vmatpush2.msra.mxu0 0.0
    %3285 = vmatprep.subr.mxu0 0.0
    %3286 = vmatpush2.msra.mxu0 0.0
    %3287 = vmatprep.subr.mxu0 0.0
    %3288 = vmatpush2.msra.mxu0 0.0
    %3289 = vmatprep.subr.mxu0 0.0
    %3290 = vmatpush2.msra.mxu0 0.0
    %3291 = vmatprep.subr.mxu0 0.0
    %3292 = vmatpush2.msra.mxu0 0.0
    %3293 = vmatprep.subr.mxu0 0.0
    %3294 = vmatpush2.msra.mxu0 0.0
    %3295 = vmatprep.subr.mxu0 0.0
    %3296 = vmatpush2.msra.mxu0 0.0
    %3297 = vmatprep.subr.mxu0 0.0
    %3298 = vmatpush2.msra.mxu0 0.0
    %3299 = vmatprep.subr.mxu0 0.0
    %3300 = vmatpush2.msra.mxu0 0.0
    %3301 = vmatprep.subr.mxu0 0.0
    %3302 = vmatpush2.msra.mxu0 0.0
    %3303 = vmatprep.subr.mxu0 0.0
    %3304 = vmatpush2.msra.mxu0 0.0
    %3305 = vmatprep.subr.mxu0 0.0
    %3306 = vmatpush2.msra.mxu0 0.0
    %3307 = vmatprep.subr.mxu0 0.0
    %3308 = vmatpush2.msra.mxu0 0.0
    %3309 = vmatprep.subr.mxu0 0.0
    %3310 = vmatpush2.msra.mxu0 0.0
    %3311 = vmatprep.subr.mxu0 0.0
    %3312 = vmatpush2.msra.mxu0 0.0
    %3313 = vmatprep.mubr.f32.mxu0 0.0
    %3314 = vmatmul.mubr.f32.gmra.mxu0 %v2796
    %v3315 = vpop.f32.mrf.mxu0
    %v3316 = vadd.f32 0.0, %v3315
    %v3317 = vpop.f32.mrf.mxu0
    %v3318 = vadd.f32 0.0, %v3317
    %3319 = vdwg.mxu0
    %3320 = vmatprep.subr.mxu0 0.0
    %3321 = vmatpush1.msra.mxu0 %v782
    %3322 = vmatprep.subr.mxu0 0.0
    %3323 = vmatpush1.msra.mxu0 %v779
    %3324 = vmatprep.subr.mxu0 0.0
    %3325 = vmatpush1.msra.mxu0 %v776
    %3326 = vmatprep.subr.mxu0 0.0
    %3327 = vmatpush1.msra.mxu0 %v773
    %3328 = vmatprep.subr.mxu0 0.0
    %3329 = vmatpush1.msra.mxu0 %v770
    %3330 = vmatprep.subr.mxu0 0.0
    %3331 = vmatpush1.msra.mxu0 %v767
    %3332 = vmatprep.subr.mxu0 0.0
    %3333 = vmatpush1.msra.mxu0 %v764
    %3334 = vmatprep.subr.mxu0 0.0
    %3335 = vmatpush1.msra.mxu0 %v761
    %3336 = vmatprep.subr.mxu0 0.0
    %3337 = vmatpush1.msra.mxu0 %v758
    %3338 = vmatprep.subr.mxu0 0.0
    %3339 = vmatpush1.msra.mxu0 %v755
    %3340 = vmatprep.subr.mxu0 0.0
    %3341 = vmatpush1.msra.mxu0 %v752
    %3342 = vmatprep.subr.mxu0 0.0
    %3343 = vmatpush1.msra.mxu0 %v749
    %3344 = vmatprep.subr.mxu0 0.0
    %3345 = vmatpush1.msra.mxu0 %v746
    %3346 = vmatprep.subr.mxu0 0.0
    %3347 = vmatpush1.msra.mxu0 %v743
    %3348 = vmatprep.subr.mxu0 0.0
    %3349 = vmatpush1.msra.mxu0 %v740
    %3350 = vmatprep.subr.mxu0 0.0
    %3351 = vmatpush1.msra.mxu0 %v737
    %3352 = vmatprep.subr.mxu0 0.0
    %3353 = vmatpush2.msra.mxu0 0.0
    %3354 = vmatprep.subr.mxu0 0.0
    %3355 = vmatpush2.msra.mxu0 0.0
    %3356 = vmatprep.subr.mxu0 0.0
    %3357 = vmatpush2.msra.mxu0 0.0
    %3358 = vmatprep.subr.mxu0 0.0
    %3359 = vmatpush2.msra.mxu0 0.0
    %3360 = vmatprep.subr.mxu0 0.0
    %3361 = vmatpush2.msra.mxu0 0.0
    %3362 = vmatprep.subr.mxu0 0.0
    %3363 = vmatpush2.msra.mxu0 0.0
    %3364 = vmatprep.subr.mxu0 0.0
    %3365 = vmatpush2.msra.mxu0 0.0
    %3366 = vmatprep.subr.mxu0 0.0
    %3367 = vmatpush2.msra.mxu0 0.0
    %3368 = vmatprep.subr.mxu0 0.0
    %3369 = vmatpush2.msra.mxu0 0.0
    %3370 = vmatprep.subr.mxu0 0.0
    %3371 = vmatpush2.msra.mxu0 0.0
    %3372 = vmatprep.subr.mxu0 0.0
    %3373 = vmatpush2.msra.mxu0 0.0
    %3374 = vmatprep.subr.mxu0 0.0
    %3375 = vmatpush2.msra.mxu0 0.0
    %3376 = vmatprep.subr.mxu0 0.0
    %3377 = vmatpush2.msra.mxu0 0.0
    %3378 = vmatprep.subr.mxu0 0.0
    %3379 = vmatpush2.msra.mxu0 0.0
    %3380 = vmatprep.subr.mxu0 0.0
    %3381 = vmatpush2.msra.mxu0 0.0
    %3382 = vmatprep.subr.mxu0 0.0
    %3383 = vmatpush2.msra.mxu0 0.0
    %3384 = vmatprep.mubr.f32.mxu0 0.0
    %3385 = vmatmul.mubr.f32.gmra.mxu0 %v2796
    %v3386 = vpop.f32.mrf.mxu0
    %v3387 = vadd.f32 0.0, %v3386
    %v3388 = vpop.f32.mrf.mxu0
    %3389 = vdwg.mxu0
    %v3390 = vadd.f32 %v3175, %v3316
    %v3391 = vadd.f32 %v3177, %v3318
    %v3392 = vxor.u32 %v3390, 2147483648
    %v3393 = vxor.u32 %v3391, 2147483648
    %v3394 = vmul.f32 %v3392, 1.442695
    %v3395 = vpow.pop %v3394
    %v3396 = vmul.f32 %v3393, 1.442695
    %v3397 = vpow.pop %v3396
    %v3398 = vadd.f32 %v3395, 1.0
    %v3399 = vadd.f32 %v3397, 1.0
    %v3400 = vrcp.pop %v3398
    %v3401 = vmul.f32 1.0, %v3400
    %v3402 = vrcp.pop %v3399
    %v3403 = vmul.f32 1.0, %v3402
    %v3404 = vadd.f32 %v3387, %v939
    %v3405 = vmul.f32 %v3401, %v3404
    %v3406 = vadd.f32 %v3246, %v3405
    %v3407 = vtanh.pop %v3406
    %v3408 = vsub.f32 1.0, %v3403
    %v3409 = vmul.f32 %v3408, %v3407
    %v3410 = vmul.f32 %v3403, %v2796
    %v3411 = vadd.f32 %v3409, %v3410
    %v3412 = vsel %vm3106, %v3411, %v2796
    %v3413 = vsel %vm3106, %v3411, 0.0
    %p3414 = scmp.gt.s32.totalorder %s98, 5
    %v3415 = vld [vmem:[#allocation5 + $0x5] sm:$0x1]
    %3416 = vmatprep.subr.mxu0 %v150
    %3417 = vmatpush1.msra.mxu0 %v149
    %3418 = vmatprep.subr.mxu0 %v147
    %3419 = vmatpush1.msra.mxu0 %v146
    %3420 = vmatprep.subr.mxu0 %v144
    %3421 = vmatpush1.msra.mxu0 %v143
    %3422 = vmatprep.subr.mxu0 %v141
    %3423 = vmatpush1.msra.mxu0 %v140
    %3424 = vmatprep.subr.mxu0 %v138
    %3425 = vmatpush1.msra.mxu0 %v137
    %3426 = vmatprep.subr.mxu0 %v135
    %3427 = vmatpush1.msra.mxu0 %v134
    %3428 = vmatprep.subr.mxu0 %v132
    %3429 = vmatpush1.msra.mxu0 %v131
    %3430 = vmatprep.subr.mxu0 %v129
    %3431 = vmatpush1.msra.mxu0 %v128
    %3432 = vmatprep.subr.mxu0 %v126
    %3433 = vmatpush1.msra.mxu0 %v125
    %3434 = vmatprep.subr.mxu0 %v123
    %3435 = vmatpush1.msra.mxu0 %v122
    %3436 = vmatprep.subr.mxu0 %v120
    %3437 = vmatpush1.msra.mxu0 %v119
    %3438 = vmatprep.subr.mxu0 %v117
    %3439 = vmatpush1.msra.mxu0 %v116
    %3440 = vmatprep.subr.mxu0 %v114
    %3441 = vmatpush1.msra.mxu0 %v113
    %3442 = vmatprep.subr.mxu0 %v111
    %3443 = vmatpush1.msra.mxu0 %v110
    %3444 = vmatprep.subr.mxu0 %v108
    %3445 = vmatpush1.msra.mxu0 %v107
    %3446 = vmatprep.subr.mxu0 %v105
    %3447 = vmatpush1.msra.mxu0 %v104
    %3448 = vmatprep.subr.mxu0 0.0
    %3449 = vmatpush2.msra.mxu0 0.0
    %3450 = vmatprep.subr.mxu0 0.0
    %3451 = vmatpush2.msra.mxu0 0.0
    %3452 = vmatprep.subr.mxu0 0.0
    %3453 = vmatpush2.msra.mxu0 0.0
    %3454 = vmatprep.subr.mxu0 0.0
    %3455 = vmatpush2.msra.mxu0 0.0
    %3456 = vmatprep.subr.mxu0 0.0
    %3457 = vmatpush2.msra.mxu0 0.0
    %3458 = vmatprep.subr.mxu0 0.0
    %3459 = vmatpush2.msra.mxu0 0.0
    %3460 = vmatprep.subr.mxu0 0.0
    %3461 = vmatpush2.msra.mxu0 0.0
    %3462 = vmatprep.subr.mxu0 0.0
    %3463 = vmatpush2.msra.mxu0 0.0
    %3464 = vmatprep.subr.mxu0 0.0
    %3465 = vmatpush2.msra.mxu0 0.0
    %3466 = vmatprep.subr.mxu0 0.0
    %3467 = vmatpush2.msra.mxu0 0.0
    %3468 = vmatprep.subr.mxu0 0.0
    %3469 = vmatpush2.msra.mxu0 0.0
    %3470 = vmatprep.subr.mxu0 0.0
    %3471 = vmatpush2.msra.mxu0 0.0
    %3472 = vmatprep.subr.mxu0 0.0
    %3473 = vmatpush2.msra.mxu0 0.0
    %3474 = vmatprep.subr.mxu0 0.0
    %3475 = vmatpush2.msra.mxu0 0.0
    %3476 = vmatprep.subr.mxu0 0.0
    %3477 = vmatpush2.msra.mxu0 0.0
    %3478 = vmatprep.subr.mxu0 0.0
    %3479 = vmatpush2.msra.mxu0 0.0
    %3480 = vmatprep.mubr.f32.mxu0 0.0
    %3481 = vmatmul.mubr.f32.gmra.mxu0 %v3415
    %v3482 = vpop.f32.mrf.mxu0
    %v3483 = vadd.f32 %v157, %v3482
    %v3484 = vpop.f32.mrf.mxu0
    %v3485 = vadd.f32 %v161, %v3484
    %3486 = vdwg.mxu0
    %3487 = vmatprep.subr.mxu0 0.0
    %3488 = vmatpush1.msra.mxu0 %v151
    %3489 = vmatprep.subr.mxu0 0.0
    %3490 = vmatpush1.msra.mxu0 %v148
    %3491 = vmatprep.subr.mxu0 0.0
    %3492 = vmatpush1.msra.mxu0 %v145
    %3493 = vmatprep.subr.mxu0 0.0
    %3494 = vmatpush1.msra.mxu0 %v142
    %3495 = vmatprep.subr.mxu0 0.0
    %3496 = vmatpush1.msra.mxu0 %v139
    %3497 = vmatprep.subr.mxu0 0.0
    %3498 = vmatpush1.msra.mxu0 %v136
    %3499 = vmatprep.subr.mxu0 0.0
    %3500 = vmatpush1.msra.mxu0 %v133
    %3501 = vmatprep.subr.mxu0 0.0
    %3502 = vmatpush1.msra.mxu0 %v130
    %3503 = vmatprep.subr.mxu0 0.0
    %3504 = vmatpush1.msra.mxu0 %v127
    %3505 = vmatprep.subr.mxu0 0.0
    %3506 = vmatpush1.msra.mxu0 %v124
    %3507 = vmatprep.subr.mxu0 0.0
    %3508 = vmatpush1.msra.mxu0 %v121
    %3509 = vmatprep.subr.mxu0 0.0
    %3510 = vmatpush1.msra.mxu0 %v118
    %3511 = vmatprep.subr.mxu0 0.0
    %3512 = vmatpush1.msra.mxu0 %v115
    %3513 = vmatprep.subr.mxu0 0.0
    %3514 = vmatpush1.msra.mxu0 %v112
    %3515 = vmatprep.subr.mxu0 0.0
    %3516 = vmatpush1.msra.mxu0 %v109
    %3517 = vmatprep.subr.mxu0 0.0
    %3518 = vmatpush1.msra.mxu0 %v106
    %3519 = vmatprep.subr.mxu0 0.0
    %3520 = vmatpush2.msra.mxu0 0.0
    %3521 = vmatprep.subr.mxu0 0.0
    %3522 = vmatpush2.msra.mxu0 0.0
    %3523 = vmatprep.subr.mxu0 0.0
    %3524 = vmatpush2.msra.mxu0 0.0
    %3525 = vmatprep.subr.mxu0 0.0
    %3526 = vmatpush2.msra.mxu0 0.0
    %3527 = vmatprep.subr.mxu0 0.0
    %3528 = vmatpush2.msra.mxu0 0.0
    %3529 = vmatprep.subr.mxu0 0.0
    %3530 = vmatpush2.msra.mxu0 0.0
    %3531 = vmatprep.subr.mxu0 0.0
    %3532 = vmatpush2.msra.mxu0 0.0
    %3533 = vmatprep.subr.mxu0 0.0
    %3534 = vmatpush2.msra.mxu0 0.0
    %3535 = vmatprep.subr.mxu0 0.0
    %3536 = vmatpush2.msra.mxu0 0.0
    %3537 = vmatprep.subr.mxu0 0.0
    %3538 = vmatpush2.msra.mxu0 0.0
    %3539 = vmatprep.subr.mxu0 0.0
    %3540 = vmatpush2.msra.mxu0 0.0
    %3541 = vmatprep.subr.mxu0 0.0
    %3542 = vmatpush2.msra.mxu0 0.0
    %3543 = vmatprep.subr.mxu0 0.0
    %3544 = vmatpush2.msra.mxu0 0.0
    %3545 = vmatprep.subr.mxu0 0.0
    %3546 = vmatpush2.msra.mxu0 0.0
    %3547 = vmatprep.subr.mxu0 0.0
    %3548 = vmatpush2.msra.mxu0 0.0
    %3549 = vmatprep.subr.mxu0 0.0
    %3550 = vmatpush2.msra.mxu0 0.0
    %3551 = vmatprep.mubr.f32.mxu0 0.0
    %3552 = vmatmul.mubr.f32.gmra.mxu0 %v3415
    %v3553 = vpop.f32.mrf.mxu0
    %v3554 = vadd.f32 %v165, %v3553
    %v3555 = vpop.f32.mrf.mxu0
    %3556 = vdwg.mxu0
    %3557 = vmatprep.subr.mxu0 %v356
    %3558 = vmatpush1.msra.mxu0 %v355
    %3559 = vmatprep.subr.mxu0 %v353
    %3560 = vmatpush1.msra.mxu0 %v352
    %3561 = vmatprep.subr.mxu0 %v350
    %3562 = vmatpush1.msra.mxu0 %v349
    %3563 = vmatprep.subr.mxu0 %v347
    %3564 = vmatpush1.msra.mxu0 %v346
    %3565 = vmatprep.subr.mxu0 %v344
    %3566 = vmatpush1.msra.mxu0 %v343
    %3567 = vmatprep.subr.mxu0 %v341
    %3568 = vmatpush1.msra.mxu0 %v340
    %3569 = vmatprep.subr.mxu0 %v338
    %3570 = vmatpush1.msra.mxu0 %v337
    %3571 = vmatprep.subr.mxu0 %v335
    %3572 = vmatpush1.msra.mxu0 %v334
    %3573 = vmatprep.subr.mxu0 %v332
    %3574 = vmatpush1.msra.mxu0 %v331
    %3575 = vmatprep.subr.mxu0 %v329
    %3576 = vmatpush1.msra.mxu0 %v328
    %3577 = vmatprep.subr.mxu0 %v326
    %3578 = vmatpush1.msra.mxu0 %v325
    %3579 = vmatprep.subr.mxu0 %v323
    %3580 = vmatpush1.msra.mxu0 %v322
    %3581 = vmatprep.subr.mxu0 %v320
    %3582 = vmatpush1.msra.mxu0 %v319
    %3583 = vmatprep.subr.mxu0 %v317
    %3584 = vmatpush1.msra.mxu0 %v316
    %3585 = vmatprep.subr.mxu0 %v314
    %3586 = vmatpush1.msra.mxu0 %v313
    %3587 = vmatprep.subr.mxu0 %v311
    %3588 = vmatpush1.msra.mxu0 %v310
    %3589 = vmatprep.subr.mxu0 0.0
    %3590 = vmatpush2.msra.mxu0 0.0
    %3591 = vmatprep.subr.mxu0 0.0
    %3592 = vmatpush2.msra.mxu0 0.0
    %3593 = vmatprep.subr.mxu0 0.0
    %3594 = vmatpush2.msra.mxu0 0.0
    %3595 = vmatprep.subr.mxu0 0.0
    %3596 = vmatpush2.msra.mxu0 0.0
    %3597 = vmatprep.subr.mxu0 0.0
    %3598 = vmatpush2.msra.mxu0 0.0
    %3599 = vmatprep.subr.mxu0 0.0
    %3600 = vmatpush2.msra.mxu0 0.0
    %3601 = vmatprep.subr.mxu0 0.0
    %3602 = vmatpush2.msra.mxu0 0.0
    %3603 = vmatprep.subr.mxu0 0.0
    %3604 = vmatpush2.msra.mxu0 0.0
    %3605 = vmatprep.subr.mxu0 0.0
    %3606 = vmatpush2.msra.mxu0 0.0
    %3607 = vmatprep.subr.mxu0 0.0
    %3608 = vmatpush2.msra.mxu0 0.0
    %3609 = vmatprep.subr.mxu0 0.0
    %3610 = vmatpush2.msra.mxu0 0.0
    %3611 = vmatprep.subr.mxu0 0.0
    %3612 = vmatpush2.msra.mxu0 0.0
    %3613 = vmatprep.subr.mxu0 0.0
    %3614 = vmatpush2.msra.mxu0 0.0
    %3615 = vmatprep.subr.mxu0 0.0
    %3616 = vmatpush2.msra.mxu0 0.0
    %3617 = vmatprep.subr.mxu0 0.0
    %3618 = vmatpush2.msra.mxu0 0.0
    %3619 = vmatprep.subr.mxu0 0.0
    %3620 = vmatpush2.msra.mxu0 0.0
    %3621 = vmatprep.mubr.f32.mxu0 0.0
    %3622 = vmatmul.mubr.f32.gmra.mxu0 %v3107
    %v3623 = vpop.f32.mrf.mxu0
    %v3624 = vadd.f32 0.0, %v3623
    %v3625 = vpop.f32.mrf.mxu0
    %v3626 = vadd.f32 0.0, %v3625
    %3627 = vdwg.mxu0
    %3628 = vmatprep.subr.mxu0 0.0
    %3629 = vmatpush1.msra.mxu0 %v357
    %3630 = vmatprep.subr.mxu0 0.0
    %3631 = vmatpush1.msra.mxu0 %v354
    %3632 = vmatprep.subr.mxu0 0.0
    %3633 = vmatpush1.msra.mxu0 %v351
    %3634 = vmatprep.subr.mxu0 0.0
    %3635 = vmatpush1.msra.mxu0 %v348
    %3636 = vmatprep.subr.mxu0 0.0
    %3637 = vmatpush1.msra.mxu0 %v345
    %3638 = vmatprep.subr.mxu0 0.0
    %3639 = vmatpush1.msra.mxu0 %v342
    %3640 = vmatprep.subr.mxu0 0.0
    %3641 = vmatpush1.msra.mxu0 %v339
    %3642 = vmatprep.subr.mxu0 0.0
    %3643 = vmatpush1.msra.mxu0 %v336
    %3644 = vmatprep.subr.mxu0 0.0
    %3645 = vmatpush1.msra.mxu0 %v333
    %3646 = vmatprep.subr.mxu0 0.0
    %3647 = vmatpush1.msra.mxu0 %v330
    %3648 = vmatprep.subr.mxu0 0.0
    %3649 = vmatpush1.msra.mxu0 %v327
    %3650 = vmatprep.subr.mxu0 0.0
    %3651 = vmatpush1.msra.mxu0 %v324
    %3652 = vmatprep.subr.mxu0 0.0
    %3653 = vmatpush1.msra.mxu0 %v321
    %3654 = vmatprep.subr.mxu0 0.0
    %3655 = vmatpush1.msra.mxu0 %v318
    %3656 = vmatprep.subr.mxu0 0.0
    %3657 = vmatpush1.msra.mxu0 %v315
    %3658 = vmatprep.subr.mxu0 0.0
    %3659 = vmatpush1.msra.mxu0 %v312
    %3660 = vmatprep.subr.mxu0 0.0
    %3661 = vmatpush2.msra.mxu0 0.0
    %3662 = vmatprep.subr.mxu0 0.0
    %3663 = vmatpush2.msra.mxu0 0.0
    %3664 = vmatprep.subr.mxu0 0.0
    %3665 = vmatpush2.msra.mxu0 0.0
    %3666 = vmatprep.subr.mxu0 0.0
    %3667 = vmatpush2.msra.mxu0 0.0
    %3668 = vmatprep.subr.mxu0 0.0
    %3669 = vmatpush2.msra.mxu0 0.0
    %3670 = vmatprep.subr.mxu0 0.0
    %3671 = vmatpush2.msra.mxu0 0.0
    %3672 = vmatprep.subr.mxu0 0.0
    %3673 = vmatpush2.msra.mxu0 0.0
    %3674 = vmatprep.subr.mxu0 0.0
    %3675 = vmatpush2.msra.mxu0 0.0
    %3676 = vmatprep.subr.mxu0 0.0
    %3677 = vmatpush2.msra.mxu0 0.0
    %3678 = vmatprep.subr.mxu0 0.0
    %3679 = vmatpush2.msra.mxu0 0.0
    %3680 = vmatprep.subr.mxu0 0.0
    %3681 = vmatpush2.msra.mxu0 0.0
    %3682 = vmatprep.subr.mxu0 0.0
    %3683 = vmatpush2.msra.mxu0 0.0
    %3684 = vmatprep.subr.mxu0 0.0
    %3685 = vmatpush2.msra.mxu0 0.0
    %3686 = vmatprep.subr.mxu0 0.0
    %3687 = vmatpush2.msra.mxu0 0.0
    %3688 = vmatprep.subr.mxu0 0.0
    %3689 = vmatpush2.msra.mxu0 0.0
    %3690 = vmatprep.subr.mxu0 0.0
    %3691 = vmatpush2.msra.mxu0 0.0
    %3692 = vmatprep.mubr.f32.mxu0 0.0
    %3693 = vmatmul.mubr.f32.gmra.mxu0 %v3107
    %v3694 = vpop.f32.mrf.mxu0
    %v3695 = vadd.f32 0.0, %v3694
    %v3696 = vpop.f32.mrf.mxu0
    %3697 = vdwg.mxu0
    %v3698 = vadd.f32 %v3483, %v3624
    %v3699 = vadd.f32 %v3485, %v3626
    %v3700 = vxor.u32 %v3698, 2147483648
    %v3701 = vxor.u32 %v3699, 2147483648
    %v3702 = vmul.f32 %v3700, 1.442695
    %v3703 = vpow.pop %v3702
    %v3704 = vmul.f32 %v3701, 1.442695
    %v3705 = vpow.pop %v3704
    %v3706 = vadd.f32 %v3703, 1.0
    %v3707 = vadd.f32 %v3705, 1.0
    %v3708 = vrcp.pop %v3706
    %v3709 = vmul.f32 1.0, %v3708
    %v3710 = vrcp.pop %v3707
    %v3711 = vmul.f32 1.0, %v3710
    %v3712 = vadd.f32 %v3695, %v513
    %v3713 = vmul.f32 %v3709, %v3712
    %v3714 = vadd.f32 %v3554, %v3713
    %v3715 = vtanh.pop %v3714
    %v3716 = vsub.f32 1.0, %v3711
    %v3717 = vmul.f32 %v3716, %v3715
    %v3718 = vmul.f32 %v3711, %v3107
    %v3719 = vadd.f32 %v3717, %v3718
    %s3720 = scalar_select %p3414, 1, 0
    %v3721 = vstv %s3720
    %vm3722 = vcmp.eq.s32.totalorder %v3721, 1
    %v3723 = vsel %vm3722, %v3719, %v3107
    %3724 = vmatprep.subr.mxu0 %v573
    %3725 = vmatpush1.msra.mxu0 %v572
    %3726 = vmatprep.subr.mxu0 %v570
    %3727 = vmatpush1.msra.mxu0 %v569
    %3728 = vmatprep.subr.mxu0 %v567
    %3729 = vmatpush1.msra.mxu0 %v566
    %3730 = vmatprep.subr.mxu0 %v564
    %3731 = vmatpush1.msra.mxu0 %v563
    %3732 = vmatprep.subr.mxu0 %v561
    %3733 = vmatpush1.msra.mxu0 %v560
    %3734 = vmatprep.subr.mxu0 %v558
    %3735 = vmatpush1.msra.mxu0 %v557
    %3736 = vmatprep.subr.mxu0 %v555
    %3737 = vmatpush1.msra.mxu0 %v554
    %3738 = vmatprep.subr.mxu0 %v552
    %3739 = vmatpush1.msra.mxu0 %v551
    %3740 = vmatprep.subr.mxu0 %v549
    %3741 = vmatpush1.msra.mxu0 %v548
    %3742 = vmatprep.subr.mxu0 %v546
    %3743 = vmatpush1.msra.mxu0 %v545
    %3744 = vmatprep.subr.mxu0 %v543
    %3745 = vmatpush1.msra.mxu0 %v542
    %3746 = vmatprep.subr.mxu0 %v540
    %3747 = vmatpush1.msra.mxu0 %v539
    %3748 = vmatprep.subr.mxu0 %v537
    %3749 = vmatpush1.msra.mxu0 %v536
    %3750 = vmatprep.subr.mxu0 %v534
    %3751 = vmatpush1.msra.mxu0 %v533
    %3752 = vmatprep.subr.mxu0 %v531
    %3753 = vmatpush1.msra.mxu0 %v530
    %3754 = vmatprep.subr.mxu0 %v528
    %3755 = vmatpush1.msra.mxu0 %v527
    %3756 = vmatprep.subr.mxu0 0.0
    %3757 = vmatpush2.msra.mxu0 0.0
    %3758 = vmatprep.subr.mxu0 0.0
    %3759 = vmatpush2.msra.mxu0 0.0
    %3760 = vmatprep.subr.mxu0 0.0
    %3761 = vmatpush2.msra.mxu0 0.0
    %3762 = vmatprep.subr.mxu0 0.0
    %3763 = vmatpush2.msra.mxu0 0.0
    %3764 = vmatprep.subr.mxu0 0.0
    %3765 = vmatpush2.msra.mxu0 0.0
    %3766 = vmatprep.subr.mxu0 0.0
    %3767 = vmatpush2.msra.mxu0 0.0
    %3768 = vmatprep.subr.mxu0 0.0
    %3769 = vmatpush2.msra.mxu0 0.0
    %3770 = vmatprep.subr.mxu0 0.0
    %3771 = vmatpush2.msra.mxu0 0.0
    %3772 = vmatprep.subr.mxu0 0.0
    %3773 = vmatpush2.msra.mxu0 0.0
    %3774 = vmatprep.subr.mxu0 0.0
    %3775 = vmatpush2.msra.mxu0 0.0
    %3776 = vmatprep.subr.mxu0 0.0
    %3777 = vmatpush2.msra.mxu0 0.0
    %3778 = vmatprep.subr.mxu0 0.0
    %3779 = vmatpush2.msra.mxu0 0.0
    %3780 = vmatprep.subr.mxu0 0.0
    %3781 = vmatpush2.msra.mxu0 0.0
    %3782 = vmatprep.subr.mxu0 0.0
    %3783 = vmatpush2.msra.mxu0 0.0
    %3784 = vmatprep.subr.mxu0 0.0
    %3785 = vmatpush2.msra.mxu0 0.0
    %3786 = vmatprep.subr.mxu0 0.0
    %3787 = vmatpush2.msra.mxu0 0.0
    %3788 = vmatprep.mubr.f32.mxu0 0.0
    %3789 = vmatmul.mubr.f32.gmra.mxu0 %v3723
    %v3790 = vpop.f32.mrf.mxu0
    %v3791 = vadd.f32 %v581, %v3790
    %v3792 = vpop.f32.mrf.mxu0
    %v3793 = vadd.f32 %v585, %v3792
    %3794 = vdwg.mxu0
    %3795 = vmatprep.subr.mxu0 0.0
    %3796 = vmatpush1.msra.mxu0 %v574
    %3797 = vmatprep.subr.mxu0 0.0
    %3798 = vmatpush1.msra.mxu0 %v571
    %3799 = vmatprep.subr.mxu0 0.0
    %3800 = vmatpush1.msra.mxu0 %v568
    %3801 = vmatprep.subr.mxu0 0.0
    %3802 = vmatpush1.msra.mxu0 %v565
    %3803 = vmatprep.subr.mxu0 0.0
    %3804 = vmatpush1.msra.mxu0 %v562
    %3805 = vmatprep.subr.mxu0 0.0
    %3806 = vmatpush1.msra.mxu0 %v559
    %3807 = vmatprep.subr.mxu0 0.0
    %3808 = vmatpush1.msra.mxu0 %v556
    %3809 = vmatprep.subr.mxu0 0.0
    %3810 = vmatpush1.msra.mxu0 %v553
    %3811 = vmatprep.subr.mxu0 0.0
    %3812 = vmatpush1.msra.mxu0 %v550
    %3813 = vmatprep.subr.mxu0 0.0
    %3814 = vmatpush1.msra.mxu0 %v547
    %3815 = vmatprep.subr.mxu0 0.0
    %3816 = vmatpush1.msra.mxu0 %v544
    %3817 = vmatprep.subr.mxu0 0.0
    %3818 = vmatpush1.msra.mxu0 %v541
    %3819 = vmatprep.subr.mxu0 0.0
    %3820 = vmatpush1.msra.mxu0 %v538
    %3821 = vmatprep.subr.mxu0 0.0
    %3822 = vmatpush1.msra.mxu0 %v535
    %3823 = vmatprep.subr.mxu0 0.0
    %3824 = vmatpush1.msra.mxu0 %v532
    %3825 = vmatprep.subr.mxu0 0.0
    %3826 = vmatpush1.msra.mxu0 %v529
    %3827 = vmatprep.subr.mxu0 0.0
    %3828 = vmatpush2.msra.mxu0 0.0
    %3829 = vmatprep.subr.mxu0 0.0
    %3830 = vmatpush2.msra.mxu0 0.0
    %3831 = vmatprep.subr.mxu0 0.0
    %3832 = vmatpush2.msra.mxu0 0.0
    %3833 = vmatprep.subr.mxu0 0.0
    %3834 = vmatpush2.msra.mxu0 0.0
    %3835 = vmatprep.subr.mxu0 0.0
    %3836 = vmatpush2.msra.mxu0 0.0
    %3837 = vmatprep.subr.mxu0 0.0
    %3838 = vmatpush2.msra.mxu0 0.0
    %3839 = vmatprep.subr.mxu0 0.0
    %3840 = vmatpush2.msra.mxu0 0.0
    %3841 = vmatprep.subr.mxu0 0.0
    %3842 = vmatpush2.msra.mxu0 0.0
    %3843 = vmatprep.subr.mxu0 0.0
    %3844 = vmatpush2.msra.mxu0 0.0
    %3845 = vmatprep.subr.mxu0 0.0
    %3846 = vmatpush2.msra.mxu0 0.0
    %3847 = vmatprep.subr.mxu0 0.0
    %3848 = vmatpush2.msra.mxu0 0.0
    %3849 = vmatprep.subr.mxu0 0.0
    %3850 = vmatpush2.msra.mxu0 0.0
    %3851 = vmatprep.subr.mxu0 0.0
    %3852 = vmatpush2.msra.mxu0 0.0
    %3853 = vmatprep.subr.mxu0 0.0
    %3854 = vmatpush2.msra.mxu0 0.0
    %3855 = vmatprep.subr.mxu0 0.0
    %3856 = vmatpush2.msra.mxu0 0.0
    %3857 = vmatprep.subr.mxu0 0.0
    %3858 = vmatpush2.msra.mxu0 0.0
    %3859 = vmatprep.mubr.f32.mxu0 0.0
    %3860 = vmatmul.mubr.f32.gmra.mxu0 %v3723
    %v3861 = vpop.f32.mrf.mxu0
    %v3862 = vadd.f32 %v589, %v3861
    %v3863 = vpop.f32.mrf.mxu0
    %3864 = vdwg.mxu0
    %3865 = vmatprep.subr.mxu0 %v781
    %3866 = vmatpush1.msra.mxu0 %v780
    %3867 = vmatprep.subr.mxu0 %v778
    %3868 = vmatpush1.msra.mxu0 %v777
    %3869 = vmatprep.subr.mxu0 %v775
    %3870 = vmatpush1.msra.mxu0 %v774
    %3871 = vmatprep.subr.mxu0 %v772
    %3872 = vmatpush1.msra.mxu0 %v771
    %3873 = vmatprep.subr.mxu0 %v769
    %3874 = vmatpush1.msra.mxu0 %v768
    %3875 = vmatprep.subr.mxu0 %v766
    %3876 = vmatpush1.msra.mxu0 %v765
    %3877 = vmatprep.subr.mxu0 %v763
    %3878 = vmatpush1.msra.mxu0 %v762
    %3879 = vmatprep.subr.mxu0 %v760
    %3880 = vmatpush1.msra.mxu0 %v759
    %3881 = vmatprep.subr.mxu0 %v757
    %3882 = vmatpush1.msra.mxu0 %v756
    %3883 = vmatprep.subr.mxu0 %v754
    %3884 = vmatpush1.msra.mxu0 %v753
    %3885 = vmatprep.subr.mxu0 %v751
    %3886 = vmatpush1.msra.mxu0 %v750
    %3887 = vmatprep.subr.mxu0 %v748
    %3888 = vmatpush1.msra.mxu0 %v747
    %3889 = vmatprep.subr.mxu0 %v745
    %3890 = vmatpush1.msra.mxu0 %v744
    %3891 = vmatprep.subr.mxu0 %v742
    %3892 = vmatpush1.msra.mxu0 %v741
    %3893 = vmatprep.subr.mxu0 %v739
    %3894 = vmatpush1.msra.mxu0 %v738
    %3895 = vmatprep.subr.mxu0 %v736
    %3896 = vmatpush1.msra.mxu0 %v735
    %3897 = vmatprep.subr.mxu0 0.0
    %3898 = vmatpush2.msra.mxu0 0.0
    %3899 = vmatprep.subr.mxu0 0.0
    %3900 = vmatpush2.msra.mxu0 0.0
    %3901 = vmatprep.subr.mxu0 0.0
    %3902 = vmatpush2.msra.mxu0 0.0
    %3903 = vmatprep.subr.mxu0 0.0
    %3904 = vmatpush2.msra.mxu0 0.0
    %3905 = vmatprep.subr.mxu0 0.0
    %3906 = vmatpush2.msra.mxu0 0.0
    %3907 = vmatprep.subr.mxu0 0.0
    %3908 = vmatpush2.msra.mxu0 0.0
    %3909 = vmatprep.subr.mxu0 0.0
    %3910 = vmatpush2.msra.mxu0 0.0
    %3911 = vmatprep.subr.mxu0 0.0
    %3912 = vmatpush2.msra.mxu0 0.0
    %3913 = vmatprep.subr.mxu0 0.0
    %3914 = vmatpush2.msra.mxu0 0.0
    %3915 = vmatprep.subr.mxu0 0.0
    %3916 = vmatpush2.msra.mxu0 0.0
    %3917 = vmatprep.subr.mxu0 0.0
    %3918 = vmatpush2.msra.mxu0 0.0
    %3919 = vmatprep.subr.mxu0 0.0
    %3920 = vmatpush2.msra.mxu0 0.0
    %3921 = vmatprep.subr.mxu0 0.0
    %3922 = vmatpush2.msra.mxu0 0.0
    %3923 = vmatprep.subr.mxu0 0.0
    %3924 = vmatpush2.msra.mxu0 0.0
    %3925 = vmatprep.subr.mxu0 0.0
    %3926 = vmatpush2.msra.mxu0 0.0
    %3927 = vmatprep.subr.mxu0 0.0
    %3928 = vmatpush2.msra.mxu0 0.0
    %3929 = vmatprep.mubr.f32.mxu0 0.0
    %3930 = vmatmul.mubr.f32.gmra.mxu0 %v3412
    %v3931 = vpop.f32.mrf.mxu0
    %v3932 = vadd.f32 0.0, %v3931
    %v3933 = vpop.f32.mrf.mxu0
    %v3934 = vadd.f32 0.0, %v3933
    %3935 = vdwg.mxu0
    %3936 = vmatprep.subr.mxu0 0.0
    %3937 = vmatpush1.msra.mxu0 %v782
    %3938 = vmatprep.subr.mxu0 0.0
    %3939 = vmatpush1.msra.mxu0 %v779
    %3940 = vmatprep.subr.mxu0 0.0
    %3941 = vmatpush1.msra.mxu0 %v776
    %3942 = vmatprep.subr.mxu0 0.0
    %3943 = vmatpush1.msra.mxu0 %v773
    %3944 = vmatprep.subr.mxu0 0.0
    %3945 = vmatpush1.msra.mxu0 %v770
    %3946 = vmatprep.subr.mxu0 0.0
    %3947 = vmatpush1.msra.mxu0 %v767
    %3948 = vmatprep.subr.mxu0 0.0
    %3949 = vmatpush1.msra.mxu0 %v764
    %3950 = vmatprep.subr.mxu0 0.0
    %3951 = vmatpush1.msra.mxu0 %v761
    %3952 = vmatprep.subr.mxu0 0.0
    %3953 = vmatpush1.msra.mxu0 %v758
    %3954 = vmatprep.subr.mxu0 0.0
    %3955 = vmatpush1.msra.mxu0 %v755
    %3956 = vmatprep.subr.mxu0 0.0
    %3957 = vmatpush1.msra.mxu0 %v752
    %3958 = vmatprep.subr.mxu0 0.0
    %3959 = vmatpush1.msra.mxu0 %v749
    %3960 = vmatprep.subr.mxu0 0.0
    %3961 = vmatpush1.msra.mxu0 %v746
    %3962 = vmatprep.subr.mxu0 0.0
    %3963 = vmatpush1.msra.mxu0 %v743
    %3964 = vmatprep.subr.mxu0 0.0
    %3965 = vmatpush1.msra.mxu0 %v740
    %3966 = vmatprep.subr.mxu0 0.0
    %3967 = vmatpush1.msra.mxu0 %v737
    %3968 = vmatprep.subr.mxu0 0.0
    %3969 = vmatpush2.msra.mxu0 0.0
    %3970 = vmatprep.subr.mxu0 0.0
    %3971 = vmatpush2.msra.mxu0 0.0
    %3972 = vmatprep.subr.mxu0 0.0
    %3973 = vmatpush2.msra.mxu0 0.0
    %3974 = vmatprep.subr.mxu0 0.0
    %3975 = vmatpush2.msra.mxu0 0.0
    %3976 = vmatprep.subr.mxu0 0.0
    %3977 = vmatpush2.msra.mxu0 0.0
    %3978 = vmatprep.subr.mxu0 0.0
    %3979 = vmatpush2.msra.mxu0 0.0
    %3980 = vmatprep.subr.mxu0 0.0
    %3981 = vmatpush2.msra.mxu0 0.0
    %3982 = vmatprep.subr.mxu0 0.0
    %3983 = vmatpush2.msra.mxu0 0.0
    %3984 = vmatprep.subr.mxu0 0.0
    %3985 = vmatpush2.msra.mxu0 0.0
    %3986 = vmatprep.subr.mxu0 0.0
    %3987 = vmatpush2.msra.mxu0 0.0
    %3988 = vmatprep.subr.mxu0 0.0
    %3989 = vmatpush2.msra.mxu0 0.0
    %3990 = vmatprep.subr.mxu0 0.0
    %3991 = vmatpush2.msra.mxu0 0.0
    %3992 = vmatprep.subr.mxu0 0.0
    %3993 = vmatpush2.msra.mxu0 0.0
    %3994 = vmatprep.subr.mxu0 0.0
    %3995 = vmatpush2.msra.mxu0 0.0
    %3996 = vmatprep.subr.mxu0 0.0
    %3997 = vmatpush2.msra.mxu0 0.0
    %3998 = vmatprep.subr.mxu0 0.0
    %3999 = vmatpush2.msra.mxu0 0.0
    %4000 = vmatprep.mubr.f32.mxu0 0.0
    %4001 = vmatmul.mubr.f32.gmra.mxu0 %v3412
    %v4002 = vpop.f32.mrf.mxu0
    %v4003 = vadd.f32 0.0, %v4002
    %v4004 = vpop.f32.mrf.mxu0
    %4005 = vdwg.mxu0
    %v4006 = vadd.f32 %v3791, %v3932
    %v4007 = vadd.f32 %v3793, %v3934
    %v4008 = vxor.u32 %v4006, 2147483648
    %v4009 = vxor.u32 %v4007, 2147483648
    %v4010 = vmul.f32 %v4008, 1.442695
    %v4011 = vpow.pop %v4010
    %v4012 = vmul.f32 %v4009, 1.442695
    %v4013 = vpow.pop %v4012
    %v4014 = vadd.f32 %v4011, 1.0
    %v4015 = vadd.f32 %v4013, 1.0
    %v4016 = vrcp.pop %v4014
    %v4017 = vmul.f32 1.0, %v4016
    %v4018 = vrcp.pop %v4015
    %v4019 = vmul.f32 1.0, %v4018
    %v4020 = vadd.f32 %v4003, %v939
    %v4021 = vmul.f32 %v4017, %v4020
    %v4022 = vadd.f32 %v3862, %v4021
    %v4023 = vtanh.pop %v4022
    %v4024 = vsub.f32 1.0, %v4019
    %v4025 = vmul.f32 %v4024, %v4023
    %v4026 = vmul.f32 %v4019, %v3412
    %v4027 = vadd.f32 %v4025, %v4026
    %v4028 = vsel %vm3722, %v4027, %v3412
    %v4029 = vsel %vm3722, %v4027, 0.0
    %p4030 = scmp.gt.s32.totalorder %s98, 6
    %v4031 = vld [vmem:[#allocation5 + $0x6] sm:$0x1]
    %4032 = vmatprep.subr.mxu0 %v150
    %4033 = vmatpush1.msra.mxu0 %v149
    %4034 = vmatprep.subr.mxu0 %v147
    %4035 = vmatpush1.msra.mxu0 %v146
    %4036 = vmatprep.subr.mxu0 %v144
    %4037 = vmatpush1.msra.mxu0 %v143
    %4038 = vmatprep.subr.mxu0 %v141
    %4039 = vmatpush1.msra.mxu0 %v140
    %4040 = vmatprep.subr.mxu0 %v138
    %4041 = vmatpush1.msra.mxu0 %v137
    %4042 = vmatprep.subr.mxu0 %v135
    %4043 = vmatpush1.msra.mxu0 %v134
    %4044 = vmatprep.subr.mxu0 %v132
    %4045 = vmatpush1.msra.mxu0 %v131
    %4046 = vmatprep.subr.mxu0 %v129
    %4047 = vmatpush1.msra.mxu0 %v128
    %4048 = vmatprep.subr.mxu0 %v126
    %4049 = vmatpush1.msra.mxu0 %v125
    %4050 = vmatprep.subr.mxu0 %v123
    %4051 = vmatpush1.msra.mxu0 %v122
    %4052 = vmatprep.subr.mxu0 %v120
    %4053 = vmatpush1.msra.mxu0 %v119
    %4054 = vmatprep.subr.mxu0 %v117
    %4055 = vmatpush1.msra.mxu0 %v116
    %4056 = vmatprep.subr.mxu0 %v114
    %4057 = vmatpush1.msra.mxu0 %v113
    %4058 = vmatprep.subr.mxu0 %v111
    %4059 = vmatpush1.msra.mxu0 %v110
    %4060 = vmatprep.subr.mxu0 %v108
    %4061 = vmatpush1.msra.mxu0 %v107
    %4062 = vmatprep.subr.mxu0 %v105
    %4063 = vmatpush1.msra.mxu0 %v104
    %4064 = vmatprep.subr.mxu0 0.0
    %4065 = vmatpush2.msra.mxu0 0.0
    %4066 = vmatprep.subr.mxu0 0.0
    %4067 = vmatpush2.msra.mxu0 0.0
    %4068 = vmatprep.subr.mxu0 0.0
    %4069 = vmatpush2.msra.mxu0 0.0
    %4070 = vmatprep.subr.mxu0 0.0
    %4071 = vmatpush2.msra.mxu0 0.0
    %4072 = vmatprep.subr.mxu0 0.0
    %4073 = vmatpush2.msra.mxu0 0.0
    %4074 = vmatprep.subr.mxu0 0.0
    %4075 = vmatpush2.msra.mxu0 0.0
    %4076 = vmatprep.subr.mxu0 0.0
    %4077 = vmatpush2.msra.mxu0 0.0
    %4078 = vmatprep.subr.mxu0 0.0
    %4079 = vmatpush2.msra.mxu0 0.0
    %4080 = vmatprep.subr.mxu0 0.0
    %4081 = vmatpush2.msra.mxu0 0.0
    %4082 = vmatprep.subr.mxu0 0.0
    %4083 = vmatpush2.msra.mxu0 0.0
    %4084 = vmatprep.subr.mxu0 0.0
    %4085 = vmatpush2.msra.mxu0 0.0
    %4086 = vmatprep.subr.mxu0 0.0
    %4087 = vmatpush2.msra.mxu0 0.0
    %4088 = vmatprep.subr.mxu0 0.0
    %4089 = vmatpush2.msra.mxu0 0.0
    %4090 = vmatprep.subr.mxu0 0.0
    %4091 = vmatpush2.msra.mxu0 0.0
    %4092 = vmatprep.subr.mxu0 0.0
    %4093 = vmatpush2.msra.mxu0 0.0
    %4094 = vmatprep.subr.mxu0 0.0
    %4095 = vmatpush2.msra.mxu0 0.0
    %4096 = vmatprep.mubr.f32.mxu0 0.0
    %4097 = vmatmul.mubr.f32.gmra.mxu0 %v4031
    %v4098 = vpop.f32.mrf.mxu0
    %v4099 = vadd.f32 %v157, %v4098
    %v4100 = vpop.f32.mrf.mxu0
    %v4101 = vadd.f32 %v161, %v4100
    %4102 = vdwg.mxu0
    %4103 = vmatprep.subr.mxu0 0.0
    %4104 = vmatpush1.msra.mxu0 %v151
    %4105 = vmatprep.subr.mxu0 0.0
    %4106 = vmatpush1.msra.mxu0 %v148
    %4107 = vmatprep.subr.mxu0 0.0
    %4108 = vmatpush1.msra.mxu0 %v145
    %4109 = vmatprep.subr.mxu0 0.0
    %4110 = vmatpush1.msra.mxu0 %v142
    %4111 = vmatprep.subr.mxu0 0.0
    %4112 = vmatpush1.msra.mxu0 %v139
    %4113 = vmatprep.subr.mxu0 0.0
    %4114 = vmatpush1.msra.mxu0 %v136
    %4115 = vmatprep.subr.mxu0 0.0
    %4116 = vmatpush1.msra.mxu0 %v133
    %4117 = vmatprep.subr.mxu0 0.0
    %4118 = vmatpush1.msra.mxu0 %v130
    %4119 = vmatprep.subr.mxu0 0.0
    %4120 = vmatpush1.msra.mxu0 %v127
    %4121 = vmatprep.subr.mxu0 0.0
    %4122 = vmatpush1.msra.mxu0 %v124
    %4123 = vmatprep.subr.mxu0 0.0
    %4124 = vmatpush1.msra.mxu0 %v121
    %4125 = vmatprep.subr.mxu0 0.0
    %4126 = vmatpush1.msra.mxu0 %v118
    %4127 = vmatprep.subr.mxu0 0.0
    %4128 = vmatpush1.msra.mxu0 %v115
    %4129 = vmatprep.subr.mxu0 0.0
    %4130 = vmatpush1.msra.mxu0 %v112
    %4131 = vmatprep.subr.mxu0 0.0
    %4132 = vmatpush1.msra.mxu0 %v109
    %4133 = vmatprep.subr.mxu0 0.0
    %4134 = vmatpush1.msra.mxu0 %v106
    %4135 = vmatprep.subr.mxu0 0.0
    %4136 = vmatpush2.msra.mxu0 0.0
    %4137 = vmatprep.subr.mxu0 0.0
    %4138 = vmatpush2.msra.mxu0 0.0
    %4139 = vmatprep.subr.mxu0 0.0
    %4140 = vmatpush2.msra.mxu0 0.0
    %4141 = vmatprep.subr.mxu0 0.0
    %4142 = vmatpush2.msra.mxu0 0.0
    %4143 = vmatprep.subr.mxu0 0.0
    %4144 = vmatpush2.msra.mxu0 0.0
    %4145 = vmatprep.subr.mxu0 0.0
    %4146 = vmatpush2.msra.mxu0 0.0
    %4147 = vmatprep.subr.mxu0 0.0
    %4148 = vmatpush2.msra.mxu0 0.0
    %4149 = vmatprep.subr.mxu0 0.0
    %4150 = vmatpush2.msra.mxu0 0.0
    %4151 = vmatprep.subr.mxu0 0.0
    %4152 = vmatpush2.msra.mxu0 0.0
    %4153 = vmatprep.subr.mxu0 0.0
    %4154 = vmatpush2.msra.mxu0 0.0
    %4155 = vmatprep.subr.mxu0 0.0
    %4156 = vmatpush2.msra.mxu0 0.0
    %4157 = vmatprep.subr.mxu0 0.0
    %4158 = vmatpush2.msra.mxu0 0.0
    %4159 = vmatprep.subr.mxu0 0.0
    %4160 = vmatpush2.msra.mxu0 0.0
    %4161 = vmatprep.subr.mxu0 0.0
    %4162 = vmatpush2.msra.mxu0 0.0
    %4163 = vmatprep.subr.mxu0 0.0
    %4164 = vmatpush2.msra.mxu0 0.0
    %4165 = vmatprep.subr.mxu0 0.0
    %4166 = vmatpush2.msra.mxu0 0.0
    %4167 = vmatprep.mubr.f32.mxu0 0.0
    %4168 = vmatmul.mubr.f32.gmra.mxu0 %v4031
    %v4169 = vpop.f32.mrf.mxu0
    %v4170 = vadd.f32 %v165, %v4169
    %v4171 = vpop.f32.mrf.mxu0
    %4172 = vdwg.mxu0
    %4173 = vmatprep.subr.mxu0 %v356
    %4174 = vmatpush1.msra.mxu0 %v355
    %4175 = vmatprep.subr.mxu0 %v353
    %4176 = vmatpush1.msra.mxu0 %v352
    %4177 = vmatprep.subr.mxu0 %v350
    %4178 = vmatpush1.msra.mxu0 %v349
    %4179 = vmatprep.subr.mxu0 %v347
    %4180 = vmatpush1.msra.mxu0 %v346
    %4181 = vmatprep.subr.mxu0 %v344
    %4182 = vmatpush1.msra.mxu0 %v343
    %4183 = vmatprep.subr.mxu0 %v341
    %4184 = vmatpush1.msra.mxu0 %v340
    %4185 = vmatprep.subr.mxu0 %v338
    %4186 = vmatpush1.msra.mxu0 %v337
    %4187 = vmatprep.subr.mxu0 %v335
    %4188 = vmatpush1.msra.mxu0 %v334
    %4189 = vmatprep.subr.mxu0 %v332
    %4190 = vmatpush1.msra.mxu0 %v331
    %4191 = vmatprep.subr.mxu0 %v329
    %4192 = vmatpush1.msra.mxu0 %v328
    %4193 = vmatprep.subr.mxu0 %v326
    %4194 = vmatpush1.msra.mxu0 %v325
    %4195 = vmatprep.subr.mxu0 %v323
    %4196 = vmatpush1.msra.mxu0 %v322
    %4197 = vmatprep.subr.mxu0 %v320
    %4198 = vmatpush1.msra.mxu0 %v319
    %4199 = vmatprep.subr.mxu0 %v317
    %4200 = vmatpush1.msra.mxu0 %v316
    %4201 = vmatprep.subr.mxu0 %v314
    %4202 = vmatpush1.msra.mxu0 %v313
    %4203 = vmatprep.subr.mxu0 %v311
    %4204 = vmatpush1.msra.mxu0 %v310
    %4205 = vmatprep.subr.mxu0 0.0
    %4206 = vmatpush2.msra.mxu0 0.0
    %4207 = vmatprep.subr.mxu0 0.0
    %4208 = vmatpush2.msra.mxu0 0.0
    %4209 = vmatprep.subr.mxu0 0.0
    %4210 = vmatpush2.msra.mxu0 0.0
    %4211 = vmatprep.subr.mxu0 0.0
    %4212 = vmatpush2.msra.mxu0 0.0
    %4213 = vmatprep.subr.mxu0 0.0
    %4214 = vmatpush2.msra.mxu0 0.0
    %4215 = vmatprep.subr.mxu0 0.0
    %4216 = vmatpush2.msra.mxu0 0.0
    %4217 = vmatprep.subr.mxu0 0.0
    %4218 = vmatpush2.msra.mxu0 0.0
    %4219 = vmatprep.subr.mxu0 0.0
    %4220 = vmatpush2.msra.mxu0 0.0
    %4221 = vmatprep.subr.mxu0 0.0
    %4222 = vmatpush2.msra.mxu0 0.0
    %4223 = vmatprep.subr.mxu0 0.0
    %4224 = vmatpush2.msra.mxu0 0.0
    %4225 = vmatprep.subr.mxu0 0.0
    %4226 = vmatpush2.msra.mxu0 0.0
    %4227 = vmatprep.subr.mxu0 0.0
    %4228 = vmatpush2.msra.mxu0 0.0
    %4229 = vmatprep.subr.mxu0 0.0
    %4230 = vmatpush2.msra.mxu0 0.0
    %4231 = vmatprep.subr.mxu0 0.0
    %4232 = vmatpush2.msra.mxu0 0.0
    %4233 = vmatprep.subr.mxu0 0.0
    %4234 = vmatpush2.msra.mxu0 0.0
    %4235 = vmatprep.subr.mxu0 0.0
    %4236 = vmatpush2.msra.mxu0 0.0
    %4237 = vmatprep.mubr.f32.mxu0 0.0
    %4238 = vmatmul.mubr.f32.gmra.mxu0 %v3723
    %v4239 = vpop.f32.mrf.mxu0
    %v4240 = vadd.f32 0.0, %v4239
    %v4241 = vpop.f32.mrf.mxu0
    %v4242 = vadd.f32 0.0, %v4241
    %4243 = vdwg.mxu0
    %4244 = vmatprep.subr.mxu0 0.0
    %4245 = vmatpush1.msra.mxu0 %v357
    %4246 = vmatprep.subr.mxu0 0.0
    %4247 = vmatpush1.msra.mxu0 %v354
    %4248 = vmatprep.subr.mxu0 0.0
    %4249 = vmatpush1.msra.mxu0 %v351
    %4250 = vmatprep.subr.mxu0 0.0
    %4251 = vmatpush1.msra.mxu0 %v348
    %4252 = vmatprep.subr.mxu0 0.0
    %4253 = vmatpush1.msra.mxu0 %v345
    %4254 = vmatprep.subr.mxu0 0.0
    %4255 = vmatpush1.msra.mxu0 %v342
    %4256 = vmatprep.subr.mxu0 0.0
    %4257 = vmatpush1.msra.mxu0 %v339
    %4258 = vmatprep.subr.mxu0 0.0
    %4259 = vmatpush1.msra.mxu0 %v336
    %4260 = vmatprep.subr.mxu0 0.0
    %4261 = vmatpush1.msra.mxu0 %v333
    %4262 = vmatprep.subr.mxu0 0.0
    %4263 = vmatpush1.msra.mxu0 %v330
    %4264 = vmatprep.subr.mxu0 0.0
    %4265 = vmatpush1.msra.mxu0 %v327
    %4266 = vmatprep.subr.mxu0 0.0
    %4267 = vmatpush1.msra.mxu0 %v324
    %4268 = vmatprep.subr.mxu0 0.0
    %4269 = vmatpush1.msra.mxu0 %v321
    %4270 = vmatprep.subr.mxu0 0.0
    %4271 = vmatpush1.msra.mxu0 %v318
    %4272 = vmatprep.subr.mxu0 0.0
    %4273 = vmatpush1.msra.mxu0 %v315
    %4274 = vmatprep.subr.mxu0 0.0
    %4275 = vmatpush1.msra.mxu0 %v312
    %4276 = vmatprep.subr.mxu0 0.0
    %4277 = vmatpush2.msra.mxu0 0.0
    %4278 = vmatprep.subr.mxu0 0.0
    %4279 = vmatpush2.msra.mxu0 0.0
    %4280 = vmatprep.subr.mxu0 0.0
    %4281 = vmatpush2.msra.mxu0 0.0
    %4282 = vmatprep.subr.mxu0 0.0
    %4283 = vmatpush2.msra.mxu0 0.0
    %4284 = vmatprep.subr.mxu0 0.0
    %4285 = vmatpush2.msra.mxu0 0.0
    %4286 = vmatprep.subr.mxu0 0.0
    %4287 = vmatpush2.msra.mxu0 0.0
    %4288 = vmatprep.subr.mxu0 0.0
    %4289 = vmatpush2.msra.mxu0 0.0
    %4290 = vmatprep.subr.mxu0 0.0
    %4291 = vmatpush2.msra.mxu0 0.0
    %4292 = vmatprep.subr.mxu0 0.0
    %4293 = vmatpush2.msra.mxu0 0.0
    %4294 = vmatprep.subr.mxu0 0.0
    %4295 = vmatpush2.msra.mxu0 0.0
    %4296 = vmatprep.subr.mxu0 0.0
    %4297 = vmatpush2.msra.mxu0 0.0
    %4298 = vmatprep.subr.mxu0 0.0
    %4299 = vmatpush2.msra.mxu0 0.0
    %4300 = vmatprep.subr.mxu0 0.0
    %4301 = vmatpush2.msra.mxu0 0.0
    %4302 = vmatprep.subr.mxu0 0.0
    %4303 = vmatpush2.msra.mxu0 0.0
    %4304 = vmatprep.subr.mxu0 0.0
    %4305 = vmatpush2.msra.mxu0 0.0
    %4306 = vmatprep.subr.mxu0 0.0
    %4307 = vmatpush2.msra.mxu0 0.0
    %4308 = vmatprep.mubr.f32.mxu0 0.0
    %4309 = vmatmul.mubr.f32.gmra.mxu0 %v3723
    %v4310 = vpop.f32.mrf.mxu0
    %v4311 = vadd.f32 0.0, %v4310
    %v4312 = vpop.f32.mrf.mxu0
    %4313 = vdwg.mxu0
    %v4314 = vadd.f32 %v4099, %v4240
    %v4315 = vadd.f32 %v4101, %v4242
    %v4316 = vxor.u32 %v4314, 2147483648
    %v4317 = vxor.u32 %v4315, 2147483648
    %v4318 = vmul.f32 %v4316, 1.442695
    %v4319 = vpow.pop %v4318
    %v4320 = vmul.f32 %v4317, 1.442695
    %v4321 = vpow.pop %v4320
    %v4322 = vadd.f32 %v4319, 1.0
    %v4323 = vadd.f32 %v4321, 1.0
    %v4324 = vrcp.pop %v4322
    %v4325 = vmul.f32 1.0, %v4324
    %v4326 = vrcp.pop %v4323
    %v4327 = vmul.f32 1.0, %v4326
    %v4328 = vadd.f32 %v4311, %v513
    %v4329 = vmul.f32 %v4325, %v4328
    %v4330 = vadd.f32 %v4170, %v4329
    %v4331 = vtanh.pop %v4330
    %v4332 = vsub.f32 1.0, %v4327
    %v4333 = vmul.f32 %v4332, %v4331
    %v4334 = vmul.f32 %v4327, %v3723
    %v4335 = vadd.f32 %v4333, %v4334
    %s4336 = scalar_select %p4030, 1, 0
    %v4337 = vstv %s4336
    %vm4338 = vcmp.eq.s32.totalorder %v4337, 1
    %v4339 = vsel %vm4338, %v4335, %v3723
    %4340 = vmatprep.subr.mxu0 %v573
    %4341 = vmatpush1.msra.mxu0 %v572
    %4342 = vmatprep.subr.mxu0 %v570
    %4343 = vmatpush1.msra.mxu0 %v569
    %4344 = vmatprep.subr.mxu0 %v567
    %4345 = vmatpush1.msra.mxu0 %v566
    %4346 = vmatprep.subr.mxu0 %v564
    %4347 = vmatpush1.msra.mxu0 %v563
    %4348 = vmatprep.subr.mxu0 %v561
    %4349 = vmatpush1.msra.mxu0 %v560
    %4350 = vmatprep.subr.mxu0 %v558
    %4351 = vmatpush1.msra.mxu0 %v557
    %4352 = vmatprep.subr.mxu0 %v555
    %4353 = vmatpush1.msra.mxu0 %v554
    %4354 = vmatprep.subr.mxu0 %v552
    %4355 = vmatpush1.msra.mxu0 %v551
    %4356 = vmatprep.subr.mxu0 %v549
    %4357 = vmatpush1.msra.mxu0 %v548
    %4358 = vmatprep.subr.mxu0 %v546
    %4359 = vmatpush1.msra.mxu0 %v545
    %4360 = vmatprep.subr.mxu0 %v543
    %4361 = vmatpush1.msra.mxu0 %v542
    %4362 = vmatprep.subr.mxu0 %v540
    %4363 = vmatpush1.msra.mxu0 %v539
    %4364 = vmatprep.subr.mxu0 %v537
    %4365 = vmatpush1.msra.mxu0 %v536
    %4366 = vmatprep.subr.mxu0 %v534
    %4367 = vmatpush1.msra.mxu0 %v533
    %4368 = vmatprep.subr.mxu0 %v531
    %4369 = vmatpush1.msra.mxu0 %v530
    %4370 = vmatprep.subr.mxu0 %v528
    %4371 = vmatpush1.msra.mxu0 %v527
    %4372 = vmatprep.subr.mxu0 0.0
    %4373 = vmatpush2.msra.mxu0 0.0
    %4374 = vmatprep.subr.mxu0 0.0
    %4375 = vmatpush2.msra.mxu0 0.0
    %4376 = vmatprep.subr.mxu0 0.0
    %4377 = vmatpush2.msra.mxu0 0.0
    %4378 = vmatprep.subr.mxu0 0.0
    %4379 = vmatpush2.msra.mxu0 0.0
    %4380 = vmatprep.subr.mxu0 0.0
    %4381 = vmatpush2.msra.mxu0 0.0
    %4382 = vmatprep.subr.mxu0 0.0
    %4383 = vmatpush2.msra.mxu0 0.0
    %4384 = vmatprep.subr.mxu0 0.0
    %4385 = vmatpush2.msra.mxu0 0.0
    %4386 = vmatprep.subr.mxu0 0.0
    %4387 = vmatpush2.msra.mxu0 0.0
    %4388 = vmatprep.subr.mxu0 0.0
    %4389 = vmatpush2.msra.mxu0 0.0
    %4390 = vmatprep.subr.mxu0 0.0
    %4391 = vmatpush2.msra.mxu0 0.0
    %4392 = vmatprep.subr.mxu0 0.0
    %4393 = vmatpush2.msra.mxu0 0.0
    %4394 = vmatprep.subr.mxu0 0.0
    %4395 = vmatpush2.msra.mxu0 0.0
    %4396 = vmatprep.subr.mxu0 0.0
    %4397 = vmatpush2.msra.mxu0 0.0
    %4398 = vmatprep.subr.mxu0 0.0
    %4399 = vmatpush2.msra.mxu0 0.0
    %4400 = vmatprep.subr.mxu0 0.0
    %4401 = vmatpush2.msra.mxu0 0.0
    %4402 = vmatprep.subr.mxu0 0.0
    %4403 = vmatpush2.msra.mxu0 0.0
    %4404 = vmatprep.mubr.f32.mxu0 0.0
    %4405 = vmatmul.mubr.f32.gmra.mxu0 %v4339
    %v4406 = vpop.f32.mrf.mxu0
    %v4407 = vadd.f32 %v581, %v4406
    %v4408 = vpop.f32.mrf.mxu0
    %v4409 = vadd.f32 %v585, %v4408
    %4410 = vdwg.mxu0
    %4411 = vmatprep.subr.mxu0 0.0
    %4412 = vmatpush1.msra.mxu0 %v574
    %4413 = vmatprep.subr.mxu0 0.0
    %4414 = vmatpush1.msra.mxu0 %v571
    %4415 = vmatprep.subr.mxu0 0.0
    %4416 = vmatpush1.msra.mxu0 %v568
    %4417 = vmatprep.subr.mxu0 0.0
    %4418 = vmatpush1.msra.mxu0 %v565
    %4419 = vmatprep.subr.mxu0 0.0
    %4420 = vmatpush1.msra.mxu0 %v562
    %4421 = vmatprep.subr.mxu0 0.0
    %4422 = vmatpush1.msra.mxu0 %v559
    %4423 = vmatprep.subr.mxu0 0.0
    %4424 = vmatpush1.msra.mxu0 %v556
    %4425 = vmatprep.subr.mxu0 0.0
    %4426 = vmatpush1.msra.mxu0 %v553
    %4427 = vmatprep.subr.mxu0 0.0
    %4428 = vmatpush1.msra.mxu0 %v550
    %4429 = vmatprep.subr.mxu0 0.0
    %4430 = vmatpush1.msra.mxu0 %v547
    %4431 = vmatprep.subr.mxu0 0.0
    %4432 = vmatpush1.msra.mxu0 %v544
    %4433 = vmatprep.subr.mxu0 0.0
    %4434 = vmatpush1.msra.mxu0 %v541
    %4435 = vmatprep.subr.mxu0 0.0
    %4436 = vmatpush1.msra.mxu0 %v538
    %4437 = vmatprep.subr.mxu0 0.0
    %4438 = vmatpush1.msra.mxu0 %v535
    %4439 = vmatprep.subr.mxu0 0.0
    %4440 = vmatpush1.msra.mxu0 %v532
    %4441 = vmatprep.subr.mxu0 0.0
    %4442 = vmatpush1.msra.mxu0 %v529
    %4443 = vmatprep.subr.mxu0 0.0
    %4444 = vmatpush2.msra.mxu0 0.0
    %4445 = vmatprep.subr.mxu0 0.0
    %4446 = vmatpush2.msra.mxu0 0.0
    %4447 = vmatprep.subr.mxu0 0.0
    %4448 = vmatpush2.msra.mxu0 0.0
    %4449 = vmatprep.subr.mxu0 0.0
    %4450 = vmatpush2.msra.mxu0 0.0
    %4451 = vmatprep.subr.mxu0 0.0
    %4452 = vmatpush2.msra.mxu0 0.0
    %4453 = vmatprep.subr.mxu0 0.0
    %4454 = vmatpush2.msra.mxu0 0.0
    %4455 = vmatprep.subr.mxu0 0.0
    %4456 = vmatpush2.msra.mxu0 0.0
    %4457 = vmatprep.subr.mxu0 0.0
    %4458 = vmatpush2.msra.mxu0 0.0
    %4459 = vmatprep.subr.mxu0 0.0
    %4460 = vmatpush2.msra.mxu0 0.0
    %4461 = vmatprep.subr.mxu0 0.0
    %4462 = vmatpush2.msra.mxu0 0.0
    %4463 = vmatprep.subr.mxu0 0.0
    %4464 = vmatpush2.msra.mxu0 0.0
    %4465 = vmatprep.subr.mxu0 0.0
    %4466 = vmatpush2.msra.mxu0 0.0
    %4467 = vmatprep.subr.mxu0 0.0
    %4468 = vmatpush2.msra.mxu0 0.0
    %4469 = vmatprep.subr.mxu0 0.0
    %4470 = vmatpush2.msra.mxu0 0.0
    %4471 = vmatprep.subr.mxu0 0.0
    %4472 = vmatpush2.msra.mxu0 0.0
    %4473 = vmatprep.subr.mxu0 0.0
    %4474 = vmatpush2.msra.mxu0 0.0
    %4475 = vmatprep.mubr.f32.mxu0 0.0
    %4476 = vmatmul.mubr.f32.gmra.mxu0 %v4339
    %v4477 = vpop.f32.mrf.mxu0
    %v4478 = vadd.f32 %v589, %v4477
    %v4479 = vpop.f32.mrf.mxu0
    %4480 = vdwg.mxu0
    %4481 = vmatprep.subr.mxu0 %v781
    %4482 = vmatpush1.msra.mxu0 %v780
    %4483 = vmatprep.subr.mxu0 %v778
    %4484 = vmatpush1.msra.mxu0 %v777
    %4485 = vmatprep.subr.mxu0 %v775
    %4486 = vmatpush1.msra.mxu0 %v774
    %4487 = vmatprep.subr.mxu0 %v772
    %4488 = vmatpush1.msra.mxu0 %v771
    %4489 = vmatprep.subr.mxu0 %v769
    %4490 = vmatpush1.msra.mxu0 %v768
    %4491 = vmatprep.subr.mxu0 %v766
    %4492 = vmatpush1.msra.mxu0 %v765
    %4493 = vmatprep.subr.mxu0 %v763
    %4494 = vmatpush1.msra.mxu0 %v762
    %4495 = vmatprep.subr.mxu0 %v760
    %4496 = vmatpush1.msra.mxu0 %v759
    %4497 = vmatprep.subr.mxu0 %v757
    %4498 = vmatpush1.msra.mxu0 %v756
    %4499 = vmatprep.subr.mxu0 %v754
    %4500 = vmatpush1.msra.mxu0 %v753
    %4501 = vmatprep.subr.mxu0 %v751
    %4502 = vmatpush1.msra.mxu0 %v750
    %4503 = vmatprep.subr.mxu0 %v748
    %4504 = vmatpush1.msra.mxu0 %v747
    %4505 = vmatprep.subr.mxu0 %v745
    %4506 = vmatpush1.msra.mxu0 %v744
    %4507 = vmatprep.subr.mxu0 %v742
    %4508 = vmatpush1.msra.mxu0 %v741
    %4509 = vmatprep.subr.mxu0 %v739
    %4510 = vmatpush1.msra.mxu0 %v738
    %4511 = vmatprep.subr.mxu0 %v736
    %4512 = vmatpush1.msra.mxu0 %v735
    %4513 = vmatprep.subr.mxu0 0.0
    %4514 = vmatpush2.msra.mxu0 0.0
    %4515 = vmatprep.subr.mxu0 0.0
    %4516 = vmatpush2.msra.mxu0 0.0
    %4517 = vmatprep.subr.mxu0 0.0
    %4518 = vmatpush2.msra.mxu0 0.0
    %4519 = vmatprep.subr.mxu0 0.0
    %4520 = vmatpush2.msra.mxu0 0.0
    %4521 = vmatprep.subr.mxu0 0.0
    %4522 = vmatpush2.msra.mxu0 0.0
    %4523 = vmatprep.subr.mxu0 0.0
    %4524 = vmatpush2.msra.mxu0 0.0
    %4525 = vmatprep.subr.mxu0 0.0
    %4526 = vmatpush2.msra.mxu0 0.0
    %4527 = vmatprep.subr.mxu0 0.0
    %4528 = vmatpush2.msra.mxu0 0.0
    %4529 = vmatprep.subr.mxu0 0.0
    %4530 = vmatpush2.msra.mxu0 0.0
    %4531 = vmatprep.subr.mxu0 0.0
    %4532 = vmatpush2.msra.mxu0 0.0
    %4533 = vmatprep.subr.mxu0 0.0
    %4534 = vmatpush2.msra.mxu0 0.0
    %4535 = vmatprep.subr.mxu0 0.0
    %4536 = vmatpush2.msra.mxu0 0.0
    %4537 = vmatprep.subr.mxu0 0.0
    %4538 = vmatpush2.msra.mxu0 0.0
    %4539 = vmatprep.subr.mxu0 0.0
    %4540 = vmatpush2.msra.mxu0 0.0
    %4541 = vmatprep.subr.mxu0 0.0
    %4542 = vmatpush2.msra.mxu0 0.0
    %4543 = vmatprep.subr.mxu0 0.0
    %4544 = vmatpush2.msra.mxu0 0.0
    %4545 = vmatprep.mubr.f32.mxu0 0.0
    %4546 = vmatmul.mubr.f32.gmra.mxu0 %v4028
    %v4547 = vpop.f32.mrf.mxu0
    %v4548 = vadd.f32 0.0, %v4547
    %v4549 = vpop.f32.mrf.mxu0
    %v4550 = vadd.f32 0.0, %v4549
    %4551 = vdwg.mxu0
    %4552 = vmatprep.subr.mxu0 0.0
    %4553 = vmatpush1.msra.mxu0 %v782
    %4554 = vmatprep.subr.mxu0 0.0
    %4555 = vmatpush1.msra.mxu0 %v779
    %4556 = vmatprep.subr.mxu0 0.0
    %4557 = vmatpush1.msra.mxu0 %v776
    %4558 = vmatprep.subr.mxu0 0.0
    %4559 = vmatpush1.msra.mxu0 %v773
    %4560 = vmatprep.subr.mxu0 0.0
    %4561 = vmatpush1.msra.mxu0 %v770
    %4562 = vmatprep.subr.mxu0 0.0
    %4563 = vmatpush1.msra.mxu0 %v767
    %4564 = vmatprep.subr.mxu0 0.0
    %4565 = vmatpush1.msra.mxu0 %v764
    %4566 = vmatprep.subr.mxu0 0.0
    %4567 = vmatpush1.msra.mxu0 %v761
    %4568 = vmatprep.subr.mxu0 0.0
    %4569 = vmatpush1.msra.mxu0 %v758
    %4570 = vmatprep.subr.mxu0 0.0
    %4571 = vmatpush1.msra.mxu0 %v755
    %4572 = vmatprep.subr.mxu0 0.0
    %4573 = vmatpush1.msra.mxu0 %v752
    %4574 = vmatprep.subr.mxu0 0.0
    %4575 = vmatpush1.msra.mxu0 %v749
    %4576 = vmatprep.subr.mxu0 0.0
    %4577 = vmatpush1.msra.mxu0 %v746
    %4578 = vmatprep.subr.mxu0 0.0
    %4579 = vmatpush1.msra.mxu0 %v743
    %4580 = vmatprep.subr.mxu0 0.0
    %4581 = vmatpush1.msra.mxu0 %v740
    %4582 = vmatprep.subr.mxu0 0.0
    %4583 = vmatpush1.msra.mxu0 %v737
    %4584 = vmatprep.subr.mxu0 0.0
    %4585 = vmatpush2.msra.mxu0 0.0
    %4586 = vmatprep.subr.mxu0 0.0
    %4587 = vmatpush2.msra.mxu0 0.0
    %4588 = vmatprep.subr.mxu0 0.0
    %4589 = vmatpush2.msra.mxu0 0.0
    %4590 = vmatprep.subr.mxu0 0.0
    %4591 = vmatpush2.msra.mxu0 0.0
    %4592 = vmatprep.subr.mxu0 0.0
    %4593 = vmatpush2.msra.mxu0 0.0
    %4594 = vmatprep.subr.mxu0 0.0
    %4595 = vmatpush2.msra.mxu0 0.0
    %4596 = vmatprep.subr.mxu0 0.0
    %4597 = vmatpush2.msra.mxu0 0.0
    %4598 = vmatprep.subr.mxu0 0.0
    %4599 = vmatpush2.msra.mxu0 0.0
    %4600 = vmatprep.subr.mxu0 0.0
    %4601 = vmatpush2.msra.mxu0 0.0
    %4602 = vmatprep.subr.mxu0 0.0
    %4603 = vmatpush2.msra.mxu0 0.0
    %4604 = vmatprep.subr.mxu0 0.0
    %4605 = vmatpush2.msra.mxu0 0.0
    %4606 = vmatprep.subr.mxu0 0.0
    %4607 = vmatpush2.msra.mxu0 0.0
    %4608 = vmatprep.subr.mxu0 0.0
    %4609 = vmatpush2.msra.mxu0 0.0
    %4610 = vmatprep.subr.mxu0 0.0
    %4611 = vmatpush2.msra.mxu0 0.0
    %4612 = vmatprep.subr.mxu0 0.0
    %4613 = vmatpush2.msra.mxu0 0.0
    %4614 = vmatprep.subr.mxu0 0.0
    %4615 = vmatpush2.msra.mxu0 0.0
    %4616 = vmatprep.mubr.f32.mxu0 0.0
    %4617 = vmatmul.mubr.f32.gmra.mxu0 %v4028
    %v4618 = vpop.f32.mrf.mxu0
    %v4619 = vadd.f32 0.0, %v4618
    %v4620 = vpop.f32.mrf.mxu0
    %4621 = vdwg.mxu0
    %v4622 = vadd.f32 %v4407, %v4548
    %v4623 = vadd.f32 %v4409, %v4550
    %v4624 = vxor.u32 %v4622, 2147483648
    %v4625 = vxor.u32 %v4623, 2147483648
    %v4626 = vmul.f32 %v4624, 1.442695
    %v4627 = vpow.pop %v4626
    %v4628 = vmul.f32 %v4625, 1.442695
    %v4629 = vpow.pop %v4628
    %v4630 = vadd.f32 %v4627, 1.0
    %v4631 = vadd.f32 %v4629, 1.0
    %v4632 = vrcp.pop %v4630
    %v4633 = vmul.f32 1.0, %v4632
    %v4634 = vrcp.pop %v4631
    %v4635 = vmul.f32 1.0, %v4634
    %v4636 = vadd.f32 %v4619, %v939
    %v4637 = vmul.f32 %v4633, %v4636
    %v4638 = vadd.f32 %v4478, %v4637
    %v4639 = vtanh.pop %v4638
    %v4640 = vsub.f32 1.0, %v4635
    %v4641 = vmul.f32 %v4640, %v4639
    %v4642 = vmul.f32 %v4635, %v4028
    %v4643 = vadd.f32 %v4641, %v4642
    %v4644 = vsel %vm4338, %v4643, %v4028
    %v4645 = vsel %vm4338, %v4643, 0.0
    %p4646 = scmp.gt.s32.totalorder %s98, 7
    %v4647 = vld [vmem:[#allocation5 + $0x7] sm:$0x1]
    %4648 = vmatprep.subr.mxu0 %v150
    %4649 = vmatpush1.msra.mxu0 %v149
    %4650 = vmatprep.subr.mxu0 %v147
    %4651 = vmatpush1.msra.mxu0 %v146
    %4652 = vmatprep.subr.mxu0 %v144
    %4653 = vmatpush1.msra.mxu0 %v143
    %4654 = vmatprep.subr.mxu0 %v141
    %4655 = vmatpush1.msra.mxu0 %v140
    %4656 = vmatprep.subr.mxu0 %v138
    %4657 = vmatpush1.msra.mxu0 %v137
    %4658 = vmatprep.subr.mxu0 %v135
    %4659 = vmatpush1.msra.mxu0 %v134
    %4660 = vmatprep.subr.mxu0 %v132
    %4661 = vmatpush1.msra.mxu0 %v131
    %4662 = vmatprep.subr.mxu0 %v129
    %4663 = vmatpush1.msra.mxu0 %v128
    %4664 = vmatprep.subr.mxu0 %v126
    %4665 = vmatpush1.msra.mxu0 %v125
    %4666 = vmatprep.subr.mxu0 %v123
    %4667 = vmatpush1.msra.mxu0 %v122
    %4668 = vmatprep.subr.mxu0 %v120
    %4669 = vmatpush1.msra.mxu0 %v119
    %4670 = vmatprep.subr.mxu0 %v117
    %4671 = vmatpush1.msra.mxu0 %v116
    %4672 = vmatprep.subr.mxu0 %v114
    %4673 = vmatpush1.msra.mxu0 %v113
    %4674 = vmatprep.subr.mxu0 %v111
    %4675 = vmatpush1.msra.mxu0 %v110
    %4676 = vmatprep.subr.mxu0 %v108
    %4677 = vmatpush1.msra.mxu0 %v107
    %4678 = vmatprep.subr.mxu0 %v105
    %4679 = vmatpush1.msra.mxu0 %v104
    %4680 = vmatprep.subr.mxu0 0.0
    %4681 = vmatpush2.msra.mxu0 0.0
    %4682 = vmatprep.subr.mxu0 0.0
    %4683 = vmatpush2.msra.mxu0 0.0
    %4684 = vmatprep.subr.mxu0 0.0
    %4685 = vmatpush2.msra.mxu0 0.0
    %4686 = vmatprep.subr.mxu0 0.0
    %4687 = vmatpush2.msra.mxu0 0.0
    %4688 = vmatprep.subr.mxu0 0.0
    %4689 = vmatpush2.msra.mxu0 0.0
    %4690 = vmatprep.subr.mxu0 0.0
    %4691 = vmatpush2.msra.mxu0 0.0
    %4692 = vmatprep.subr.mxu0 0.0
    %4693 = vmatpush2.msra.mxu0 0.0
    %4694 = vmatprep.subr.mxu0 0.0
    %4695 = vmatpush2.msra.mxu0 0.0
    %4696 = vmatprep.subr.mxu0 0.0
    %4697 = vmatpush2.msra.mxu0 0.0
    %4698 = vmatprep.subr.mxu0 0.0
    %4699 = vmatpush2.msra.mxu0 0.0
    %4700 = vmatprep.subr.mxu0 0.0
    %4701 = vmatpush2.msra.mxu0 0.0
    %4702 = vmatprep.subr.mxu0 0.0
    %4703 = vmatpush2.msra.mxu0 0.0
    %4704 = vmatprep.subr.mxu0 0.0
    %4705 = vmatpush2.msra.mxu0 0.0
    %4706 = vmatprep.subr.mxu0 0.0
    %4707 = vmatpush2.msra.mxu0 0.0
    %4708 = vmatprep.subr.mxu0 0.0
    %4709 = vmatpush2.msra.mxu0 0.0
    %4710 = vmatprep.subr.mxu0 0.0
    %4711 = vmatpush2.msra.mxu0 0.0
    %4712 = vmatprep.mubr.f32.mxu0 0.0
    %4713 = vmatmul.mubr.f32.gmra.mxu0 %v4647
    %v4714 = vpop.f32.mrf.mxu0
    %v4715 = vadd.f32 %v157, %v4714
    %v4716 = vpop.f32.mrf.mxu0
    %v4717 = vadd.f32 %v161, %v4716
    %4718 = vdwg.mxu0
    %4719 = vmatprep.subr.mxu0 0.0
    %4720 = vmatpush1.msra.mxu0 %v151
    %4721 = vmatprep.subr.mxu0 0.0
    %4722 = vmatpush1.msra.mxu0 %v148
    %4723 = vmatprep.subr.mxu0 0.0
    %4724 = vmatpush1.msra.mxu0 %v145
    %4725 = vmatprep.subr.mxu0 0.0
    %4726 = vmatpush1.msra.mxu0 %v142
    %4727 = vmatprep.subr.mxu0 0.0
    %4728 = vmatpush1.msra.mxu0 %v139
    %4729 = vmatprep.subr.mxu0 0.0
    %4730 = vmatpush1.msra.mxu0 %v136
    %4731 = vmatprep.subr.mxu0 0.0
    %4732 = vmatpush1.msra.mxu0 %v133
    %4733 = vmatprep.subr.mxu0 0.0
    %4734 = vmatpush1.msra.mxu0 %v130
    %4735 = vmatprep.subr.mxu0 0.0
    %4736 = vmatpush1.msra.mxu0 %v127
    %4737 = vmatprep.subr.mxu0 0.0
    %4738 = vmatpush1.msra.mxu0 %v124
    %4739 = vmatprep.subr.mxu0 0.0
    %4740 = vmatpush1.msra.mxu0 %v121
    %4741 = vmatprep.subr.mxu0 0.0
    %4742 = vmatpush1.msra.mxu0 %v118
    %4743 = vmatprep.subr.mxu0 0.0
    %4744 = vmatpush1.msra.mxu0 %v115
    %4745 = vmatprep.subr.mxu0 0.0
    %4746 = vmatpush1.msra.mxu0 %v112
    %4747 = vmatprep.subr.mxu0 0.0
    %4748 = vmatpush1.msra.mxu0 %v109
    %4749 = vmatprep.subr.mxu0 0.0
    %4750 = vmatpush1.msra.mxu0 %v106
    %4751 = vmatprep.subr.mxu0 0.0
    %4752 = vmatpush2.msra.mxu0 0.0
    %4753 = vmatprep.subr.mxu0 0.0
    %4754 = vmatpush2.msra.mxu0 0.0
    %4755 = vmatprep.subr.mxu0 0.0
    %4756 = vmatpush2.msra.mxu0 0.0
    %4757 = vmatprep.subr.mxu0 0.0
    %4758 = vmatpush2.msra.mxu0 0.0
    %4759 = vmatprep.subr.mxu0 0.0
    %4760 = vmatpush2.msra.mxu0 0.0
    %4761 = vmatprep.subr.mxu0 0.0
    %4762 = vmatpush2.msra.mxu0 0.0
    %4763 = vmatprep.subr.mxu0 0.0
    %4764 = vmatpush2.msra.mxu0 0.0
    %4765 = vmatprep.subr.mxu0 0.0
    %4766 = vmatpush2.msra.mxu0 0.0
    %4767 = vmatprep.subr.mxu0 0.0
    %4768 = vmatpush2.msra.mxu0 0.0
    %4769 = vmatprep.subr.mxu0 0.0
    %4770 = vmatpush2.msra.mxu0 0.0
    %4771 = vmatprep.subr.mxu0 0.0
    %4772 = vmatpush2.msra.mxu0 0.0
    %4773 = vmatprep.subr.mxu0 0.0
    %4774 = vmatpush2.msra.mxu0 0.0
    %4775 = vmatprep.subr.mxu0 0.0
    %4776 = vmatpush2.msra.mxu0 0.0
    %4777 = vmatprep.subr.mxu0 0.0
    %4778 = vmatpush2.msra.mxu0 0.0
    %4779 = vmatprep.subr.mxu0 0.0
    %4780 = vmatpush2.msra.mxu0 0.0
    %4781 = vmatprep.subr.mxu0 0.0
    %4782 = vmatpush2.msra.mxu0 0.0
    %4783 = vmatprep.mubr.f32.mxu0 0.0
    %4784 = vmatmul.mubr.f32.gmra.mxu0 %v4647
    %v4785 = vpop.f32.mrf.mxu0
    %v4786 = vadd.f32 %v165, %v4785
    %v4787 = vpop.f32.mrf.mxu0
    %4788 = vdwg.mxu0
    %4789 = vmatprep.subr.mxu0 %v356
    %4790 = vmatpush1.msra.mxu0 %v355
    %4791 = vmatprep.subr.mxu0 %v353
    %4792 = vmatpush1.msra.mxu0 %v352
    %4793 = vmatprep.subr.mxu0 %v350
    %4794 = vmatpush1.msra.mxu0 %v349
    %4795 = vmatprep.subr.mxu0 %v347
    %4796 = vmatpush1.msra.mxu0 %v346
    %4797 = vmatprep.subr.mxu0 %v344
    %4798 = vmatpush1.msra.mxu0 %v343
    %4799 = vmatprep.subr.mxu0 %v341
    %4800 = vmatpush1.msra.mxu0 %v340
    %4801 = vmatprep.subr.mxu0 %v338
    %4802 = vmatpush1.msra.mxu0 %v337
    %4803 = vmatprep.subr.mxu0 %v335
    %4804 = vmatpush1.msra.mxu0 %v334
    %4805 = vmatprep.subr.mxu0 %v332
    %4806 = vmatpush1.msra.mxu0 %v331
    %4807 = vmatprep.subr.mxu0 %v329
    %4808 = vmatpush1.msra.mxu0 %v328
    %4809 = vmatprep.subr.mxu0 %v326
    %4810 = vmatpush1.msra.mxu0 %v325
    %4811 = vmatprep.subr.mxu0 %v323
    %4812 = vmatpush1.msra.mxu0 %v322
    %4813 = vmatprep.subr.mxu0 %v320
    %4814 = vmatpush1.msra.mxu0 %v319
    %4815 = vmatprep.subr.mxu0 %v317
    %4816 = vmatpush1.msra.mxu0 %v316
    %4817 = vmatprep.subr.mxu0 %v314
    %4818 = vmatpush1.msra.mxu0 %v313
    %4819 = vmatprep.subr.mxu0 %v311
    %4820 = vmatpush1.msra.mxu0 %v310
    %4821 = vmatprep.subr.mxu0 0.0
    %4822 = vmatpush2.msra.mxu0 0.0
    %4823 = vmatprep.subr.mxu0 0.0
    %4824 = vmatpush2.msra.mxu0 0.0
    %4825 = vmatprep.subr.mxu0 0.0
    %4826 = vmatpush2.msra.mxu0 0.0
    %4827 = vmatprep.subr.mxu0 0.0
    %4828 = vmatpush2.msra.mxu0 0.0
    %4829 = vmatprep.subr.mxu0 0.0
    %4830 = vmatpush2.msra.mxu0 0.0
    %4831 = vmatprep.subr.mxu0 0.0
    %4832 = vmatpush2.msra.mxu0 0.0
    %4833 = vmatprep.subr.mxu0 0.0
    %4834 = vmatpush2.msra.mxu0 0.0
    %4835 = vmatprep.subr.mxu0 0.0
    %4836 = vmatpush2.msra.mxu0 0.0
    %4837 = vmatprep.subr.mxu0 0.0
    %4838 = vmatpush2.msra.mxu0 0.0
    %4839 = vmatprep.subr.mxu0 0.0
    %4840 = vmatpush2.msra.mxu0 0.0
    %4841 = vmatprep.subr.mxu0 0.0
    %4842 = vmatpush2.msra.mxu0 0.0
    %4843 = vmatprep.subr.mxu0 0.0
    %4844 = vmatpush2.msra.mxu0 0.0
    %4845 = vmatprep.subr.mxu0 0.0
    %4846 = vmatpush2.msra.mxu0 0.0
    %4847 = vmatprep.subr.mxu0 0.0
    %4848 = vmatpush2.msra.mxu0 0.0
    %4849 = vmatprep.subr.mxu0 0.0
    %4850 = vmatpush2.msra.mxu0 0.0
    %4851 = vmatprep.subr.mxu0 0.0
    %4852 = vmatpush2.msra.mxu0 0.0
    %4853 = vmatprep.mubr.f32.mxu0 0.0
    %4854 = vmatmul.mubr.f32.gmra.mxu0 %v4339
    %v4855 = vpop.f32.mrf.mxu0
    %v4856 = vadd.f32 0.0, %v4855
    %v4857 = vpop.f32.mrf.mxu0
    %v4858 = vadd.f32 0.0, %v4857
    %4859 = vdwg.mxu0
    %4860 = vmatprep.subr.mxu0 0.0
    %4861 = vmatpush1.msra.mxu0 %v357
    %4862 = vmatprep.subr.mxu0 0.0
    %4863 = vmatpush1.msra.mxu0 %v354
    %4864 = vmatprep.subr.mxu0 0.0
    %4865 = vmatpush1.msra.mxu0 %v351
    %4866 = vmatprep.subr.mxu0 0.0
    %4867 = vmatpush1.msra.mxu0 %v348
    %4868 = vmatprep.subr.mxu0 0.0
    %4869 = vmatpush1.msra.mxu0 %v345
    %4870 = vmatprep.subr.mxu0 0.0
    %4871 = vmatpush1.msra.mxu0 %v342
    %4872 = vmatprep.subr.mxu0 0.0
    %4873 = vmatpush1.msra.mxu0 %v339
    %4874 = vmatprep.subr.mxu0 0.0
    %4875 = vmatpush1.msra.mxu0 %v336
    %4876 = vmatprep.subr.mxu0 0.0
    %4877 = vmatpush1.msra.mxu0 %v333
    %4878 = vmatprep.subr.mxu0 0.0
    %4879 = vmatpush1.msra.mxu0 %v330
    %4880 = vmatprep.subr.mxu0 0.0
    %4881 = vmatpush1.msra.mxu0 %v327
    %4882 = vmatprep.subr.mxu0 0.0
    %4883 = vmatpush1.msra.mxu0 %v324
    %4884 = vmatprep.subr.mxu0 0.0
    %4885 = vmatpush1.msra.mxu0 %v321
    %4886 = vmatprep.subr.mxu0 0.0
    %4887 = vmatpush1.msra.mxu0 %v318
    %4888 = vmatprep.subr.mxu0 0.0
    %4889 = vmatpush1.msra.mxu0 %v315
    %4890 = vmatprep.subr.mxu0 0.0
    %4891 = vmatpush1.msra.mxu0 %v312
    %4892 = vmatprep.subr.mxu0 0.0
    %4893 = vmatpush2.msra.mxu0 0.0
    %4894 = vmatprep.subr.mxu0 0.0
    %4895 = vmatpush2.msra.mxu0 0.0
    %4896 = vmatprep.subr.mxu0 0.0
    %4897 = vmatpush2.msra.mxu0 0.0
    %4898 = vmatprep.subr.mxu0 0.0
    %4899 = vmatpush2.msra.mxu0 0.0
    %4900 = vmatprep.subr.mxu0 0.0
    %4901 = vmatpush2.msra.mxu0 0.0
    %4902 = vmatprep.subr.mxu0 0.0
    %4903 = vmatpush2.msra.mxu0 0.0
    %4904 = vmatprep.subr.mxu0 0.0
    %4905 = vmatpush2.msra.mxu0 0.0
    %4906 = vmatprep.subr.mxu0 0.0
    %4907 = vmatpush2.msra.mxu0 0.0
    %4908 = vmatprep.subr.mxu0 0.0
    %4909 = vmatpush2.msra.mxu0 0.0
    %4910 = vmatprep.subr.mxu0 0.0
    %4911 = vmatpush2.msra.mxu0 0.0
    %4912 = vmatprep.subr.mxu0 0.0
    %4913 = vmatpush2.msra.mxu0 0.0
    %4914 = vmatprep.subr.mxu0 0.0
    %4915 = vmatpush2.msra.mxu0 0.0
    %4916 = vmatprep.subr.mxu0 0.0
    %4917 = vmatpush2.msra.mxu0 0.0
    %4918 = vmatprep.subr.mxu0 0.0
    %4919 = vmatpush2.msra.mxu0 0.0
    %4920 = vmatprep.subr.mxu0 0.0
    %4921 = vmatpush2.msra.mxu0 0.0
    %4922 = vmatprep.subr.mxu0 0.0
    %4923 = vmatpush2.msra.mxu0 0.0
    %4924 = vmatprep.mubr.f32.mxu0 0.0
    %4925 = vmatmul.mubr.f32.gmra.mxu0 %v4339
    %v4926 = vpop.f32.mrf.mxu0
    %v4927 = vadd.f32 0.0, %v4926
    %v4928 = vpop.f32.mrf.mxu0
    %4929 = vdwg.mxu0
    %v4930 = vadd.f32 %v4715, %v4856
    %v4931 = vadd.f32 %v4717, %v4858
    %v4932 = vxor.u32 %v4930, 2147483648
    %v4933 = vxor.u32 %v4931, 2147483648
    %v4934 = vmul.f32 %v4932, 1.442695
    %v4935 = vpow.pop %v4934
    %v4936 = vmul.f32 %v4933, 1.442695
    %v4937 = vpow.pop %v4936
    %v4938 = vadd.f32 %v4935, 1.0
    %v4939 = vadd.f32 %v4937, 1.0
    %v4940 = vrcp.pop %v4938
    %v4941 = vmul.f32 1.0, %v4940
    %v4942 = vrcp.pop %v4939
    %v4943 = vmul.f32 1.0, %v4942
    %v4944 = vadd.f32 %v4927, %v513
    %v4945 = vmul.f32 %v4941, %v4944
    %v4946 = vadd.f32 %v4786, %v4945
    %v4947 = vtanh.pop %v4946
    %v4948 = vsub.f32 1.0, %v4943
    %v4949 = vmul.f32 %v4948, %v4947
    %v4950 = vmul.f32 %v4943, %v4339
    %v4951 = vadd.f32 %v4949, %v4950
    %s4952 = scalar_select %p4646, 1, 0
    %v4953 = vstv %s4952
    %vm4954 = vcmp.eq.s32.totalorder %v4953, 1
    %v4955 = vsel %vm4954, %v4951, %v4339
    %4956 = vmatprep.subr.mxu0 %v573
    %4957 = vmatpush1.msra.mxu0 %v572
    %4958 = vmatprep.subr.mxu0 %v570
    %4959 = vmatpush1.msra.mxu0 %v569
    %4960 = vmatprep.subr.mxu0 %v567
    %4961 = vmatpush1.msra.mxu0 %v566
    %4962 = vmatprep.subr.mxu0 %v564
    %4963 = vmatpush1.msra.mxu0 %v563
    %4964 = vmatprep.subr.mxu0 %v561
    %4965 = vmatpush1.msra.mxu0 %v560
    %4966 = vmatprep.subr.mxu0 %v558
    %4967 = vmatpush1.msra.mxu0 %v557
    %4968 = vmatprep.subr.mxu0 %v555
    %4969 = vmatpush1.msra.mxu0 %v554
    %4970 = vmatprep.subr.mxu0 %v552
    %4971 = vmatpush1.msra.mxu0 %v551
    %4972 = vmatprep.subr.mxu0 %v549
    %4973 = vmatpush1.msra.mxu0 %v548
    %4974 = vmatprep.subr.mxu0 %v546
    %4975 = vmatpush1.msra.mxu0 %v545
    %4976 = vmatprep.subr.mxu0 %v543
    %4977 = vmatpush1.msra.mxu0 %v542
    %4978 = vmatprep.subr.mxu0 %v540
    %4979 = vmatpush1.msra.mxu0 %v539
    %4980 = vmatprep.subr.mxu0 %v537
    %4981 = vmatpush1.msra.mxu0 %v536
    %4982 = vmatprep.subr.mxu0 %v534
    %4983 = vmatpush1.msra.mxu0 %v533
    %4984 = vmatprep.subr.mxu0 %v531
    %4985 = vmatpush1.msra.mxu0 %v530
    %4986 = vmatprep.subr.mxu0 %v528
    %4987 = vmatpush1.msra.mxu0 %v527
    %4988 = vmatprep.subr.mxu0 0.0
    %4989 = vmatpush2.msra.mxu0 0.0
    %4990 = vmatprep.subr.mxu0 0.0
    %4991 = vmatpush2.msra.mxu0 0.0
    %4992 = vmatprep.subr.mxu0 0.0
    %4993 = vmatpush2.msra.mxu0 0.0
    %4994 = vmatprep.subr.mxu0 0.0
    %4995 = vmatpush2.msra.mxu0 0.0
    %4996 = vmatprep.subr.mxu0 0.0
    %4997 = vmatpush2.msra.mxu0 0.0
    %4998 = vmatprep.subr.mxu0 0.0
    %4999 = vmatpush2.msra.mxu0 0.0
    %5000 = vmatprep.subr.mxu0 0.0
    %5001 = vmatpush2.msra.mxu0 0.0
    %5002 = vmatprep.subr.mxu0 0.0
    %5003 = vmatpush2.msra.mxu0 0.0
    %5004 = vmatprep.subr.mxu0 0.0
    %5005 = vmatpush2.msra.mxu0 0.0
    %5006 = vmatprep.subr.mxu0 0.0
    %5007 = vmatpush2.msra.mxu0 0.0
    %5008 = vmatprep.subr.mxu0 0.0
    %5009 = vmatpush2.msra.mxu0 0.0
    %5010 = vmatprep.subr.mxu0 0.0
    %5011 = vmatpush2.msra.mxu0 0.0
    %5012 = vmatprep.subr.mxu0 0.0
    %5013 = vmatpush2.msra.mxu0 0.0
    %5014 = vmatprep.subr.mxu0 0.0
    %5015 = vmatpush2.msra.mxu0 0.0
    %5016 = vmatprep.subr.mxu0 0.0
    %5017 = vmatpush2.msra.mxu0 0.0
    %5018 = vmatprep.subr.mxu0 0.0
    %5019 = vmatpush2.msra.mxu0 0.0
    %5020 = vmatprep.mubr.f32.mxu0 0.0
    %5021 = vmatmul.mubr.f32.gmra.mxu0 %v4955
    %v5022 = vpop.f32.mrf.mxu0
    %v5023 = vadd.f32 %v581, %v5022
    %v5024 = vpop.f32.mrf.mxu0
    %v5025 = vadd.f32 %v585, %v5024
    %5026 = vdwg.mxu0
    %5027 = vmatprep.subr.mxu0 0.0
    %5028 = vmatpush1.msra.mxu0 %v574
    %5029 = vmatprep.subr.mxu0 0.0
    %5030 = vmatpush1.msra.mxu0 %v571
    %5031 = vmatprep.subr.mxu0 0.0
    %5032 = vmatpush1.msra.mxu0 %v568
    %5033 = vmatprep.subr.mxu0 0.0
    %5034 = vmatpush1.msra.mxu0 %v565
    %5035 = vmatprep.subr.mxu0 0.0
    %5036 = vmatpush1.msra.mxu0 %v562
    %5037 = vmatprep.subr.mxu0 0.0
    %5038 = vmatpush1.msra.mxu0 %v559
    %5039 = vmatprep.subr.mxu0 0.0
    %5040 = vmatpush1.msra.mxu0 %v556
    %5041 = vmatprep.subr.mxu0 0.0
    %5042 = vmatpush1.msra.mxu0 %v553
    %5043 = vmatprep.subr.mxu0 0.0
    %5044 = vmatpush1.msra.mxu0 %v550
    %5045 = vmatprep.subr.mxu0 0.0
    %5046 = vmatpush1.msra.mxu0 %v547
    %5047 = vmatprep.subr.mxu0 0.0
    %5048 = vmatpush1.msra.mxu0 %v544
    %5049 = vmatprep.subr.mxu0 0.0
    %5050 = vmatpush1.msra.mxu0 %v541
    %5051 = vmatprep.subr.mxu0 0.0
    %5052 = vmatpush1.msra.mxu0 %v538
    %5053 = vmatprep.subr.mxu0 0.0
    %5054 = vmatpush1.msra.mxu0 %v535
    %5055 = vmatprep.subr.mxu0 0.0
    %5056 = vmatpush1.msra.mxu0 %v532
    %5057 = vmatprep.subr.mxu0 0.0
    %5058 = vmatpush1.msra.mxu0 %v529
    %5059 = vmatprep.subr.mxu0 0.0
    %5060 = vmatpush2.msra.mxu0 0.0
    %5061 = vmatprep.subr.mxu0 0.0
    %5062 = vmatpush2.msra.mxu0 0.0
    %5063 = vmatprep.subr.mxu0 0.0
    %5064 = vmatpush2.msra.mxu0 0.0
    %5065 = vmatprep.subr.mxu0 0.0
    %5066 = vmatpush2.msra.mxu0 0.0
    %5067 = vmatprep.subr.mxu0 0.0
    %5068 = vmatpush2.msra.mxu0 0.0
    %5069 = vmatprep.subr.mxu0 0.0
    %5070 = vmatpush2.msra.mxu0 0.0
    %5071 = vmatprep.subr.mxu0 0.0
    %5072 = vmatpush2.msra.mxu0 0.0
    %5073 = vmatprep.subr.mxu0 0.0
    %5074 = vmatpush2.msra.mxu0 0.0
    %5075 = vmatprep.subr.mxu0 0.0
    %5076 = vmatpush2.msra.mxu0 0.0
    %5077 = vmatprep.subr.mxu0 0.0
    %5078 = vmatpush2.msra.mxu0 0.0
    %5079 = vmatprep.subr.mxu0 0.0
    %5080 = vmatpush2.msra.mxu0 0.0
    %5081 = vmatprep.subr.mxu0 0.0
    %5082 = vmatpush2.msra.mxu0 0.0
    %5083 = vmatprep.subr.mxu0 0.0
    %5084 = vmatpush2.msra.mxu0 0.0
    %5085 = vmatprep.subr.mxu0 0.0
    %5086 = vmatpush2.msra.mxu0 0.0
    %5087 = vmatprep.subr.mxu0 0.0
    %5088 = vmatpush2.msra.mxu0 0.0
    %5089 = vmatprep.subr.mxu0 0.0
    %5090 = vmatpush2.msra.mxu0 0.0
    %5091 = vmatprep.mubr.f32.mxu0 0.0
    %5092 = vmatmul.mubr.f32.gmra.mxu0 %v4955
    %v5093 = vpop.f32.mrf.mxu0
    %v5094 = vadd.f32 %v589, %v5093
    %v5095 = vpop.f32.mrf.mxu0
    %5096 = vdwg.mxu0
    %5097 = vmatprep.subr.mxu0 %v781
    %5098 = vmatpush1.msra.mxu0 %v780
    %5099 = vmatprep.subr.mxu0 %v778
    %5100 = vmatpush1.msra.mxu0 %v777
    %5101 = vmatprep.subr.mxu0 %v775
    %5102 = vmatpush1.msra.mxu0 %v774
    %5103 = vmatprep.subr.mxu0 %v772
    %5104 = vmatpush1.msra.mxu0 %v771
    %5105 = vmatprep.subr.mxu0 %v769
    %5106 = vmatpush1.msra.mxu0 %v768
    %5107 = vmatprep.subr.mxu0 %v766
    %5108 = vmatpush1.msra.mxu0 %v765
    %5109 = vmatprep.subr.mxu0 %v763
    %5110 = vmatpush1.msra.mxu0 %v762
    %5111 = vmatprep.subr.mxu0 %v760
    %5112 = vmatpush1.msra.mxu0 %v759
    %5113 = vmatprep.subr.mxu0 %v757
    %5114 = vmatpush1.msra.mxu0 %v756
    %5115 = vmatprep.subr.mxu0 %v754
    %5116 = vmatpush1.msra.mxu0 %v753
    %5117 = vmatprep.subr.mxu0 %v751
    %5118 = vmatpush1.msra.mxu0 %v750
    %5119 = vmatprep.subr.mxu0 %v748
    %5120 = vmatpush1.msra.mxu0 %v747
    %5121 = vmatprep.subr.mxu0 %v745
    %5122 = vmatpush1.msra.mxu0 %v744
    %5123 = vmatprep.subr.mxu0 %v742
    %5124 = vmatpush1.msra.mxu0 %v741
    %5125 = vmatprep.subr.mxu0 %v739
    %5126 = vmatpush1.msra.mxu0 %v738
    %5127 = vmatprep.subr.mxu0 %v736
    %5128 = vmatpush1.msra.mxu0 %v735
    %5129 = vmatprep.subr.mxu0 0.0
    %5130 = vmatpush2.msra.mxu0 0.0
    %5131 = vmatprep.subr.mxu0 0.0
    %5132 = vmatpush2.msra.mxu0 0.0
    %5133 = vmatprep.subr.mxu0 0.0
    %5134 = vmatpush2.msra.mxu0 0.0
    %5135 = vmatprep.subr.mxu0 0.0
    %5136 = vmatpush2.msra.mxu0 0.0
    %5137 = vmatprep.subr.mxu0 0.0
    %5138 = vmatpush2.msra.mxu0 0.0
    %5139 = vmatprep.subr.mxu0 0.0
    %5140 = vmatpush2.msra.mxu0 0.0
    %5141 = vmatprep.subr.mxu0 0.0
    %5142 = vmatpush2.msra.mxu0 0.0
    %5143 = vmatprep.subr.mxu0 0.0
    %5144 = vmatpush2.msra.mxu0 0.0
    %5145 = vmatprep.subr.mxu0 0.0
    %5146 = vmatpush2.msra.mxu0 0.0
    %5147 = vmatprep.subr.mxu0 0.0
    %5148 = vmatpush2.msra.mxu0 0.0
    %5149 = vmatprep.subr.mxu0 0.0
    %5150 = vmatpush2.msra.mxu0 0.0
    %5151 = vmatprep.subr.mxu0 0.0
    %5152 = vmatpush2.msra.mxu0 0.0
    %5153 = vmatprep.subr.mxu0 0.0
    %5154 = vmatpush2.msra.mxu0 0.0
    %5155 = vmatprep.subr.mxu0 0.0
    %5156 = vmatpush2.msra.mxu0 0.0
    %5157 = vmatprep.subr.mxu0 0.0
    %5158 = vmatpush2.msra.mxu0 0.0
    %5159 = vmatprep.subr.mxu0 0.0
    %5160 = vmatpush2.msra.mxu0 0.0
    %5161 = vmatprep.mubr.f32.mxu0 0.0
    %5162 = vmatmul.mubr.f32.gmra.mxu0 %v4644
    %v5163 = vpop.f32.mrf.mxu0
    %v5164 = vadd.f32 0.0, %v5163
    %v5165 = vpop.f32.mrf.mxu0
    %v5166 = vadd.f32 0.0, %v5165
    %5167 = vdwg.mxu0
    %5168 = vmatprep.subr.mxu0 0.0
    %5169 = vmatpush1.msra.mxu0 %v782
    %5170 = vmatprep.subr.mxu0 0.0
    %5171 = vmatpush1.msra.mxu0 %v779
    %5172 = vmatprep.subr.mxu0 0.0
    %5173 = vmatpush1.msra.mxu0 %v776
    %5174 = vmatprep.subr.mxu0 0.0
    %5175 = vmatpush1.msra.mxu0 %v773
    %5176 = vmatprep.subr.mxu0 0.0
    %5177 = vmatpush1.msra.mxu0 %v770
    %5178 = vmatprep.subr.mxu0 0.0
    %5179 = vmatpush1.msra.mxu0 %v767
    %5180 = vmatprep.subr.mxu0 0.0
    %5181 = vmatpush1.msra.mxu0 %v764
    %5182 = vmatprep.subr.mxu0 0.0
    %5183 = vmatpush1.msra.mxu0 %v761
    %5184 = vmatprep.subr.mxu0 0.0
    %5185 = vmatpush1.msra.mxu0 %v758
    %5186 = vmatprep.subr.mxu0 0.0
    %5187 = vmatpush1.msra.mxu0 %v755
    %5188 = vmatprep.subr.mxu0 0.0
    %5189 = vmatpush1.msra.mxu0 %v752
    %5190 = vmatprep.subr.mxu0 0.0
    %5191 = vmatpush1.msra.mxu0 %v749
    %5192 = vmatprep.subr.mxu0 0.0
    %5193 = vmatpush1.msra.mxu0 %v746
    %5194 = vmatprep.subr.mxu0 0.0
    %5195 = vmatpush1.msra.mxu0 %v743
    %5196 = vmatprep.subr.mxu0 0.0
    %5197 = vmatpush1.msra.mxu0 %v740
    %5198 = vmatprep.subr.mxu0 0.0
    %5199 = vmatpush1.msra.mxu0 %v737
    %5200 = vmatprep.subr.mxu0 0.0
    %5201 = vmatpush2.msra.mxu0 0.0
    %5202 = vmatprep.subr.mxu0 0.0
    %5203 = vmatpush2.msra.mxu0 0.0
    %5204 = vmatprep.subr.mxu0 0.0
    %5205 = vmatpush2.msra.mxu0 0.0
    %5206 = vmatprep.subr.mxu0 0.0
    %5207 = vmatpush2.msra.mxu0 0.0
    %5208 = vmatprep.subr.mxu0 0.0
    %5209 = vmatpush2.msra.mxu0 0.0
    %5210 = vmatprep.subr.mxu0 0.0
    %5211 = vmatpush2.msra.mxu0 0.0
    %5212 = vmatprep.subr.mxu0 0.0
    %5213 = vmatpush2.msra.mxu0 0.0
    %5214 = vmatprep.subr.mxu0 0.0
    %5215 = vmatpush2.msra.mxu0 0.0
    %5216 = vmatprep.subr.mxu0 0.0
    %5217 = vmatpush2.msra.mxu0 0.0
    %5218 = vmatprep.subr.mxu0 0.0
    %5219 = vmatpush2.msra.mxu0 0.0
    %5220 = vmatprep.subr.mxu0 0.0
    %5221 = vmatpush2.msra.mxu0 0.0
    %5222 = vmatprep.subr.mxu0 0.0
    %5223 = vmatpush2.msra.mxu0 0.0
    %5224 = vmatprep.subr.mxu0 0.0
    %5225 = vmatpush2.msra.mxu0 0.0
    %5226 = vmatprep.subr.mxu0 0.0
    %5227 = vmatpush2.msra.mxu0 0.0
    %5228 = vmatprep.subr.mxu0 0.0
    %5229 = vmatpush2.msra.mxu0 0.0
    %5230 = vmatprep.subr.mxu0 0.0
    %5231 = vmatpush2.msra.mxu0 0.0
    %5232 = vmatprep.mubr.f32.mxu0 0.0
    %5233 = vmatmul.mubr.f32.gmra.mxu0 %v4644
    %v5234 = vpop.f32.mrf.mxu0
    %v5235 = vadd.f32 0.0, %v5234
    %v5236 = vpop.f32.mrf.mxu0
    %5237 = vdwg.mxu0
    %v5238 = vadd.f32 %v5023, %v5164
    %v5239 = vadd.f32 %v5025, %v5166
    %v5240 = vxor.u32 %v5238, 2147483648
    %v5241 = vxor.u32 %v5239, 2147483648
    %v5242 = vmul.f32 %v5240, 1.442695
    %v5243 = vpow.pop %v5242
    %v5244 = vmul.f32 %v5241, 1.442695
    %v5245 = vpow.pop %v5244
    %v5246 = vadd.f32 %v5243, 1.0
    %v5247 = vadd.f32 %v5245, 1.0
    %v5248 = vrcp.pop %v5246
    %v5249 = vmul.f32 1.0, %v5248
    %v5250 = vrcp.pop %v5247
    %v5251 = vmul.f32 1.0, %v5250
    %v5252 = vadd.f32 %v5235, %v939
    %v5253 = vmul.f32 %v5249, %v5252
    %v5254 = vadd.f32 %v5094, %v5253
    %v5255 = vtanh.pop %v5254
    %v5256 = vsub.f32 1.0, %v5251
    %v5257 = vmul.f32 %v5256, %v5255
    %v5258 = vmul.f32 %v5251, %v4644
    %v5259 = vadd.f32 %v5257, %v5258
    %v5260 = vsel %vm4954, %v5259, %v4644
    %v5261 = vsel %vm4954, %v5259, 0.0
    %5262 = vst [vmem:[#allocation2] sm:$0x1] %v4955
    %5263 = vst [vmem:[%s100] sm:$0x1] %v5260
    %v5265 = vrot.slane %v1565, 7
    %v5268 = vrot.slane %v2181, 6
    %v5271 = vrot.slane %v2797, 5
    %v5274 = vrot.slane %v3413, 4
    %v5277 = vrot.slane %v4029, 3
    %v5280 = vrot.slane %v4645, 2
    %v5283 = vrot.slane %v5261, 1
    %vm5285 = vcmask 1040384
    %v5286 = vsel %vm5285, %v949, %v5265
    %vm5287 = vcmask 1041408
    %v5288 = vsel %vm5287, %v5286, %v5268
    %vm5289 = vcmask 1042432
    %v5290 = vsel %vm5289, %v5288, %v5271
    %vm5291 = vcmask 1043456
    %v5292 = vsel %vm5291, %v5290, %v5274
    %vm5293 = vcmask 1044480
    %v5294 = vsel %vm5293, %v5292, %v5277
    %vm5295 = vcmask 1045504
    %v5296 = vsel %vm5295, %v5294, %v5280
    %vm5297 = vcmask 1046528
    %v5298 = vsel %vm5297, %v5296, %v5283
    %v5299 = vld [vmem:[#allocation11] sm:$0xff]
    %v5300 = vld [vmem:[#allocation11 + $0x8] sm:$0xff]
    %v5301 = vld [vmem:[#allocation11 + $0x10] sm:$0xff]
    %v5302 = vld [vmem:[#allocation11 + $0x18] sm:$0xff]
    %v5303 = vld [vmem:[#allocation11 + $0x20] sm:$0xff]
    %v5304 = vld [vmem:[#allocation11 + $0x28] sm:$0xff]
    %v5305 = vld [vmem:[#allocation11 + $0x30] sm:$0xff]
    %v5306 = vld [vmem:[#allocation11 + $0x38] sm:$0xff]
    %v5307 = vld [vmem:[#allocation11 + $0x40] sm:$0xff]
    %v5308 = vld [vmem:[#allocation11 + $0x48] sm:$0xff]
    %v5309 = vld [vmem:[#allocation11 + $0x50] sm:$0xff]
    %v5310 = vld [vmem:[#allocation11 + $0x58] sm:$0xff]
    %v5311 = vld [vmem:[#allocation11 + $0x60] sm:$0xff]
    %v5312 = vld [vmem:[#allocation11 + $0x68] sm:$0xff]
    %v5313 = vld [vmem:[#allocation11 + $0x70] sm:$0xff]
    %v5314 = vld [vmem:[#allocation11 + $0x78] sm:$0xff]
    %v5315 = vld [vmem:[%s7] sm:$0x1]
    %v5317 = vlaneseq
    %v5318 = vshrl.u32 %v5317, 7
    %v5319 = vsub.s32 0, %v5318
    %v5320 = vrot.slane %v5315, %v5319
    %5322 = vmatprep.subr.mxu0 0.0
    %5323 = vmatpush1.msra.mxu0 %v5314
    %5324 = vmatprep.subr.mxu0 0.0
    %5325 = vmatpush1.msra.mxu0 %v5313
    %5326 = vmatprep.subr.mxu0 0.0
    %5327 = vmatpush1.msra.mxu0 %v5312
    %5328 = vmatprep.subr.mxu0 0.0
    %5329 = vmatpush1.msra.mxu0 %v5311
    %5330 = vmatprep.subr.mxu0 0.0
    %5331 = vmatpush1.msra.mxu0 %v5310
    %5332 = vmatprep.subr.mxu0 0.0
    %5333 = vmatpush1.msra.mxu0 %v5309
    %5334 = vmatprep.subr.mxu0 0.0
    %5335 = vmatpush1.msra.mxu0 %v5308
    %5336 = vmatprep.subr.mxu0 0.0
    %5337 = vmatpush1.msra.mxu0 %v5307
    %5338 = vmatprep.subr.mxu0 0.0
    %5339 = vmatpush1.msra.mxu0 %v5306
    %5340 = vmatprep.subr.mxu0 0.0
    %5341 = vmatpush1.msra.mxu0 %v5305
    %5342 = vmatprep.subr.mxu0 0.0
    %5343 = vmatpush1.msra.mxu0 %v5304
    %5344 = vmatprep.subr.mxu0 0.0
    %5345 = vmatpush1.msra.mxu0 %v5303
    %5346 = vmatprep.subr.mxu0 0.0
    %5347 = vmatpush1.msra.mxu0 %v5302
    %5348 = vmatprep.subr.mxu0 0.0
    %5349 = vmatpush1.msra.mxu0 %v5301
    %5350 = vmatprep.subr.mxu0 0.0
    %5351 = vmatpush1.msra.mxu0 %v5300
    %5352 = vmatprep.subr.mxu0 0.0
    %5353 = vmatpush1.msra.mxu0 %v5299
    %5354 = vmatprep.subr.mxu0 0.0
    %5355 = vmatpush2.msra.mxu0 0.0
    %5356 = vmatprep.subr.mxu0 0.0
    %5357 = vmatpush2.msra.mxu0 0.0
    %5358 = vmatprep.subr.mxu0 0.0
    %5359 = vmatpush2.msra.mxu0 0.0
    %5360 = vmatprep.subr.mxu0 0.0
    %5361 = vmatpush2.msra.mxu0 0.0
    %5362 = vmatprep.subr.mxu0 0.0
    %5363 = vmatpush2.msra.mxu0 0.0
    %5364 = vmatprep.subr.mxu0 0.0
    %5365 = vmatpush2.msra.mxu0 0.0
    %5366 = vmatprep.subr.mxu0 0.0
    %5367 = vmatpush2.msra.mxu0 0.0
    %5368 = vmatprep.subr.mxu0 0.0
    %5369 = vmatpush2.msra.mxu0 0.0
    %5370 = vmatprep.subr.mxu0 0.0
    %5371 = vmatpush2.msra.mxu0 0.0
    %5372 = vmatprep.subr.mxu0 0.0
    %5373 = vmatpush2.msra.mxu0 0.0
    %5374 = vmatprep.subr.mxu0 0.0
    %5375 = vmatpush2.msra.mxu0 0.0
    %5376 = vmatprep.subr.mxu0 0.0
    %5377 = vmatpush2.msra.mxu0 0.0
    %5378 = vmatprep.subr.mxu0 0.0
    %5379 = vmatpush2.msra.mxu0 0.0
    %5380 = vmatprep.subr.mxu0 0.0
    %5381 = vmatpush2.msra.mxu0 0.0
    %5382 = vmatprep.subr.mxu0 0.0
    %5383 = vmatpush2.msra.mxu0 0.0
    %5384 = vmatprep.subr.mxu0 0.0
    %5385 = vmatpush2.msra.mxu0 0.0
    %5386 = vmatprep.mubr.f32.mxu0 0.0
    %5387 = vmatmul.mubr.f32.gmra.mxu0 %v5298
    %v5388 = vpop.f32.mrf.mxu0
    %v5389 = vadd.f32 %v5320, %v5388
    %v5390 = vpop.f32.mrf.mxu0
    %5391 = vdwg.mxu0
    %v5392 = vlaneseq
    %v5393 = vshrl.u32 %v5392, 7
    %v5394 = vstv %s98
    %vm5395 = vcmp.lt.s32.totalorder %v5393, %v5394
    %v5396 = vsel %vm5395, %v5389, 0.0
    %5397 = vst [vmem:[#allocation13] sm:$0xff] %v5396
    // Predicated region
    $region54: #{tpu_custom_call.1} parent=1 // pred_check
      %p5398 = pneg %p88
    $region55: #{tpu_custom_call.1} parent=1 // pred_check_branch
      %5400 = sbr.rel (%p5398) target = $region57
    $region56: #{tpu_custom_call.1} parent=1 // pred_region
      %v5401 = vld [vmem:[#allocation2] sm:$0x1]
      %v5402 = vld [vmem:[#allocation2 + $0x1] sm:$0x1]
      %5403 = vst [vmem:[#allocation14] sm:$0x1] %v5401
      %5404 = vst [vmem:[#allocation14 + $0x1] sm:$0x1] %v5402
    $region57: #{tpu_custom_call.1} parent=1 // pred_fallthru
      _
    // Predicated region
    $region58: #{tpu_custom_call.1} parent=1 // pred_check
      _
    $region59: #{tpu_custom_call.1} parent=1 // pred_check_branch
      %5406 = sbr.rel (0) target = $region61
    $region60: #{tpu_custom_call.1} parent=1 // pred_region
      %s5408 = ssub.s32 128, 128
      %5409 = vsyncadd [#allocation7], %s5408
      %s5411 = sshll.u32 [#allocation13], 4
      %s5412 = int_to_ptr.vmem [resolvable:$true] %s5411
      %5414 = dma.vmem_to_hbm [thread:$0]  %s5412, 128, %s9, [#allocation7]
    $region61: #{tpu_custom_call.1} parent=1 // pred_fallthru
      _
    // Predicated region
    $region62: #{tpu_custom_call.1} parent=1 // pred_check
      _
    $region63: #{tpu_custom_call.1} parent=1 // pred_check_branch
      %5416 = sbr.rel (0) target = $region65
    $region64: #{tpu_custom_call.1} parent=1 // pred_region
      %s5418 = ssub.s32 32, 32
      %5419 = vsyncadd [#allocation15], %s5418
      %s5420 = sshll.u32 [#allocation14], 4
      %s5421 = int_to_ptr.vmem [resolvable:$true] %s5420
      %5426 = dma.vmem_to_hbm [thread:$0]  %s5421, 32, %s10, [#allocation15], 16, 16, 1
    $region65: #{tpu_custom_call.1} parent=1 // pred_fallthru
      _
    // Predicated region
    $region66: #{tpu_custom_call.1} parent=1 // pred_check
      _
    $region67: #{tpu_custom_call.1} parent=1 // pred_check_branch
      %5428 = sbr.rel (0) target = $region69
    $region68: #{tpu_custom_call.1} parent=1 // pred_region
      %5429 = dma.done [#allocation7], 128
    $region69: #{tpu_custom_call.1} parent=1 // pred_fallthru
      _
    // Predicated region
    $region70: #{tpu_custom_call.1} parent=1 // pred_check
      _
    $region71: #{tpu_custom_call.1} parent=1 // pred_check_branch
      %5431 = sbr.rel (0) target = $region73
    $region72: #{tpu_custom_call.1} parent=1 // pred_region
      %5432 = dma.done [#allocation15], 32
    $region73: #{tpu_custom_call.1} parent=1 // pred_fallthru
      _
    %5433 = vsyncpa [#allocation6], 1
    %5434 = vsyncpa [#allocation9], 1
    %5435 = vsyncpa [#allocation12], 1
    %5436 = vsyncpa [#allocation7], 1
    %5437 = vsyncpa [#allocation15], 1

</llo_original>
